<compile_context>
chip_gen: v7x
topology: tpu7x:2x2x1
jax: 0.10.0
libtpu: 0.0.40
codegen_flags: <defaults>
</compile_context>

<pallas_src>
import jax
import jax.numpy as jnp
from jax import lax
from jax.experimental import pallas as pl
from jax.experimental.pallas import tpu as pltpu

BN_EPS = 1e-5

# (cin, cout, kernel, has_bn); cin=None means hidden_dim
LAYER_CFG = [
    (None, 24, 7, True),
    (24, 12, 2, True),
    (12, 8, 2, True),
    (8, 6, 2, True),
    (6, 3, 2, True),
    (3, 3, 2, False),
]


# ---------------------------------------------------------------------------
# Pallas kernels
# ---------------------------------------------------------------------------
def _deconv_relu_stats_kernel(x_ref, w_ref, b_ref, o_ref, ssum_ref, ssq_ref):
    # x: (cin, tM), w: (cout*k*k, cin), b: (cout*k*k, 1)
    y = jnp.dot(w_ref[...], x_ref[...], preferred_element_type=jnp.float32)
    y = jnp.maximum(y + b_ref[...], 0.0)
    o_ref[...] = y
    # Per-tile partial BatchNorm statistics of the post-ReLU activations
    # (per weight-row, i.e. per (cout, kh, kw) group); reduced to per-channel
    # stats by a tiny XLA reduction in the wrapper so the grid stays "parallel".
    ssum_ref[...] = jnp.sum(y, axis=1, keepdims=True)[None]
    ssq_ref[...] = jnp.sum(y * y, axis=1, keepdims=True)[None]


def _deconv_relu_kernel(x_ref, w_ref, b_ref, o_ref):
    y = jnp.dot(w_ref[...], x_ref[...], preferred_element_type=jnp.float32)
    o_ref[...] = jnp.maximum(y + b_ref[...], 0.0)


# ---------------------------------------------------------------------------
# pallas_call wrapper
# ---------------------------------------------------------------------------
def _pick_tile_cols(m, cap=8192):
    """Column tile: largest multiple-of-128 divisor of m that is <= cap and < m
    (so the grid has >=2 steps and both v7x TensorCores get work on the layers
    that matter).  Falls back to a single full-width block when m is not
    128-aligned (only the tiny early layers / small batch hit this).  The cap
    keeps double-buffered in+out tiles well under the scoped-VMEM limit."""
    if m % 128 != 0:
        # TODO(synk): pad-to-128 + tail masking for very large non-aligned M.
        return m
    d = m // 128
    best = 1
    for t in range(1, min(d, cap // 128) + 1):
        if d % t == 0 and 128 * t < m:
            best = t
    return 128 * best


def _deconv_relu_call(x, w, b, *, with_stats):
    cin, m_cols = x.shape
    n = w.shape[0]
    tm = _pick_tile_cols(m_cols)
    grid = (m_cols // tm,)
    in_specs = [
        pl.BlockSpec((cin, tm), lambda i: (0, i)),
        pl.BlockSpec((n, cin), lambda i: (0, 0)),   # resident: same block every step
        pl.BlockSpec((n, 1), lambda i: (0, 0)),
    ]
    if with_stats:
        out_shape = (
            jax.ShapeDtypeStruct((n, m_cols), jnp.float32),
            jax.ShapeDtypeStruct((grid[0], n, 1), jnp.float32),
            jax.ShapeDtypeStruct((grid[0], n, 1), jnp.float32),
        )
        out_specs = (
            pl.BlockSpec((n, tm), lambda i: (0, i)),
            pl.BlockSpec((1, n, 1), lambda i: (i, 0, 0)),
            pl.BlockSpec((1, n, 1), lambda i: (i, 0, 0)),
        )
        kernel = _deconv_relu_stats_kernel
    else:
        out_shape = jax.ShapeDtypeStruct((n, m_cols), jnp.float32)
        out_specs = pl.BlockSpec((n, tm), lambda i: (0, i))
        kernel = _deconv_relu_kernel
    return pl.pallas_call(
        kernel,
        out_shape=out_shape,
        grid=grid,
        in_specs=in_specs,
        out_specs=out_specs,
        compiler_params=pltpu.CompilerParams(dimension_semantics=("parallel",)),
    )(x, w, b)


# ---------------------------------------------------------------------------
# Parameter init (deterministic, synthetic)
# ---------------------------------------------------------------------------
def init_decoder_params(key, hidden_dim):
    params = []
    for cin, cout, k, _has_bn in LAYER_CFG:
        cin = hidden_dim if cin is None else cin
        key, kw, kb, kg, kbt = jax.random.split(key, 5)
        fan = cin * k * k
        # PyTorch ConvTranspose2d weight layout: (Cin, Cout, kH, kW)
        w4d = jax.random.normal(kw, (cin, cout, k, k), jnp.float32) / jnp.sqrt(fan)
        bias = 0.1 * jax.random.normal(kb, (cout,), jnp.float32)
        gamma = 1.0 + 0.1 * jax.random.normal(kg, (cout,), jnp.float32)
        beta = 0.1 * jax.random.normal(kbt, (cout,), jnp.float32)
        params.append(
            {
                "w4d": w4d,
                "bias": bias,
                # Rows ordered (cout, kh, kw) so the inter-layer depth-to-space is
                # a free row-major reshape (no transposes between layers).
                "w_nk": jnp.transpose(w4d, (1, 2, 3, 0)).reshape(cout * k * k, cin),
                "b_col": jnp.repeat(bias, k * k)[:, None],
                "gamma": gamma,
                "beta": beta,
            }
        )
    return params


# ---------------------------------------------------------------------------
# Full decoder forward (Pallas)
# ---------------------------------------------------------------------------
def decoder_forward(params, x, hidden_dim):
    xr = x.reshape(-1, hidden_dim).astype(jnp.float32)
    batch = xr.shape[0]
    cur = xr.T                                   # (Cin, sites) layout
    a_scale = None                               # previous layer's folded BN scale
    b_shift = None                               # previous layer's folded BN shift
    for p, (_cin, cout, k, has_bn) in zip(params, LAYER_CFG):
        w = p["w_nk"]                            # (cout*k*k, cin)
        bias = p["b_col"]                        # (cout*k*k, 1)
        if a_scale is not None:
            # Exact fold of the previous layer's training-mode BatchNorm affine:
            #   deconv(a*z + b) == (W * a) @ z + (W @ b + bias)
            # (tiny XLA ops on the weight tensor, done once per layer, not per tile).
            bias = bias + w @ b_shift
            w = w * a_scale[None, :]
        m_cols = cur.shape[1]
        if has_bn:
            cur, psum, psq = _deconv_relu_call(cur, w, bias, with_stats=True)
            cnt = float(m_cols * k * k)          # elements per channel
            ch_sum = psum.sum(axis=(0, 2)).reshape(cout, k * k).sum(axis=1)
            ch_sq = psq.sum(axis=(0, 2)).reshape(cout, k * k).sum(axis=1)
            mean = ch_sum / cnt
            var = jnp.maximum(ch_sq / cnt - mean * mean, 0.0)   # biased variance
            a_scale = p["gamma"] * lax.rsqrt(var + BN_EPS)
            b_shift = (p["beta"] - mean * a_scale)[:, None]
            # TODO(synk): BatchNorm running_mean / running_var buffer updates
            # (training-time side effect) are not tracked; forward output unaffected.
        else:
            cur = _deconv_relu_call(cur, w, bias, with_stats=False)
            a_scale = None
            b_shift = None
        # Depth-to-space between layers is a free row-major reshape in this layout.
        cur = cur.reshape(cout, k * k * m_cols)

    # cur: (3, 1024*49*B).  Column digits, most->least significant:
    #   (p6, p5, p4, p3, p2, p1, b)  with  p_i = kh_i * k_i + kw_i.
    # Final spatial index: h = 32*kh1 + 16*kh2 + 8*kh3 + 4*kh4 + 2*kh5 + kh6
    # (same for w).  Un-interleave once, with four rank<=8 transpose stages.
    n3 = 3 * batch
    t = cur.reshape(3, 4, 4, 4, 4, 4, 49, batch)      # c,p6,p5,p4,p3,p2,p1,b
    t = jnp.transpose(t, (7, 0, 6, 5, 4, 3, 2, 1))    # b,c,p1,p2,p3,p4,p5,p6
    t = t.reshape(n3, 7, 7, 2, 2, 2, 2, 64)           # N,kh1,kw1,kh2,kw2,kh3,kw3,(p4 p5 p6)
    t = jnp.transpose(t, (0, 1, 3, 5, 2, 4, 6, 7))    # N,kh1,kh2,kh3,kw1,kw2,kw3,rest
    t = t.reshape(n3, 28, 28, 2, 2, 2, 2, 4)          # N,H3,W3,kh4,kw4,kh5,kw5,p6
    t = jnp.transpose(t, (0, 1, 3, 5, 2, 4, 6, 7))    # N,H3,kh4,kh5,W3,kw4,kw5,p6
    t = t.reshape(n3, 112, 112, 2, 2)                 # N,H5,W5,kh6,kw6
    t = jnp.transpose(t, (0, 1, 3, 2, 4))             # N,H5,kh6,W5,kw6
    return t.reshape(batch, 3, 224, 224)              # NCHW, like the PyTorch module


# ---------------------------------------------------------------------------
# Plain-XLA reference of the same PyTorch forward (for the self-check)
# ---------------------------------------------------------------------------
def reference_forward(params, x, hidden_dim):
    h = x.reshape(-1, hidden_dim).astype(jnp.float32)
    h = h.reshape(h.shape[0], hidden_dim, 1, 1)       # NCHW
    for p, (_cin, cout, k, has_bn) in zip(params, LAYER_CFG):
        w = p["w4d"]                                  # (cin, cout, k, k)
        b_, _c, hh, ww = h.shape
        # Non-overlapping ConvTranspose2d:
        #   out[b, co, i*k+kh, j*k+kw] = sum_ci h[b, ci, i, j] * w[ci, co, kh, kw]
        y = jnp.einsum("bcij,cokl->boikjl", h, w, precision=lax.Precision.HIGHEST)
        y = y.reshape(b_, cout, hh * k, ww * k) + p["bias"][None, :, None, None]
        y = jnp.maximum(y, 0.0)
        if has_bn:
            mean = jnp.mean(y, axis=(0, 2, 3), keepdims=True)
            var = jnp.mean(jnp.square(y - mean), axis=(0, 2, 3), keepdims=True)
            y = (y - mean) * lax.rsqrt(var + BN_EPS)
            y = y * p["gamma"][None, :, None, None] + p["beta"][None, :, None, None]
        h = y
    return h


if __name__ == "__main__":
    hidden_dim = 32
    batch = 2

    key = jax.random.PRNGKey(0)
    key, xk = jax.random.split(key)
    x = jax.random.normal(xk, (batch, hidden_dim), jnp.float32)
    params = init_decoder_params(key, hidden_dim)

    fwd = jax.jit(decoder_forward, static_argnums=2)
    out = jax.block_until_ready(fwd(params, x, hidden_dim))

    assert out.shape == (batch, 3, 224, 224), out.shape
    assert out.dtype == jnp.float32
    assert bool(jnp.all(out >= 0.0))          # final layer ends with ReLU
    assert bool(jnp.all(jnp.isfinite(out)))

    # Numerical check against the plain-XLA reference.  Bounds are loose enough to
    # absorb MXU pass rounding but far below the O(1) mismatch any layout /
    # BN-folding mistake would produce.
    ref = jax.block_until_ready(
        jax.jit(reference_forward, static_argnums=2)(params, x, hidden_dim))
    max_err = float(jnp.max(jnp.abs(out - ref)))
    mean_err = float(jnp.mean(jnp.abs(out - ref)))
    assert max_err < 1.5e-1 and mean_err < 3e-2, (max_err, mean_err)

    print("KERNEL_OK")
</pallas_src>

<mosaic_0001>
module attributes {stable_mosaic.version = 11 : i64} {
  func.func @_deconv_relu_stats_kernel(%arg0: i32, %arg1: memref<32x2xf32, #tpu.memory_space<vmem>>, %arg2: memref<1176x32xf32, #tpu.memory_space<vmem>>, %arg3: memref<1176x1xf32, #tpu.memory_space<vmem>>, %arg4: memref<1176x2xf32, #tpu.memory_space<vmem>>, %arg5: memref<1x1176x1xf32, #tpu.memory_space<vmem>>, %arg6: memref<1x1176x1xf32, #tpu.memory_space<vmem>>) attributes {dimension_semantics = [#tpu.dimension_semantics<parallel>], iteration_bounds = array<i64: 1>, scalar_prefetch = 0 : i64, scratch_operands = 0 : i64, tpu.core_type = #tpu.core_type<tc>, window_params = [{transform_indices = @transform_0, window_bounds = array<i64: 32, 2>}, {pipeline_mode = #tpu.pipeline_mode<synchronous>, transform_indices = @transform_1, window_bounds = array<i64: 1176, 32>}, {pipeline_mode = #tpu.pipeline_mode<synchronous>, transform_indices = @transform_2, window_bounds = array<i64: 1176, 1>}, {transform_indices = @transform_3, window_bounds = array<i64: 1176, 2>}, {transform_indices = @transform_4, window_bounds = array<i64: 1, 1176, 1>}, {transform_indices = @transform_5, window_bounds = array<i64: 1, 1176, 1>}]} {
    %c0 = arith.constant 0 : index
    %c0_0 = arith.constant 0 : index
    %0 = vector.load %arg2[%c0, %c0_0] : memref<1176x32xf32, #tpu.memory_space<vmem>>, vector<1176x32xf32>
    %c0_1 = arith.constant 0 : index
    %c0_2 = arith.constant 0 : index
    %1 = vector.load %arg1[%c0_1, %c0_2] : memref<32x2xf32, #tpu.memory_space<vmem>>, vector<32x2xf32>
    %cst = arith.constant dense<0.000000e+00> : vector<1176x2xf32>
    %2 = tpu.matmul %0, %1, %cst {dimension_numbers = #tpu.dot_dimension_numbers<[1], [0], [0], [1], [0, 0, 1, 1], [], []>} : vector<1176x32xf32>, vector<32x2xf32>, vector<1176x2xf32> -> vector<1176x2xf32>
    %c0_3 = arith.constant 0 : index
    %c0_4 = arith.constant 0 : index
    %3 = vector.load %arg3[%c0_3, %c0_4] : memref<1176x1xf32, #tpu.memory_space<vmem>>, vector<1176x1xf32>
    %4 = vector.broadcast %3 : vector<1176x1xf32> to vector<1176x2xf32>
    %5 = arith.addf %2, %4 : vector<1176x2xf32>
    %cst_5 = arith.constant 0.000000e+00 : f32
    %6 = vector.broadcast %cst_5 : f32 to vector<1176x2xf32>
    %7 = arith.maximumf %5, %6 : vector<1176x2xf32>
    %c0_6 = arith.constant 0 : index
    %c0_7 = arith.constant 0 : index
    %8 = vector.load %arg4[%c0_6, %c0_7] : memref<1176x2xf32, #tpu.memory_space<vmem>>, vector<1176x2xf32>
    tpu.vector_store %arg4[%c0_6, %c0_7], %7 {strides = array<i32>} : memref<1176x2xf32, #tpu.memory_space<vmem>>, vector<1176x2xf32>,
    %cst_8 = arith.constant dense<0.000000e+00> : vector<1176xf32>
    %9 = vector.multi_reduction <add>, %7, %cst_8 [1] : vector<1176x2xf32> to vector<1176xf32>
    %10 = vector.shape_cast %9 : vector<1176xf32> to vector<1176x1xf32>
    %11 = vector.shape_cast %10 : vector<1176x1xf32> to vector<1x1176x1xf32>
    %c0_9 = arith.constant 0 : index
    %c0_10 = arith.constant 0 : index
    %c0_11 = arith.constant 0 : index
    %12 = vector.load %arg5[%c0_9, %c0_10, %c0_11] : memref<1x1176x1xf32, #tpu.memory_space<vmem>>, vector<1x1176x1xf32>
    tpu.vector_store %arg5[%c0_9, %c0_10, %c0_11], %11 {strides = array<i32>} : memref<1x1176x1xf32, #tpu.memory_space<vmem>>, vector<1x1176x1xf32>,
    %13 = arith.mulf %7, %7 : vector<1176x2xf32>
    %cst_12 = arith.constant dense<0.000000e+00> : vector<1176xf32>
    %14 = vector.multi_reduction <add>, %13, %cst_12 [1] : vector<1176x2xf32> to vector<1176xf32>
    %15 = vector.shape_cast %14 : vector<1176xf32> to vector<1176x1xf32>
    %16 = vector.shape_cast %15 : vector<1176x1xf32> to vector<1x1176x1xf32>
    %c0_13 = arith.constant 0 : index
    %c0_14 = arith.constant 0 : index
    %c0_15 = arith.constant 0 : index
    %17 = vector.load %arg6[%c0_13, %c0_14, %c0_15] : memref<1x1176x1xf32, #tpu.memory_space<vmem>>, vector<1x1176x1xf32>
    tpu.vector_store %arg6[%c0_13, %c0_14, %c0_15], %16 {strides = array<i32>} : memref<1x1176x1xf32, #tpu.memory_space<vmem>>, vector<1x1176x1xf32>,
    return
  }
  func.func @transform_0(%arg0: i32) -> (i32, i32) {
    %c0_i32 = arith.constant 0 : i32
    %c0_i32_0 = arith.constant 0 : i32
    return %c0_i32, %arg0 : i32, i32
  }
  func.func @transform_1(%arg0: i32) -> (i32, i32) {
    %c0_i32 = arith.constant 0 : i32
    %c0_i32_0 = arith.constant 0 : i32
    %c0_i32_1 = arith.constant 0 : i32
    return %c0_i32, %c0_i32_0 : i32, i32
  }
  func.func @transform_2(%arg0: i32) -> (i32, i32) {
    %c0_i32 = arith.constant 0 : i32
    %c0_i32_0 = arith.constant 0 : i32
    %c0_i32_1 = arith.constant 0 : i32
    return %c0_i32, %c0_i32_0 : i32, i32
  }
  func.func @transform_3(%arg0: i32) -> (i32, i32) {
    %c0_i32 = arith.constant 0 : i32
    %c0_i32_0 = arith.constant 0 : i32
    return %c0_i32, %arg0 : i32, i32
  }
  func.func @transform_4(%arg0: i32) -> (i32, i32, i32) {
    %c0_i32 = arith.constant 0 : i32
    %c0_i32_0 = arith.constant 0 : i32
    %c0_i32_1 = arith.constant 0 : i32
    return %arg0, %c0_i32, %c0_i32_0 : i32, i32, i32
  }
  func.func @transform_5(%arg0: i32) -> (i32, i32, i32) {
    %c0_i32 = arith.constant 0 : i32
    %c0_i32_0 = arith.constant 0 : i32
    %c0_i32_1 = arith.constant 0 : i32
    return %arg0, %c0_i32, %c0_i32_0 : i32, i32, i32
  }
}

module attributes {stable_mosaic.version = 11 : i64} {
  func.func @_deconv_relu_stats_kernel(%arg0: i32, %arg1: memref<24x98xf32, #tpu.memory_space<vmem>>, %arg2: memref<48x24xf32, #tpu.memory_space<vmem>>, %arg3: memref<48x1xf32, #tpu.memory_space<vmem>>, %arg4: memref<48x98xf32, #tpu.memory_space<vmem>>, %arg5: memref<1x48x1xf32, #tpu.memory_space<vmem>>, %arg6: memref<1x48x1xf32, #tpu.memory_space<vmem>>) attributes {dimension_semantics = [#tpu.dimension_semantics<parallel>], iteration_bounds = array<i64: 1>, scalar_prefetch = 0 : i64, scratch_operands = 0 : i64, tpu.core_type = #tpu.core_type<tc>, window_params = [{transform_indices = @transform_0, window_bounds = array<i64: 24, 98>}, {pipeline_mode = #tpu.pipeline_mode<synchronous>, transform_indices = @transform_1, window_bounds = array<i64: 48, 24>}, {pipeline_mode = #tpu.pipeline_mode<synchronous>, transform_indices = @transform_2, window_bounds = array<i64: 48, 1>}, {transform_indices = @transform_3, window_bounds = array<i64: 48, 98>}, {transform_indices = @transform_4, window_bounds = array<i64: 1, 48, 1>}, {transform_indices = @transform_5, window_bounds = array<i64: 1, 48, 1>}]} {
    %c0 = arith.constant 0 : index
    %c0_0 = arith.constant 0 : index
    %0 = vector.load %arg2[%c0, %c0_0] : memref<48x24xf32, #tpu.memory_space<vmem>>, vector<48x24xf32>
    %c0_1 = arith.constant 0 : index
    %c0_2 = arith.constant 0 : index
    %1 = vector.load %arg1[%c0_1, %c0_2] : memref<24x98xf32, #tpu.memory_space<vmem>>, vector<24x98xf32>
    %cst = arith.constant dense<0.000000e+00> : vector<48x98xf32>
    %2 = tpu.matmul %0, %1, %cst {dimension_numbers = #tpu.dot_dimension_numbers<[1], [0], [0], [1], [0, 0, 1, 1], [], []>} : vector<48x24xf32>, vector<24x98xf32>, vector<48x98xf32> -> vector<48x98xf32>
    %c0_3 = arith.constant 0 : index
    %c0_4 = arith.constant 0 : index
    %3 = vector.load %arg3[%c0_3, %c0_4] : memref<48x1xf32, #tpu.memory_space<vmem>>, vector<48x1xf32>
    %4 = vector.broadcast %3 : vector<48x1xf32> to vector<48x98xf32>
    %5 = arith.addf %2, %4 : vector<48x98xf32>
    %cst_5 = arith.constant 0.000000e+00 : f32
    %6 = vector.broadcast %cst_5 : f32 to vector<48x98xf32>
    %7 = arith.maximumf %5, %6 : vector<48x98xf32>
    %c0_6 = arith.constant 0 : index
    %c0_7 = arith.constant 0 : index
    %8 = vector.load %arg4[%c0_6, %c0_7] : memref<48x98xf32, #tpu.memory_space<vmem>>, vector<48x98xf32>
    tpu.vector_store %arg4[%c0_6, %c0_7], %7 {strides = array<i32>} : memref<48x98xf32, #tpu.memory_space<vmem>>, vector<48x98xf32>,
    %cst_8 = arith.constant dense<0.000000e+00> : vector<48xf32>
    %9 = vector.multi_reduction <add>, %7, %cst_8 [1] : vector<48x98xf32> to vector<48xf32>
    %10 = vector.shape_cast %9 : vector<48xf32> to vector<48x1xf32>
    %11 = vector.shape_cast %10 : vector<48x1xf32> to vector<1x48x1xf32>
    %c0_9 = arith.constant 0 : index
    %c0_10 = arith.constant 0 : index
    %c0_11 = arith.constant 0 : index
    %12 = vector.load %arg5[%c0_9, %c0_10, %c0_11] : memref<1x48x1xf32, #tpu.memory_space<vmem>>, vector<1x48x1xf32>
    tpu.vector_store %arg5[%c0_9, %c0_10, %c0_11], %11 {strides = array<i32>} : memref<1x48x1xf32, #tpu.memory_space<vmem>>, vector<1x48x1xf32>,
    %13 = arith.mulf %7, %7 : vector<48x98xf32>
    %cst_12 = arith.constant dense<0.000000e+00> : vector<48xf32>
    %14 = vector.multi_reduction <add>, %13, %cst_12 [1] : vector<48x98xf32> to vector<48xf32>
    %15 = vector.shape_cast %14 : vector<48xf32> to vector<48x1xf32>
    %16 = vector.shape_cast %15 : vector<48x1xf32> to vector<1x48x1xf32>
    %c0_13 = arith.constant 0 : index
    %c0_14 = arith.constant 0 : index
    %c0_15 = arith.constant 0 : index
    %17 = vector.load %arg6[%c0_13, %c0_14, %c0_15] : memref<1x48x1xf32, #tpu.memory_space<vmem>>, vector<1x48x1xf32>
    tpu.vector_store %arg6[%c0_13, %c0_14, %c0_15], %16 {strides = array<i32>} : memref<1x48x1xf32, #tpu.memory_space<vmem>>, vector<1x48x1xf32>,
    return
  }
  func.func @transform_0(%arg0: i32) -> (i32, i32) {
    %c0_i32 = arith.constant 0 : i32
    %c0_i32_0 = arith.constant 0 : i32
    return %c0_i32, %arg0 : i32, i32
  }
  func.func @transform_1(%arg0: i32) -> (i32, i32) {
    %c0_i32 = arith.constant 0 : i32
    %c0_i32_0 = arith.constant 0 : i32
    %c0_i32_1 = arith.constant 0 : i32
    return %c0_i32, %c0_i32_0 : i32, i32
  }
  func.func @transform_2(%arg0: i32) -> (i32, i32) {
    %c0_i32 = arith.constant 0 : i32
    %c0_i32_0 = arith.constant 0 : i32
    %c0_i32_1 = arith.constant 0 : i32
    return %c0_i32, %c0_i32_0 : i32, i32
  }
  func.func @transform_3(%arg0: i32) -> (i32, i32) {
    %c0_i32 = arith.constant 0 : i32
    %c0_i32_0 = arith.constant 0 : i32
    return %c0_i32, %arg0 : i32, i32
  }
  func.func @transform_4(%arg0: i32) -> (i32, i32, i32) {
    %c0_i32 = arith.constant 0 : i32
    %c0_i32_0 = arith.constant 0 : i32
    %c0_i32_1 = arith.constant 0 : i32
    return %arg0, %c0_i32, %c0_i32_0 : i32, i32, i32
  }
  func.func @transform_5(%arg0: i32) -> (i32, i32, i32) {
    %c0_i32 = arith.constant 0 : i32
    %c0_i32_0 = arith.constant 0 : i32
    %c0_i32_1 = arith.constant 0 : i32
    return %arg0, %c0_i32, %c0_i32_0 : i32, i32, i32
  }
}

module attributes {stable_mosaic.version = 11 : i64} {
  func.func @_deconv_relu_stats_kernel(%arg0: i32, %arg1: memref<12x392xf32, #tpu.memory_space<vmem>>, %arg2: memref<32x12xf32, #tpu.memory_space<vmem>>, %arg3: memref<32x1xf32, #tpu.memory_space<vmem>>, %arg4: memref<32x392xf32, #tpu.memory_space<vmem>>, %arg5: memref<1x32x1xf32, #tpu.memory_space<vmem>>, %arg6: memref<1x32x1xf32, #tpu.memory_space<vmem>>) attributes {dimension_semantics = [#tpu.dimension_semantics<parallel>], iteration_bounds = array<i64: 1>, scalar_prefetch = 0 : i64, scratch_operands = 0 : i64, tpu.core_type = #tpu.core_type<tc>, window_params = [{transform_indices = @transform_0, window_bounds = array<i64: 12, 392>}, {pipeline_mode = #tpu.pipeline_mode<synchronous>, transform_indices = @transform_1, window_bounds = array<i64: 32, 12>}, {pipeline_mode = #tpu.pipeline_mode<synchronous>, transform_indices = @transform_2, window_bounds = array<i64: 32, 1>}, {transform_indices = @transform_3, window_bounds = array<i64: 32, 392>}, {transform_indices = @transform_4, window_bounds = array<i64: 1, 32, 1>}, {transform_indices = @transform_5, window_bounds = array<i64: 1, 32, 1>}]} {
    %c0 = arith.constant 0 : index
    %c0_0 = arith.constant 0 : index
    %0 = vector.load %arg2[%c0, %c0_0] : memref<32x12xf32, #tpu.memory_space<vmem>>, vector<32x12xf32>
    %c0_1 = arith.constant 0 : index
    %c0_2 = arith.constant 0 : index
    %1 = vector.load %arg1[%c0_1, %c0_2] : memref<12x392xf32, #tpu.memory_space<vmem>>, vector<12x392xf32>
    %cst = arith.constant dense<0.000000e+00> : vector<32x392xf32>
    %2 = tpu.matmul %0, %1, %cst {dimension_numbers = #tpu.dot_dimension_numbers<[1], [0], [0], [1], [0, 0, 1, 1], [], []>} : vector<32x12xf32>, vector<12x392xf32>, vector<32x392xf32> -> vector<32x392xf32>
    %c0_3 = arith.constant 0 : index
    %c0_4 = arith.constant 0 : index
    %3 = vector.load %arg3[%c0_3, %c0_4] : memref<32x1xf32, #tpu.memory_space<vmem>>, vector<32x1xf32>
    %4 = vector.broadcast %3 : vector<32x1xf32> to vector<32x392xf32>
    %5 = arith.addf %2, %4 : vector<32x392xf32>
    %cst_5 = arith.constant 0.000000e+00 : f32
    %6 = vector.broadcast %cst_5 : f32 to vector<32x392xf32>
    %7 = arith.maximumf %5, %6 : vector<32x392xf32>
    %c0_6 = arith.constant 0 : index
    %c0_7 = arith.constant 0 : index
    %8 = vector.load %arg4[%c0_6, %c0_7] : memref<32x392xf32, #tpu.memory_space<vmem>>, vector<32x392xf32>
    tpu.vector_store %arg4[%c0_6, %c0_7], %7 {strides = array<i32>} : memref<32x392xf32, #tpu.memory_space<vmem>>, vector<32x392xf32>,
    %cst_8 = arith.constant dense<0.000000e+00> : vector<32xf32>
    %9 = vector.multi_reduction <add>, %7, %cst_8 [1] : vector<32x392xf32> to vector<32xf32>
    %10 = vector.shape_cast %9 : vector<32xf32> to vector<32x1xf32>
    %11 = vector.shape_cast %10 : vector<32x1xf32> to vector<1x32x1xf32>
    %c0_9 = arith.constant 0 : index
    %c0_10 = arith.constant 0 : index
    %c0_11 = arith.constant 0 : index
    %12 = vector.load %arg5[%c0_9, %c0_10, %c0_11] : memref<1x32x1xf32, #tpu.memory_space<vmem>>, vector<1x32x1xf32>
    tpu.vector_store %arg5[%c0_9, %c0_10, %c0_11], %11 {strides = array<i32>} : memref<1x32x1xf32, #tpu.memory_space<vmem>>, vector<1x32x1xf32>,
    %13 = arith.mulf %7, %7 : vector<32x392xf32>
    %cst_12 = arith.constant dense<0.000000e+00> : vector<32xf32>
    %14 = vector.multi_reduction <add>, %13, %cst_12 [1] : vector<32x392xf32> to vector<32xf32>
    %15 = vector.shape_cast %14 : vector<32xf32> to vector<32x1xf32>
    %16 = vector.shape_cast %15 : vector<32x1xf32> to vector<1x32x1xf32>
    %c0_13 = arith.constant 0 : index
    %c0_14 = arith.constant 0 : index
    %c0_15 = arith.constant 0 : index
    %17 = vector.load %arg6[%c0_13, %c0_14, %c0_15] : memref<1x32x1xf32, #tpu.memory_space<vmem>>, vector<1x32x1xf32>
    tpu.vector_store %arg6[%c0_13, %c0_14, %c0_15], %16 {strides = array<i32>} : memref<1x32x1xf32, #tpu.memory_space<vmem>>, vector<1x32x1xf32>,
    return
  }
  func.func @transform_0(%arg0: i32) -> (i32, i32) {
    %c0_i32 = arith.constant 0 : i32
    %c0_i32_0 = arith.constant 0 : i32
    return %c0_i32, %arg0 : i32, i32
  }
  func.func @transform_1(%arg0: i32) -> (i32, i32) {
    %c0_i32 = arith.constant 0 : i32
    %c0_i32_0 = arith.constant 0 : i32
    %c0_i32_1 = arith.constant 0 : i32
    return %c0_i32, %c0_i32_0 : i32, i32
  }
  func.func @transform_2(%arg0: i32) -> (i32, i32) {
    %c0_i32 = arith.constant 0 : i32
    %c0_i32_0 = arith.constant 0 : i32
    %c0_i32_1 = arith.constant 0 : i32
    return %c0_i32, %c0_i32_0 : i32, i32
  }
  func.func @transform_3(%arg0: i32) -> (i32, i32) {
    %c0_i32 = arith.constant 0 : i32
    %c0_i32_0 = arith.constant 0 : i32
    return %c0_i32, %arg0 : i32, i32
  }
  func.func @transform_4(%arg0: i32) -> (i32, i32, i32) {
    %c0_i32 = arith.constant 0 : i32
    %c0_i32_0 = arith.constant 0 : i32
    %c0_i32_1 = arith.constant 0 : i32
    return %arg0, %c0_i32, %c0_i32_0 : i32, i32, i32
  }
  func.func @transform_5(%arg0: i32) -> (i32, i32, i32) {
    %c0_i32 = arith.constant 0 : i32
    %c0_i32_0 = arith.constant 0 : i32
    %c0_i32_1 = arith.constant 0 : i32
    return %arg0, %c0_i32, %c0_i32_0 : i32, i32, i32
  }
}

module attributes {stable_mosaic.version = 11 : i64} {
  func.func @_deconv_relu_stats_kernel(%arg0: i32, %arg1: memref<8x1568xf32, #tpu.memory_space<vmem>>, %arg2: memref<24x8xf32, #tpu.memory_space<vmem>>, %arg3: memref<24x1xf32, #tpu.memory_space<vmem>>, %arg4: memref<24x1568xf32, #tpu.memory_space<vmem>>, %arg5: memref<1x24x1xf32, #tpu.memory_space<vmem>>, %arg6: memref<1x24x1xf32, #tpu.memory_space<vmem>>) attributes {dimension_semantics = [#tpu.dimension_semantics<parallel>], iteration_bounds = array<i64: 1>, scalar_prefetch = 0 : i64, scratch_operands = 0 : i64, tpu.core_type = #tpu.core_type<tc>, window_params = [{transform_indices = @transform_0, window_bounds = array<i64: 8, 1568>}, {pipeline_mode = #tpu.pipeline_mode<synchronous>, transform_indices = @transform_1, window_bounds = array<i64: 24, 8>}, {pipeline_mode = #tpu.pipeline_mode<synchronous>, transform_indices = @transform_2, window_bounds = array<i64: 24, 1>}, {transform_indices = @transform_3, window_bounds = array<i64: 24, 1568>}, {transform_indices = @transform_4, window_bounds = array<i64: 1, 24, 1>}, {transform_indices = @transform_5, window_bounds = array<i64: 1, 24, 1>}]} {
    %c0 = arith.constant 0 : index
    %c0_0 = arith.constant 0 : index
    %0 = vector.load %arg2[%c0, %c0_0] : memref<24x8xf32, #tpu.memory_space<vmem>>, vector<24x8xf32>
    %c0_1 = arith.constant 0 : index
    %c0_2 = arith.constant 0 : index
    %1 = vector.load %arg1[%c0_1, %c0_2] : memref<8x1568xf32, #tpu.memory_space<vmem>>, vector<8x1568xf32>
    %cst = arith.constant dense<0.000000e+00> : vector<24x1568xf32>
    %2 = tpu.matmul %0, %1, %cst {dimension_numbers = #tpu.dot_dimension_numbers<[1], [0], [0], [1], [0, 0, 1, 1], [], []>} : vector<24x8xf32>, vector<8x1568xf32>, vector<24x1568xf32> -> vector<24x1568xf32>
    %c0_3 = arith.constant 0 : index
    %c0_4 = arith.constant 0 : index
    %3 = vector.load %arg3[%c0_3, %c0_4] : memref<24x1xf32, #tpu.memory_space<vmem>>, vector<24x1xf32>
    %4 = vector.broadcast %3 : vector<24x1xf32> to vector<24x1568xf32>
    %5 = arith.addf %2, %4 : vector<24x1568xf32>
    %cst_5 = arith.constant 0.000000e+00 : f32
    %6 = vector.broadcast %cst_5 : f32 to vector<24x1568xf32>
    %7 = arith.maximumf %5, %6 : vector<24x1568xf32>
    %c0_6 = arith.constant 0 : index
    %c0_7 = arith.constant 0 : index
    %8 = vector.load %arg4[%c0_6, %c0_7] : memref<24x1568xf32, #tpu.memory_space<vmem>>, vector<24x1568xf32>
    tpu.vector_store %arg4[%c0_6, %c0_7], %7 {strides = array<i32>} : memref<24x1568xf32, #tpu.memory_space<vmem>>, vector<24x1568xf32>,
    %cst_8 = arith.constant dense<0.000000e+00> : vector<24xf32>
    %9 = vector.multi_reduction <add>, %7, %cst_8 [1] : vector<24x1568xf32> to vector<24xf32>
    %10 = vector.shape_cast %9 : vector<24xf32> to vector<24x1xf32>
    %11 = vector.shape_cast %10 : vector<24x1xf32> to vector<1x24x1xf32>
    %c0_9 = arith.constant 0 : index
    %c0_10 = arith.constant 0 : index
    %c0_11 = arith.constant 0 : index
    %12 = vector.load %arg5[%c0_9, %c0_10, %c0_11] : memref<1x24x1xf32, #tpu.memory_space<vmem>>, vector<1x24x1xf32>
    tpu.vector_store %arg5[%c0_9, %c0_10, %c0_11], %11 {strides = array<i32>} : memref<1x24x1xf32, #tpu.memory_space<vmem>>, vector<1x24x1xf32>,
    %13 = arith.mulf %7, %7 : vector<24x1568xf32>
    %cst_12 = arith.constant dense<0.000000e+00> : vector<24xf32>
    %14 = vector.multi_reduction <add>, %13, %cst_12 [1] : vector<24x1568xf32> to vector<24xf32>
    %15 = vector.shape_cast %14 : vector<24xf32> to vector<24x1xf32>
    %16 = vector.shape_cast %15 : vector<24x1xf32> to vector<1x24x1xf32>
    %c0_13 = arith.constant 0 : index
    %c0_14 = arith.constant 0 : index
    %c0_15 = arith.constant 0 : index
    %17 = vector.load %arg6[%c0_13, %c0_14, %c0_15] : memref<1x24x1xf32, #tpu.memory_space<vmem>>, vector<1x24x1xf32>
    tpu.vector_store %arg6[%c0_13, %c0_14, %c0_15], %16 {strides = array<i32>} : memref<1x24x1xf32, #tpu.memory_space<vmem>>, vector<1x24x1xf32>,
    return
  }
  func.func @transform_0(%arg0: i32) -> (i32, i32) {
    %c0_i32 = arith.constant 0 : i32
    %c0_i32_0 = arith.constant 0 : i32
    return %c0_i32, %arg0 : i32, i32
  }
  func.func @transform_1(%arg0: i32) -> (i32, i32) {
    %c0_i32 = arith.constant 0 : i32
    %c0_i32_0 = arith.constant 0 : i32
    %c0_i32_1 = arith.constant 0 : i32
    return %c0_i32, %c0_i32_0 : i32, i32
  }
  func.func @transform_2(%arg0: i32) -> (i32, i32) {
    %c0_i32 = arith.constant 0 : i32
    %c0_i32_0 = arith.constant 0 : i32
    %c0_i32_1 = arith.constant 0 : i32
    return %c0_i32, %c0_i32_0 : i32, i32
  }
  func.func @transform_3(%arg0: i32) -> (i32, i32) {
    %c0_i32 = arith.constant 0 : i32
    %c0_i32_0 = arith.constant 0 : i32
    return %c0_i32, %arg0 : i32, i32
  }
  func.func @transform_4(%arg0: i32) -> (i32, i32, i32) {
    %c0_i32 = arith.constant 0 : i32
    %c0_i32_0 = arith.constant 0 : i32
    %c0_i32_1 = arith.constant 0 : i32
    return %arg0, %c0_i32, %c0_i32_0 : i32, i32, i32
  }
  func.func @transform_5(%arg0: i32) -> (i32, i32, i32) {
    %c0_i32 = arith.constant 0 : i32
    %c0_i32_0 = arith.constant 0 : i32
    %c0_i32_1 = arith.constant 0 : i32
    return %arg0, %c0_i32, %c0_i32_0 : i32, i32, i32
  }
}

module attributes {stable_mosaic.version = 11 : i64} {
  func.func @_deconv_relu_stats_kernel(%arg0: i32, %arg1: memref<6x896xf32, #tpu.memory_space<vmem>>, %arg2: memref<12x6xf32, #tpu.memory_space<vmem>>, %arg3: memref<12x1xf32, #tpu.memory_space<vmem>>, %arg4: memref<12x896xf32, #tpu.memory_space<vmem>>, %arg5: memref<1x12x1xf32, #tpu.memory_space<vmem>>, %arg6: memref<1x12x1xf32, #tpu.memory_space<vmem>>) attributes {dimension_semantics = [#tpu.dimension_semantics<parallel>], iteration_bounds = array<i64: 7>, scalar_prefetch = 0 : i64, scratch_operands = 0 : i64, tpu.core_type = #tpu.core_type<tc>, window_params = [{transform_indices = @transform_0, window_bounds = array<i64: 6, 896>}, {pipeline_mode = #tpu.pipeline_mode<synchronous>, transform_indices = @transform_1, window_bounds = array<i64: 12, 6>}, {pipeline_mode = #tpu.pipeline_mode<synchronous>, transform_indices = @transform_2, window_bounds = array<i64: 12, 1>}, {transform_indices = @transform_3, window_bounds = array<i64: 12, 896>}, {transform_indices = @transform_4, window_bounds = array<i64: 1, 12, 1>}, {transform_indices = @transform_5, window_bounds = array<i64: 1, 12, 1>}]} {
    %c0 = arith.constant 0 : index
    %c0_0 = arith.constant 0 : index
    %0 = vector.load %arg2[%c0, %c0_0] : memref<12x6xf32, #tpu.memory_space<vmem>>, vector<12x6xf32>
    %c0_1 = arith.constant 0 : index
    %c0_2 = arith.constant 0 : index
    %1 = vector.load %arg1[%c0_1, %c0_2] : memref<6x896xf32, #tpu.memory_space<vmem>>, vector<6x896xf32>
    %cst = arith.constant dense<0.000000e+00> : vector<12x896xf32>
    %2 = tpu.matmul %0, %1, %cst {dimension_numbers = #tpu.dot_dimension_numbers<[1], [0], [0], [1], [0, 0, 1, 1], [], []>} : vector<12x6xf32>, vector<6x896xf32>, vector<12x896xf32> -> vector<12x896xf32>
    %c0_3 = arith.constant 0 : index
    %c0_4 = arith.constant 0 : index
    %3 = vector.load %arg3[%c0_3, %c0_4] : memref<12x1xf32, #tpu.memory_space<vmem>>, vector<12x1xf32>
    %4 = vector.broadcast %3 : vector<12x1xf32> to vector<12x896xf32>
    %5 = arith.addf %2, %4 : vector<12x896xf32>
    %cst_5 = arith.constant 0.000000e+00 : f32
    %6 = vector.broadcast %cst_5 : f32 to vector<12x896xf32>
    %7 = arith.maximumf %5, %6 : vector<12x896xf32>
    %c0_6 = arith.constant 0 : index
    %c0_7 = arith.constant 0 : index
    %8 = vector.load %arg4[%c0_6, %c0_7] : memref<12x896xf32, #tpu.memory_space<vmem>>, vector<12x896xf32>
    tpu.vector_store %arg4[%c0_6, %c0_7], %7 {strides = array<i32>} : memref<12x896xf32, #tpu.memory_space<vmem>>, vector<12x896xf32>,
    %cst_8 = arith.constant dense<0.000000e+00> : vector<12xf32>
    %9 = vector.multi_reduction <add>, %7, %cst_8 [1] : vector<12x896xf32> to vector<12xf32>
    %10 = vector.shape_cast %9 : vector<12xf32> to vector<12x1xf32>
    %11 = vector.shape_cast %10 : vector<12x1xf32> to vector<1x12x1xf32>
    %c0_9 = arith.constant 0 : index
    %c0_10 = arith.constant 0 : index
    %c0_11 = arith.constant 0 : index
    %12 = vector.load %arg5[%c0_9, %c0_10, %c0_11] : memref<1x12x1xf32, #tpu.memory_space<vmem>>, vector<1x12x1xf32>
    tpu.vector_store %arg5[%c0_9, %c0_10, %c0_11], %11 {strides = array<i32>} : memref<1x12x1xf32, #tpu.memory_space<vmem>>, vector<1x12x1xf32>,
    %13 = arith.mulf %7, %7 : vector<12x896xf32>
    %cst_12 = arith.constant dense<0.000000e+00> : vector<12xf32>
    %14 = vector.multi_reduction <add>, %13, %cst_12 [1] : vector<12x896xf32> to vector<12xf32>
    %15 = vector.shape_cast %14 : vector<12xf32> to vector<12x1xf32>
    %16 = vector.shape_cast %15 : vector<12x1xf32> to vector<1x12x1xf32>
    %c0_13 = arith.constant 0 : index
    %c0_14 = arith.constant 0 : index
    %c0_15 = arith.constant 0 : index
    %17 = vector.load %arg6[%c0_13, %c0_14, %c0_15] : memref<1x12x1xf32, #tpu.memory_space<vmem>>, vector<1x12x1xf32>
    tpu.vector_store %arg6[%c0_13, %c0_14, %c0_15], %16 {strides = array<i32>} : memref<1x12x1xf32, #tpu.memory_space<vmem>>, vector<1x12x1xf32>,
    return
  }
  func.func @transform_0(%arg0: i32) -> (i32, i32) {
    %c0_i32 = arith.constant 0 : i32
    %c0_i32_0 = arith.constant 0 : i32
    return %c0_i32, %arg0 : i32, i32
  }
  func.func @transform_1(%arg0: i32) -> (i32, i32) {
    %c0_i32 = arith.constant 0 : i32
    %c0_i32_0 = arith.constant 0 : i32
    %c0_i32_1 = arith.constant 0 : i32
    return %c0_i32, %c0_i32_0 : i32, i32
  }
  func.func @transform_2(%arg0: i32) -> (i32, i32) {
    %c0_i32 = arith.constant 0 : i32
    %c0_i32_0 = arith.constant 0 : i32
    %c0_i32_1 = arith.constant 0 : i32
    return %c0_i32, %c0_i32_0 : i32, i32
  }
  func.func @transform_3(%arg0: i32) -> (i32, i32) {
    %c0_i32 = arith.constant 0 : i32
    %c0_i32_0 = arith.constant 0 : i32
    return %c0_i32, %arg0 : i32, i32
  }
  func.func @transform_4(%arg0: i32) -> (i32, i32, i32) {
    %c0_i32 = arith.constant 0 : i32
    %c0_i32_0 = arith.constant 0 : i32
    %c0_i32_1 = arith.constant 0 : i32
    return %arg0, %c0_i32, %c0_i32_0 : i32, i32, i32
  }
  func.func @transform_5(%arg0: i32) -> (i32, i32, i32) {
    %c0_i32 = arith.constant 0 : i32
    %c0_i32_0 = arith.constant 0 : i32
    %c0_i32_1 = arith.constant 0 : i32
    return %arg0, %c0_i32, %c0_i32_0 : i32, i32, i32
  }
}

module attributes {stable_mosaic.version = 11 : i64} {
  func.func @_deconv_relu_kernel(%arg0: i32, %arg1: memref<3x6272xf32, #tpu.memory_space<vmem>>, %arg2: memref<12x3xf32, #tpu.memory_space<vmem>>, %arg3: memref<12x1xf32, #tpu.memory_space<vmem>>, %arg4: memref<12x6272xf32, #tpu.memory_space<vmem>>) attributes {dimension_semantics = [#tpu.dimension_semantics<parallel>], iteration_bounds = array<i64: 4>, scalar_prefetch = 0 : i64, scratch_operands = 0 : i64, tpu.core_type = #tpu.core_type<tc>, window_params = [{transform_indices = @transform_0, window_bounds = array<i64: 3, 6272>}, {pipeline_mode = #tpu.pipeline_mode<synchronous>, transform_indices = @transform_1, window_bounds = array<i64: 12, 3>}, {pipeline_mode = #tpu.pipeline_mode<synchronous>, transform_indices = @transform_2, window_bounds = array<i64: 12, 1>}, {transform_indices = @transform_3, window_bounds = array<i64: 12, 6272>}]} {
    %c0 = arith.constant 0 : index
    %c0_0 = arith.constant 0 : index
    %0 = vector.load %arg2[%c0, %c0_0] : memref<12x3xf32, #tpu.memory_space<vmem>>, vector<12x3xf32>
    %c0_1 = arith.constant 0 : index
    %c0_2 = arith.constant 0 : index
    %1 = vector.load %arg1[%c0_1, %c0_2] : memref<3x6272xf32, #tpu.memory_space<vmem>>, vector<3x6272xf32>
    %cst = arith.constant dense<0.000000e+00> : vector<12x6272xf32>
    %2 = tpu.matmul %0, %1, %cst {dimension_numbers = #tpu.dot_dimension_numbers<[1], [0], [0], [1], [0, 0, 1, 1], [], []>} : vector<12x3xf32>, vector<3x6272xf32>, vector<12x6272xf32> -> vector<12x6272xf32>
    %c0_3 = arith.constant 0 : index
    %c0_4 = arith.constant 0 : index
    %3 = vector.load %arg3[%c0_3, %c0_4] : memref<12x1xf32, #tpu.memory_space<vmem>>, vector<12x1xf32>
    %4 = vector.broadcast %3 : vector<12x1xf32> to vector<12x6272xf32>
    %5 = arith.addf %2, %4 : vector<12x6272xf32>
    %cst_5 = arith.constant 0.000000e+00 : f32
    %6 = vector.broadcast %cst_5 : f32 to vector<12x6272xf32>
    %7 = arith.maximumf %5, %6 : vector<12x6272xf32>
    %c0_6 = arith.constant 0 : index
    %c0_7 = arith.constant 0 : index
    %8 = vector.load %arg4[%c0_6, %c0_7] : memref<12x6272xf32, #tpu.memory_space<vmem>>, vector<12x6272xf32>
    tpu.vector_store %arg4[%c0_6, %c0_7], %7 {strides = array<i32>} : memref<12x6272xf32, #tpu.memory_space<vmem>>, vector<12x6272xf32>,
    return
  }
  func.func @transform_0(%arg0: i32) -> (i32, i32) {
    %c0_i32 = arith.constant 0 : i32
    %c0_i32_0 = arith.constant 0 : i32
    return %c0_i32, %arg0 : i32, i32
  }
  func.func @transform_1(%arg0: i32) -> (i32, i32) {
    %c0_i32 = arith.constant 0 : i32
    %c0_i32_0 = arith.constant 0 : i32
    %c0_i32_1 = arith.constant 0 : i32
    return %c0_i32, %c0_i32_0 : i32, i32
  }
  func.func @transform_2(%arg0: i32) -> (i32, i32) {
    %c0_i32 = arith.constant 0 : i32
    %c0_i32_0 = arith.constant 0 : i32
    %c0_i32_1 = arith.constant 0 : i32
    return %c0_i32, %c0_i32_0 : i32, i32
  }
  func.func @transform_3(%arg0: i32) -> (i32, i32) {
    %c0_i32 = arith.constant 0 : i32
    %c0_i32_0 = arith.constant 0 : i32
    return %c0_i32, %arg0 : i32, i32
  }
}

</mosaic_0001>

<llo_original>
// kernel: decoder_forward.7
$region0: #{decoder_forward.7}
  #allocation0 [shape = 'u32[]', space=smem, size = 0x4, offset = 0x4, fixed_abs, tag = 'smem constant byte address 0x4 - core index']
  #allocation1 [shape = 'u32[144,128]{1,0:T(1,128)}', space=vmem, size = 0x12000, scoped, tag = 'internal scratch']
  %s0 = inlined_call_operand.vmem [shape: f32[24,98], index: 0, kind: input, shape index: {}]
  %s1 = inlined_call_operand.vmem [shape: f32[48,24], index: 1, kind: input, shape index: {}]
  %s2 = inlined_call_operand.vmem [shape: f32[48,1], index: 2, kind: input, shape index: {}]
  %s3 = inlined_call_operand.vmem [shape: f32[48,98], index: 3, kind: output, shape index: {0}]
  %s4 = inlined_call_operand.vmem [shape: f32[1,48,1], index: 4, kind: output, shape index: {1}]
  %s5 = inlined_call_operand.vmem [shape: f32[1,48,1], index: 5, kind: output, shape index: {2}]
  %6 = xla_tuple %s3, %s4, %s5
  %s7 = sld [smem:[#allocation0]]
  $region38: #{decoder_forward.7} parent=0
    _
  %s9 = ssub.s32 1, %s7
  %s10 = scalar_select 0, %s9, %s7
  // Predicated region
  $region2: #{decoder_forward.7} parent=0 // pred_check
    _
  $region3: #{decoder_forward.7} parent=0 // pred_check_branch
    %12 = sbr.rel (0) target = $region5
  $region4: #{decoder_forward.7} parent=0 // pred_region
    _
  $region5: #{decoder_forward.7} parent=0 // pred_fallthru
    _
  // Predicated region
  $region6: #{decoder_forward.7} parent=0 // pred_check
    _
  $region7: #{decoder_forward.7} parent=0 // pred_check_branch
    %14 = sbr.rel (0) target = $region9
  $region8: #{decoder_forward.7} parent=0 // pred_region
    _
  $region9: #{decoder_forward.7} parent=0 // pred_fallthru
    _
  // Predicated region
  $region10: #{decoder_forward.7} parent=0 // pred_check
    _
  $region11: #{decoder_forward.7} parent=0 // pred_check_branch
    %16 = sbr.rel (0) target = $region13
  $region12: #{decoder_forward.7} parent=0 // pred_region
    _
  $region13: #{decoder_forward.7} parent=0 // pred_fallthru
    _
  %v17 = vld [vmem:[%s1] sm:$0xff]
  %v18 = vld [vmem:[%s1 + $0x8] sm:$0xff]
  %v19 = vld [vmem:[%s1 + $0x10] sm:$0xff]
  %v20 = vld [vmem:[%s1 + $0x18] sm:$0xff]
  %v21 = vld [vmem:[%s1 + $0x20] sm:$0xff]
  %v22 = vld [vmem:[%s1 + $0x28] sm:$0xff]
  %v23 = vld [vmem:[%s0] sm:$0xff]
  %v24 = vld [vmem:[%s0 + $0x8] sm:$0xff]
  %v25 = vld [vmem:[%s0 + $0x10] sm:$0xff]
  %v26 = vld [vmem:[%s2] sm:$0xff]
  %v27 = vld [vmem:[%s2 + $0x8] sm:$0xff]
  %v28 = vld [vmem:[%s2 + $0x10] sm:$0xff]
  %v29 = vld [vmem:[%s2 + $0x18] sm:$0xff]
  %v30 = vld [vmem:[%s2 + $0x20] sm:$0xff]
  %v31 = vld [vmem:[%s2 + $0x28] sm:$0xff]
  %33 = vset.pattern.permute.xlu0 0
  %34 = vperm.xlu0 %33, %v26
  %v35 = vpop.permute.xlu0 %34
  %38 = vset.pattern.permute.xlu0 0
  %39 = vperm.xlu0 %38, %v27
  %v40 = vpop.permute.xlu0 %39
  %43 = vset.pattern.permute.xlu0 0
  %44 = vperm.xlu0 %43, %v28
  %v45 = vpop.permute.xlu0 %44
  %48 = vset.pattern.permute.xlu0 0
  %49 = vperm.xlu0 %48, %v29
  %v50 = vpop.permute.xlu0 %49
  %53 = vset.pattern.permute.xlu0 0
  %54 = vperm.xlu0 %53, %v30
  %v55 = vpop.permute.xlu0 %54
  %58 = vset.pattern.permute.xlu0 0
  %59 = vperm.xlu0 %58, %v31
  %v60 = vpop.permute.xlu0 %59
  %vm62 = vcmask 195584
  %v64 = vsel %vm62, %v17, 0
  %v67 = vsel %vm62, %v18, 0
  %v70 = vsel %vm62, %v19, 0
  %v73 = vsel %vm62, %v20, 0
  %v76 = vsel %vm62, %v21, 0
  %v79 = vsel %vm62, %v22, 0
  %81 = vmatprep.subr.mxu0 0.0
  %82 = vmatpush1.msra.mxu0 %v23
  %83 = vmatprep.subr.mxu0 0.0
  %84 = vmatpush1.msra.mxu0 %v24
  %85 = vmatprep.subr.mxu0 0.0
  %86 = vmatpush1.msra.mxu0 %v25
  %87 = vmatprep.subr.mxu0 0.0
  %88 = vmatpush1.msra.mxu0 0.0
  %89 = vmatprep.subr.mxu0 0.0
  %90 = vmatpush1.msra.mxu0 0.0
  %91 = vmatprep.subr.mxu0 0.0
  %92 = vmatpush1.msra.mxu0 0.0
  %93 = vmatprep.subr.mxu0 0.0
  %94 = vmatpush1.msra.mxu0 0.0
  %95 = vmatprep.subr.mxu0 0.0
  %96 = vmatpush1.msra.mxu0 0.0
  %97 = vmatprep.subr.mxu0 0.0
  %98 = vmatpush1.msra.mxu0 0.0
  %99 = vmatprep.subr.mxu0 0.0
  %100 = vmatpush1.msra.mxu0 0.0
  %101 = vmatprep.subr.mxu0 0.0
  %102 = vmatpush1.msra.mxu0 0.0
  %103 = vmatprep.subr.mxu0 0.0
  %104 = vmatpush1.msra.mxu0 0.0
  %105 = vmatprep.subr.mxu0 0.0
  %106 = vmatpush1.msra.mxu0 0.0
  %107 = vmatprep.subr.mxu0 0.0
  %108 = vmatpush1.msra.mxu0 0.0
  %109 = vmatprep.subr.mxu0 0.0
  %110 = vmatpush1.msra.mxu0 0.0
  %111 = vmatprep.subr.mxu0 0.0
  %112 = vmatpush1.msra.mxu0 0.0
  %113 = vmatprep.subr.mxu0 0.0
  %114 = vmatpush1.msra.mxu0 0.0
  %115 = vmatprep.subr.mxu0 0.0
  %116 = vmatpush1.msra.mxu0 0.0
  %117 = vmatprep.subr.mxu0 0.0
  %118 = vmatpush1.msra.mxu0 0.0
  %119 = vmatprep.subr.mxu0 0.0
  %120 = vmatpush1.msra.mxu0 0.0
  %121 = vmatprep.subr.mxu0 0.0
  %122 = vmatpush1.msra.mxu0 0.0
  %123 = vmatprep.subr.mxu0 0.0
  %124 = vmatpush1.msra.mxu0 0.0
  %125 = vmatprep.subr.mxu0 0.0
  %126 = vmatpush1.msra.mxu0 0.0
  %127 = vmatprep.subr.mxu0 0.0
  %128 = vmatpush1.msra.mxu0 0.0
  %129 = vmatprep.subr.mxu0 0.0
  %130 = vmatpush1.msra.mxu0 0.0
  %131 = vmatprep.subr.mxu0 0.0
  %132 = vmatpush1.msra.mxu0 0.0
  %133 = vmatprep.subr.mxu0 0.0
  %134 = vmatpush1.msra.mxu0 0.0
  %135 = vmatprep.subr.mxu0 0.0
  %136 = vmatpush1.msra.mxu0 0.0
  %137 = vmatprep.subr.mxu0 0.0
  %138 = vmatpush1.msra.mxu0 0.0
  %139 = vmatprep.subr.mxu0 0.0
  %140 = vmatpush1.msra.mxu0 0.0
  %141 = vmatprep.subr.mxu0 0.0
  %142 = vmatpush1.msra.mxu0 0.0
  %143 = vmatprep.subr.mxu0 0.0
  %144 = vmatpush1.msra.mxu0 0.0
  %145 = vmatprep.mubr.f32.mxu0 0.0
  %146 = vmatmul.mubr.f32.gmra.mrb[0].mxu0 %v64
  %v147 = vpop.f32.mrb[0].mxu0
  %v148 = vadd.f32 %v35, %v147
  %v149 = vpop.f32.mrb[0].mxu0
  %150 = vmatprep.mubr.f32.mxu0 0.0
  %151 = vmatmul.mubr.f32.gmra.mrb[0].mxu0 %v67
  %v152 = vpop.f32.mrb[0].mxu0
  %v153 = vadd.f32 %v40, %v152
  %v154 = vpop.f32.mrb[0].mxu0
  %155 = vmatprep.mubr.f32.mxu0 0.0
  %156 = vmatmul.mubr.f32.gmra.mrb[0].mxu0 %v70
  %v157 = vpop.f32.mrb[0].mxu0
  %v158 = vadd.f32 %v45, %v157
  %v159 = vpop.f32.mrb[0].mxu0
  %160 = vmatprep.mubr.f32.mxu0 0.0
  %161 = vmatmul.mubr.f32.gmra.mrb[0].mxu0 %v73
  %v162 = vpop.f32.mrb[0].mxu0
  %v163 = vadd.f32 %v50, %v162
  %v164 = vpop.f32.mrb[0].mxu0
  %165 = vmatprep.mubr.f32.mxu0 0.0
  %166 = vmatmul.mubr.f32.gmra.mrb[0].mxu0 %v76
  %v167 = vpop.f32.mrb[0].mxu0
  %v168 = vadd.f32 %v55, %v167
  %v169 = vpop.f32.mrb[0].mxu0
  %170 = vmatprep.mubr.f32.mxu0 0.0
  %171 = vmatmul.mubr.f32.gmra.mrb[0].mxu0 %v79
  %v172 = vpop.f32.mrb[0].mxu0
  %v173 = vadd.f32 %v60, %v172
  %v174 = vpop.f32.mrb[0].mxu0
  %175 = vdwg.mxu0
  %v176 = vmax.f32 %v148, 0.0
  %v177 = vmax.f32 %v153, 0.0
  %v178 = vmax.f32 %v158, 0.0
  %v179 = vmax.f32 %v163, 0.0
  %v180 = vmax.f32 %v168, 0.0
  %v181 = vmax.f32 %v173, 0.0
  %vm182 = vcmask 801792
  %183 = vst.msk [vmem:[%s3] sm:$0xff] %vm182, %v176
  %184 = vst.msk [vmem:[%s3 + $0x8] sm:$0xff] %vm182, %v177
  %185 = vst.msk [vmem:[%s3 + $0x10] sm:$0xff] %vm182, %v178
  %186 = vst.msk [vmem:[%s3 + $0x18] sm:$0xff] %vm182, %v179
  %187 = vst.msk [vmem:[%s3 + $0x20] sm:$0xff] %vm182, %v180
  %188 = vst.msk [vmem:[%s3 + $0x28] sm:$0xff] %vm182, %v181
  %v189 = vsel %vm182, %v176, 0.0
  %190 = vadd.xlane.f32.xlu0 %v189
  %v191 = vpop.xlane.xlu0 %190
  %v192 = vsel %vm182, %v177, 0.0
  %193 = vadd.xlane.f32.xlu0 %v192
  %v194 = vpop.xlane.xlu0 %193
  %v195 = vsel %vm182, %v178, 0.0
  %196 = vadd.xlane.f32.xlu0 %v195
  %v197 = vpop.xlane.xlu0 %196
  %v198 = vsel %vm182, %v179, 0.0
  %199 = vadd.xlane.f32.xlu0 %v198
  %v200 = vpop.xlane.xlu0 %199
  %v201 = vsel %vm182, %v180, 0.0
  %202 = vadd.xlane.f32.xlu0 %v201
  %v203 = vpop.xlane.xlu0 %202
  %v204 = vsel %vm182, %v181, 0.0
  %205 = vadd.xlane.f32.xlu0 %v204
  %v206 = vpop.xlane.xlu0 %205
  %vm207 = vcmask 7168
  %208 = vst.msk [vmem:[%s4] sm:$0xff] %vm207, %v191
  %209 = vst.msk [vmem:[%s4 + $0x8] sm:$0xff] %vm207, %v194
  %210 = vst.msk [vmem:[%s4 + $0x10] sm:$0xff] %vm207, %v197
  %211 = vst.msk [vmem:[%s4 + $0x18] sm:$0xff] %vm207, %v200
  %212 = vst.msk [vmem:[%s4 + $0x20] sm:$0xff] %vm207, %v203
  %213 = vst.msk [vmem:[%s4 + $0x28] sm:$0xff] %vm207, %v206
  %v214 = vmul.f32 %v176, %v176
  %v215 = vmul.f32 %v177, %v177
  %v216 = vmul.f32 %v178, %v178
  %v217 = vmul.f32 %v179, %v179
  %v218 = vmul.f32 %v180, %v180
  %v219 = vmul.f32 %v181, %v181
  %v220 = vsel %vm182, %v214, 0.0
  %221 = vadd.xlane.f32.xlu0 %v220
  %v222 = vpop.xlane.xlu0 %221
  %v223 = vsel %vm182, %v215, 0.0
  %224 = vadd.xlane.f32.xlu0 %v223
  %v225 = vpop.xlane.xlu0 %224
  %v226 = vsel %vm182, %v216, 0.0
  %227 = vadd.xlane.f32.xlu0 %v226
  %v228 = vpop.xlane.xlu0 %227
  %v229 = vsel %vm182, %v217, 0.0
  %230 = vadd.xlane.f32.xlu0 %v229
  %v231 = vpop.xlane.xlu0 %230
  %v232 = vsel %vm182, %v218, 0.0
  %233 = vadd.xlane.f32.xlu0 %v232
  %v234 = vpop.xlane.xlu0 %233
  %v235 = vsel %vm182, %v219, 0.0
  %236 = vadd.xlane.f32.xlu0 %v235
  %v237 = vpop.xlane.xlu0 %236
  %238 = vst.msk [vmem:[%s5] sm:$0xff] %vm207, %v222
  %239 = vst.msk [vmem:[%s5 + $0x8] sm:$0xff] %vm207, %v225
  %240 = vst.msk [vmem:[%s5 + $0x10] sm:$0xff] %vm207, %v228
  %241 = vst.msk [vmem:[%s5 + $0x18] sm:$0xff] %vm207, %v231
  %242 = vst.msk [vmem:[%s5 + $0x20] sm:$0xff] %vm207, %v234
  %243 = vst.msk [vmem:[%s5 + $0x28] sm:$0xff] %vm207, %v237
  // Predicated region
  $region14: #{decoder_forward.7} parent=0 // pred_check
    _
  $region15: #{decoder_forward.7} parent=0 // pred_check_branch
    %245 = sbr.rel (0) target = $region17
  $region16: #{decoder_forward.7} parent=0 // pred_region
    _
  $region17: #{decoder_forward.7} parent=0 // pred_fallthru
    _
  // Predicated region
  $region18: #{decoder_forward.7} parent=0 // pred_check
    _
  $region19: #{decoder_forward.7} parent=0 // pred_check_branch
    %247 = sbr.rel (0) target = $region21
  $region20: #{decoder_forward.7} parent=0 // pred_region
    _
  $region21: #{decoder_forward.7} parent=0 // pred_fallthru
    _
  // Predicated region
  $region22: #{decoder_forward.7} parent=0 // pred_check
    _
  $region23: #{decoder_forward.7} parent=0 // pred_check_branch
    %249 = sbr.rel (0) target = $region25
  $region24: #{decoder_forward.7} parent=0 // pred_region
    _
  $region25: #{decoder_forward.7} parent=0 // pred_fallthru
    _
  // Predicated region
  $region26: #{decoder_forward.7} parent=0 // pred_check
    _
  $region27: #{decoder_forward.7} parent=0 // pred_check_branch
    %251 = sbr.rel (0) target = $region29
  $region28: #{decoder_forward.7} parent=0 // pred_region
    _
  $region29: #{decoder_forward.7} parent=0 // pred_fallthru
    _
  // Predicated region
  $region30: #{decoder_forward.7} parent=0 // pred_check
    _
  $region31: #{decoder_forward.7} parent=0 // pred_check_branch
    %253 = sbr.rel (0) target = $region33
  $region32: #{decoder_forward.7} parent=0 // pred_region
    _
  $region33: #{decoder_forward.7} parent=0 // pred_fallthru
    _
  // Predicated region
  $region34: #{decoder_forward.7} parent=0 // pred_check
    _
  $region35: #{decoder_forward.7} parent=0 // pred_check_branch
    %255 = sbr.rel (0) target = $region37
  $region36: #{decoder_forward.7} parent=0 // pred_region
    _
  $region37: #{decoder_forward.7} parent=0 // pred_fallthru
    _

// kernel: decoder_forward.8
$region0: #{decoder_forward.8}
  #allocation0 [shape = 'u32[]', space=smem, size = 0x4, offset = 0x4, fixed_abs, tag = 'smem constant byte address 0x4 - core index']
  #allocation1 [shape = 'u32[144,128]{1,0:T(1,128)}', space=vmem, size = 0x12000, scoped, tag = 'internal scratch']
  %s0 = inlined_call_operand.vmem [shape: f32[12,392], index: 0, kind: input, shape index: {}]
  %s1 = inlined_call_operand.vmem [shape: f32[32,12], index: 1, kind: input, shape index: {}]
  %s2 = inlined_call_operand.vmem [shape: f32[32,1], index: 2, kind: input, shape index: {}]
  %s3 = inlined_call_operand.vmem [shape: f32[32,392], index: 3, kind: output, shape index: {0}]
  %s4 = inlined_call_operand.vmem [shape: f32[1,32,1], index: 4, kind: output, shape index: {1}]
  %s5 = inlined_call_operand.vmem [shape: f32[1,32,1], index: 5, kind: output, shape index: {2}]
  %6 = xla_tuple %s3, %s4, %s5
  %s7 = sld [smem:[#allocation0]]
  $region38: #{decoder_forward.8} parent=0
    _
  %s9 = ssub.s32 1, %s7
  %s10 = scalar_select 0, %s9, %s7
  // Predicated region
  $region2: #{decoder_forward.8} parent=0 // pred_check
    _
  $region3: #{decoder_forward.8} parent=0 // pred_check_branch
    %12 = sbr.rel (0) target = $region5
  $region4: #{decoder_forward.8} parent=0 // pred_region
    _
  $region5: #{decoder_forward.8} parent=0 // pred_fallthru
    _
  // Predicated region
  $region6: #{decoder_forward.8} parent=0 // pred_check
    _
  $region7: #{decoder_forward.8} parent=0 // pred_check_branch
    %14 = sbr.rel (0) target = $region9
  $region8: #{decoder_forward.8} parent=0 // pred_region
    _
  $region9: #{decoder_forward.8} parent=0 // pred_fallthru
    _
  // Predicated region
  $region10: #{decoder_forward.8} parent=0 // pred_check
    _
  $region11: #{decoder_forward.8} parent=0 // pred_check_branch
    %16 = sbr.rel (0) target = $region13
  $region12: #{decoder_forward.8} parent=0 // pred_region
    _
  $region13: #{decoder_forward.8} parent=0 // pred_fallthru
    _
  %v17 = vld [vmem:[%s1] sm:$0xff]
  %v18 = vld [vmem:[%s1 + $0x8] sm:$0xff]
  %v19 = vld [vmem:[%s1 + $0x10] sm:$0xff]
  %v20 = vld [vmem:[%s1 + $0x18] sm:$0xff]
  %v21 = vld [vmem:[%s0] sm:$0xff]
  %v22 = vld [vmem:[%s0 + $0x8] sm:$0xff]
  %v23 = vld [vmem:[%s0 + $0x10] sm:$0xff]
  %v24 = vld [vmem:[%s0 + $0x18] sm:$0xff]
  %v25 = vld [vmem:[%s0 + $0x20] sm:$0xf]
  %v26 = vld [vmem:[%s0 + $0x28] sm:$0xf]
  %v27 = vld [vmem:[%s0 + $0x30] sm:$0xf]
  %v28 = vld [vmem:[%s0 + $0x38] sm:$0xf]
  %v29 = vld [vmem:[%s2] sm:$0xff]
  %v30 = vld [vmem:[%s2 + $0x8] sm:$0xff]
  %v31 = vld [vmem:[%s2 + $0x10] sm:$0xff]
  %v32 = vld [vmem:[%s2 + $0x18] sm:$0xff]
  %34 = vset.pattern.permute.xlu0 0
  %35 = vperm.xlu0 %34, %v29
  %v36 = vpop.permute.xlu0 %35
  %39 = vset.pattern.permute.xlu0 0
  %40 = vperm.xlu0 %39, %v30
  %v41 = vpop.permute.xlu0 %40
  %44 = vset.pattern.permute.xlu0 0
  %45 = vperm.xlu0 %44, %v31
  %v46 = vpop.permute.xlu0 %45
  %49 = vset.pattern.permute.xlu0 0
  %50 = vperm.xlu0 %49, %v32
  %v51 = vpop.permute.xlu0 %50
  %vm53 = vcmask 97280
  %v55 = vsel %vm53, %v17, 0
  %v58 = vsel %vm53, %v18, 0
  %v61 = vsel %vm53, %v19, 0
  %v64 = vsel %vm53, %v20, 0
  %vm66 = vcmask 1043456
  %v68 = vsel %vm66, %v25, 0
  %v71 = vsel %vm66, %v26, 0
  %v74 = vsel %vm66, %v27, 0
  %v77 = vsel %vm66, %v28, 0
  %79 = vmatprep.subr.mxu0 %v22
  %80 = vmatpush1.msra.mxu0 %v21
  %81 = vmatprep.subr.mxu0 %v71
  %82 = vmatpush1.msra.mxu0 %v68
  %83 = vmatprep.subr.mxu0 0.0
  %84 = vmatpush1.msra.mxu0 0.0
  %85 = vmatprep.subr.mxu0 0.0
  %86 = vmatpush1.msra.mxu0 0.0
  %87 = vmatprep.subr.mxu0 0.0
  %88 = vmatpush1.msra.mxu0 0.0
  %89 = vmatprep.subr.mxu0 0.0
  %90 = vmatpush1.msra.mxu0 0.0
  %91 = vmatprep.subr.mxu0 0.0
  %92 = vmatpush1.msra.mxu0 0.0
  %93 = vmatprep.subr.mxu0 0.0
  %94 = vmatpush1.msra.mxu0 0.0
  %95 = vmatprep.subr.mxu0 0.0
  %96 = vmatpush1.msra.mxu0 0.0
  %97 = vmatprep.subr.mxu0 0.0
  %98 = vmatpush1.msra.mxu0 0.0
  %99 = vmatprep.subr.mxu0 0.0
  %100 = vmatpush1.msra.mxu0 0.0
  %101 = vmatprep.subr.mxu0 0.0
  %102 = vmatpush1.msra.mxu0 0.0
  %103 = vmatprep.subr.mxu0 0.0
  %104 = vmatpush1.msra.mxu0 0.0
  %105 = vmatprep.subr.mxu0 0.0
  %106 = vmatpush1.msra.mxu0 0.0
  %107 = vmatprep.subr.mxu0 0.0
  %108 = vmatpush1.msra.mxu0 0.0
  %109 = vmatprep.subr.mxu0 0.0
  %110 = vmatpush1.msra.mxu0 0.0
  %111 = vmatprep.subr.mxu0 0.0
  %112 = vmatpush1.msra.mxu0 0.0
  %113 = vmatprep.subr.mxu0 0.0
  %114 = vmatpush1.msra.mxu0 0.0
  %115 = vmatprep.subr.mxu0 0.0
  %116 = vmatpush1.msra.mxu0 0.0
  %117 = vmatprep.subr.mxu0 0.0
  %118 = vmatpush1.msra.mxu0 0.0
  %119 = vmatprep.subr.mxu0 0.0
  %120 = vmatpush1.msra.mxu0 0.0
  %121 = vmatprep.subr.mxu0 0.0
  %122 = vmatpush1.msra.mxu0 0.0
  %123 = vmatprep.subr.mxu0 0.0
  %124 = vmatpush1.msra.mxu0 0.0
  %125 = vmatprep.subr.mxu0 0.0
  %126 = vmatpush1.msra.mxu0 0.0
  %127 = vmatprep.subr.mxu0 0.0
  %128 = vmatpush1.msra.mxu0 0.0
  %129 = vmatprep.subr.mxu0 0.0
  %130 = vmatpush1.msra.mxu0 0.0
  %131 = vmatprep.subr.mxu0 0.0
  %132 = vmatpush1.msra.mxu0 0.0
  %133 = vmatprep.subr.mxu0 0.0
  %134 = vmatpush1.msra.mxu0 0.0
  %135 = vmatprep.subr.mxu0 0.0
  %136 = vmatpush1.msra.mxu0 0.0
  %137 = vmatprep.subr.mxu0 0.0
  %138 = vmatpush1.msra.mxu0 0.0
  %139 = vmatprep.subr.mxu0 0.0
  %140 = vmatpush1.msra.mxu0 0.0
  %141 = vmatprep.subr.mxu0 0.0
  %142 = vmatpush1.msra.mxu0 0.0
  %143 = vmatprep.mubr.f32.mxu0 0.0
  %144 = vmatmul.mubr.f32.gmra.mrb[0].mxu0 %v55
  %v145 = vpop.f32.mrb[0].mxu0
  %v146 = vadd.f32 %v36, %v145
  %v147 = vpop.f32.mrb[0].mxu0
  %v148 = vadd.f32 %v36, %v147
  %149 = vmatprep.mubr.f32.mxu0 0.0
  %150 = vmatmul.mubr.f32.gmra.mrb[0].mxu0 %v58
  %v151 = vpop.f32.mrb[0].mxu0
  %v152 = vadd.f32 %v41, %v151
  %v153 = vpop.f32.mrb[0].mxu0
  %v154 = vadd.f32 %v41, %v153
  %155 = vmatprep.mubr.f32.mxu0 0.0
  %156 = vmatmul.mubr.f32.gmra.mrb[0].mxu0 %v61
  %v157 = vpop.f32.mrb[0].mxu0
  %v158 = vadd.f32 %v46, %v157
  %v159 = vpop.f32.mrb[0].mxu0
  %v160 = vadd.f32 %v46, %v159
  %161 = vmatprep.mubr.f32.mxu0 0.0
  %162 = vmatmul.mubr.f32.gmra.mrb[0].mxu0 %v64
  %v163 = vpop.f32.mrb[0].mxu0
  %v164 = vadd.f32 %v51, %v163
  %v165 = vpop.f32.mrb[0].mxu0
  %v166 = vadd.f32 %v51, %v165
  %167 = vdwg.mxu0
  %168 = vmatprep.subr.mxu0 %v24
  %169 = vmatpush1.msra.mxu0 %v23
  %170 = vmatprep.subr.mxu0 %v77
  %171 = vmatpush1.msra.mxu0 %v74
  %172 = vmatprep.subr.mxu0 0.0
  %173 = vmatpush1.msra.mxu0 0.0
  %174 = vmatprep.subr.mxu0 0.0
  %175 = vmatpush1.msra.mxu0 0.0
  %176 = vmatprep.subr.mxu0 0.0
  %177 = vmatpush1.msra.mxu0 0.0
  %178 = vmatprep.subr.mxu0 0.0
  %179 = vmatpush1.msra.mxu0 0.0
  %180 = vmatprep.subr.mxu0 0.0
  %181 = vmatpush1.msra.mxu0 0.0
  %182 = vmatprep.subr.mxu0 0.0
  %183 = vmatpush1.msra.mxu0 0.0
  %184 = vmatprep.subr.mxu0 0.0
  %185 = vmatpush1.msra.mxu0 0.0
  %186 = vmatprep.subr.mxu0 0.0
  %187 = vmatpush1.msra.mxu0 0.0
  %188 = vmatprep.subr.mxu0 0.0
  %189 = vmatpush1.msra.mxu0 0.0
  %190 = vmatprep.subr.mxu0 0.0
  %191 = vmatpush1.msra.mxu0 0.0
  %192 = vmatprep.subr.mxu0 0.0
  %193 = vmatpush1.msra.mxu0 0.0
  %194 = vmatprep.subr.mxu0 0.0
  %195 = vmatpush1.msra.mxu0 0.0
  %196 = vmatprep.subr.mxu0 0.0
  %197 = vmatpush1.msra.mxu0 0.0
  %198 = vmatprep.subr.mxu0 0.0
  %199 = vmatpush1.msra.mxu0 0.0
  %200 = vmatprep.subr.mxu0 0.0
  %201 = vmatpush1.msra.mxu0 0.0
  %202 = vmatprep.subr.mxu0 0.0
  %203 = vmatpush1.msra.mxu0 0.0
  %204 = vmatprep.subr.mxu0 0.0
  %205 = vmatpush1.msra.mxu0 0.0
  %206 = vmatprep.subr.mxu0 0.0
  %207 = vmatpush1.msra.mxu0 0.0
  %208 = vmatprep.subr.mxu0 0.0
  %209 = vmatpush1.msra.mxu0 0.0
  %210 = vmatprep.subr.mxu0 0.0
  %211 = vmatpush1.msra.mxu0 0.0
  %212 = vmatprep.subr.mxu0 0.0
  %213 = vmatpush1.msra.mxu0 0.0
  %214 = vmatprep.subr.mxu0 0.0
  %215 = vmatpush1.msra.mxu0 0.0
  %216 = vmatprep.subr.mxu0 0.0
  %217 = vmatpush1.msra.mxu0 0.0
  %218 = vmatprep.subr.mxu0 0.0
  %219 = vmatpush1.msra.mxu0 0.0
  %220 = vmatprep.subr.mxu0 0.0
  %221 = vmatpush1.msra.mxu0 0.0
  %222 = vmatprep.subr.mxu0 0.0
  %223 = vmatpush1.msra.mxu0 0.0
  %224 = vmatprep.subr.mxu0 0.0
  %225 = vmatpush1.msra.mxu0 0.0
  %226 = vmatprep.subr.mxu0 0.0
  %227 = vmatpush1.msra.mxu0 0.0
  %228 = vmatprep.subr.mxu0 0.0
  %229 = vmatpush1.msra.mxu0 0.0
  %230 = vmatprep.subr.mxu0 0.0
  %231 = vmatpush1.msra.mxu0 0.0
  %232 = vmatprep.mubr.f32.mxu0 0.0
  %233 = vmatmul.mubr.f32.gmra.mrb[0].mxu0 %v55
  %v234 = vpop.f32.mrb[0].mxu0
  %v235 = vadd.f32 %v36, %v234
  %v236 = vpop.f32.mrb[0].mxu0
  %v237 = vadd.f32 %v36, %v236
  %238 = vmatprep.mubr.f32.mxu0 0.0
  %239 = vmatmul.mubr.f32.gmra.mrb[0].mxu0 %v58
  %v240 = vpop.f32.mrb[0].mxu0
  %v241 = vadd.f32 %v41, %v240
  %v242 = vpop.f32.mrb[0].mxu0
  %v243 = vadd.f32 %v41, %v242
  %244 = vmatprep.mubr.f32.mxu0 0.0
  %245 = vmatmul.mubr.f32.gmra.mrb[0].mxu0 %v61
  %v246 = vpop.f32.mrb[0].mxu0
  %v247 = vadd.f32 %v46, %v246
  %v248 = vpop.f32.mrb[0].mxu0
  %v249 = vadd.f32 %v46, %v248
  %250 = vmatprep.mubr.f32.mxu0 0.0
  %251 = vmatmul.mubr.f32.gmra.mrb[0].mxu0 %v64
  %v252 = vpop.f32.mrb[0].mxu0
  %v253 = vadd.f32 %v51, %v252
  %v254 = vpop.f32.mrb[0].mxu0
  %v255 = vadd.f32 %v51, %v254
  %256 = vdwg.mxu0
  %v257 = vmax.f32 %v146, 0.0
  %v258 = vmax.f32 %v148, 0.0
  %v259 = vmax.f32 %v235, 0.0
  %v260 = vmax.f32 %v237, 0.0
  %v261 = vmax.f32 %v152, 0.0
  %v262 = vmax.f32 %v154, 0.0
  %v263 = vmax.f32 %v241, 0.0
  %v264 = vmax.f32 %v243, 0.0
  %v265 = vmax.f32 %v158, 0.0
  %v266 = vmax.f32 %v160, 0.0
  %v267 = vmax.f32 %v247, 0.0
  %v268 = vmax.f32 %v249, 0.0
  %v269 = vmax.f32 %v164, 0.0
  %v270 = vmax.f32 %v166, 0.0
  %v271 = vmax.f32 %v253, 0.0
  %v272 = vmax.f32 %v255, 0.0
  %273 = vst [vmem:[%s3] sm:$0xff] %v257
  %274 = vst [vmem:[%s3 + $0x8] sm:$0xff] %v258
  %275 = vst [vmem:[%s3 + $0x10] sm:$0xff] %v259
  %vm276 = vcmask 64512
  %277 = vst.msk [vmem:[%s3 + $0x18] sm:$0xff] %vm276, %v260
  %278 = vst [vmem:[%s3 + $0x20] sm:$0xff] %v261
  %279 = vst [vmem:[%s3 + $0x28] sm:$0xff] %v262
  %280 = vst [vmem:[%s3 + $0x30] sm:$0xff] %v263
  %281 = vst.msk [vmem:[%s3 + $0x38] sm:$0xff] %vm276, %v264
  %282 = vst [vmem:[%s3 + $0x40] sm:$0xff] %v265
  %283 = vst [vmem:[%s3 + $0x48] sm:$0xff] %v266
  %284 = vst [vmem:[%s3 + $0x50] sm:$0xff] %v267
  %285 = vst.msk [vmem:[%s3 + $0x58] sm:$0xff] %vm276, %v268
  %286 = vst [vmem:[%s3 + $0x60] sm:$0xff] %v269
  %287 = vst [vmem:[%s3 + $0x68] sm:$0xff] %v270
  %288 = vst [vmem:[%s3 + $0x70] sm:$0xff] %v271
  %289 = vst.msk [vmem:[%s3 + $0x78] sm:$0xff] %vm276, %v272
  %v290 = vadd.f32 %v257, %v258
  %v291 = vadd.f32 %v290, %v259
  %v292 = vsel %vm276, %v260, 0.0
  %v293 = vadd.f32 %v291, %v292
  %294 = vadd.xlane.f32.xlu0 %v293
  %v295 = vpop.xlane.xlu0 %294
  %v296 = vadd.f32 %v261, %v262
  %v297 = vadd.f32 %v296, %v263
  %v298 = vsel %vm276, %v264, 0.0
  %v299 = vadd.f32 %v297, %v298
  %300 = vadd.xlane.f32.xlu0 %v299
  %v301 = vpop.xlane.xlu0 %300
  %v302 = vadd.f32 %v265, %v266
  %v303 = vadd.f32 %v302, %v267
  %v304 = vsel %vm276, %v268, 0.0
  %v305 = vadd.f32 %v303, %v304
  %306 = vadd.xlane.f32.xlu0 %v305
  %v307 = vpop.xlane.xlu0 %306
  %v308 = vadd.f32 %v269, %v270
  %v309 = vadd.f32 %v308, %v271
  %v310 = vsel %vm276, %v272, 0.0
  %v311 = vadd.f32 %v309, %v310
  %312 = vadd.xlane.f32.xlu0 %v311
  %v313 = vpop.xlane.xlu0 %312
  %vm314 = vcmask 7168
  %315 = vst.msk [vmem:[%s4] sm:$0xff] %vm314, %v295
  %316 = vst.msk [vmem:[%s4 + $0x8] sm:$0xff] %vm314, %v301
  %317 = vst.msk [vmem:[%s4 + $0x10] sm:$0xff] %vm314, %v307
  %318 = vst.msk [vmem:[%s4 + $0x18] sm:$0xff] %vm314, %v313
  %v319 = vmul.f32 %v257, %v257
  %v320 = vmul.f32 %v258, %v258
  %v321 = vmul.f32 %v259, %v259
  %v322 = vmul.f32 %v260, %v260
  %v323 = vmul.f32 %v261, %v261
  %v324 = vmul.f32 %v262, %v262
  %v325 = vmul.f32 %v263, %v263
  %v326 = vmul.f32 %v264, %v264
  %v327 = vmul.f32 %v265, %v265
  %v328 = vmul.f32 %v266, %v266
  %v329 = vmul.f32 %v267, %v267
  %v330 = vmul.f32 %v268, %v268
  %v331 = vmul.f32 %v269, %v269
  %v332 = vmul.f32 %v270, %v270
  %v333 = vmul.f32 %v271, %v271
  %v334 = vmul.f32 %v272, %v272
  %v335 = vadd.f32 %v319, %v320
  %v336 = vadd.f32 %v335, %v321
  %v337 = vsel %vm276, %v322, 0.0
  %v338 = vadd.f32 %v336, %v337
  %339 = vadd.xlane.f32.xlu0 %v338
  %v340 = vpop.xlane.xlu0 %339
  %v341 = vadd.f32 %v323, %v324
  %v342 = vadd.f32 %v341, %v325
  %v343 = vsel %vm276, %v326, 0.0
  %v344 = vadd.f32 %v342, %v343
  %345 = vadd.xlane.f32.xlu0 %v344
  %v346 = vpop.xlane.xlu0 %345
  %v347 = vadd.f32 %v327, %v328
  %v348 = vadd.f32 %v347, %v329
  %v349 = vsel %vm276, %v330, 0.0
  %v350 = vadd.f32 %v348, %v349
  %351 = vadd.xlane.f32.xlu0 %v350
  %v352 = vpop.xlane.xlu0 %351
  %v353 = vadd.f32 %v331, %v332
  %v354 = vadd.f32 %v353, %v333
  %v355 = vsel %vm276, %v334, 0.0
  %v356 = vadd.f32 %v354, %v355
  %357 = vadd.xlane.f32.xlu0 %v356
  %v358 = vpop.xlane.xlu0 %357
  %359 = vst.msk [vmem:[%s5] sm:$0xff] %vm314, %v340
  %360 = vst.msk [vmem:[%s5 + $0x8] sm:$0xff] %vm314, %v346
  %361 = vst.msk [vmem:[%s5 + $0x10] sm:$0xff] %vm314, %v352
  %362 = vst.msk [vmem:[%s5 + $0x18] sm:$0xff] %vm314, %v358
  // Predicated region
  $region14: #{decoder_forward.8} parent=0 // pred_check
    _
  $region15: #{decoder_forward.8} parent=0 // pred_check_branch
    %364 = sbr.rel (0) target = $region17
  $region16: #{decoder_forward.8} parent=0 // pred_region
    _
  $region17: #{decoder_forward.8} parent=0 // pred_fallthru
    _
  // Predicated region
  $region18: #{decoder_forward.8} parent=0 // pred_check
    _
  $region19: #{decoder_forward.8} parent=0 // pred_check_branch
    %366 = sbr.rel (0) target = $region21
  $region20: #{decoder_forward.8} parent=0 // pred_region
    _
  $region21: #{decoder_forward.8} parent=0 // pred_fallthru
    _
  // Predicated region
  $region22: #{decoder_forward.8} parent=0 // pred_check
    _
  $region23: #{decoder_forward.8} parent=0 // pred_check_branch
    %368 = sbr.rel (0) target = $region25
  $region24: #{decoder_forward.8} parent=0 // pred_region
    _
  $region25: #{decoder_forward.8} parent=0 // pred_fallthru
    _
  // Predicated region
  $region26: #{decoder_forward.8} parent=0 // pred_check
    _
  $region27: #{decoder_forward.8} parent=0 // pred_check_branch
    %370 = sbr.rel (0) target = $region29
  $region28: #{decoder_forward.8} parent=0 // pred_region
    _
  $region29: #{decoder_forward.8} parent=0 // pred_fallthru
    _
  // Predicated region
  $region30: #{decoder_forward.8} parent=0 // pred_check
    _
  $region31: #{decoder_forward.8} parent=0 // pred_check_branch
    %372 = sbr.rel (0) target = $region33
  $region32: #{decoder_forward.8} parent=0 // pred_region
    _
  $region33: #{decoder_forward.8} parent=0 // pred_fallthru
    _
  // Predicated region
  $region34: #{decoder_forward.8} parent=0 // pred_check
    _
  $region35: #{decoder_forward.8} parent=0 // pred_check_branch
    %374 = sbr.rel (0) target = $region37
  $region36: #{decoder_forward.8} parent=0 // pred_region
    _
  $region37: #{decoder_forward.8} parent=0 // pred_fallthru
    _

// kernel: decoder_forward.9
$region0: #{decoder_forward.9}
  #allocation0 [shape = 'u32[]', space=smem, size = 0x4, offset = 0x4, fixed_abs, tag = 'smem constant byte address 0x4 - core index']
  #allocation1 [shape = 'u32[144,128]{1,0:T(1,128)}', space=vmem, size = 0x12000, scoped, tag = 'internal scratch']
  %s0 = inlined_call_operand.vmem [shape: f32[8,1568], index: 0, kind: input, shape index: {}]
  %s1 = inlined_call_operand.vmem [shape: f32[24,8], index: 1, kind: input, shape index: {}]
  %s2 = inlined_call_operand.vmem [shape: f32[24,1], index: 2, kind: input, shape index: {}]
  %s3 = inlined_call_operand.vmem [shape: f32[24,1568], index: 3, kind: output, shape index: {0}]
  %s4 = inlined_call_operand.vmem [shape: f32[1,24,1], index: 4, kind: output, shape index: {1}]
  %s5 = inlined_call_operand.vmem [shape: f32[1,24,1], index: 5, kind: output, shape index: {2}]
  %6 = xla_tuple %s3, %s4, %s5
  %s7 = sld [smem:[#allocation0]]
  $region38: #{decoder_forward.9} parent=0
    _
  %s9 = ssub.s32 1, %s7
  %s10 = scalar_select 0, %s9, %s7
  // Predicated region
  $region2: #{decoder_forward.9} parent=0 // pred_check
    _
  $region3: #{decoder_forward.9} parent=0 // pred_check_branch
    %12 = sbr.rel (0) target = $region5
  $region4: #{decoder_forward.9} parent=0 // pred_region
    _
  $region5: #{decoder_forward.9} parent=0 // pred_fallthru
    _
  // Predicated region
  $region6: #{decoder_forward.9} parent=0 // pred_check
    _
  $region7: #{decoder_forward.9} parent=0 // pred_check_branch
    %14 = sbr.rel (0) target = $region9
  $region8: #{decoder_forward.9} parent=0 // pred_region
    _
  $region9: #{decoder_forward.9} parent=0 // pred_fallthru
    _
  // Predicated region
  $region10: #{decoder_forward.9} parent=0 // pred_check
    _
  $region11: #{decoder_forward.9} parent=0 // pred_check_branch
    %16 = sbr.rel (0) target = $region13
  $region12: #{decoder_forward.9} parent=0 // pred_region
    _
  $region13: #{decoder_forward.9} parent=0 // pred_fallthru
    _
  %v17 = vld [vmem:[%s1] sm:$0xff]
  %v18 = vld [vmem:[%s1 + $0x8] sm:$0xff]
  %v19 = vld [vmem:[%s1 + $0x10] sm:$0xff]
  %v20 = vld [vmem:[%s0] sm:$0xff]
  %v21 = vld [vmem:[%s0 + $0x8] sm:$0xff]
  %v22 = vld [vmem:[%s0 + $0x10] sm:$0xff]
  %v23 = vld [vmem:[%s0 + $0x18] sm:$0xff]
  %v24 = vld [vmem:[%s0 + $0x20] sm:$0xff]
  %v25 = vld [vmem:[%s0 + $0x28] sm:$0xff]
  %v26 = vld [vmem:[%s0 + $0x30] sm:$0xff]
  %v27 = vld [vmem:[%s0 + $0x38] sm:$0xff]
  %v28 = vld [vmem:[%s0 + $0x40] sm:$0xff]
  %v29 = vld [vmem:[%s0 + $0x48] sm:$0xff]
  %v30 = vld [vmem:[%s0 + $0x50] sm:$0xff]
  %v31 = vld [vmem:[%s0 + $0x58] sm:$0xff]
  %v32 = vld [vmem:[%s0 + $0x60] sm:$0xff]
  %v33 = vld [vmem:[%s2] sm:$0xff]
  %v34 = vld [vmem:[%s2 + $0x8] sm:$0xff]
  %v35 = vld [vmem:[%s2 + $0x10] sm:$0xff]
  %37 = vset.pattern.permute.xlu0 0
  %38 = vperm.xlu0 %37, %v33
  %v39 = vpop.permute.xlu0 %38
  %42 = vset.pattern.permute.xlu0 0
  %43 = vperm.xlu0 %42, %v34
  %v44 = vpop.permute.xlu0 %43
  %47 = vset.pattern.permute.xlu0 0
  %48 = vperm.xlu0 %47, %v35
  %v49 = vpop.permute.xlu0 %48
  %vm51 = vcmask 64512
  %v53 = vsel %vm51, %v17, 0
  %v56 = vsel %vm51, %v18, 0
  %v59 = vsel %vm51, %v19, 0
  %61 = vmatprep.subr.mxu0 %v21
  %62 = vmatpush1.msra.mxu0 %v20
  %63 = vmatprep.subr.mxu0 0.0
  %64 = vmatpush1.msra.mxu0 0.0
  %65 = vmatprep.subr.mxu0 0.0
  %66 = vmatpush1.msra.mxu0 0.0
  %67 = vmatprep.subr.mxu0 0.0
  %68 = vmatpush1.msra.mxu0 0.0
  %69 = vmatprep.subr.mxu0 0.0
  %70 = vmatpush1.msra.mxu0 0.0
  %71 = vmatprep.subr.mxu0 0.0
  %72 = vmatpush1.msra.mxu0 0.0
  %73 = vmatprep.subr.mxu0 0.0
  %74 = vmatpush1.msra.mxu0 0.0
  %75 = vmatprep.subr.mxu0 0.0
  %76 = vmatpush1.msra.mxu0 0.0
  %77 = vmatprep.subr.mxu0 0.0
  %78 = vmatpush1.msra.mxu0 0.0
  %79 = vmatprep.subr.mxu0 0.0
  %80 = vmatpush1.msra.mxu0 0.0
  %81 = vmatprep.subr.mxu0 0.0
  %82 = vmatpush1.msra.mxu0 0.0
  %83 = vmatprep.subr.mxu0 0.0
  %84 = vmatpush1.msra.mxu0 0.0
  %85 = vmatprep.subr.mxu0 0.0
  %86 = vmatpush1.msra.mxu0 0.0
  %87 = vmatprep.subr.mxu0 0.0
  %88 = vmatpush1.msra.mxu0 0.0
  %89 = vmatprep.subr.mxu0 0.0
  %90 = vmatpush1.msra.mxu0 0.0
  %91 = vmatprep.subr.mxu0 0.0
  %92 = vmatpush1.msra.mxu0 0.0
  %93 = vmatprep.subr.mxu0 0.0
  %94 = vmatpush1.msra.mxu0 0.0
  %95 = vmatprep.subr.mxu0 0.0
  %96 = vmatpush1.msra.mxu0 0.0
  %97 = vmatprep.subr.mxu0 0.0
  %98 = vmatpush1.msra.mxu0 0.0
  %99 = vmatprep.subr.mxu0 0.0
  %100 = vmatpush1.msra.mxu0 0.0
  %101 = vmatprep.subr.mxu0 0.0
  %102 = vmatpush1.msra.mxu0 0.0
  %103 = vmatprep.subr.mxu0 0.0
  %104 = vmatpush1.msra.mxu0 0.0
  %105 = vmatprep.subr.mxu0 0.0
  %106 = vmatpush1.msra.mxu0 0.0
  %107 = vmatprep.subr.mxu0 0.0
  %108 = vmatpush1.msra.mxu0 0.0
  %109 = vmatprep.subr.mxu0 0.0
  %110 = vmatpush1.msra.mxu0 0.0
  %111 = vmatprep.subr.mxu0 0.0
  %112 = vmatpush1.msra.mxu0 0.0
  %113 = vmatprep.subr.mxu0 0.0
  %114 = vmatpush1.msra.mxu0 0.0
  %115 = vmatprep.subr.mxu0 0.0
  %116 = vmatpush1.msra.mxu0 0.0
  %117 = vmatprep.subr.mxu0 0.0
  %118 = vmatpush1.msra.mxu0 0.0
  %119 = vmatprep.subr.mxu0 0.0
  %120 = vmatpush1.msra.mxu0 0.0
  %121 = vmatprep.subr.mxu0 0.0
  %122 = vmatpush1.msra.mxu0 0.0
  %123 = vmatprep.subr.mxu0 0.0
  %124 = vmatpush1.msra.mxu0 0.0
  %125 = vmatprep.mubr.f32.mxu0 0.0
  %126 = vmatmul.mubr.f32.gmra.mrb[0].mxu0 %v53
  %v127 = vpop.f32.mrb[0].mxu0
  %v128 = vadd.f32 %v39, %v127
  %v129 = vpop.f32.mrb[0].mxu0
  %v130 = vadd.f32 %v39, %v129
  %131 = vmatprep.mubr.f32.mxu0 0.0
  %132 = vmatmul.mubr.f32.gmra.mrb[0].mxu0 %v56
  %v133 = vpop.f32.mrb[0].mxu0
  %v134 = vadd.f32 %v44, %v133
  %v135 = vpop.f32.mrb[0].mxu0
  %v136 = vadd.f32 %v44, %v135
  %137 = vmatprep.mubr.f32.mxu0 0.0
  %138 = vmatmul.mubr.f32.gmra.mrb[0].mxu0 %v59
  %v139 = vpop.f32.mrb[0].mxu0
  %v140 = vadd.f32 %v49, %v139
  %v141 = vpop.f32.mrb[0].mxu0
  %v142 = vadd.f32 %v49, %v141
  %143 = vdwg.mxu0
  %144 = vmatprep.subr.mxu0 %v23
  %145 = vmatpush1.msra.mxu0 %v22
  %146 = vmatprep.subr.mxu0 0.0
  %147 = vmatpush1.msra.mxu0 0.0
  %148 = vmatprep.subr.mxu0 0.0
  %149 = vmatpush1.msra.mxu0 0.0
  %150 = vmatprep.subr.mxu0 0.0
  %151 = vmatpush1.msra.mxu0 0.0
  %152 = vmatprep.subr.mxu0 0.0
  %153 = vmatpush1.msra.mxu0 0.0
  %154 = vmatprep.subr.mxu0 0.0
  %155 = vmatpush1.msra.mxu0 0.0
  %156 = vmatprep.subr.mxu0 0.0
  %157 = vmatpush1.msra.mxu0 0.0
  %158 = vmatprep.subr.mxu0 0.0
  %159 = vmatpush1.msra.mxu0 0.0
  %160 = vmatprep.subr.mxu0 0.0
  %161 = vmatpush1.msra.mxu0 0.0
  %162 = vmatprep.subr.mxu0 0.0
  %163 = vmatpush1.msra.mxu0 0.0
  %164 = vmatprep.subr.mxu0 0.0
  %165 = vmatpush1.msra.mxu0 0.0
  %166 = vmatprep.subr.mxu0 0.0
  %167 = vmatpush1.msra.mxu0 0.0
  %168 = vmatprep.subr.mxu0 0.0
  %169 = vmatpush1.msra.mxu0 0.0
  %170 = vmatprep.subr.mxu0 0.0
  %171 = vmatpush1.msra.mxu0 0.0
  %172 = vmatprep.subr.mxu0 0.0
  %173 = vmatpush1.msra.mxu0 0.0
  %174 = vmatprep.subr.mxu0 0.0
  %175 = vmatpush1.msra.mxu0 0.0
  %176 = vmatprep.subr.mxu0 0.0
  %177 = vmatpush1.msra.mxu0 0.0
  %178 = vmatprep.subr.mxu0 0.0
  %179 = vmatpush1.msra.mxu0 0.0
  %180 = vmatprep.subr.mxu0 0.0
  %181 = vmatpush1.msra.mxu0 0.0
  %182 = vmatprep.subr.mxu0 0.0
  %183 = vmatpush1.msra.mxu0 0.0
  %184 = vmatprep.subr.mxu0 0.0
  %185 = vmatpush1.msra.mxu0 0.0
  %186 = vmatprep.subr.mxu0 0.0
  %187 = vmatpush1.msra.mxu0 0.0
  %188 = vmatprep.subr.mxu0 0.0
  %189 = vmatpush1.msra.mxu0 0.0
  %190 = vmatprep.subr.mxu0 0.0
  %191 = vmatpush1.msra.mxu0 0.0
  %192 = vmatprep.subr.mxu0 0.0
  %193 = vmatpush1.msra.mxu0 0.0
  %194 = vmatprep.subr.mxu0 0.0
  %195 = vmatpush1.msra.mxu0 0.0
  %196 = vmatprep.subr.mxu0 0.0
  %197 = vmatpush1.msra.mxu0 0.0
  %198 = vmatprep.subr.mxu0 0.0
  %199 = vmatpush1.msra.mxu0 0.0
  %200 = vmatprep.subr.mxu0 0.0
  %201 = vmatpush1.msra.mxu0 0.0
  %202 = vmatprep.subr.mxu0 0.0
  %203 = vmatpush1.msra.mxu0 0.0
  %204 = vmatprep.subr.mxu0 0.0
  %205 = vmatpush1.msra.mxu0 0.0
  %206 = vmatprep.subr.mxu0 0.0
  %207 = vmatpush1.msra.mxu0 0.0
  %208 = vmatprep.mubr.f32.mxu0 0.0
  %209 = vmatmul.mubr.f32.gmra.mrb[0].mxu0 %v53
  %v210 = vpop.f32.mrb[0].mxu0
  %v211 = vadd.f32 %v39, %v210
  %v212 = vpop.f32.mrb[0].mxu0
  %v213 = vadd.f32 %v39, %v212
  %214 = vmatprep.mubr.f32.mxu0 0.0
  %215 = vmatmul.mubr.f32.gmra.mrb[0].mxu0 %v56
  %v216 = vpop.f32.mrb[0].mxu0
  %v217 = vadd.f32 %v44, %v216
  %v218 = vpop.f32.mrb[0].mxu0
  %v219 = vadd.f32 %v44, %v218
  %220 = vmatprep.mubr.f32.mxu0 0.0
  %221 = vmatmul.mubr.f32.gmra.mrb[0].mxu0 %v59
  %v222 = vpop.f32.mrb[0].mxu0
  %v223 = vadd.f32 %v49, %v222
  %v224 = vpop.f32.mrb[0].mxu0
  %v225 = vadd.f32 %v49, %v224
  %226 = vdwg.mxu0
  %227 = vmatprep.subr.mxu0 %v25
  %228 = vmatpush1.msra.mxu0 %v24
  %229 = vmatprep.subr.mxu0 0.0
  %230 = vmatpush1.msra.mxu0 0.0
  %231 = vmatprep.subr.mxu0 0.0
  %232 = vmatpush1.msra.mxu0 0.0
  %233 = vmatprep.subr.mxu0 0.0
  %234 = vmatpush1.msra.mxu0 0.0
  %235 = vmatprep.subr.mxu0 0.0
  %236 = vmatpush1.msra.mxu0 0.0
  %237 = vmatprep.subr.mxu0 0.0
  %238 = vmatpush1.msra.mxu0 0.0
  %239 = vmatprep.subr.mxu0 0.0
  %240 = vmatpush1.msra.mxu0 0.0
  %241 = vmatprep.subr.mxu0 0.0
  %242 = vmatpush1.msra.mxu0 0.0
  %243 = vmatprep.subr.mxu0 0.0
  %244 = vmatpush1.msra.mxu0 0.0
  %245 = vmatprep.subr.mxu0 0.0
  %246 = vmatpush1.msra.mxu0 0.0
  %247 = vmatprep.subr.mxu0 0.0
  %248 = vmatpush1.msra.mxu0 0.0
  %249 = vmatprep.subr.mxu0 0.0
  %250 = vmatpush1.msra.mxu0 0.0
  %251 = vmatprep.subr.mxu0 0.0
  %252 = vmatpush1.msra.mxu0 0.0
  %253 = vmatprep.subr.mxu0 0.0
  %254 = vmatpush1.msra.mxu0 0.0
  %255 = vmatprep.subr.mxu0 0.0
  %256 = vmatpush1.msra.mxu0 0.0
  %257 = vmatprep.subr.mxu0 0.0
  %258 = vmatpush1.msra.mxu0 0.0
  %259 = vmatprep.subr.mxu0 0.0
  %260 = vmatpush1.msra.mxu0 0.0
  %261 = vmatprep.subr.mxu0 0.0
  %262 = vmatpush1.msra.mxu0 0.0
  %263 = vmatprep.subr.mxu0 0.0
  %264 = vmatpush1.msra.mxu0 0.0
  %265 = vmatprep.subr.mxu0 0.0
  %266 = vmatpush1.msra.mxu0 0.0
  %267 = vmatprep.subr.mxu0 0.0
  %268 = vmatpush1.msra.mxu0 0.0
  %269 = vmatprep.subr.mxu0 0.0
  %270 = vmatpush1.msra.mxu0 0.0
  %271 = vmatprep.subr.mxu0 0.0
  %272 = vmatpush1.msra.mxu0 0.0
  %273 = vmatprep.subr.mxu0 0.0
  %274 = vmatpush1.msra.mxu0 0.0
  %275 = vmatprep.subr.mxu0 0.0
  %276 = vmatpush1.msra.mxu0 0.0
  %277 = vmatprep.subr.mxu0 0.0
  %278 = vmatpush1.msra.mxu0 0.0
  %279 = vmatprep.subr.mxu0 0.0
  %280 = vmatpush1.msra.mxu0 0.0
  %281 = vmatprep.subr.mxu0 0.0
  %282 = vmatpush1.msra.mxu0 0.0
  %283 = vmatprep.subr.mxu0 0.0
  %284 = vmatpush1.msra.mxu0 0.0
  %285 = vmatprep.subr.mxu0 0.0
  %286 = vmatpush1.msra.mxu0 0.0
  %287 = vmatprep.subr.mxu0 0.0
  %288 = vmatpush1.msra.mxu0 0.0
  %289 = vmatprep.subr.mxu0 0.0
  %290 = vmatpush1.msra.mxu0 0.0
  %291 = vmatprep.mubr.f32.mxu0 0.0
  %292 = vmatmul.mubr.f32.gmra.mrb[0].mxu0 %v53
  %v293 = vpop.f32.mrb[0].mxu0
  %v294 = vadd.f32 %v39, %v293
  %v295 = vpop.f32.mrb[0].mxu0
  %v296 = vadd.f32 %v39, %v295
  %297 = vmatprep.mubr.f32.mxu0 0.0
  %298 = vmatmul.mubr.f32.gmra.mrb[0].mxu0 %v56
  %v299 = vpop.f32.mrb[0].mxu0
  %v300 = vadd.f32 %v44, %v299
  %v301 = vpop.f32.mrb[0].mxu0
  %v302 = vadd.f32 %v44, %v301
  %303 = vmatprep.mubr.f32.mxu0 0.0
  %304 = vmatmul.mubr.f32.gmra.mrb[0].mxu0 %v59
  %v305 = vpop.f32.mrb[0].mxu0
  %v306 = vadd.f32 %v49, %v305
  %v307 = vpop.f32.mrb[0].mxu0
  %v308 = vadd.f32 %v49, %v307
  %309 = vdwg.mxu0
  %310 = vmatprep.subr.mxu0 %v27
  %311 = vmatpush1.msra.mxu0 %v26
  %312 = vmatprep.subr.mxu0 0.0
  %313 = vmatpush1.msra.mxu0 0.0
  %314 = vmatprep.subr.mxu0 0.0
  %315 = vmatpush1.msra.mxu0 0.0
  %316 = vmatprep.subr.mxu0 0.0
  %317 = vmatpush1.msra.mxu0 0.0
  %318 = vmatprep.subr.mxu0 0.0
  %319 = vmatpush1.msra.mxu0 0.0
  %320 = vmatprep.subr.mxu0 0.0
  %321 = vmatpush1.msra.mxu0 0.0
  %322 = vmatprep.subr.mxu0 0.0
  %323 = vmatpush1.msra.mxu0 0.0
  %324 = vmatprep.subr.mxu0 0.0
  %325 = vmatpush1.msra.mxu0 0.0
  %326 = vmatprep.subr.mxu0 0.0
  %327 = vmatpush1.msra.mxu0 0.0
  %328 = vmatprep.subr.mxu0 0.0
  %329 = vmatpush1.msra.mxu0 0.0
  %330 = vmatprep.subr.mxu0 0.0
  %331 = vmatpush1.msra.mxu0 0.0
  %332 = vmatprep.subr.mxu0 0.0
  %333 = vmatpush1.msra.mxu0 0.0
  %334 = vmatprep.subr.mxu0 0.0
  %335 = vmatpush1.msra.mxu0 0.0
  %336 = vmatprep.subr.mxu0 0.0
  %337 = vmatpush1.msra.mxu0 0.0
  %338 = vmatprep.subr.mxu0 0.0
  %339 = vmatpush1.msra.mxu0 0.0
  %340 = vmatprep.subr.mxu0 0.0
  %341 = vmatpush1.msra.mxu0 0.0
  %342 = vmatprep.subr.mxu0 0.0
  %343 = vmatpush1.msra.mxu0 0.0
  %344 = vmatprep.subr.mxu0 0.0
  %345 = vmatpush1.msra.mxu0 0.0
  %346 = vmatprep.subr.mxu0 0.0
  %347 = vmatpush1.msra.mxu0 0.0
  %348 = vmatprep.subr.mxu0 0.0
  %349 = vmatpush1.msra.mxu0 0.0
  %350 = vmatprep.subr.mxu0 0.0
  %351 = vmatpush1.msra.mxu0 0.0
  %352 = vmatprep.subr.mxu0 0.0
  %353 = vmatpush1.msra.mxu0 0.0
  %354 = vmatprep.subr.mxu0 0.0
  %355 = vmatpush1.msra.mxu0 0.0
  %356 = vmatprep.subr.mxu0 0.0
  %357 = vmatpush1.msra.mxu0 0.0
  %358 = vmatprep.subr.mxu0 0.0
  %359 = vmatpush1.msra.mxu0 0.0
  %360 = vmatprep.subr.mxu0 0.0
  %361 = vmatpush1.msra.mxu0 0.0
  %362 = vmatprep.subr.mxu0 0.0
  %363 = vmatpush1.msra.mxu0 0.0
  %364 = vmatprep.subr.mxu0 0.0
  %365 = vmatpush1.msra.mxu0 0.0
  %366 = vmatprep.subr.mxu0 0.0
  %367 = vmatpush1.msra.mxu0 0.0
  %368 = vmatprep.subr.mxu0 0.0
  %369 = vmatpush1.msra.mxu0 0.0
  %370 = vmatprep.subr.mxu0 0.0
  %371 = vmatpush1.msra.mxu0 0.0
  %372 = vmatprep.subr.mxu0 0.0
  %373 = vmatpush1.msra.mxu0 0.0
  %374 = vmatprep.mubr.f32.mxu0 0.0
  %375 = vmatmul.mubr.f32.gmra.mrb[0].mxu0 %v53
  %v376 = vpop.f32.mrb[0].mxu0
  %v377 = vadd.f32 %v39, %v376
  %v378 = vpop.f32.mrb[0].mxu0
  %v379 = vadd.f32 %v39, %v378
  %380 = vmatprep.mubr.f32.mxu0 0.0
  %381 = vmatmul.mubr.f32.gmra.mrb[0].mxu0 %v56
  %v382 = vpop.f32.mrb[0].mxu0
  %v383 = vadd.f32 %v44, %v382
  %v384 = vpop.f32.mrb[0].mxu0
  %v385 = vadd.f32 %v44, %v384
  %386 = vmatprep.mubr.f32.mxu0 0.0
  %387 = vmatmul.mubr.f32.gmra.mrb[0].mxu0 %v59
  %v388 = vpop.f32.mrb[0].mxu0
  %v389 = vadd.f32 %v49, %v388
  %v390 = vpop.f32.mrb[0].mxu0
  %v391 = vadd.f32 %v49, %v390
  %392 = vdwg.mxu0
  %393 = vmatprep.subr.mxu0 %v29
  %394 = vmatpush1.msra.mxu0 %v28
  %395 = vmatprep.subr.mxu0 0.0
  %396 = vmatpush1.msra.mxu0 0.0
  %397 = vmatprep.subr.mxu0 0.0
  %398 = vmatpush1.msra.mxu0 0.0
  %399 = vmatprep.subr.mxu0 0.0
  %400 = vmatpush1.msra.mxu0 0.0
  %401 = vmatprep.subr.mxu0 0.0
  %402 = vmatpush1.msra.mxu0 0.0
  %403 = vmatprep.subr.mxu0 0.0
  %404 = vmatpush1.msra.mxu0 0.0
  %405 = vmatprep.subr.mxu0 0.0
  %406 = vmatpush1.msra.mxu0 0.0
  %407 = vmatprep.subr.mxu0 0.0
  %408 = vmatpush1.msra.mxu0 0.0
  %409 = vmatprep.subr.mxu0 0.0
  %410 = vmatpush1.msra.mxu0 0.0
  %411 = vmatprep.subr.mxu0 0.0
  %412 = vmatpush1.msra.mxu0 0.0
  %413 = vmatprep.subr.mxu0 0.0
  %414 = vmatpush1.msra.mxu0 0.0
  %415 = vmatprep.subr.mxu0 0.0
  %416 = vmatpush1.msra.mxu0 0.0
  %417 = vmatprep.subr.mxu0 0.0
  %418 = vmatpush1.msra.mxu0 0.0
  %419 = vmatprep.subr.mxu0 0.0
  %420 = vmatpush1.msra.mxu0 0.0
  %421 = vmatprep.subr.mxu0 0.0
  %422 = vmatpush1.msra.mxu0 0.0
  %423 = vmatprep.subr.mxu0 0.0
  %424 = vmatpush1.msra.mxu0 0.0
  %425 = vmatprep.subr.mxu0 0.0
  %426 = vmatpush1.msra.mxu0 0.0
  %427 = vmatprep.subr.mxu0 0.0
  %428 = vmatpush1.msra.mxu0 0.0
  %429 = vmatprep.subr.mxu0 0.0
  %430 = vmatpush1.msra.mxu0 0.0
  %431 = vmatprep.subr.mxu0 0.0
  %432 = vmatpush1.msra.mxu0 0.0
  %433 = vmatprep.subr.mxu0 0.0
  %434 = vmatpush1.msra.mxu0 0.0
  %435 = vmatprep.subr.mxu0 0.0
  %436 = vmatpush1.msra.mxu0 0.0
  %437 = vmatprep.subr.mxu0 0.0
  %438 = vmatpush1.msra.mxu0 0.0
  %439 = vmatprep.subr.mxu0 0.0
  %440 = vmatpush1.msra.mxu0 0.0
  %441 = vmatprep.subr.mxu0 0.0
  %442 = vmatpush1.msra.mxu0 0.0
  %443 = vmatprep.subr.mxu0 0.0
  %444 = vmatpush1.msra.mxu0 0.0
  %445 = vmatprep.subr.mxu0 0.0
  %446 = vmatpush1.msra.mxu0 0.0
  %447 = vmatprep.subr.mxu0 0.0
  %448 = vmatpush1.msra.mxu0 0.0
  %449 = vmatprep.subr.mxu0 0.0
  %450 = vmatpush1.msra.mxu0 0.0
  %451 = vmatprep.subr.mxu0 0.0
  %452 = vmatpush1.msra.mxu0 0.0
  %453 = vmatprep.subr.mxu0 0.0
  %454 = vmatpush1.msra.mxu0 0.0
  %455 = vmatprep.subr.mxu0 0.0
  %456 = vmatpush1.msra.mxu0 0.0
  %457 = vmatprep.mubr.f32.mxu0 0.0
  %458 = vmatmul.mubr.f32.gmra.mrb[0].mxu0 %v53
  %v459 = vpop.f32.mrb[0].mxu0
  %v460 = vadd.f32 %v39, %v459
  %v461 = vpop.f32.mrb[0].mxu0
  %v462 = vadd.f32 %v39, %v461
  %463 = vmatprep.mubr.f32.mxu0 0.0
  %464 = vmatmul.mubr.f32.gmra.mrb[0].mxu0 %v56
  %v465 = vpop.f32.mrb[0].mxu0
  %v466 = vadd.f32 %v44, %v465
  %v467 = vpop.f32.mrb[0].mxu0
  %v468 = vadd.f32 %v44, %v467
  %469 = vmatprep.mubr.f32.mxu0 0.0
  %470 = vmatmul.mubr.f32.gmra.mrb[0].mxu0 %v59
  %v471 = vpop.f32.mrb[0].mxu0
  %v472 = vadd.f32 %v49, %v471
  %v473 = vpop.f32.mrb[0].mxu0
  %v474 = vadd.f32 %v49, %v473
  %475 = vdwg.mxu0
  %476 = vmatprep.subr.mxu0 %v31
  %477 = vmatpush1.msra.mxu0 %v30
  %478 = vmatprep.subr.mxu0 0.0
  %479 = vmatpush1.msra.mxu0 0.0
  %480 = vmatprep.subr.mxu0 0.0
  %481 = vmatpush1.msra.mxu0 0.0
  %482 = vmatprep.subr.mxu0 0.0
  %483 = vmatpush1.msra.mxu0 0.0
  %484 = vmatprep.subr.mxu0 0.0
  %485 = vmatpush1.msra.mxu0 0.0
  %486 = vmatprep.subr.mxu0 0.0
  %487 = vmatpush1.msra.mxu0 0.0
  %488 = vmatprep.subr.mxu0 0.0
  %489 = vmatpush1.msra.mxu0 0.0
  %490 = vmatprep.subr.mxu0 0.0
  %491 = vmatpush1.msra.mxu0 0.0
  %492 = vmatprep.subr.mxu0 0.0
  %493 = vmatpush1.msra.mxu0 0.0
  %494 = vmatprep.subr.mxu0 0.0
  %495 = vmatpush1.msra.mxu0 0.0
  %496 = vmatprep.subr.mxu0 0.0
  %497 = vmatpush1.msra.mxu0 0.0
  %498 = vmatprep.subr.mxu0 0.0
  %499 = vmatpush1.msra.mxu0 0.0
  %500 = vmatprep.subr.mxu0 0.0
  %501 = vmatpush1.msra.mxu0 0.0
  %502 = vmatprep.subr.mxu0 0.0
  %503 = vmatpush1.msra.mxu0 0.0
  %504 = vmatprep.subr.mxu0 0.0
  %505 = vmatpush1.msra.mxu0 0.0
  %506 = vmatprep.subr.mxu0 0.0
  %507 = vmatpush1.msra.mxu0 0.0
  %508 = vmatprep.subr.mxu0 0.0
  %509 = vmatpush1.msra.mxu0 0.0
  %510 = vmatprep.subr.mxu0 0.0
  %511 = vmatpush1.msra.mxu0 0.0
  %512 = vmatprep.subr.mxu0 0.0
  %513 = vmatpush1.msra.mxu0 0.0
  %514 = vmatprep.subr.mxu0 0.0
  %515 = vmatpush1.msra.mxu0 0.0
  %516 = vmatprep.subr.mxu0 0.0
  %517 = vmatpush1.msra.mxu0 0.0
  %518 = vmatprep.subr.mxu0 0.0
  %519 = vmatpush1.msra.mxu0 0.0
  %520 = vmatprep.subr.mxu0 0.0
  %521 = vmatpush1.msra.mxu0 0.0
  %522 = vmatprep.subr.mxu0 0.0
  %523 = vmatpush1.msra.mxu0 0.0
  %524 = vmatprep.subr.mxu0 0.0
  %525 = vmatpush1.msra.mxu0 0.0
  %526 = vmatprep.subr.mxu0 0.0
  %527 = vmatpush1.msra.mxu0 0.0
  %528 = vmatprep.subr.mxu0 0.0
  %529 = vmatpush1.msra.mxu0 0.0
  %530 = vmatprep.subr.mxu0 0.0
  %531 = vmatpush1.msra.mxu0 0.0
  %532 = vmatprep.subr.mxu0 0.0
  %533 = vmatpush1.msra.mxu0 0.0
  %534 = vmatprep.subr.mxu0 0.0
  %535 = vmatpush1.msra.mxu0 0.0
  %536 = vmatprep.subr.mxu0 0.0
  %537 = vmatpush1.msra.mxu0 0.0
  %538 = vmatprep.subr.mxu0 0.0
  %539 = vmatpush1.msra.mxu0 0.0
  %540 = vmatprep.mubr.f32.mxu0 0.0
  %541 = vmatmul.mubr.f32.gmra.mrb[0].mxu0 %v53
  %v542 = vpop.f32.mrb[0].mxu0
  %v543 = vadd.f32 %v39, %v542
  %v544 = vpop.f32.mrb[0].mxu0
  %v545 = vadd.f32 %v39, %v544
  %546 = vmatprep.mubr.f32.mxu0 0.0
  %547 = vmatmul.mubr.f32.gmra.mrb[0].mxu0 %v56
  %v548 = vpop.f32.mrb[0].mxu0
  %v549 = vadd.f32 %v44, %v548
  %v550 = vpop.f32.mrb[0].mxu0
  %v551 = vadd.f32 %v44, %v550
  %552 = vmatprep.mubr.f32.mxu0 0.0
  %553 = vmatmul.mubr.f32.gmra.mrb[0].mxu0 %v59
  %v554 = vpop.f32.mrb[0].mxu0
  %v555 = vadd.f32 %v49, %v554
  %v556 = vpop.f32.mrb[0].mxu0
  %v557 = vadd.f32 %v49, %v556
  %558 = vdwg.mxu0
  %559 = vmatprep.subr.mxu0 0.0
  %560 = vmatpush1.msra.mxu0 %v32
  %561 = vmatprep.subr.mxu0 0.0
  %562 = vmatpush1.msra.mxu0 0.0
  %563 = vmatprep.subr.mxu0 0.0
  %564 = vmatpush1.msra.mxu0 0.0
  %565 = vmatprep.subr.mxu0 0.0
  %566 = vmatpush1.msra.mxu0 0.0
  %567 = vmatprep.subr.mxu0 0.0
  %568 = vmatpush1.msra.mxu0 0.0
  %569 = vmatprep.subr.mxu0 0.0
  %570 = vmatpush1.msra.mxu0 0.0
  %571 = vmatprep.subr.mxu0 0.0
  %572 = vmatpush1.msra.mxu0 0.0
  %573 = vmatprep.subr.mxu0 0.0
  %574 = vmatpush1.msra.mxu0 0.0
  %575 = vmatprep.subr.mxu0 0.0
  %576 = vmatpush1.msra.mxu0 0.0
  %577 = vmatprep.subr.mxu0 0.0
  %578 = vmatpush1.msra.mxu0 0.0
  %579 = vmatprep.subr.mxu0 0.0
  %580 = vmatpush1.msra.mxu0 0.0
  %581 = vmatprep.subr.mxu0 0.0
  %582 = vmatpush1.msra.mxu0 0.0
  %583 = vmatprep.subr.mxu0 0.0
  %584 = vmatpush1.msra.mxu0 0.0
  %585 = vmatprep.subr.mxu0 0.0
  %586 = vmatpush1.msra.mxu0 0.0
  %587 = vmatprep.subr.mxu0 0.0
  %588 = vmatpush1.msra.mxu0 0.0
  %589 = vmatprep.subr.mxu0 0.0
  %590 = vmatpush1.msra.mxu0 0.0
  %591 = vmatprep.subr.mxu0 0.0
  %592 = vmatpush1.msra.mxu0 0.0
  %593 = vmatprep.subr.mxu0 0.0
  %594 = vmatpush1.msra.mxu0 0.0
  %595 = vmatprep.subr.mxu0 0.0
  %596 = vmatpush1.msra.mxu0 0.0
  %597 = vmatprep.subr.mxu0 0.0
  %598 = vmatpush1.msra.mxu0 0.0
  %599 = vmatprep.subr.mxu0 0.0
  %600 = vmatpush1.msra.mxu0 0.0
  %601 = vmatprep.subr.mxu0 0.0
  %602 = vmatpush1.msra.mxu0 0.0
  %603 = vmatprep.subr.mxu0 0.0
  %604 = vmatpush1.msra.mxu0 0.0
  %605 = vmatprep.subr.mxu0 0.0
  %606 = vmatpush1.msra.mxu0 0.0
  %607 = vmatprep.subr.mxu0 0.0
  %608 = vmatpush1.msra.mxu0 0.0
  %609 = vmatprep.subr.mxu0 0.0
  %610 = vmatpush1.msra.mxu0 0.0
  %611 = vmatprep.subr.mxu0 0.0
  %612 = vmatpush1.msra.mxu0 0.0
  %613 = vmatprep.subr.mxu0 0.0
  %614 = vmatpush1.msra.mxu0 0.0
  %615 = vmatprep.subr.mxu0 0.0
  %616 = vmatpush1.msra.mxu0 0.0
  %617 = vmatprep.subr.mxu0 0.0
  %618 = vmatpush1.msra.mxu0 0.0
  %619 = vmatprep.subr.mxu0 0.0
  %620 = vmatpush1.msra.mxu0 0.0
  %621 = vmatprep.subr.mxu0 0.0
  %622 = vmatpush1.msra.mxu0 0.0
  %623 = vmatprep.mubr.f32.mxu0 0.0
  %624 = vmatmul.mubr.f32.gmra.mrb[0].mxu0 %v53
  %v625 = vpop.f32.mrb[0].mxu0
  %v626 = vadd.f32 %v39, %v625
  %v627 = vpop.f32.mrb[0].mxu0
  %628 = vmatprep.mubr.f32.mxu0 0.0
  %629 = vmatmul.mubr.f32.gmra.mrb[0].mxu0 %v56
  %v630 = vpop.f32.mrb[0].mxu0
  %v631 = vadd.f32 %v44, %v630
  %v632 = vpop.f32.mrb[0].mxu0
  %633 = vmatprep.mubr.f32.mxu0 0.0
  %634 = vmatmul.mubr.f32.gmra.mrb[0].mxu0 %v59
  %v635 = vpop.f32.mrb[0].mxu0
  %v636 = vadd.f32 %v49, %v635
  %v637 = vpop.f32.mrb[0].mxu0
  %638 = vdwg.mxu0
  %v639 = vmax.f32 %v128, 0.0
  %v640 = vmax.f32 %v130, 0.0
  %v641 = vmax.f32 %v211, 0.0
  %v642 = vmax.f32 %v213, 0.0
  %v643 = vmax.f32 %v294, 0.0
  %v644 = vmax.f32 %v296, 0.0
  %v645 = vmax.f32 %v377, 0.0
  %v646 = vmax.f32 %v379, 0.0
  %v647 = vmax.f32 %v460, 0.0
  %v648 = vmax.f32 %v462, 0.0
  %v649 = vmax.f32 %v543, 0.0
  %v650 = vmax.f32 %v545, 0.0
  %v651 = vmax.f32 %v626, 0.0
  %v652 = vmax.f32 %v134, 0.0
  %v653 = vmax.f32 %v136, 0.0
  %v654 = vmax.f32 %v217, 0.0
  %v655 = vmax.f32 %v219, 0.0
  %v656 = vmax.f32 %v300, 0.0
  %v657 = vmax.f32 %v302, 0.0
  %v658 = vmax.f32 %v383, 0.0
  %v659 = vmax.f32 %v385, 0.0
  %v660 = vmax.f32 %v466, 0.0
  %v661 = vmax.f32 %v468, 0.0
  %v662 = vmax.f32 %v549, 0.0
  %v663 = vmax.f32 %v551, 0.0
  %v664 = vmax.f32 %v631, 0.0
  %v665 = vmax.f32 %v140, 0.0
  %v666 = vmax.f32 %v142, 0.0
  %v667 = vmax.f32 %v223, 0.0
  %v668 = vmax.f32 %v225, 0.0
  %v669 = vmax.f32 %v306, 0.0
  %v670 = vmax.f32 %v308, 0.0
  %v671 = vmax.f32 %v389, 0.0
  %v672 = vmax.f32 %v391, 0.0
  %v673 = vmax.f32 %v472, 0.0
  %v674 = vmax.f32 %v474, 0.0
  %v675 = vmax.f32 %v555, 0.0
  %v676 = vmax.f32 %v557, 0.0
  %v677 = vmax.f32 %v636, 0.0
  %678 = vst [vmem:[%s3] sm:$0xff] %v639
  %679 = vst [vmem:[%s3 + $0x8] sm:$0xff] %v640
  %680 = vst [vmem:[%s3 + $0x10] sm:$0xff] %v641
  %681 = vst [vmem:[%s3 + $0x18] sm:$0xff] %v642
  %682 = vst [vmem:[%s3 + $0x20] sm:$0xff] %v643
  %683 = vst [vmem:[%s3 + $0x28] sm:$0xff] %v644
  %684 = vst [vmem:[%s3 + $0x30] sm:$0xff] %v645
  %685 = vst [vmem:[%s3 + $0x38] sm:$0xff] %v646
  %686 = vst [vmem:[%s3 + $0x40] sm:$0xff] %v647
  %687 = vst [vmem:[%s3 + $0x48] sm:$0xff] %v648
  %688 = vst [vmem:[%s3 + $0x50] sm:$0xff] %v649
  %689 = vst [vmem:[%s3 + $0x58] sm:$0xff] %v650
  %vm690 = vcmask 261120
  %691 = vst.msk [vmem:[%s3 + $0x60] sm:$0xff] %vm690, %v651
  %692 = vst [vmem:[%s3 + $0x68] sm:$0xff] %v652
  %693 = vst [vmem:[%s3 + $0x70] sm:$0xff] %v653
  %694 = vst [vmem:[%s3 + $0x78] sm:$0xff] %v654
  %695 = vst [vmem:[%s3 + $0x80] sm:$0xff] %v655
  %696 = vst [vmem:[%s3 + $0x88] sm:$0xff] %v656
  %697 = vst [vmem:[%s3 + $0x90] sm:$0xff] %v657
  %698 = vst [vmem:[%s3 + $0x98] sm:$0xff] %v658
  %699 = vst [vmem:[%s3 + $0xa0] sm:$0xff] %v659
  %700 = vst [vmem:[%s3 + $0xa8] sm:$0xff] %v660
  %701 = vst [vmem:[%s3 + $0xb0] sm:$0xff] %v661
  %702 = vst [vmem:[%s3 + $0xb8] sm:$0xff] %v662
  %703 = vst [vmem:[%s3 + $0xc0] sm:$0xff] %v663
  %704 = vst.msk [vmem:[%s3 + $0xc8] sm:$0xff] %vm690, %v664
  %705 = vst [vmem:[%s3 + $0xd0] sm:$0xff] %v665
  %706 = vst [vmem:[%s3 + $0xd8] sm:$0xff] %v666
  %707 = vst [vmem:[%s3 + $0xe0] sm:$0xff] %v667
  %708 = vst [vmem:[%s3 + $0xe8] sm:$0xff] %v668
  %709 = vst [vmem:[%s3 + $0xf0] sm:$0xff] %v669
  %710 = vst [vmem:[%s3 + $0xf8] sm:$0xff] %v670
  %711 = vst [vmem:[%s3 + $0x100] sm:$0xff] %v671
  %712 = vst [vmem:[%s3 + $0x108] sm:$0xff] %v672
  %713 = vst [vmem:[%s3 + $0x110] sm:$0xff] %v673
  %714 = vst [vmem:[%s3 + $0x118] sm:$0xff] %v674
  %715 = vst [vmem:[%s3 + $0x120] sm:$0xff] %v675
  %716 = vst [vmem:[%s3 + $0x128] sm:$0xff] %v676
  %717 = vst.msk [vmem:[%s3 + $0x130] sm:$0xff] %vm690, %v677
  %v718 = vadd.f32 %v639, %v640
  %v719 = vadd.f32 %v718, %v641
  %v720 = vadd.f32 %v719, %v642
  %v721 = vadd.f32 %v720, %v643
  %v722 = vadd.f32 %v721, %v644
  %v723 = vadd.f32 %v722, %v645
  %v724 = vadd.f32 %v723, %v646
  %v725 = vadd.f32 %v724, %v647
  %v726 = vadd.f32 %v725, %v648
  %v727 = vadd.f32 %v726, %v649
  %v728 = vadd.f32 %v727, %v650
  %v729 = vsel %vm690, %v651, 0.0
  %v730 = vadd.f32 %v728, %v729
  %731 = vadd.xlane.f32.xlu0 %v730
  %v732 = vpop.xlane.xlu0 %731
  %v733 = vadd.f32 %v652, %v653
  %v734 = vadd.f32 %v733, %v654
  %v735 = vadd.f32 %v734, %v655
  %v736 = vadd.f32 %v735, %v656
  %v737 = vadd.f32 %v736, %v657
  %v738 = vadd.f32 %v737, %v658
  %v739 = vadd.f32 %v738, %v659
  %v740 = vadd.f32 %v739, %v660
  %v741 = vadd.f32 %v740, %v661
  %v742 = vadd.f32 %v741, %v662
  %v743 = vadd.f32 %v742, %v663
  %v744 = vsel %vm690, %v664, 0.0
  %v745 = vadd.f32 %v743, %v744
  %746 = vadd.xlane.f32.xlu0 %v745
  %v747 = vpop.xlane.xlu0 %746
  %v748 = vadd.f32 %v665, %v666
  %v749 = vadd.f32 %v748, %v667
  %v750 = vadd.f32 %v749, %v668
  %v751 = vadd.f32 %v750, %v669
  %v752 = vadd.f32 %v751, %v670
  %v753 = vadd.f32 %v752, %v671
  %v754 = vadd.f32 %v753, %v672
  %v755 = vadd.f32 %v754, %v673
  %v756 = vadd.f32 %v755, %v674
  %v757 = vadd.f32 %v756, %v675
  %v758 = vadd.f32 %v757, %v676
  %v759 = vsel %vm690, %v677, 0.0
  %v760 = vadd.f32 %v758, %v759
  %761 = vadd.xlane.f32.xlu0 %v760
  %v762 = vpop.xlane.xlu0 %761
  %vm763 = vcmask 7168
  %764 = vst.msk [vmem:[%s4] sm:$0xff] %vm763, %v732
  %765 = vst.msk [vmem:[%s4 + $0x8] sm:$0xff] %vm763, %v747
  %766 = vst.msk [vmem:[%s4 + $0x10] sm:$0xff] %vm763, %v762
  %v767 = vmul.f32 %v639, %v639
  %v768 = vmul.f32 %v640, %v640
  %v769 = vmul.f32 %v641, %v641
  %v770 = vmul.f32 %v642, %v642
  %v771 = vmul.f32 %v643, %v643
  %v772 = vmul.f32 %v644, %v644
  %v773 = vmul.f32 %v645, %v645
  %v774 = vmul.f32 %v646, %v646
  %v775 = vmul.f32 %v647, %v647
  %v776 = vmul.f32 %v648, %v648
  %v777 = vmul.f32 %v649, %v649
  %v778 = vmul.f32 %v650, %v650
  %v779 = vmul.f32 %v651, %v651
  %v780 = vmul.f32 %v652, %v652
  %v781 = vmul.f32 %v653, %v653
  %v782 = vmul.f32 %v654, %v654
  %v783 = vmul.f32 %v655, %v655
  %v784 = vmul.f32 %v656, %v656
  %v785 = vmul.f32 %v657, %v657
  %v786 = vmul.f32 %v658, %v658
  %v787 = vmul.f32 %v659, %v659
  %v788 = vmul.f32 %v660, %v660
  %v789 = vmul.f32 %v661, %v661
  %v790 = vmul.f32 %v662, %v662
  %v791 = vmul.f32 %v663, %v663
  %v792 = vmul.f32 %v664, %v664
  %v793 = vmul.f32 %v665, %v665
  %v794 = vmul.f32 %v666, %v666
  %v795 = vmul.f32 %v667, %v667
  %v796 = vmul.f32 %v668, %v668
  %v797 = vmul.f32 %v669, %v669
  %v798 = vmul.f32 %v670, %v670
  %v799 = vmul.f32 %v671, %v671
  %v800 = vmul.f32 %v672, %v672
  %v801 = vmul.f32 %v673, %v673
  %v802 = vmul.f32 %v674, %v674
  %v803 = vmul.f32 %v675, %v675
  %v804 = vmul.f32 %v676, %v676
  %v805 = vmul.f32 %v677, %v677
  %v806 = vadd.f32 %v767, %v768
  %v807 = vadd.f32 %v806, %v769
  %v808 = vadd.f32 %v807, %v770
  %v809 = vadd.f32 %v808, %v771
  %v810 = vadd.f32 %v809, %v772
  %v811 = vadd.f32 %v810, %v773
  %v812 = vadd.f32 %v811, %v774
  %v813 = vadd.f32 %v812, %v775
  %v814 = vadd.f32 %v813, %v776
  %v815 = vadd.f32 %v814, %v777
  %v816 = vadd.f32 %v815, %v778
  %v817 = vsel %vm690, %v779, 0.0
  %v818 = vadd.f32 %v816, %v817
  %819 = vadd.xlane.f32.xlu0 %v818
  %v820 = vpop.xlane.xlu0 %819
  %v821 = vadd.f32 %v780, %v781
  %v822 = vadd.f32 %v821, %v782
  %v823 = vadd.f32 %v822, %v783
  %v824 = vadd.f32 %v823, %v784
  %v825 = vadd.f32 %v824, %v785
  %v826 = vadd.f32 %v825, %v786
  %v827 = vadd.f32 %v826, %v787
  %v828 = vadd.f32 %v827, %v788
  %v829 = vadd.f32 %v828, %v789
  %v830 = vadd.f32 %v829, %v790
  %v831 = vadd.f32 %v830, %v791
  %v832 = vsel %vm690, %v792, 0.0
  %v833 = vadd.f32 %v831, %v832
  %834 = vadd.xlane.f32.xlu0 %v833
  %v835 = vpop.xlane.xlu0 %834
  %v836 = vadd.f32 %v793, %v794
  %v837 = vadd.f32 %v836, %v795
  %v838 = vadd.f32 %v837, %v796
  %v839 = vadd.f32 %v838, %v797
  %v840 = vadd.f32 %v839, %v798
  %v841 = vadd.f32 %v840, %v799
  %v842 = vadd.f32 %v841, %v800
  %v843 = vadd.f32 %v842, %v801
  %v844 = vadd.f32 %v843, %v802
  %v845 = vadd.f32 %v844, %v803
  %v846 = vadd.f32 %v845, %v804
  %v847 = vsel %vm690, %v805, 0.0
  %v848 = vadd.f32 %v846, %v847
  %849 = vadd.xlane.f32.xlu0 %v848
  %v850 = vpop.xlane.xlu0 %849
  %851 = vst.msk [vmem:[%s5] sm:$0xff] %vm763, %v820
  %852 = vst.msk [vmem:[%s5 + $0x8] sm:$0xff] %vm763, %v835
  %853 = vst.msk [vmem:[%s5 + $0x10] sm:$0xff] %vm763, %v850
  // Predicated region
  $region14: #{decoder_forward.9} parent=0 // pred_check
    _
  $region15: #{decoder_forward.9} parent=0 // pred_check_branch
    %855 = sbr.rel (0) target = $region17
  $region16: #{decoder_forward.9} parent=0 // pred_region
    _
  $region17: #{decoder_forward.9} parent=0 // pred_fallthru
    _
  // Predicated region
  $region18: #{decoder_forward.9} parent=0 // pred_check
    _
  $region19: #{decoder_forward.9} parent=0 // pred_check_branch
    %857 = sbr.rel (0) target = $region21
  $region20: #{decoder_forward.9} parent=0 // pred_region
    _
  $region21: #{decoder_forward.9} parent=0 // pred_fallthru
    _
  // Predicated region
  $region22: #{decoder_forward.9} parent=0 // pred_check
    _
  $region23: #{decoder_forward.9} parent=0 // pred_check_branch
    %859 = sbr.rel (0) target = $region25
  $region24: #{decoder_forward.9} parent=0 // pred_region
    _
  $region25: #{decoder_forward.9} parent=0 // pred_fallthru
    _
  // Predicated region
  $region26: #{decoder_forward.9} parent=0 // pred_check
    _
  $region27: #{decoder_forward.9} parent=0 // pred_check_branch
    %861 = sbr.rel (0) target = $region29
  $region28: #{decoder_forward.9} parent=0 // pred_region
    _
  $region29: #{decoder_forward.9} parent=0 // pred_fallthru
    _
  // Predicated region
  $region30: #{decoder_forward.9} parent=0 // pred_check
    _
  $region31: #{decoder_forward.9} parent=0 // pred_check_branch
    %863 = sbr.rel (0) target = $region33
  $region32: #{decoder_forward.9} parent=0 // pred_region
    _
  $region33: #{decoder_forward.9} parent=0 // pred_fallthru
    _
  // Predicated region
  $region34: #{decoder_forward.9} parent=0 // pred_check
    _
  $region35: #{decoder_forward.9} parent=0 // pred_check_branch
    %865 = sbr.rel (0) target = $region37
  $region36: #{decoder_forward.9} parent=0 // pred_region
    _
  $region37: #{decoder_forward.9} parent=0 // pred_fallthru
    _

// kernel: decoder_forward.10
$region0: #{decoder_forward.10}
  #allocation0 [shape = 'u32[]', space=smem, size = 0x4, offset = 0x4, fixed_abs, tag = 'smem constant byte address 0x4 - core index']
  #allocation1 [shape = 'u32[144,128]{1,0:T(1,128)}', space=vmem, size = 0x12000, scoped, tag = 'internal scratch']
  %s0 = inlined_call_operand.vmem [shape: f32[6,6272], index: 0, kind: input, shape index: {}]
  %s1 = inlined_call_operand.vmem [shape: f32[12,6], index: 1, kind: input, shape index: {}]
  %s2 = inlined_call_operand.vmem [shape: f32[12,1], index: 2, kind: input, shape index: {}]
  %s3 = inlined_call_operand.vmem [shape: f32[12,6272], index: 3, kind: output, shape index: {0}]
  %s4 = inlined_call_operand.vmem [shape: f32[7,12,1], index: 4, kind: output, shape index: {1}]
  %s5 = inlined_call_operand.vmem [shape: f32[7,12,1], index: 5, kind: output, shape index: {2}]
  %6 = xla_tuple %s3, %s4, %s5
  %s7 = sld [smem:[#allocation0]]
  $region80: #{decoder_forward.10} parent=0
    _
  %s9 = ssub.s32 1, %s7
  %s10 = scalar_select 0, %s9, %s7
  $region1: #{decoder_forward.10} parent=0
    #allocation2 [shape = 'u8[114688]{0}', space=vmem, size = 0x1c000, scoped, tag = 'output window, operand 0']
    loop: start=0, step=1, limit=9
    $region2: #{decoder_forward.10} parent=1 // loop_pre_header
      _
    $region3: #{decoder_forward.10} parent=1 // loop_header
      %s12 = sphi 0, %s16
      %p13 = scmp.ge.s32.totalorder %s12, 9
      %s22 = sphi 0, %s24
      %s25 = sphi 0, %s22
      %s26 = sphi 0, %s25
      %s42 = sphi 0, %s26
      %s46 = sphi 0, %s46
      %s48 = sphi 0, %s46
      %s49 = sphi 0, %s48
      %s63 = sphi 0, %s49
      %s67 = sphi 0, %s67
      %s69 = sphi 0, %s67
      %s70 = sphi 0, %s69
      %s84 = sphi 0, %s70
      %s90 = sphi 0, %s92
      %s93 = sphi 0, %s90
      %s94 = sphi 0, %s93
      %s110 = sphi 0, %s94
      %s116 = sphi 0, %s118
      %s119 = sphi 0, %s116
      %s120 = sphi 0, %s119
      %s136 = sphi 0, %s120
      %s142 = sphi 0, %s144
      %s145 = sphi 0, %s142
      %s146 = sphi 0, %s145
      %s162 = sphi 0, %s146
    $region4: #{decoder_forward.10} parent=1 // loop_header_branch
      %15 = sbr.rel (%p13) target = $region8
    $region5: #{decoder_forward.10} parent=1 // loop_body
      %s17 = ssub.s32 %s12, 1
      %s18 = ssub.s32 %s12, 2
      %s19 = sadd.s32 %s12, 1
      %s20 = ssub.s32 %s12, %s19
      %p21 = scmp.eq.s32.totalorder %s20, 0
      %s23 = sadd.s32 %s22, 1
      %s24 = scalar_select %p21, %s22, %s23
      %p27 = pneg %p21
      %p28 = scmp.eq.s32.totalorder %s12, 6
      %p29 = por %p27, %p28
      %p30 = scmp.ne.s32.totalorder %s22, %s25
      %p31 = scmp.eq.s32.totalorder %s12, 0
      %p32 = por %p30, %p31
      %p33 = scmp.ne.s32.totalorder %s22, %s25
      %p34 = scmp.eq.s32.totalorder %s17, 6
      %p35 = por %p33, %p34
      %p36 = scmp.ne.s32.totalorder %s25, %s26
      %p37 = scmp.eq.s32.totalorder %s17, 0
      %p38 = por %p36, %p37
      %p39 = scmp.ne.s32.totalorder %s25, %s26
      %p40 = scmp.eq.s32.totalorder %s18, 6
      %p41 = por %p39, %p40
      %p43 = scmp.ne.s32.totalorder %s26, %s42
      %p44 = scmp.eq.s32.totalorder %s18, 0
      %p45 = por %p43, %p44
      %s47 = sadd.s32 %s46, 1
      %p50 = scmp.eq.s32.totalorder %s12, 6
      %p51 = scmp.ne.s32.totalorder %s46, %s48
      %p52 = scmp.eq.s32.totalorder %s12, 0
      %p53 = por %p51, %p52
      %p54 = scmp.ne.s32.totalorder %s46, %s48
      %p55 = scmp.eq.s32.totalorder %s17, 6
      %p56 = por %p54, %p55
      %p57 = scmp.ne.s32.totalorder %s48, %s49
      %p58 = scmp.eq.s32.totalorder %s17, 0
      %p59 = por %p57, %p58
      %p60 = scmp.ne.s32.totalorder %s48, %s49
      %p61 = scmp.eq.s32.totalorder %s18, 6
      %p62 = por %p60, %p61
      %p64 = scmp.ne.s32.totalorder %s49, %s63
      %p65 = scmp.eq.s32.totalorder %s18, 0
      %p66 = por %p64, %p65
      %s68 = sadd.s32 %s67, 1
      %p71 = scmp.eq.s32.totalorder %s12, 6
      %p72 = scmp.ne.s32.totalorder %s67, %s69
      %p73 = scmp.eq.s32.totalorder %s12, 0
      %p74 = por %p72, %p73
      %p75 = scmp.ne.s32.totalorder %s67, %s69
      %p76 = scmp.eq.s32.totalorder %s17, 6
      %p77 = por %p75, %p76
      %p78 = scmp.ne.s32.totalorder %s69, %s70
      %p79 = scmp.eq.s32.totalorder %s17, 0
      %p80 = por %p78, %p79
      %p81 = scmp.ne.s32.totalorder %s69, %s70
      %p82 = scmp.eq.s32.totalorder %s18, 6
      %p83 = por %p81, %p82
      %p85 = scmp.ne.s32.totalorder %s70, %s84
      %p86 = scmp.eq.s32.totalorder %s18, 0
      %p87 = por %p85, %p86
      %s88 = ssub.s32 %s12, %s19
      %p89 = scmp.eq.s32.totalorder %s88, 0
      %s91 = sadd.s32 %s90, 1
      %s92 = scalar_select %p89, %s90, %s91
      %p95 = pneg %p89
      %p96 = scmp.eq.s32.totalorder %s12, 6
      %p97 = por %p95, %p96
      %p98 = scmp.ne.s32.totalorder %s90, %s93
      %p99 = scmp.eq.s32.totalorder %s12, 0
      %p100 = por %p98, %p99
      %p101 = scmp.ne.s32.totalorder %s90, %s93
      %p102 = scmp.eq.s32.totalorder %s17, 6
      %p103 = por %p101, %p102
      %p104 = scmp.ne.s32.totalorder %s93, %s94
      %p105 = scmp.eq.s32.totalorder %s17, 0
      %p106 = por %p104, %p105
      %p107 = scmp.ne.s32.totalorder %s93, %s94
      %p108 = scmp.eq.s32.totalorder %s18, 6
      %p109 = por %p107, %p108
      %p111 = scmp.ne.s32.totalorder %s94, %s110
      %p112 = scmp.eq.s32.totalorder %s18, 0
      %p113 = por %p111, %p112
      %s114 = ssub.s32 %s12, %s19
      %p115 = scmp.eq.s32.totalorder %s114, 0
      %s117 = sadd.s32 %s116, 1
      %s118 = scalar_select %p115, %s116, %s117
      %p121 = pneg %p115
      %p122 = scmp.eq.s32.totalorder %s12, 6
      %p123 = por %p121, %p122
      %p124 = scmp.ne.s32.totalorder %s116, %s119
      %p125 = scmp.eq.s32.totalorder %s12, 0
      %p126 = por %p124, %p125
      %p127 = scmp.ne.s32.totalorder %s116, %s119
      %p128 = scmp.eq.s32.totalorder %s17, 6
      %p129 = por %p127, %p128
      %p130 = scmp.ne.s32.totalorder %s119, %s120
      %p131 = scmp.eq.s32.totalorder %s17, 0
      %p132 = por %p130, %p131
      %p133 = scmp.ne.s32.totalorder %s119, %s120
      %p134 = scmp.eq.s32.totalorder %s18, 6
      %p135 = por %p133, %p134
      %p137 = scmp.ne.s32.totalorder %s120, %s136
      %p138 = scmp.eq.s32.totalorder %s18, 0
      %p139 = por %p137, %p138
      %s140 = ssub.s32 %s12, %s19
      %p141 = scmp.eq.s32.totalorder %s140, 0
      %s143 = sadd.s32 %s142, 1
      %s144 = scalar_select %p141, %s142, %s143
      %p147 = pneg %p141
      %p148 = scmp.eq.s32.totalorder %s12, 6
      %p149 = por %p147, %p148
      %p150 = scmp.ne.s32.totalorder %s142, %s145
      %p151 = scmp.eq.s32.totalorder %s12, 0
      %p152 = por %p150, %p151
      %p153 = scmp.ne.s32.totalorder %s142, %s145
      %p154 = scmp.eq.s32.totalorder %s17, 6
      %p155 = por %p153, %p154
      %p156 = scmp.ne.s32.totalorder %s145, %s146
      %p157 = scmp.eq.s32.totalorder %s17, 0
      %p158 = por %p156, %p157
      %p159 = scmp.ne.s32.totalorder %s145, %s146
      %p160 = scmp.eq.s32.totalorder %s18, 6
      %p161 = por %p159, %p160
      %p163 = scmp.ne.s32.totalorder %s146, %s162
      %p164 = scmp.eq.s32.totalorder %s18, 0
      %p165 = por %p163, %p164
      %p166 = scmp.le.s32.totalorder 1, %s12
      %p167 = scmp.lt.s32.totalorder %s12, 8
      %p168 = pnand %p166, %p167
      %p169 = pneg %p168
      // Predicated region
      $region9: #{decoder_forward.10} parent=5 // pred_check
        _
      $region10: #{decoder_forward.10} parent=5 // pred_check_branch
        %171 = sbr.rel (%p168) target = $region12
      $region11: #{decoder_forward.10} parent=5 // pred_region
        %s172 = ssub.s32 %s12, 1
        // Predicated region
        $region13: #{decoder_forward.10} parent=11 // pred_check
          %p173 = pneg %p59
        $region14: #{decoder_forward.10} parent=11 // pred_check_branch
          %175 = sbr.rel (%p173) target = $region16
        $region15: #{decoder_forward.10} parent=11 // pred_region
          _
        $region16: #{decoder_forward.10} parent=11 // pred_fallthru
          _
        // Predicated region
        $region17: #{decoder_forward.10} parent=11 // pred_check
          %p176 = pneg %p80
        $region18: #{decoder_forward.10} parent=11 // pred_check_branch
          %178 = sbr.rel (%p176) target = $region20
        $region19: #{decoder_forward.10} parent=11 // pred_region
          _
        $region20: #{decoder_forward.10} parent=11 // pred_fallthru
          _
      $region12: #{decoder_forward.10} parent=5 // pred_fallthru
        _
      %p179 = scmp.lt.s32.totalorder %s12, 7
      // Predicated region
      $region21: #{decoder_forward.10} parent=5 // pred_check
        %p180 = pneg %p179
      $region22: #{decoder_forward.10} parent=5 // pred_check_branch
        %182 = sbr.rel (%p180) target = $region24
      $region23: #{decoder_forward.10} parent=5 // pred_region
        // Predicated region
        $region25: #{decoder_forward.10} parent=23 // pred_check
          %p183 = pneg %p32
        $region26: #{decoder_forward.10} parent=23 // pred_check_branch
          %185 = sbr.rel (%p183) target = $region28
        $region27: #{decoder_forward.10} parent=23 // pred_region
          %s186 = smul.u32 7, %s12
          %p187 = scmp.lt.s32.totalorder %s186, 48
          %s188 = scalar_select %p187, %s186, 48
          %s189 = smul.addr %s188, 8
          %s190 = scalar_lea.vmem %s0, %s189
          %s191 = smul.u32 7, %s12
        $region28: #{decoder_forward.10} parent=23 // pred_fallthru
          _
      $region24: #{decoder_forward.10} parent=5 // pred_fallthru
        _
      %p192 = scmp.le.s32.totalorder 1, %s12
      %p193 = scmp.lt.s32.totalorder %s12, 8
      %p194 = pnand %p192, %p193
      %p195 = pneg %p194
      // Predicated region
      $region29: #{decoder_forward.10} parent=5 // pred_check
        _
      $region30: #{decoder_forward.10} parent=5 // pred_check_branch
        %197 = sbr.rel (%p194) target = $region32
      $region31: #{decoder_forward.10} parent=5 // pred_region
        %s198 = ssub.s32 %s12, 1
        %s199 = smul.u32 7, %s17
        %p200 = scmp.lt.s32.totalorder %s199, 48
        %s201 = scalar_select %p200, %s199, 48
        %s202 = smul.addr %s201, 8
        %s203 = scalar_lea.vmem %s0, %s202
        %p204 = pneg %p38
        %p205 = pneg %p35
        %p206 = pneg %p59
        %p207 = pneg %p56
        %p208 = pneg %p80
        %p209 = pneg %p77
        %p210 = pneg %p106
        %p211 = pneg %p103
        %s212 = sand.u32 %s93, 1
        %s213 = sand.u32 %s93, 1
        %s214 = smul.addr %s213, 112
        %s215 = scalar_lea.vmem [#allocation2], %s214
        %p216 = pneg %p132
        %p217 = pneg %p129
        %p218 = scmp.lt.s32.totalorder %s17, 6
        %s219 = scalar_select %p218, %s17, 6
        %s220 = smul.addr %s219, 2
        %s221 = smul.addr %s220, 8
        %s222 = scalar_lea.vmem %s4, %s221
        %p223 = pneg %p158
        %p224 = pneg %p155
        %p225 = scmp.lt.s32.totalorder %s17, 6
        %s226 = scalar_select %p225, %s17, 6
        %s227 = smul.addr %s226, 2
        %s228 = smul.addr %s227, 8
        %s229 = scalar_lea.vmem %s5, %s228
        %s230 = smul.u32 7, %s17
        %p231 = scmp.lt.s32.totalorder %s230, 48
        %s232 = scalar_select %p231, %s230, 48
        %s233 = smul.addr %s232, 8
        %s234 = scalar_lea.vmem %s0, %s233
        %s235 = smul.u32 7, %s17
        %s236 = smul.u32 7, %s17
        %p237 = scmp.lt.s32.totalorder %s17, 6
        %s238 = scalar_select %p237, %s17, 6
        %s239 = smul.addr %s238, 2
        %s240 = smul.addr %s239, 8
        %s241 = scalar_lea.vmem %s4, %s240
        %p242 = scmp.lt.s32.totalorder %s17, 6
        %s243 = scalar_select %p242, %s17, 6
        %s244 = smul.addr %s243, 2
        %s245 = smul.addr %s244, 8
        %s246 = scalar_lea.vmem %s5, %s245
        %v247 = vld [vmem:[%s1] sm:$0xff]
        %v248 = vld [vmem:[%s1 + $0x8] sm:$0xf]
        %v249 = vld [vmem:[%s234] sm:$0x3f]
        %v250 = vld [vmem:[%s234 + $0x8] sm:$0x3f]
        %v251 = vld [vmem:[%s234 + $0x10] sm:$0x3f]
        %v252 = vld [vmem:[%s234 + $0x18] sm:$0x3f]
        %v253 = vld [vmem:[%s234 + $0x20] sm:$0x3f]
        %v254 = vld [vmem:[%s234 + $0x28] sm:$0x3f]
        %v255 = vld [vmem:[%s234 + $0x30] sm:$0x3f]
        %v256 = vld [vmem:[%s2] sm:$0xff]
        %v257 = vld [vmem:[%s2 + $0x8] sm:$0xf]
        %259 = vset.pattern.permute.xlu0 0
        %260 = vperm.xlu0 %259, %v256
        %v261 = vpop.permute.xlu0 %260
        %264 = vset.pattern.permute.xlu0 0
        %265 = vperm.xlu0 %264, %v257
        %v266 = vpop.permute.xlu0 %265
        %vm268 = vcmask 48128
        %v270 = vsel %vm268, %v247, 0
        %v273 = vsel %vm268, %v248, 0
        %vm275 = vcmask 1045504
        %v277 = vsel %vm275, %v249, 0
        %v280 = vsel %vm275, %v250, 0
        %v283 = vsel %vm275, %v251, 0
        %v286 = vsel %vm275, %v252, 0
        %v289 = vsel %vm275, %v253, 0
        %v292 = vsel %vm275, %v254, 0
        %v295 = vsel %vm275, %v255, 0
        %297 = vmatprep.subr.mxu0 %v280
        %298 = vmatpush1.msra.mxu0 %v277
        %299 = vmatprep.subr.mxu0 0.0
        %300 = vmatpush1.msra.mxu0 0.0
        %301 = vmatprep.subr.mxu0 0.0
        %302 = vmatpush1.msra.mxu0 0.0
        %303 = vmatprep.subr.mxu0 0.0
        %304 = vmatpush1.msra.mxu0 0.0
        %305 = vmatprep.subr.mxu0 0.0
        %306 = vmatpush1.msra.mxu0 0.0
        %307 = vmatprep.subr.mxu0 0.0
        %308 = vmatpush1.msra.mxu0 0.0
        %309 = vmatprep.subr.mxu0 0.0
        %310 = vmatpush1.msra.mxu0 0.0
        %311 = vmatprep.subr.mxu0 0.0
        %312 = vmatpush1.msra.mxu0 0.0
        %313 = vmatprep.subr.mxu0 0.0
        %314 = vmatpush1.msra.mxu0 0.0
        %315 = vmatprep.subr.mxu0 0.0
        %316 = vmatpush1.msra.mxu0 0.0
        %317 = vmatprep.subr.mxu0 0.0
        %318 = vmatpush1.msra.mxu0 0.0
        %319 = vmatprep.subr.mxu0 0.0
        %320 = vmatpush1.msra.mxu0 0.0
        %321 = vmatprep.subr.mxu0 0.0
        %322 = vmatpush1.msra.mxu0 0.0
        %323 = vmatprep.subr.mxu0 0.0
        %324 = vmatpush1.msra.mxu0 0.0
        %325 = vmatprep.subr.mxu0 0.0
        %326 = vmatpush1.msra.mxu0 0.0
        %327 = vmatprep.subr.mxu0 0.0
        %328 = vmatpush1.msra.mxu0 0.0
        %329 = vmatprep.subr.mxu0 0.0
        %330 = vmatpush1.msra.mxu0 0.0
        %331 = vmatprep.subr.mxu0 0.0
        %332 = vmatpush1.msra.mxu0 0.0
        %333 = vmatprep.subr.mxu0 0.0
        %334 = vmatpush1.msra.mxu0 0.0
        %335 = vmatprep.subr.mxu0 0.0
        %336 = vmatpush1.msra.mxu0 0.0
        %337 = vmatprep.subr.mxu0 0.0
        %338 = vmatpush1.msra.mxu0 0.0
        %339 = vmatprep.subr.mxu0 0.0
        %340 = vmatpush1.msra.mxu0 0.0
        %341 = vmatprep.subr.mxu0 0.0
        %342 = vmatpush1.msra.mxu0 0.0
        %343 = vmatprep.subr.mxu0 0.0
        %344 = vmatpush1.msra.mxu0 0.0
        %345 = vmatprep.subr.mxu0 0.0
        %346 = vmatpush1.msra.mxu0 0.0
        %347 = vmatprep.subr.mxu0 0.0
        %348 = vmatpush1.msra.mxu0 0.0
        %349 = vmatprep.subr.mxu0 0.0
        %350 = vmatpush1.msra.mxu0 0.0
        %351 = vmatprep.subr.mxu0 0.0
        %352 = vmatpush1.msra.mxu0 0.0
        %353 = vmatprep.subr.mxu0 0.0
        %354 = vmatpush1.msra.mxu0 0.0
        %355 = vmatprep.subr.mxu0 0.0
        %356 = vmatpush1.msra.mxu0 0.0
        %357 = vmatprep.subr.mxu0 0.0
        %358 = vmatpush1.msra.mxu0 0.0
        %359 = vmatprep.subr.mxu0 0.0
        %360 = vmatpush1.msra.mxu0 0.0
        %361 = vmatprep.mubr.f32.mxu0 0.0
        %362 = vmatmul.mubr.f32.gmra.mrb[0].mxu0 %v270
        %v363 = vpop.f32.mrb[0].mxu0
        %v364 = vadd.f32 %v261, %v363
        %v365 = vpop.f32.mrb[0].mxu0
        %v366 = vadd.f32 %v261, %v365
        %367 = vmatprep.mubr.f32.mxu0 0.0
        %368 = vmatmul.mubr.f32.gmra.mrb[0].mxu0 %v273
        %v369 = vpop.f32.mrb[0].mxu0
        %v370 = vadd.f32 %v266, %v369
        %v371 = vpop.f32.mrb[0].mxu0
        %v372 = vadd.f32 %v266, %v371
        %373 = vdwg.mxu0
        %374 = vmatprep.subr.mxu0 %v286
        %375 = vmatpush1.msra.mxu0 %v283
        %376 = vmatprep.subr.mxu0 0.0
        %377 = vmatpush1.msra.mxu0 0.0
        %378 = vmatprep.subr.mxu0 0.0
        %379 = vmatpush1.msra.mxu0 0.0
        %380 = vmatprep.subr.mxu0 0.0
        %381 = vmatpush1.msra.mxu0 0.0
        %382 = vmatprep.subr.mxu0 0.0
        %383 = vmatpush1.msra.mxu0 0.0
        %384 = vmatprep.subr.mxu0 0.0
        %385 = vmatpush1.msra.mxu0 0.0
        %386 = vmatprep.subr.mxu0 0.0
        %387 = vmatpush1.msra.mxu0 0.0
        %388 = vmatprep.subr.mxu0 0.0
        %389 = vmatpush1.msra.mxu0 0.0
        %390 = vmatprep.subr.mxu0 0.0
        %391 = vmatpush1.msra.mxu0 0.0
        %392 = vmatprep.subr.mxu0 0.0
        %393 = vmatpush1.msra.mxu0 0.0
        %394 = vmatprep.subr.mxu0 0.0
        %395 = vmatpush1.msra.mxu0 0.0
        %396 = vmatprep.subr.mxu0 0.0
        %397 = vmatpush1.msra.mxu0 0.0
        %398 = vmatprep.subr.mxu0 0.0
        %399 = vmatpush1.msra.mxu0 0.0
        %400 = vmatprep.subr.mxu0 0.0
        %401 = vmatpush1.msra.mxu0 0.0
        %402 = vmatprep.subr.mxu0 0.0
        %403 = vmatpush1.msra.mxu0 0.0
        %404 = vmatprep.subr.mxu0 0.0
        %405 = vmatpush1.msra.mxu0 0.0
        %406 = vmatprep.subr.mxu0 0.0
        %407 = vmatpush1.msra.mxu0 0.0
        %408 = vmatprep.subr.mxu0 0.0
        %409 = vmatpush1.msra.mxu0 0.0
        %410 = vmatprep.subr.mxu0 0.0
        %411 = vmatpush1.msra.mxu0 0.0
        %412 = vmatprep.subr.mxu0 0.0
        %413 = vmatpush1.msra.mxu0 0.0
        %414 = vmatprep.subr.mxu0 0.0
        %415 = vmatpush1.msra.mxu0 0.0
        %416 = vmatprep.subr.mxu0 0.0
        %417 = vmatpush1.msra.mxu0 0.0
        %418 = vmatprep.subr.mxu0 0.0
        %419 = vmatpush1.msra.mxu0 0.0
        %420 = vmatprep.subr.mxu0 0.0
        %421 = vmatpush1.msra.mxu0 0.0
        %422 = vmatprep.subr.mxu0 0.0
        %423 = vmatpush1.msra.mxu0 0.0
        %424 = vmatprep.subr.mxu0 0.0
        %425 = vmatpush1.msra.mxu0 0.0
        %426 = vmatprep.subr.mxu0 0.0
        %427 = vmatpush1.msra.mxu0 0.0
        %428 = vmatprep.subr.mxu0 0.0
        %429 = vmatpush1.msra.mxu0 0.0
        %430 = vmatprep.subr.mxu0 0.0
        %431 = vmatpush1.msra.mxu0 0.0
        %432 = vmatprep.subr.mxu0 0.0
        %433 = vmatpush1.msra.mxu0 0.0
        %434 = vmatprep.subr.mxu0 0.0
        %435 = vmatpush1.msra.mxu0 0.0
        %436 = vmatprep.subr.mxu0 0.0
        %437 = vmatpush1.msra.mxu0 0.0
        %438 = vmatprep.mubr.f32.mxu0 0.0
        %439 = vmatmul.mubr.f32.gmra.mrb[0].mxu0 %v270
        %v440 = vpop.f32.mrb[0].mxu0
        %v441 = vadd.f32 %v261, %v440
        %v442 = vpop.f32.mrb[0].mxu0
        %v443 = vadd.f32 %v261, %v442
        %444 = vmatprep.mubr.f32.mxu0 0.0
        %445 = vmatmul.mubr.f32.gmra.mrb[0].mxu0 %v273
        %v446 = vpop.f32.mrb[0].mxu0
        %v447 = vadd.f32 %v266, %v446
        %v448 = vpop.f32.mrb[0].mxu0
        %v449 = vadd.f32 %v266, %v448
        %450 = vdwg.mxu0
        %451 = vmatprep.subr.mxu0 %v292
        %452 = vmatpush1.msra.mxu0 %v289
        %453 = vmatprep.subr.mxu0 0.0
        %454 = vmatpush1.msra.mxu0 0.0
        %455 = vmatprep.subr.mxu0 0.0
        %456 = vmatpush1.msra.mxu0 0.0
        %457 = vmatprep.subr.mxu0 0.0
        %458 = vmatpush1.msra.mxu0 0.0
        %459 = vmatprep.subr.mxu0 0.0
        %460 = vmatpush1.msra.mxu0 0.0
        %461 = vmatprep.subr.mxu0 0.0
        %462 = vmatpush1.msra.mxu0 0.0
        %463 = vmatprep.subr.mxu0 0.0
        %464 = vmatpush1.msra.mxu0 0.0
        %465 = vmatprep.subr.mxu0 0.0
        %466 = vmatpush1.msra.mxu0 0.0
        %467 = vmatprep.subr.mxu0 0.0
        %468 = vmatpush1.msra.mxu0 0.0
        %469 = vmatprep.subr.mxu0 0.0
        %470 = vmatpush1.msra.mxu0 0.0
        %471 = vmatprep.subr.mxu0 0.0
        %472 = vmatpush1.msra.mxu0 0.0
        %473 = vmatprep.subr.mxu0 0.0
        %474 = vmatpush1.msra.mxu0 0.0
        %475 = vmatprep.subr.mxu0 0.0
        %476 = vmatpush1.msra.mxu0 0.0
        %477 = vmatprep.subr.mxu0 0.0
        %478 = vmatpush1.msra.mxu0 0.0
        %479 = vmatprep.subr.mxu0 0.0
        %480 = vmatpush1.msra.mxu0 0.0
        %481 = vmatprep.subr.mxu0 0.0
        %482 = vmatpush1.msra.mxu0 0.0
        %483 = vmatprep.subr.mxu0 0.0
        %484 = vmatpush1.msra.mxu0 0.0
        %485 = vmatprep.subr.mxu0 0.0
        %486 = vmatpush1.msra.mxu0 0.0
        %487 = vmatprep.subr.mxu0 0.0
        %488 = vmatpush1.msra.mxu0 0.0
        %489 = vmatprep.subr.mxu0 0.0
        %490 = vmatpush1.msra.mxu0 0.0
        %491 = vmatprep.subr.mxu0 0.0
        %492 = vmatpush1.msra.mxu0 0.0
        %493 = vmatprep.subr.mxu0 0.0
        %494 = vmatpush1.msra.mxu0 0.0
        %495 = vmatprep.subr.mxu0 0.0
        %496 = vmatpush1.msra.mxu0 0.0
        %497 = vmatprep.subr.mxu0 0.0
        %498 = vmatpush1.msra.mxu0 0.0
        %499 = vmatprep.subr.mxu0 0.0
        %500 = vmatpush1.msra.mxu0 0.0
        %501 = vmatprep.subr.mxu0 0.0
        %502 = vmatpush1.msra.mxu0 0.0
        %503 = vmatprep.subr.mxu0 0.0
        %504 = vmatpush1.msra.mxu0 0.0
        %505 = vmatprep.subr.mxu0 0.0
        %506 = vmatpush1.msra.mxu0 0.0
        %507 = vmatprep.subr.mxu0 0.0
        %508 = vmatpush1.msra.mxu0 0.0
        %509 = vmatprep.subr.mxu0 0.0
        %510 = vmatpush1.msra.mxu0 0.0
        %511 = vmatprep.subr.mxu0 0.0
        %512 = vmatpush1.msra.mxu0 0.0
        %513 = vmatprep.subr.mxu0 0.0
        %514 = vmatpush1.msra.mxu0 0.0
        %515 = vmatprep.mubr.f32.mxu0 0.0
        %516 = vmatmul.mubr.f32.gmra.mrb[0].mxu0 %v270
        %v517 = vpop.f32.mrb[0].mxu0
        %v518 = vadd.f32 %v261, %v517
        %v519 = vpop.f32.mrb[0].mxu0
        %v520 = vadd.f32 %v261, %v519
        %521 = vmatprep.mubr.f32.mxu0 0.0
        %522 = vmatmul.mubr.f32.gmra.mrb[0].mxu0 %v273
        %v523 = vpop.f32.mrb[0].mxu0
        %v524 = vadd.f32 %v266, %v523
        %v525 = vpop.f32.mrb[0].mxu0
        %v526 = vadd.f32 %v266, %v525
        %527 = vdwg.mxu0
        %528 = vmatprep.subr.mxu0 0.0
        %529 = vmatpush1.msra.mxu0 %v295
        %530 = vmatprep.subr.mxu0 0.0
        %531 = vmatpush1.msra.mxu0 0.0
        %532 = vmatprep.subr.mxu0 0.0
        %533 = vmatpush1.msra.mxu0 0.0
        %534 = vmatprep.subr.mxu0 0.0
        %535 = vmatpush1.msra.mxu0 0.0
        %536 = vmatprep.subr.mxu0 0.0
        %537 = vmatpush1.msra.mxu0 0.0
        %538 = vmatprep.subr.mxu0 0.0
        %539 = vmatpush1.msra.mxu0 0.0
        %540 = vmatprep.subr.mxu0 0.0
        %541 = vmatpush1.msra.mxu0 0.0
        %542 = vmatprep.subr.mxu0 0.0
        %543 = vmatpush1.msra.mxu0 0.0
        %544 = vmatprep.subr.mxu0 0.0
        %545 = vmatpush1.msra.mxu0 0.0
        %546 = vmatprep.subr.mxu0 0.0
        %547 = vmatpush1.msra.mxu0 0.0
        %548 = vmatprep.subr.mxu0 0.0
        %549 = vmatpush1.msra.mxu0 0.0
        %550 = vmatprep.subr.mxu0 0.0
        %551 = vmatpush1.msra.mxu0 0.0
        %552 = vmatprep.subr.mxu0 0.0
        %553 = vmatpush1.msra.mxu0 0.0
        %554 = vmatprep.subr.mxu0 0.0
        %555 = vmatpush1.msra.mxu0 0.0
        %556 = vmatprep.subr.mxu0 0.0
        %557 = vmatpush1.msra.mxu0 0.0
        %558 = vmatprep.subr.mxu0 0.0
        %559 = vmatpush1.msra.mxu0 0.0
        %560 = vmatprep.subr.mxu0 0.0
        %561 = vmatpush1.msra.mxu0 0.0
        %562 = vmatprep.subr.mxu0 0.0
        %563 = vmatpush1.msra.mxu0 0.0
        %564 = vmatprep.subr.mxu0 0.0
        %565 = vmatpush1.msra.mxu0 0.0
        %566 = vmatprep.subr.mxu0 0.0
        %567 = vmatpush1.msra.mxu0 0.0
        %568 = vmatprep.subr.mxu0 0.0
        %569 = vmatpush1.msra.mxu0 0.0
        %570 = vmatprep.subr.mxu0 0.0
        %571 = vmatpush1.msra.mxu0 0.0
        %572 = vmatprep.subr.mxu0 0.0
        %573 = vmatpush1.msra.mxu0 0.0
        %574 = vmatprep.subr.mxu0 0.0
        %575 = vmatpush1.msra.mxu0 0.0
        %576 = vmatprep.subr.mxu0 0.0
        %577 = vmatpush1.msra.mxu0 0.0
        %578 = vmatprep.subr.mxu0 0.0
        %579 = vmatpush1.msra.mxu0 0.0
        %580 = vmatprep.subr.mxu0 0.0
        %581 = vmatpush1.msra.mxu0 0.0
        %582 = vmatprep.subr.mxu0 0.0
        %583 = vmatpush1.msra.mxu0 0.0
        %584 = vmatprep.subr.mxu0 0.0
        %585 = vmatpush1.msra.mxu0 0.0
        %586 = vmatprep.subr.mxu0 0.0
        %587 = vmatpush1.msra.mxu0 0.0
        %588 = vmatprep.subr.mxu0 0.0
        %589 = vmatpush1.msra.mxu0 0.0
        %590 = vmatprep.subr.mxu0 0.0
        %591 = vmatpush1.msra.mxu0 0.0
        %592 = vmatprep.mubr.f32.mxu0 0.0
        %593 = vmatmul.mubr.f32.gmra.mrb[0].mxu0 %v270
        %v594 = vpop.f32.mrb[0].mxu0
        %v595 = vadd.f32 %v261, %v594
        %v596 = vpop.f32.mrb[0].mxu0
        %597 = vmatprep.mubr.f32.mxu0 0.0
        %598 = vmatmul.mubr.f32.gmra.mrb[0].mxu0 %v273
        %v599 = vpop.f32.mrb[0].mxu0
        %v600 = vadd.f32 %v266, %v599
        %v601 = vpop.f32.mrb[0].mxu0
        %602 = vdwg.mxu0
        %v603 = vmax.f32 %v364, 0.0
        %v604 = vmax.f32 %v366, 0.0
        %v605 = vmax.f32 %v441, 0.0
        %v606 = vmax.f32 %v443, 0.0
        %v607 = vmax.f32 %v518, 0.0
        %v608 = vmax.f32 %v520, 0.0
        %v609 = vmax.f32 %v595, 0.0
        %v610 = vmax.f32 %v370, 0.0
        %v611 = vmax.f32 %v372, 0.0
        %v612 = vmax.f32 %v447, 0.0
        %v613 = vmax.f32 %v449, 0.0
        %v614 = vmax.f32 %v524, 0.0
        %v615 = vmax.f32 %v526, 0.0
        %v616 = vmax.f32 %v600, 0.0
        %617 = vst [vmem:[%s215] sm:$0xff] %v603
        %618 = vst [vmem:[%s215 + $0x8] sm:$0xff] %v604
        %619 = vst [vmem:[%s215 + $0x10] sm:$0xff] %v605
        %620 = vst [vmem:[%s215 + $0x18] sm:$0xff] %v606
        %621 = vst [vmem:[%s215 + $0x20] sm:$0xff] %v607
        %622 = vst [vmem:[%s215 + $0x28] sm:$0xff] %v608
        %623 = vst [vmem:[%s215 + $0x30] sm:$0xff] %v609
        %624 = vst [vmem:[%s215 + $0x38] sm:$0xf] %v610
        %625 = vst [vmem:[%s215 + $0x40] sm:$0xf] %v611
        %626 = vst [vmem:[%s215 + $0x48] sm:$0xf] %v612
        %627 = vst [vmem:[%s215 + $0x50] sm:$0xf] %v613
        %628 = vst [vmem:[%s215 + $0x58] sm:$0xf] %v614
        %629 = vst [vmem:[%s215 + $0x60] sm:$0xf] %v615
        %630 = vst [vmem:[%s215 + $0x68] sm:$0xf] %v616
        %v631 = vadd.f32 %v603, %v604
        %v632 = vadd.f32 %v631, %v605
        %v633 = vadd.f32 %v632, %v606
        %v634 = vadd.f32 %v633, %v607
        %v635 = vadd.f32 %v634, %v608
        %v636 = vadd.f32 %v635, %v609
        %637 = vadd.xlane.f32.xlu0 %v636
        %v638 = vpop.xlane.xlu0 %637
        %vm639 = vcmask 1043456
        %v640 = vsel %vm639, %v610, 0.0
        %v641 = vsel %vm639, %v611, 0.0
        %v642 = vadd.f32 %v640, %v641
        %v643 = vsel %vm639, %v612, 0.0
        %v644 = vadd.f32 %v642, %v643
        %v645 = vsel %vm639, %v613, 0.0
        %v646 = vadd.f32 %v644, %v645
        %v647 = vsel %vm639, %v614, 0.0
        %v648 = vadd.f32 %v646, %v647
        %v649 = vsel %vm639, %v615, 0.0
        %v650 = vadd.f32 %v648, %v649
        %v651 = vsel %vm639, %v616, 0.0
        %v652 = vadd.f32 %v650, %v651
        %653 = vadd.xlane.f32.xlu0 %v652
        %v654 = vpop.xlane.xlu0 %653
        %vm655 = vcmask 7168
        %656 = vst.msk [vmem:[%s241] sm:$0xff] %vm655, %v638
        %vm657 = vcmask 3072
        %658 = vst.msk [vmem:[%s241 + $0x8] sm:$0xf] %vm657, %v654
        %v659 = vmul.f32 %v603, %v603
        %v660 = vmul.f32 %v604, %v604
        %v661 = vmul.f32 %v605, %v605
        %v662 = vmul.f32 %v606, %v606
        %v663 = vmul.f32 %v607, %v607
        %v664 = vmul.f32 %v608, %v608
        %v665 = vmul.f32 %v609, %v609
        %v666 = vmul.f32 %v610, %v610
        %v667 = vmul.f32 %v611, %v611
        %v668 = vmul.f32 %v612, %v612
        %v669 = vmul.f32 %v613, %v613
        %v670 = vmul.f32 %v614, %v614
        %v671 = vmul.f32 %v615, %v615
        %v672 = vmul.f32 %v616, %v616
        %v673 = vadd.f32 %v659, %v660
        %v674 = vadd.f32 %v673, %v661
        %v675 = vadd.f32 %v674, %v662
        %v676 = vadd.f32 %v675, %v663
        %v677 = vadd.f32 %v676, %v664
        %v678 = vadd.f32 %v677, %v665
        %679 = vadd.xlane.f32.xlu0 %v678
        %v680 = vpop.xlane.xlu0 %679
        %v681 = vsel %vm639, %v666, 0.0
        %v682 = vsel %vm639, %v667, 0.0
        %v683 = vadd.f32 %v681, %v682
        %v684 = vsel %vm639, %v668, 0.0
        %v685 = vadd.f32 %v683, %v684
        %v686 = vsel %vm639, %v669, 0.0
        %v687 = vadd.f32 %v685, %v686
        %v688 = vsel %vm639, %v670, 0.0
        %v689 = vadd.f32 %v687, %v688
        %v690 = vsel %vm639, %v671, 0.0
        %v691 = vadd.f32 %v689, %v690
        %v692 = vsel %vm639, %v672, 0.0
        %v693 = vadd.f32 %v691, %v692
        %694 = vadd.xlane.f32.xlu0 %v693
        %v695 = vpop.xlane.xlu0 %694
        %696 = vst.msk [vmem:[%s246] sm:$0xff] %vm655, %v680
        %697 = vst.msk [vmem:[%s246 + $0x8] sm:$0xf] %vm657, %v695
        %s698 = sand.u32 %s93, 1
        %s699 = sand.u32 %s93, 1
        %s700 = smul.addr %s699, 112
        %s701 = scalar_lea.vmem [#allocation2], %s700
        %p702 = scmp.lt.s32.totalorder %s17, 6
        %s703 = scalar_select %p702, %s17, 6
        %s704 = smul.addr %s703, 2
        %s705 = smul.addr %s704, 8
        %s706 = scalar_lea.vmem %s4, %s705
        %p707 = scmp.lt.s32.totalorder %s17, 6
        %s708 = scalar_select %p707, %s17, 6
        %s709 = smul.addr %s708, 2
        %s710 = smul.addr %s709, 8
        %s711 = scalar_lea.vmem %s5, %s710
        // Predicated region
        $region33: #{decoder_forward.10} parent=31 // pred_check
          %p712 = pneg %p103
        $region34: #{decoder_forward.10} parent=31 // pred_check_branch
          %714 = sbr.rel (%p712) target = $region36
        $region35: #{decoder_forward.10} parent=31 // pred_region
          %s715 = smul.u32 7, %s17
          %s716 = smul.addr %s715, 8
          %s717 = scalar_lea.vmem %s3, %s716
          // Predicated region
          $region37: #{decoder_forward.10} parent=35 // pred_check
            _
          $region38: #{decoder_forward.10} parent=35 // pred_check_branch
            %719 = sbr.rel (0) target = $region40
          $region39: #{decoder_forward.10} parent=35 // pred_region
            // Predicated region
            $region41: #{decoder_forward.10} parent=39 // pred_check
              _
            $region42: #{decoder_forward.10} parent=39 // pred_check_branch
              %721 = sbr.rel (0) target = $region44
            $region43: #{decoder_forward.10} parent=39 // pred_region
              loop: start=0, step=1, limit=1
              $region45: #{decoder_forward.10} parent=43 // loop_pre_header
                _
              $region46: #{decoder_forward.10} parent=43 // loop_header
                %s723 = sphi 0, %s727
                %p724 = scmp.ge.s32.totalorder %s723, 1
                %s728 = sphi %s701, %s701
                %s729 = sphi %s717, %s717
              $region47: #{decoder_forward.10} parent=43 // loop_header_branch
                %726 = sbr.rel (%p724) target = $region51
              $region48: #{decoder_forward.10} parent=43 // loop_body
                %v730 = vld [vmem:[%s728] sm:$0xff]
                %731 = vst [vmem:[%s729] sm:$0xff] %v730
                %v732 = vld [vmem:[%s728 + $0x8] sm:$0xff]
                %733 = vst [vmem:[%s729 + $0x8] sm:$0xff] %v732
                %v734 = vld [vmem:[%s728 + $0x10] sm:$0xff]
                %735 = vst [vmem:[%s729 + $0x10] sm:$0xff] %v734
                %v736 = vld [vmem:[%s728 + $0x18] sm:$0xff]
                %737 = vst [vmem:[%s729 + $0x18] sm:$0xff] %v736
                %v738 = vld [vmem:[%s728 + $0x20] sm:$0xff]
                %739 = vst [vmem:[%s729 + $0x20] sm:$0xff] %v738
                %v740 = vld [vmem:[%s728 + $0x28] sm:$0xff]
                %741 = vst [vmem:[%s729 + $0x28] sm:$0xff] %v740
                %v742 = vld [vmem:[%s728 + $0x30] sm:$0xff]
                %743 = vst [vmem:[%s729 + $0x30] sm:$0xff] %v742
                %v744 = vld [vmem:[%s728 + $0x38] sm:$0xff]
                %745 = vst [vmem:[%s729 + $0x188] sm:$0xff] %v744
                %v746 = vld [vmem:[%s728 + $0x40] sm:$0xff]
                %747 = vst [vmem:[%s729 + $0x190] sm:$0xff] %v746
                %v748 = vld [vmem:[%s728 + $0x48] sm:$0xff]
                %749 = vst [vmem:[%s729 + $0x198] sm:$0xff] %v748
                %v750 = vld [vmem:[%s728 + $0x50] sm:$0xff]
                %751 = vst [vmem:[%s729 + $0x1a0] sm:$0xff] %v750
                %v752 = vld [vmem:[%s728 + $0x58] sm:$0xff]
                %753 = vst [vmem:[%s729 + $0x1a8] sm:$0xff] %v752
                %v754 = vld [vmem:[%s728 + $0x60] sm:$0xff]
                %755 = vst [vmem:[%s729 + $0x1b0] sm:$0xff] %v754
                %v756 = vld [vmem:[%s728 + $0x68] sm:$0xff]
                %757 = vst [vmem:[%s729 + $0x1b8] sm:$0xff] %v756
              $region49: #{decoder_forward.10} parent=43 // loop_footer
                %s727 = sadd.s32 1, %s723
              $region50: #{decoder_forward.10} parent=43 // loop_footer_branch
                %722 = sbr.rel target = $region46
              $region51: #{decoder_forward.10} parent=43 // loop_exit
                _
            $region44: #{decoder_forward.10} parent=39 // pred_fallthru
              _
            // Predicated region
            $region52: #{decoder_forward.10} parent=39 // pred_check
              _
            $region53: #{decoder_forward.10} parent=39 // pred_check_branch
              %759 = sbr.rel target = $region55
            $region54: #{decoder_forward.10} parent=39 // pred_region
              _
            $region55: #{decoder_forward.10} parent=39 // pred_fallthru
              _
          $region40: #{decoder_forward.10} parent=35 // pred_fallthru
            _
          %760 = vnop
        $region36: #{decoder_forward.10} parent=31 // pred_fallthru
          _
        // Predicated region
        $region56: #{decoder_forward.10} parent=31 // pred_check
          %p761 = pneg %p129
        $region57: #{decoder_forward.10} parent=31 // pred_check_branch
          %763 = sbr.rel (%p761) target = $region59
        $region58: #{decoder_forward.10} parent=31 // pred_region
          _
        $region59: #{decoder_forward.10} parent=31 // pred_fallthru
          _
        // Predicated region
        $region60: #{decoder_forward.10} parent=31 // pred_check
          %p764 = pneg %p155
        $region61: #{decoder_forward.10} parent=31 // pred_check_branch
          %766 = sbr.rel (%p764) target = $region63
        $region62: #{decoder_forward.10} parent=31 // pred_region
          _
        $region63: #{decoder_forward.10} parent=31 // pred_fallthru
          _
      $region32: #{decoder_forward.10} parent=5 // pred_fallthru
        _
      %p767 = scmp.le.s32.totalorder 2, %s12
      // Predicated region
      $region64: #{decoder_forward.10} parent=5 // pred_check
        %p768 = pneg %p767
      $region65: #{decoder_forward.10} parent=5 // pred_check_branch
        %770 = sbr.rel (%p768) target = $region67
      $region66: #{decoder_forward.10} parent=5 // pred_region
        %s771 = ssub.s32 %s12, 2
        // Predicated region
        $region68: #{decoder_forward.10} parent=66 // pred_check
          %p772 = pneg %p109
        $region69: #{decoder_forward.10} parent=66 // pred_check_branch
          %774 = sbr.rel (%p772) target = $region71
        $region70: #{decoder_forward.10} parent=66 // pred_region
          %s775 = sand.u32 %s94, 1
          %s776 = sand.u32 %s94, 1
          %s777 = smul.addr %s776, 112
          %s778 = scalar_lea.vmem [#allocation2], %s777
        $region71: #{decoder_forward.10} parent=66 // pred_fallthru
          _
        // Predicated region
        $region72: #{decoder_forward.10} parent=66 // pred_check
          %p779 = pneg %p135
        $region73: #{decoder_forward.10} parent=66 // pred_check_branch
          %781 = sbr.rel (%p779) target = $region75
        $region74: #{decoder_forward.10} parent=66 // pred_region
          %p782 = scmp.lt.s32.totalorder %s18, 6
          %s783 = scalar_select %p782, %s18, 6
          %s784 = smul.addr %s783, 2
          %s785 = smul.addr %s784, 8
          %s786 = scalar_lea.vmem %s4, %s785
        $region75: #{decoder_forward.10} parent=66 // pred_fallthru
          _
        // Predicated region
        $region76: #{decoder_forward.10} parent=66 // pred_check
          %p787 = pneg %p161
        $region77: #{decoder_forward.10} parent=66 // pred_check_branch
          %789 = sbr.rel (%p787) target = $region79
        $region78: #{decoder_forward.10} parent=66 // pred_region
          %p790 = scmp.lt.s32.totalorder %s18, 6
          %s791 = scalar_select %p790, %s18, 6
          %s792 = smul.addr %s791, 2
          %s793 = smul.addr %s792, 8
          %s794 = scalar_lea.vmem %s5, %s793
        $region79: #{decoder_forward.10} parent=66 // pred_fallthru
          _
      $region67: #{decoder_forward.10} parent=5 // pred_fallthru
        _
    $region6: #{decoder_forward.10} parent=1 // loop_footer
      %s16 = sadd.s32 1, %s12
    $region7: #{decoder_forward.10} parent=1 // loop_footer_branch
      %11 = sbr.rel target = $region3
    $region8: #{decoder_forward.10} parent=1 // loop_exit
      _

// kernel: decoder_forward.6
$region0: #{decoder_forward.6}
  #allocation0 [shape = 'u32[]', space=smem, size = 0x4, offset = 0x4, fixed_abs, tag = 'smem constant byte address 0x4 - core index']
  #allocation1 [shape = 'u32[144,128]{1,0:T(1,128)}', space=vmem, size = 0x12000, scoped, tag = 'internal scratch']
  %s0 = inlined_call_operand.vmem [shape: f32[32,2], index: 0, kind: input, shape index: {}]
  %s1 = inlined_call_operand.vmem [shape: f32[1176,32], index: 1, kind: input, shape index: {}]
  %s2 = inlined_call_operand.vmem [shape: f32[1176,1], index: 2, kind: input, shape index: {}]
  %s3 = inlined_call_operand.vmem [shape: f32[1176,2], index: 3, kind: output, shape index: {0}]
  %s4 = inlined_call_operand.vmem [shape: f32[1,1176,1], index: 4, kind: output, shape index: {1}]
  %s5 = inlined_call_operand.vmem [shape: f32[1,1176,1], index: 5, kind: output, shape index: {2}]
  %6 = xla_tuple %s3, %s4, %s5
  %s7 = sld [smem:[#allocation0]]
  $region38: #{decoder_forward.6} parent=0
    _
  %s9 = ssub.s32 1, %s7
  %s10 = scalar_select 0, %s9, %s7
  // Predicated region
  $region2: #{decoder_forward.6} parent=0 // pred_check
    _
  $region3: #{decoder_forward.6} parent=0 // pred_check_branch
    %12 = sbr.rel (0) target = $region5
  $region4: #{decoder_forward.6} parent=0 // pred_region
    _
  $region5: #{decoder_forward.6} parent=0 // pred_fallthru
    _
  // Predicated region
  $region6: #{decoder_forward.6} parent=0 // pred_check
    _
  $region7: #{decoder_forward.6} parent=0 // pred_check_branch
    %14 = sbr.rel (0) target = $region9
  $region8: #{decoder_forward.6} parent=0 // pred_region
    _
  $region9: #{decoder_forward.6} parent=0 // pred_fallthru
    _
  // Predicated region
  $region10: #{decoder_forward.6} parent=0 // pred_check
    _
  $region11: #{decoder_forward.6} parent=0 // pred_check_branch
    %16 = sbr.rel (0) target = $region13
  $region12: #{decoder_forward.6} parent=0 // pred_region
    _
  $region13: #{decoder_forward.6} parent=0 // pred_fallthru
    _
  %v17 = vld [vmem:[%s1] sm:$0xff]
  %v18 = vld [vmem:[%s1 + $0x8] sm:$0xff]
  %v19 = vld [vmem:[%s1 + $0x10] sm:$0xff]
  %v20 = vld [vmem:[%s1 + $0x18] sm:$0xff]
  %v21 = vld [vmem:[%s1 + $0x20] sm:$0xff]
  %v22 = vld [vmem:[%s1 + $0x28] sm:$0xff]
  %v23 = vld [vmem:[%s1 + $0x30] sm:$0xff]
  %v24 = vld [vmem:[%s1 + $0x38] sm:$0xff]
  %v25 = vld [vmem:[%s1 + $0x40] sm:$0xff]
  %v26 = vld [vmem:[%s1 + $0x48] sm:$0xff]
  %v27 = vld [vmem:[%s1 + $0x50] sm:$0xff]
  %v28 = vld [vmem:[%s1 + $0x58] sm:$0xff]
  %v29 = vld [vmem:[%s1 + $0x60] sm:$0xff]
  %v30 = vld [vmem:[%s1 + $0x68] sm:$0xff]
  %v31 = vld [vmem:[%s1 + $0x70] sm:$0xff]
  %v32 = vld [vmem:[%s1 + $0x78] sm:$0xff]
  %v33 = vld [vmem:[%s1 + $0x80] sm:$0xff]
  %v34 = vld [vmem:[%s1 + $0x88] sm:$0xff]
  %v35 = vld [vmem:[%s1 + $0x90] sm:$0xff]
  %v36 = vld [vmem:[%s1 + $0x98] sm:$0xff]
  %v37 = vld [vmem:[%s1 + $0xa0] sm:$0xff]
  %v38 = vld [vmem:[%s1 + $0xa8] sm:$0xff]
  %v39 = vld [vmem:[%s1 + $0xb0] sm:$0xff]
  %v40 = vld [vmem:[%s1 + $0xb8] sm:$0xff]
  %v41 = vld [vmem:[%s1 + $0xc0] sm:$0xff]
  %v42 = vld [vmem:[%s1 + $0xc8] sm:$0xff]
  %v43 = vld [vmem:[%s1 + $0xd0] sm:$0xff]
  %v44 = vld [vmem:[%s1 + $0xd8] sm:$0xff]
  %v45 = vld [vmem:[%s1 + $0xe0] sm:$0xff]
  %v46 = vld [vmem:[%s1 + $0xe8] sm:$0xff]
  %v47 = vld [vmem:[%s1 + $0xf0] sm:$0xff]
  %v48 = vld [vmem:[%s1 + $0xf8] sm:$0xff]
  %v49 = vld [vmem:[%s1 + $0x100] sm:$0xff]
  %v50 = vld [vmem:[%s1 + $0x108] sm:$0xff]
  %v51 = vld [vmem:[%s1 + $0x110] sm:$0xff]
  %v52 = vld [vmem:[%s1 + $0x118] sm:$0xff]
  %v53 = vld [vmem:[%s1 + $0x120] sm:$0xff]
  %v54 = vld [vmem:[%s1 + $0x128] sm:$0xff]
  %v55 = vld [vmem:[%s1 + $0x130] sm:$0xff]
  %v56 = vld [vmem:[%s1 + $0x138] sm:$0xff]
  %v57 = vld [vmem:[%s1 + $0x140] sm:$0xff]
  %v58 = vld [vmem:[%s1 + $0x148] sm:$0xff]
  %v59 = vld [vmem:[%s1 + $0x150] sm:$0xff]
  %v60 = vld [vmem:[%s1 + $0x158] sm:$0xff]
  %v61 = vld [vmem:[%s1 + $0x160] sm:$0xff]
  %v62 = vld [vmem:[%s1 + $0x168] sm:$0xff]
  %v63 = vld [vmem:[%s1 + $0x170] sm:$0xff]
  %v64 = vld [vmem:[%s1 + $0x178] sm:$0xff]
  %v65 = vld [vmem:[%s1 + $0x180] sm:$0xff]
  %v66 = vld [vmem:[%s1 + $0x188] sm:$0xff]
  %v67 = vld [vmem:[%s1 + $0x190] sm:$0xff]
  %v68 = vld [vmem:[%s1 + $0x198] sm:$0xff]
  %v69 = vld [vmem:[%s1 + $0x1a0] sm:$0xff]
  %v70 = vld [vmem:[%s1 + $0x1a8] sm:$0xff]
  %v71 = vld [vmem:[%s1 + $0x1b0] sm:$0xff]
  %v72 = vld [vmem:[%s1 + $0x1b8] sm:$0xff]
  %v73 = vld [vmem:[%s1 + $0x1c0] sm:$0xff]
  %v74 = vld [vmem:[%s1 + $0x1c8] sm:$0xff]
  %v75 = vld [vmem:[%s1 + $0x1d0] sm:$0xff]
  %v76 = vld [vmem:[%s1 + $0x1d8] sm:$0xff]
  %v77 = vld [vmem:[%s1 + $0x1e0] sm:$0xff]
  %v78 = vld [vmem:[%s1 + $0x1e8] sm:$0xff]
  %v79 = vld [vmem:[%s1 + $0x1f0] sm:$0xff]
  %v80 = vld [vmem:[%s1 + $0x1f8] sm:$0xff]
  %v81 = vld [vmem:[%s1 + $0x200] sm:$0xff]
  %v82 = vld [vmem:[%s1 + $0x208] sm:$0xff]
  %v83 = vld [vmem:[%s1 + $0x210] sm:$0xff]
  %v84 = vld [vmem:[%s1 + $0x218] sm:$0xff]
  %v85 = vld [vmem:[%s1 + $0x220] sm:$0xff]
  %v86 = vld [vmem:[%s1 + $0x228] sm:$0xff]
  %v87 = vld [vmem:[%s1 + $0x230] sm:$0xff]
  %v88 = vld [vmem:[%s1 + $0x238] sm:$0xff]
  %v89 = vld [vmem:[%s1 + $0x240] sm:$0xff]
  %v90 = vld [vmem:[%s1 + $0x248] sm:$0xff]
  %v91 = vld [vmem:[%s1 + $0x250] sm:$0xff]
  %v92 = vld [vmem:[%s1 + $0x258] sm:$0xff]
  %v93 = vld [vmem:[%s1 + $0x260] sm:$0xff]
  %v94 = vld [vmem:[%s1 + $0x268] sm:$0xff]
  %v95 = vld [vmem:[%s1 + $0x270] sm:$0xff]
  %v96 = vld [vmem:[%s1 + $0x278] sm:$0xff]
  %v97 = vld [vmem:[%s1 + $0x280] sm:$0xff]
  %v98 = vld [vmem:[%s1 + $0x288] sm:$0xff]
  %v99 = vld [vmem:[%s1 + $0x290] sm:$0xff]
  %v100 = vld [vmem:[%s1 + $0x298] sm:$0xff]
  %v101 = vld [vmem:[%s1 + $0x2a0] sm:$0xff]
  %v102 = vld [vmem:[%s1 + $0x2a8] sm:$0xff]
  %v103 = vld [vmem:[%s1 + $0x2b0] sm:$0xff]
  %v104 = vld [vmem:[%s1 + $0x2b8] sm:$0xff]
  %v105 = vld [vmem:[%s1 + $0x2c0] sm:$0xff]
  %v106 = vld [vmem:[%s1 + $0x2c8] sm:$0xff]
  %v107 = vld [vmem:[%s1 + $0x2d0] sm:$0xff]
  %v108 = vld [vmem:[%s1 + $0x2d8] sm:$0xff]
  %v109 = vld [vmem:[%s1 + $0x2e0] sm:$0xff]
  %v110 = vld [vmem:[%s1 + $0x2e8] sm:$0xff]
  %v111 = vld [vmem:[%s1 + $0x2f0] sm:$0xff]
  %v112 = vld [vmem:[%s1 + $0x2f8] sm:$0xff]
  %v113 = vld [vmem:[%s1 + $0x300] sm:$0xff]
  %v114 = vld [vmem:[%s1 + $0x308] sm:$0xff]
  %v115 = vld [vmem:[%s1 + $0x310] sm:$0xff]
  %v116 = vld [vmem:[%s1 + $0x318] sm:$0xff]
  %v117 = vld [vmem:[%s1 + $0x320] sm:$0xff]
  %v118 = vld [vmem:[%s1 + $0x328] sm:$0xff]
  %v119 = vld [vmem:[%s1 + $0x330] sm:$0xff]
  %v120 = vld [vmem:[%s1 + $0x338] sm:$0xff]
  %v121 = vld [vmem:[%s1 + $0x340] sm:$0xff]
  %v122 = vld [vmem:[%s1 + $0x348] sm:$0xff]
  %v123 = vld [vmem:[%s1 + $0x350] sm:$0xff]
  %v124 = vld [vmem:[%s1 + $0x358] sm:$0xff]
  %v125 = vld [vmem:[%s1 + $0x360] sm:$0xff]
  %v126 = vld [vmem:[%s1 + $0x368] sm:$0xff]
  %v127 = vld [vmem:[%s1 + $0x370] sm:$0xff]
  %v128 = vld [vmem:[%s1 + $0x378] sm:$0xff]
  %v129 = vld [vmem:[%s1 + $0x380] sm:$0xff]
  %v130 = vld [vmem:[%s1 + $0x388] sm:$0xff]
  %v131 = vld [vmem:[%s1 + $0x390] sm:$0xff]
  %v132 = vld [vmem:[%s1 + $0x398] sm:$0xff]
  %v133 = vld [vmem:[%s1 + $0x3a0] sm:$0xff]
  %v134 = vld [vmem:[%s1 + $0x3a8] sm:$0xff]
  %v135 = vld [vmem:[%s1 + $0x3b0] sm:$0xff]
  %v136 = vld [vmem:[%s1 + $0x3b8] sm:$0xff]
  %v137 = vld [vmem:[%s1 + $0x3c0] sm:$0xff]
  %v138 = vld [vmem:[%s1 + $0x3c8] sm:$0xff]
  %v139 = vld [vmem:[%s1 + $0x3d0] sm:$0xff]
  %v140 = vld [vmem:[%s1 + $0x3d8] sm:$0xff]
  %v141 = vld [vmem:[%s1 + $0x3e0] sm:$0xff]
  %v142 = vld [vmem:[%s1 + $0x3e8] sm:$0xff]
  %v143 = vld [vmem:[%s1 + $0x3f0] sm:$0xff]
  %v144 = vld [vmem:[%s1 + $0x3f8] sm:$0xff]
  %v145 = vld [vmem:[%s1 + $0x400] sm:$0xff]
  %v146 = vld [vmem:[%s1 + $0x408] sm:$0xff]
  %v147 = vld [vmem:[%s1 + $0x410] sm:$0xff]
  %v148 = vld [vmem:[%s1 + $0x418] sm:$0xff]
  %v149 = vld [vmem:[%s1 + $0x420] sm:$0xff]
  %v150 = vld [vmem:[%s1 + $0x428] sm:$0xff]
  %v151 = vld [vmem:[%s1 + $0x430] sm:$0xff]
  %v152 = vld [vmem:[%s1 + $0x438] sm:$0xff]
  %v153 = vld [vmem:[%s1 + $0x440] sm:$0xff]
  %v154 = vld [vmem:[%s1 + $0x448] sm:$0xff]
  %v155 = vld [vmem:[%s1 + $0x450] sm:$0xff]
  %v156 = vld [vmem:[%s1 + $0x458] sm:$0xff]
  %v157 = vld [vmem:[%s1 + $0x460] sm:$0xff]
  %v158 = vld [vmem:[%s1 + $0x468] sm:$0xff]
  %v159 = vld [vmem:[%s1 + $0x470] sm:$0xff]
  %v160 = vld [vmem:[%s1 + $0x478] sm:$0xff]
  %v161 = vld [vmem:[%s1 + $0x480] sm:$0xff]
  %v162 = vld [vmem:[%s1 + $0x488] sm:$0xff]
  %v163 = vld [vmem:[%s1 + $0x490] sm:$0xff]
  %v164 = vld [vmem:[%s0] sm:$0xff]
  %v165 = vld [vmem:[%s0 + $0x8] sm:$0xff]
  %v166 = vld [vmem:[%s0 + $0x10] sm:$0xff]
  %v167 = vld [vmem:[%s0 + $0x18] sm:$0xff]
  %v168 = vld [vmem:[%s2] sm:$0xff]
  %v169 = vld [vmem:[%s2 + $0x8] sm:$0xff]
  %v170 = vld [vmem:[%s2 + $0x10] sm:$0xff]
  %v171 = vld [vmem:[%s2 + $0x18] sm:$0xff]
  %v172 = vld [vmem:[%s2 + $0x20] sm:$0xff]
  %v173 = vld [vmem:[%s2 + $0x28] sm:$0xff]
  %v174 = vld [vmem:[%s2 + $0x30] sm:$0xff]
  %v175 = vld [vmem:[%s2 + $0x38] sm:$0xff]
  %v176 = vld [vmem:[%s2 + $0x40] sm:$0xff]
  %v177 = vld [vmem:[%s2 + $0x48] sm:$0xff]
  %v178 = vld [vmem:[%s2 + $0x50] sm:$0xff]
  %v179 = vld [vmem:[%s2 + $0x58] sm:$0xff]
  %v180 = vld [vmem:[%s2 + $0x60] sm:$0xff]
  %v181 = vld [vmem:[%s2 + $0x68] sm:$0xff]
  %v182 = vld [vmem:[%s2 + $0x70] sm:$0xff]
  %v183 = vld [vmem:[%s2 + $0x78] sm:$0xff]
  %v184 = vld [vmem:[%s2 + $0x80] sm:$0xff]
  %v185 = vld [vmem:[%s2 + $0x88] sm:$0xff]
  %v186 = vld [vmem:[%s2 + $0x90] sm:$0xff]
  %v187 = vld [vmem:[%s2 + $0x98] sm:$0xff]
  %v188 = vld [vmem:[%s2 + $0xa0] sm:$0xff]
  %v189 = vld [vmem:[%s2 + $0xa8] sm:$0xff]
  %v190 = vld [vmem:[%s2 + $0xb0] sm:$0xff]
  %v191 = vld [vmem:[%s2 + $0xb8] sm:$0xff]
  %v192 = vld [vmem:[%s2 + $0xc0] sm:$0xff]
  %v193 = vld [vmem:[%s2 + $0xc8] sm:$0xff]
  %v194 = vld [vmem:[%s2 + $0xd0] sm:$0xff]
  %v195 = vld [vmem:[%s2 + $0xd8] sm:$0xff]
  %v196 = vld [vmem:[%s2 + $0xe0] sm:$0xff]
  %v197 = vld [vmem:[%s2 + $0xe8] sm:$0xff]
  %v198 = vld [vmem:[%s2 + $0xf0] sm:$0xff]
  %v199 = vld [vmem:[%s2 + $0xf8] sm:$0xff]
  %v200 = vld [vmem:[%s2 + $0x100] sm:$0xff]
  %v201 = vld [vmem:[%s2 + $0x108] sm:$0xff]
  %v202 = vld [vmem:[%s2 + $0x110] sm:$0xff]
  %v203 = vld [vmem:[%s2 + $0x118] sm:$0xff]
  %v204 = vld [vmem:[%s2 + $0x120] sm:$0xff]
  %v205 = vld [vmem:[%s2 + $0x128] sm:$0xff]
  %v206 = vld [vmem:[%s2 + $0x130] sm:$0xff]
  %v207 = vld [vmem:[%s2 + $0x138] sm:$0xff]
  %v208 = vld [vmem:[%s2 + $0x140] sm:$0xff]
  %v209 = vld [vmem:[%s2 + $0x148] sm:$0xff]
  %v210 = vld [vmem:[%s2 + $0x150] sm:$0xff]
  %v211 = vld [vmem:[%s2 + $0x158] sm:$0xff]
  %v212 = vld [vmem:[%s2 + $0x160] sm:$0xff]
  %v213 = vld [vmem:[%s2 + $0x168] sm:$0xff]
  %v214 = vld [vmem:[%s2 + $0x170] sm:$0xff]
  %v215 = vld [vmem:[%s2 + $0x178] sm:$0xff]
  %v216 = vld [vmem:[%s2 + $0x180] sm:$0xff]
  %v217 = vld [vmem:[%s2 + $0x188] sm:$0xff]
  %v218 = vld [vmem:[%s2 + $0x190] sm:$0xff]
  %v219 = vld [vmem:[%s2 + $0x198] sm:$0xff]
  %v220 = vld [vmem:[%s2 + $0x1a0] sm:$0xff]
  %v221 = vld [vmem:[%s2 + $0x1a8] sm:$0xff]
  %v222 = vld [vmem:[%s2 + $0x1b0] sm:$0xff]
  %v223 = vld [vmem:[%s2 + $0x1b8] sm:$0xff]
  %v224 = vld [vmem:[%s2 + $0x1c0] sm:$0xff]
  %v225 = vld [vmem:[%s2 + $0x1c8] sm:$0xff]
  %v226 = vld [vmem:[%s2 + $0x1d0] sm:$0xff]
  %v227 = vld [vmem:[%s2 + $0x1d8] sm:$0xff]
  %v228 = vld [vmem:[%s2 + $0x1e0] sm:$0xff]
  %v229 = vld [vmem:[%s2 + $0x1e8] sm:$0xff]
  %v230 = vld [vmem:[%s2 + $0x1f0] sm:$0xff]
  %v231 = vld [vmem:[%s2 + $0x1f8] sm:$0xff]
  %v232 = vld [vmem:[%s2 + $0x200] sm:$0xff]
  %v233 = vld [vmem:[%s2 + $0x208] sm:$0xff]
  %v234 = vld [vmem:[%s2 + $0x210] sm:$0xff]
  %v235 = vld [vmem:[%s2 + $0x218] sm:$0xff]
  %v236 = vld [vmem:[%s2 + $0x220] sm:$0xff]
  %v237 = vld [vmem:[%s2 + $0x228] sm:$0xff]
  %v238 = vld [vmem:[%s2 + $0x230] sm:$0xff]
  %v239 = vld [vmem:[%s2 + $0x238] sm:$0xff]
  %v240 = vld [vmem:[%s2 + $0x240] sm:$0xff]
  %v241 = vld [vmem:[%s2 + $0x248] sm:$0xff]
  %v242 = vld [vmem:[%s2 + $0x250] sm:$0xff]
  %v243 = vld [vmem:[%s2 + $0x258] sm:$0xff]
  %v244 = vld [vmem:[%s2 + $0x260] sm:$0xff]
  %v245 = vld [vmem:[%s2 + $0x268] sm:$0xff]
  %v246 = vld [vmem:[%s2 + $0x270] sm:$0xff]
  %v247 = vld [vmem:[%s2 + $0x278] sm:$0xff]
  %v248 = vld [vmem:[%s2 + $0x280] sm:$0xff]
  %v249 = vld [vmem:[%s2 + $0x288] sm:$0xff]
  %v250 = vld [vmem:[%s2 + $0x290] sm:$0xff]
  %v251 = vld [vmem:[%s2 + $0x298] sm:$0xff]
  %v252 = vld [vmem:[%s2 + $0x2a0] sm:$0xff]
  %v253 = vld [vmem:[%s2 + $0x2a8] sm:$0xff]
  %v254 = vld [vmem:[%s2 + $0x2b0] sm:$0xff]
  %v255 = vld [vmem:[%s2 + $0x2b8] sm:$0xff]
  %v256 = vld [vmem:[%s2 + $0x2c0] sm:$0xff]
  %v257 = vld [vmem:[%s2 + $0x2c8] sm:$0xff]
  %v258 = vld [vmem:[%s2 + $0x2d0] sm:$0xff]
  %v259 = vld [vmem:[%s2 + $0x2d8] sm:$0xff]
  %v260 = vld [vmem:[%s2 + $0x2e0] sm:$0xff]
  %v261 = vld [vmem:[%s2 + $0x2e8] sm:$0xff]
  %v262 = vld [vmem:[%s2 + $0x2f0] sm:$0xff]
  %v263 = vld [vmem:[%s2 + $0x2f8] sm:$0xff]
  %v264 = vld [vmem:[%s2 + $0x300] sm:$0xff]
  %v265 = vld [vmem:[%s2 + $0x308] sm:$0xff]
  %v266 = vld [vmem:[%s2 + $0x310] sm:$0xff]
  %v267 = vld [vmem:[%s2 + $0x318] sm:$0xff]
  %v268 = vld [vmem:[%s2 + $0x320] sm:$0xff]
  %v269 = vld [vmem:[%s2 + $0x328] sm:$0xff]
  %v270 = vld [vmem:[%s2 + $0x330] sm:$0xff]
  %v271 = vld [vmem:[%s2 + $0x338] sm:$0xff]
  %v272 = vld [vmem:[%s2 + $0x340] sm:$0xff]
  %v273 = vld [vmem:[%s2 + $0x348] sm:$0xff]
  %v274 = vld [vmem:[%s2 + $0x350] sm:$0xff]
  %v275 = vld [vmem:[%s2 + $0x358] sm:$0xff]
  %v276 = vld [vmem:[%s2 + $0x360] sm:$0xff]
  %v277 = vld [vmem:[%s2 + $0x368] sm:$0xff]
  %v278 = vld [vmem:[%s2 + $0x370] sm:$0xff]
  %v279 = vld [vmem:[%s2 + $0x378] sm:$0xff]
  %v280 = vld [vmem:[%s2 + $0x380] sm:$0xff]
  %v281 = vld [vmem:[%s2 + $0x388] sm:$0xff]
  %v282 = vld [vmem:[%s2 + $0x390] sm:$0xff]
  %v283 = vld [vmem:[%s2 + $0x398] sm:$0xff]
  %v284 = vld [vmem:[%s2 + $0x3a0] sm:$0xff]
  %v285 = vld [vmem:[%s2 + $0x3a8] sm:$0xff]
  %v286 = vld [vmem:[%s2 + $0x3b0] sm:$0xff]
  %v287 = vld [vmem:[%s2 + $0x3b8] sm:$0xff]
  %v288 = vld [vmem:[%s2 + $0x3c0] sm:$0xff]
  %v289 = vld [vmem:[%s2 + $0x3c8] sm:$0xff]
  %v290 = vld [vmem:[%s2 + $0x3d0] sm:$0xff]
  %v291 = vld [vmem:[%s2 + $0x3d8] sm:$0xff]
  %v292 = vld [vmem:[%s2 + $0x3e0] sm:$0xff]
  %v293 = vld [vmem:[%s2 + $0x3e8] sm:$0xff]
  %v294 = vld [vmem:[%s2 + $0x3f0] sm:$0xff]
  %v295 = vld [vmem:[%s2 + $0x3f8] sm:$0xff]
  %v296 = vld [vmem:[%s2 + $0x400] sm:$0xff]
  %v297 = vld [vmem:[%s2 + $0x408] sm:$0xff]
  %v298 = vld [vmem:[%s2 + $0x410] sm:$0xff]
  %v299 = vld [vmem:[%s2 + $0x418] sm:$0xff]
  %v300 = vld [vmem:[%s2 + $0x420] sm:$0xff]
  %v301 = vld [vmem:[%s2 + $0x428] sm:$0xff]
  %v302 = vld [vmem:[%s2 + $0x430] sm:$0xff]
  %v303 = vld [vmem:[%s2 + $0x438] sm:$0xff]
  %v304 = vld [vmem:[%s2 + $0x440] sm:$0xff]
  %v305 = vld [vmem:[%s2 + $0x448] sm:$0xff]
  %v306 = vld [vmem:[%s2 + $0x450] sm:$0xff]
  %v307 = vld [vmem:[%s2 + $0x458] sm:$0xff]
  %v308 = vld [vmem:[%s2 + $0x460] sm:$0xff]
  %v309 = vld [vmem:[%s2 + $0x468] sm:$0xff]
  %v310 = vld [vmem:[%s2 + $0x470] sm:$0xff]
  %v311 = vld [vmem:[%s2 + $0x478] sm:$0xff]
  %v312 = vld [vmem:[%s2 + $0x480] sm:$0xff]
  %v313 = vld [vmem:[%s2 + $0x488] sm:$0xff]
  %v314 = vld [vmem:[%s2 + $0x490] sm:$0xff]
  %316 = vset.pattern.permute.xlu0 0
  %317 = vperm.xlu0 %316, %v168
  %v318 = vpop.permute.xlu0 %317
  %321 = vset.pattern.permute.xlu0 0
  %322 = vperm.xlu0 %321, %v169
  %v323 = vpop.permute.xlu0 %322
  %326 = vset.pattern.permute.xlu0 0
  %327 = vperm.xlu0 %326, %v170
  %v328 = vpop.permute.xlu0 %327
  %331 = vset.pattern.permute.xlu0 0
  %332 = vperm.xlu0 %331, %v171
  %v333 = vpop.permute.xlu0 %332
  %336 = vset.pattern.permute.xlu0 0
  %337 = vperm.xlu0 %336, %v172
  %v338 = vpop.permute.xlu0 %337
  %341 = vset.pattern.permute.xlu0 0
  %342 = vperm.xlu0 %341, %v173
  %v343 = vpop.permute.xlu0 %342
  %346 = vset.pattern.permute.xlu0 0
  %347 = vperm.xlu0 %346, %v174
  %v348 = vpop.permute.xlu0 %347
  %351 = vset.pattern.permute.xlu0 0
  %352 = vperm.xlu0 %351, %v175
  %v353 = vpop.permute.xlu0 %352
  %356 = vset.pattern.permute.xlu0 0
  %357 = vperm.xlu0 %356, %v176
  %v358 = vpop.permute.xlu0 %357
  %361 = vset.pattern.permute.xlu0 0
  %362 = vperm.xlu0 %361, %v177
  %v363 = vpop.permute.xlu0 %362
  %366 = vset.pattern.permute.xlu0 0
  %367 = vperm.xlu0 %366, %v178
  %v368 = vpop.permute.xlu0 %367
  %371 = vset.pattern.permute.xlu0 0
  %372 = vperm.xlu0 %371, %v179
  %v373 = vpop.permute.xlu0 %372
  %376 = vset.pattern.permute.xlu0 0
  %377 = vperm.xlu0 %376, %v180
  %v378 = vpop.permute.xlu0 %377
  %381 = vset.pattern.permute.xlu0 0
  %382 = vperm.xlu0 %381, %v181
  %v383 = vpop.permute.xlu0 %382
  %386 = vset.pattern.permute.xlu0 0
  %387 = vperm.xlu0 %386, %v182
  %v388 = vpop.permute.xlu0 %387
  %391 = vset.pattern.permute.xlu0 0
  %392 = vperm.xlu0 %391, %v183
  %v393 = vpop.permute.xlu0 %392
  %396 = vset.pattern.permute.xlu0 0
  %397 = vperm.xlu0 %396, %v184
  %v398 = vpop.permute.xlu0 %397
  %401 = vset.pattern.permute.xlu0 0
  %402 = vperm.xlu0 %401, %v185
  %v403 = vpop.permute.xlu0 %402
  %406 = vset.pattern.permute.xlu0 0
  %407 = vperm.xlu0 %406, %v186
  %v408 = vpop.permute.xlu0 %407
  %411 = vset.pattern.permute.xlu0 0
  %412 = vperm.xlu0 %411, %v187
  %v413 = vpop.permute.xlu0 %412
  %416 = vset.pattern.permute.xlu0 0
  %417 = vperm.xlu0 %416, %v188
  %v418 = vpop.permute.xlu0 %417
  %421 = vset.pattern.permute.xlu0 0
  %422 = vperm.xlu0 %421, %v189
  %v423 = vpop.permute.xlu0 %422
  %426 = vset.pattern.permute.xlu0 0
  %427 = vperm.xlu0 %426, %v190
  %v428 = vpop.permute.xlu0 %427
  %431 = vset.pattern.permute.xlu0 0
  %432 = vperm.xlu0 %431, %v191
  %v433 = vpop.permute.xlu0 %432
  %436 = vset.pattern.permute.xlu0 0
  %437 = vperm.xlu0 %436, %v192
  %v438 = vpop.permute.xlu0 %437
  %441 = vset.pattern.permute.xlu0 0
  %442 = vperm.xlu0 %441, %v193
  %v443 = vpop.permute.xlu0 %442
  %446 = vset.pattern.permute.xlu0 0
  %447 = vperm.xlu0 %446, %v194
  %v448 = vpop.permute.xlu0 %447
  %451 = vset.pattern.permute.xlu0 0
  %452 = vperm.xlu0 %451, %v195
  %v453 = vpop.permute.xlu0 %452
  %456 = vset.pattern.permute.xlu0 0
  %457 = vperm.xlu0 %456, %v196
  %v458 = vpop.permute.xlu0 %457
  %461 = vset.pattern.permute.xlu0 0
  %462 = vperm.xlu0 %461, %v197
  %v463 = vpop.permute.xlu0 %462
  %466 = vset.pattern.permute.xlu0 0
  %467 = vperm.xlu0 %466, %v198
  %v468 = vpop.permute.xlu0 %467
  %471 = vset.pattern.permute.xlu0 0
  %472 = vperm.xlu0 %471, %v199
  %v473 = vpop.permute.xlu0 %472
  %476 = vset.pattern.permute.xlu0 0
  %477 = vperm.xlu0 %476, %v200
  %v478 = vpop.permute.xlu0 %477
  %481 = vset.pattern.permute.xlu0 0
  %482 = vperm.xlu0 %481, %v201
  %v483 = vpop.permute.xlu0 %482
  %486 = vset.pattern.permute.xlu0 0
  %487 = vperm.xlu0 %486, %v202
  %v488 = vpop.permute.xlu0 %487
  %491 = vset.pattern.permute.xlu0 0
  %492 = vperm.xlu0 %491, %v203
  %v493 = vpop.permute.xlu0 %492
  %496 = vset.pattern.permute.xlu0 0
  %497 = vperm.xlu0 %496, %v204
  %v498 = vpop.permute.xlu0 %497
  %501 = vset.pattern.permute.xlu0 0
  %502 = vperm.xlu0 %501, %v205
  %v503 = vpop.permute.xlu0 %502
  %506 = vset.pattern.permute.xlu0 0
  %507 = vperm.xlu0 %506, %v206
  %v508 = vpop.permute.xlu0 %507
  %511 = vset.pattern.permute.xlu0 0
  %512 = vperm.xlu0 %511, %v207
  %v513 = vpop.permute.xlu0 %512
  %516 = vset.pattern.permute.xlu0 0
  %517 = vperm.xlu0 %516, %v208
  %v518 = vpop.permute.xlu0 %517
  %521 = vset.pattern.permute.xlu0 0
  %522 = vperm.xlu0 %521, %v209
  %v523 = vpop.permute.xlu0 %522
  %526 = vset.pattern.permute.xlu0 0
  %527 = vperm.xlu0 %526, %v210
  %v528 = vpop.permute.xlu0 %527
  %531 = vset.pattern.permute.xlu0 0
  %532 = vperm.xlu0 %531, %v211
  %v533 = vpop.permute.xlu0 %532
  %536 = vset.pattern.permute.xlu0 0
  %537 = vperm.xlu0 %536, %v212
  %v538 = vpop.permute.xlu0 %537
  %541 = vset.pattern.permute.xlu0 0
  %542 = vperm.xlu0 %541, %v213
  %v543 = vpop.permute.xlu0 %542
  %546 = vset.pattern.permute.xlu0 0
  %547 = vperm.xlu0 %546, %v214
  %v548 = vpop.permute.xlu0 %547
  %551 = vset.pattern.permute.xlu0 0
  %552 = vperm.xlu0 %551, %v215
  %v553 = vpop.permute.xlu0 %552
  %556 = vset.pattern.permute.xlu0 0
  %557 = vperm.xlu0 %556, %v216
  %v558 = vpop.permute.xlu0 %557
  %561 = vset.pattern.permute.xlu0 0
  %562 = vperm.xlu0 %561, %v217
  %v563 = vpop.permute.xlu0 %562
  %566 = vset.pattern.permute.xlu0 0
  %567 = vperm.xlu0 %566, %v218
  %v568 = vpop.permute.xlu0 %567
  %571 = vset.pattern.permute.xlu0 0
  %572 = vperm.xlu0 %571, %v219
  %v573 = vpop.permute.xlu0 %572
  %576 = vset.pattern.permute.xlu0 0
  %577 = vperm.xlu0 %576, %v220
  %v578 = vpop.permute.xlu0 %577
  %581 = vset.pattern.permute.xlu0 0
  %582 = vperm.xlu0 %581, %v221
  %v583 = vpop.permute.xlu0 %582
  %586 = vset.pattern.permute.xlu0 0
  %587 = vperm.xlu0 %586, %v222
  %v588 = vpop.permute.xlu0 %587
  %591 = vset.pattern.permute.xlu0 0
  %592 = vperm.xlu0 %591, %v223
  %v593 = vpop.permute.xlu0 %592
  %596 = vset.pattern.permute.xlu0 0
  %597 = vperm.xlu0 %596, %v224
  %v598 = vpop.permute.xlu0 %597
  %601 = vset.pattern.permute.xlu0 0
  %602 = vperm.xlu0 %601, %v225
  %v603 = vpop.permute.xlu0 %602
  %606 = vset.pattern.permute.xlu0 0
  %607 = vperm.xlu0 %606, %v226
  %v608 = vpop.permute.xlu0 %607
  %611 = vset.pattern.permute.xlu0 0
  %612 = vperm.xlu0 %611, %v227
  %v613 = vpop.permute.xlu0 %612
  %616 = vset.pattern.permute.xlu0 0
  %617 = vperm.xlu0 %616, %v228
  %v618 = vpop.permute.xlu0 %617
  %621 = vset.pattern.permute.xlu0 0
  %622 = vperm.xlu0 %621, %v229
  %v623 = vpop.permute.xlu0 %622
  %626 = vset.pattern.permute.xlu0 0
  %627 = vperm.xlu0 %626, %v230
  %v628 = vpop.permute.xlu0 %627
  %631 = vset.pattern.permute.xlu0 0
  %632 = vperm.xlu0 %631, %v231
  %v633 = vpop.permute.xlu0 %632
  %636 = vset.pattern.permute.xlu0 0
  %637 = vperm.xlu0 %636, %v232
  %v638 = vpop.permute.xlu0 %637
  %641 = vset.pattern.permute.xlu0 0
  %642 = vperm.xlu0 %641, %v233
  %v643 = vpop.permute.xlu0 %642
  %646 = vset.pattern.permute.xlu0 0
  %647 = vperm.xlu0 %646, %v234
  %v648 = vpop.permute.xlu0 %647
  %651 = vset.pattern.permute.xlu0 0
  %652 = vperm.xlu0 %651, %v235
  %v653 = vpop.permute.xlu0 %652
  %656 = vset.pattern.permute.xlu0 0
  %657 = vperm.xlu0 %656, %v236
  %v658 = vpop.permute.xlu0 %657
  %661 = vset.pattern.permute.xlu0 0
  %662 = vperm.xlu0 %661, %v237
  %v663 = vpop.permute.xlu0 %662
  %666 = vset.pattern.permute.xlu0 0
  %667 = vperm.xlu0 %666, %v238
  %v668 = vpop.permute.xlu0 %667
  %671 = vset.pattern.permute.xlu0 0
  %672 = vperm.xlu0 %671, %v239
  %v673 = vpop.permute.xlu0 %672
  %676 = vset.pattern.permute.xlu0 0
  %677 = vperm.xlu0 %676, %v240
  %v678 = vpop.permute.xlu0 %677
  %681 = vset.pattern.permute.xlu0 0
  %682 = vperm.xlu0 %681, %v241
  %v683 = vpop.permute.xlu0 %682
  %686 = vset.pattern.permute.xlu0 0
  %687 = vperm.xlu0 %686, %v242
  %v688 = vpop.permute.xlu0 %687
  %691 = vset.pattern.permute.xlu0 0
  %692 = vperm.xlu0 %691, %v243
  %v693 = vpop.permute.xlu0 %692
  %696 = vset.pattern.permute.xlu0 0
  %697 = vperm.xlu0 %696, %v244
  %v698 = vpop.permute.xlu0 %697
  %701 = vset.pattern.permute.xlu0 0
  %702 = vperm.xlu0 %701, %v245
  %v703 = vpop.permute.xlu0 %702
  %706 = vset.pattern.permute.xlu0 0
  %707 = vperm.xlu0 %706, %v246
  %v708 = vpop.permute.xlu0 %707
  %711 = vset.pattern.permute.xlu0 0
  %712 = vperm.xlu0 %711, %v247
  %v713 = vpop.permute.xlu0 %712
  %716 = vset.pattern.permute.xlu0 0
  %717 = vperm.xlu0 %716, %v248
  %v718 = vpop.permute.xlu0 %717
  %721 = vset.pattern.permute.xlu0 0
  %722 = vperm.xlu0 %721, %v249
  %v723 = vpop.permute.xlu0 %722
  %726 = vset.pattern.permute.xlu0 0
  %727 = vperm.xlu0 %726, %v250
  %v728 = vpop.permute.xlu0 %727
  %731 = vset.pattern.permute.xlu0 0
  %732 = vperm.xlu0 %731, %v251
  %v733 = vpop.permute.xlu0 %732
  %736 = vset.pattern.permute.xlu0 0
  %737 = vperm.xlu0 %736, %v252
  %v738 = vpop.permute.xlu0 %737
  %741 = vset.pattern.permute.xlu0 0
  %742 = vperm.xlu0 %741, %v253
  %v743 = vpop.permute.xlu0 %742
  %746 = vset.pattern.permute.xlu0 0
  %747 = vperm.xlu0 %746, %v254
  %v748 = vpop.permute.xlu0 %747
  %751 = vset.pattern.permute.xlu0 0
  %752 = vperm.xlu0 %751, %v255
  %v753 = vpop.permute.xlu0 %752
  %756 = vset.pattern.permute.xlu0 0
  %757 = vperm.xlu0 %756, %v256
  %v758 = vpop.permute.xlu0 %757
  %761 = vset.pattern.permute.xlu0 0
  %762 = vperm.xlu0 %761, %v257
  %v763 = vpop.permute.xlu0 %762
  %766 = vset.pattern.permute.xlu0 0
  %767 = vperm.xlu0 %766, %v258
  %v768 = vpop.permute.xlu0 %767
  %771 = vset.pattern.permute.xlu0 0
  %772 = vperm.xlu0 %771, %v259
  %v773 = vpop.permute.xlu0 %772
  %776 = vset.pattern.permute.xlu0 0
  %777 = vperm.xlu0 %776, %v260
  %v778 = vpop.permute.xlu0 %777
  %781 = vset.pattern.permute.xlu0 0
  %782 = vperm.xlu0 %781, %v261
  %v783 = vpop.permute.xlu0 %782
  %786 = vset.pattern.permute.xlu0 0
  %787 = vperm.xlu0 %786, %v262
  %v788 = vpop.permute.xlu0 %787
  %791 = vset.pattern.permute.xlu0 0
  %792 = vperm.xlu0 %791, %v263
  %v793 = vpop.permute.xlu0 %792
  %796 = vset.pattern.permute.xlu0 0
  %797 = vperm.xlu0 %796, %v264
  %v798 = vpop.permute.xlu0 %797
  %801 = vset.pattern.permute.xlu0 0
  %802 = vperm.xlu0 %801, %v265
  %v803 = vpop.permute.xlu0 %802
  %806 = vset.pattern.permute.xlu0 0
  %807 = vperm.xlu0 %806, %v266
  %v808 = vpop.permute.xlu0 %807
  %811 = vset.pattern.permute.xlu0 0
  %812 = vperm.xlu0 %811, %v267
  %v813 = vpop.permute.xlu0 %812
  %816 = vset.pattern.permute.xlu0 0
  %817 = vperm.xlu0 %816, %v268
  %v818 = vpop.permute.xlu0 %817
  %821 = vset.pattern.permute.xlu0 0
  %822 = vperm.xlu0 %821, %v269
  %v823 = vpop.permute.xlu0 %822
  %826 = vset.pattern.permute.xlu0 0
  %827 = vperm.xlu0 %826, %v270
  %v828 = vpop.permute.xlu0 %827
  %831 = vset.pattern.permute.xlu0 0
  %832 = vperm.xlu0 %831, %v271
  %v833 = vpop.permute.xlu0 %832
  %836 = vset.pattern.permute.xlu0 0
  %837 = vperm.xlu0 %836, %v272
  %v838 = vpop.permute.xlu0 %837
  %841 = vset.pattern.permute.xlu0 0
  %842 = vperm.xlu0 %841, %v273
  %v843 = vpop.permute.xlu0 %842
  %846 = vset.pattern.permute.xlu0 0
  %847 = vperm.xlu0 %846, %v274
  %v848 = vpop.permute.xlu0 %847
  %851 = vset.pattern.permute.xlu0 0
  %852 = vperm.xlu0 %851, %v275
  %v853 = vpop.permute.xlu0 %852
  %856 = vset.pattern.permute.xlu0 0
  %857 = vperm.xlu0 %856, %v276
  %v858 = vpop.permute.xlu0 %857
  %861 = vset.pattern.permute.xlu0 0
  %862 = vperm.xlu0 %861, %v277
  %v863 = vpop.permute.xlu0 %862
  %866 = vset.pattern.permute.xlu0 0
  %867 = vperm.xlu0 %866, %v278
  %v868 = vpop.permute.xlu0 %867
  %871 = vset.pattern.permute.xlu0 0
  %872 = vperm.xlu0 %871, %v279
  %v873 = vpop.permute.xlu0 %872
  %876 = vset.pattern.permute.xlu0 0
  %877 = vperm.xlu0 %876, %v280
  %v878 = vpop.permute.xlu0 %877
  %881 = vset.pattern.permute.xlu0 0
  %882 = vperm.xlu0 %881, %v281
  %v883 = vpop.permute.xlu0 %882
  %886 = vset.pattern.permute.xlu0 0
  %887 = vperm.xlu0 %886, %v282
  %v888 = vpop.permute.xlu0 %887
  %891 = vset.pattern.permute.xlu0 0
  %892 = vperm.xlu0 %891, %v283
  %v893 = vpop.permute.xlu0 %892
  %896 = vset.pattern.permute.xlu0 0
  %897 = vperm.xlu0 %896, %v284
  %v898 = vpop.permute.xlu0 %897
  %901 = vset.pattern.permute.xlu0 0
  %902 = vperm.xlu0 %901, %v285
  %v903 = vpop.permute.xlu0 %902
  %906 = vset.pattern.permute.xlu0 0
  %907 = vperm.xlu0 %906, %v286
  %v908 = vpop.permute.xlu0 %907
  %911 = vset.pattern.permute.xlu0 0
  %912 = vperm.xlu0 %911, %v287
  %v913 = vpop.permute.xlu0 %912
  %916 = vset.pattern.permute.xlu0 0
  %917 = vperm.xlu0 %916, %v288
  %v918 = vpop.permute.xlu0 %917
  %921 = vset.pattern.permute.xlu0 0
  %922 = vperm.xlu0 %921, %v289
  %v923 = vpop.permute.xlu0 %922
  %926 = vset.pattern.permute.xlu0 0
  %927 = vperm.xlu0 %926, %v290
  %v928 = vpop.permute.xlu0 %927
  %931 = vset.pattern.permute.xlu0 0
  %932 = vperm.xlu0 %931, %v291
  %v933 = vpop.permute.xlu0 %932
  %936 = vset.pattern.permute.xlu0 0
  %937 = vperm.xlu0 %936, %v292
  %v938 = vpop.permute.xlu0 %937
  %941 = vset.pattern.permute.xlu0 0
  %942 = vperm.xlu0 %941, %v293
  %v943 = vpop.permute.xlu0 %942
  %946 = vset.pattern.permute.xlu0 0
  %947 = vperm.xlu0 %946, %v294
  %v948 = vpop.permute.xlu0 %947
  %951 = vset.pattern.permute.xlu0 0
  %952 = vperm.xlu0 %951, %v295
  %v953 = vpop.permute.xlu0 %952
  %956 = vset.pattern.permute.xlu0 0
  %957 = vperm.xlu0 %956, %v296
  %v958 = vpop.permute.xlu0 %957
  %961 = vset.pattern.permute.xlu0 0
  %962 = vperm.xlu0 %961, %v297
  %v963 = vpop.permute.xlu0 %962
  %966 = vset.pattern.permute.xlu0 0
  %967 = vperm.xlu0 %966, %v298
  %v968 = vpop.permute.xlu0 %967
  %971 = vset.pattern.permute.xlu0 0
  %972 = vperm.xlu0 %971, %v299
  %v973 = vpop.permute.xlu0 %972
  %976 = vset.pattern.permute.xlu0 0
  %977 = vperm.xlu0 %976, %v300
  %v978 = vpop.permute.xlu0 %977
  %981 = vset.pattern.permute.xlu0 0
  %982 = vperm.xlu0 %981, %v301
  %v983 = vpop.permute.xlu0 %982
  %986 = vset.pattern.permute.xlu0 0
  %987 = vperm.xlu0 %986, %v302
  %v988 = vpop.permute.xlu0 %987
  %991 = vset.pattern.permute.xlu0 0
  %992 = vperm.xlu0 %991, %v303
  %v993 = vpop.permute.xlu0 %992
  %996 = vset.pattern.permute.xlu0 0
  %997 = vperm.xlu0 %996, %v304
  %v998 = vpop.permute.xlu0 %997
  %1001 = vset.pattern.permute.xlu0 0
  %1002 = vperm.xlu0 %1001, %v305
  %v1003 = vpop.permute.xlu0 %1002
  %1006 = vset.pattern.permute.xlu0 0
  %1007 = vperm.xlu0 %1006, %v306
  %v1008 = vpop.permute.xlu0 %1007
  %1011 = vset.pattern.permute.xlu0 0
  %1012 = vperm.xlu0 %1011, %v307
  %v1013 = vpop.permute.xlu0 %1012
  %1016 = vset.pattern.permute.xlu0 0
  %1017 = vperm.xlu0 %1016, %v308
  %v1018 = vpop.permute.xlu0 %1017
  %1021 = vset.pattern.permute.xlu0 0
  %1022 = vperm.xlu0 %1021, %v309
  %v1023 = vpop.permute.xlu0 %1022
  %1026 = vset.pattern.permute.xlu0 0
  %1027 = vperm.xlu0 %1026, %v310
  %v1028 = vpop.permute.xlu0 %1027
  %1031 = vset.pattern.permute.xlu0 0
  %1032 = vperm.xlu0 %1031, %v311
  %v1033 = vpop.permute.xlu0 %1032
  %1036 = vset.pattern.permute.xlu0 0
  %1037 = vperm.xlu0 %1036, %v312
  %v1038 = vpop.permute.xlu0 %1037
  %1041 = vset.pattern.permute.xlu0 0
  %1042 = vperm.xlu0 %1041, %v313
  %v1043 = vpop.permute.xlu0 %1042
  %1046 = vset.pattern.permute.xlu0 0
  %1047 = vperm.xlu0 %1046, %v314
  %v1048 = vpop.permute.xlu0 %1047
  %vm1050 = vcmask 261120
  %v1052 = vsel %vm1050, %v17, 0
  %v1055 = vsel %vm1050, %v18, 0
  %v1058 = vsel %vm1050, %v19, 0
  %v1061 = vsel %vm1050, %v20, 0
  %v1064 = vsel %vm1050, %v21, 0
  %v1067 = vsel %vm1050, %v22, 0
  %v1070 = vsel %vm1050, %v23, 0
  %v1073 = vsel %vm1050, %v24, 0
  %v1076 = vsel %vm1050, %v25, 0
  %v1079 = vsel %vm1050, %v26, 0
  %v1082 = vsel %vm1050, %v27, 0
  %v1085 = vsel %vm1050, %v28, 0
  %v1088 = vsel %vm1050, %v29, 0
  %v1091 = vsel %vm1050, %v30, 0
  %v1094 = vsel %vm1050, %v31, 0
  %v1097 = vsel %vm1050, %v32, 0
  %v1100 = vsel %vm1050, %v33, 0
  %v1103 = vsel %vm1050, %v34, 0
  %v1106 = vsel %vm1050, %v35, 0
  %v1109 = vsel %vm1050, %v36, 0
  %v1112 = vsel %vm1050, %v37, 0
  %v1115 = vsel %vm1050, %v38, 0
  %v1118 = vsel %vm1050, %v39, 0
  %v1121 = vsel %vm1050, %v40, 0
  %v1124 = vsel %vm1050, %v41, 0
  %v1127 = vsel %vm1050, %v42, 0
  %v1130 = vsel %vm1050, %v43, 0
  %v1133 = vsel %vm1050, %v44, 0
  %v1136 = vsel %vm1050, %v45, 0
  %v1139 = vsel %vm1050, %v46, 0
  %v1142 = vsel %vm1050, %v47, 0
  %v1145 = vsel %vm1050, %v48, 0
  %v1148 = vsel %vm1050, %v49, 0
  %v1151 = vsel %vm1050, %v50, 0
  %v1154 = vsel %vm1050, %v51, 0
  %v1157 = vsel %vm1050, %v52, 0
  %v1160 = vsel %vm1050, %v53, 0
  %v1163 = vsel %vm1050, %v54, 0
  %v1166 = vsel %vm1050, %v55, 0
  %v1169 = vsel %vm1050, %v56, 0
  %v1172 = vsel %vm1050, %v57, 0
  %v1175 = vsel %vm1050, %v58, 0
  %v1178 = vsel %vm1050, %v59, 0
  %v1181 = vsel %vm1050, %v60, 0
  %v1184 = vsel %vm1050, %v61, 0
  %v1187 = vsel %vm1050, %v62, 0
  %v1190 = vsel %vm1050, %v63, 0
  %v1193 = vsel %vm1050, %v64, 0
  %v1196 = vsel %vm1050, %v65, 0
  %v1199 = vsel %vm1050, %v66, 0
  %v1202 = vsel %vm1050, %v67, 0
  %v1205 = vsel %vm1050, %v68, 0
  %v1208 = vsel %vm1050, %v69, 0
  %v1211 = vsel %vm1050, %v70, 0
  %v1214 = vsel %vm1050, %v71, 0
  %v1217 = vsel %vm1050, %v72, 0
  %v1220 = vsel %vm1050, %v73, 0
  %v1223 = vsel %vm1050, %v74, 0
  %v1226 = vsel %vm1050, %v75, 0
  %v1229 = vsel %vm1050, %v76, 0
  %v1232 = vsel %vm1050, %v77, 0
  %v1235 = vsel %vm1050, %v78, 0
  %v1238 = vsel %vm1050, %v79, 0
  %v1241 = vsel %vm1050, %v80, 0
  %v1244 = vsel %vm1050, %v81, 0
  %v1247 = vsel %vm1050, %v82, 0
  %v1250 = vsel %vm1050, %v83, 0
  %v1253 = vsel %vm1050, %v84, 0
  %v1256 = vsel %vm1050, %v85, 0
  %v1259 = vsel %vm1050, %v86, 0
  %v1262 = vsel %vm1050, %v87, 0
  %v1265 = vsel %vm1050, %v88, 0
  %v1268 = vsel %vm1050, %v89, 0
  %v1271 = vsel %vm1050, %v90, 0
  %v1274 = vsel %vm1050, %v91, 0
  %v1277 = vsel %vm1050, %v92, 0
  %v1280 = vsel %vm1050, %v93, 0
  %v1283 = vsel %vm1050, %v94, 0
  %v1286 = vsel %vm1050, %v95, 0
  %v1289 = vsel %vm1050, %v96, 0
  %v1292 = vsel %vm1050, %v97, 0
  %v1295 = vsel %vm1050, %v98, 0
  %v1298 = vsel %vm1050, %v99, 0
  %v1301 = vsel %vm1050, %v100, 0
  %v1304 = vsel %vm1050, %v101, 0
  %v1307 = vsel %vm1050, %v102, 0
  %v1310 = vsel %vm1050, %v103, 0
  %v1313 = vsel %vm1050, %v104, 0
  %v1316 = vsel %vm1050, %v105, 0
  %v1319 = vsel %vm1050, %v106, 0
  %v1322 = vsel %vm1050, %v107, 0
  %v1325 = vsel %vm1050, %v108, 0
  %v1328 = vsel %vm1050, %v109, 0
  %v1331 = vsel %vm1050, %v110, 0
  %v1334 = vsel %vm1050, %v111, 0
  %v1337 = vsel %vm1050, %v112, 0
  %v1340 = vsel %vm1050, %v113, 0
  %v1343 = vsel %vm1050, %v114, 0
  %v1346 = vsel %vm1050, %v115, 0
  %v1349 = vsel %vm1050, %v116, 0
  %v1352 = vsel %vm1050, %v117, 0
  %v1355 = vsel %vm1050, %v118, 0
  %v1358 = vsel %vm1050, %v119, 0
  %v1361 = vsel %vm1050, %v120, 0
  %v1364 = vsel %vm1050, %v121, 0
  %v1367 = vsel %vm1050, %v122, 0
  %v1370 = vsel %vm1050, %v123, 0
  %v1373 = vsel %vm1050, %v124, 0
  %v1376 = vsel %vm1050, %v125, 0
  %v1379 = vsel %vm1050, %v126, 0
  %v1382 = vsel %vm1050, %v127, 0
  %v1385 = vsel %vm1050, %v128, 0
  %v1388 = vsel %vm1050, %v129, 0
  %v1391 = vsel %vm1050, %v130, 0
  %v1394 = vsel %vm1050, %v131, 0
  %v1397 = vsel %vm1050, %v132, 0
  %v1400 = vsel %vm1050, %v133, 0
  %v1403 = vsel %vm1050, %v134, 0
  %v1406 = vsel %vm1050, %v135, 0
  %v1409 = vsel %vm1050, %v136, 0
  %v1412 = vsel %vm1050, %v137, 0
  %v1415 = vsel %vm1050, %v138, 0
  %v1418 = vsel %vm1050, %v139, 0
  %v1421 = vsel %vm1050, %v140, 0
  %v1424 = vsel %vm1050, %v141, 0
  %v1427 = vsel %vm1050, %v142, 0
  %v1430 = vsel %vm1050, %v143, 0
  %v1433 = vsel %vm1050, %v144, 0
  %v1436 = vsel %vm1050, %v145, 0
  %v1439 = vsel %vm1050, %v146, 0
  %v1442 = vsel %vm1050, %v147, 0
  %v1445 = vsel %vm1050, %v148, 0
  %v1448 = vsel %vm1050, %v149, 0
  %v1451 = vsel %vm1050, %v150, 0
  %v1454 = vsel %vm1050, %v151, 0
  %v1457 = vsel %vm1050, %v152, 0
  %v1460 = vsel %vm1050, %v153, 0
  %v1463 = vsel %vm1050, %v154, 0
  %v1466 = vsel %vm1050, %v155, 0
  %v1469 = vsel %vm1050, %v156, 0
  %v1472 = vsel %vm1050, %v157, 0
  %v1475 = vsel %vm1050, %v158, 0
  %v1478 = vsel %vm1050, %v159, 0
  %v1481 = vsel %vm1050, %v160, 0
  %v1484 = vsel %vm1050, %v161, 0
  %v1487 = vsel %vm1050, %v162, 0
  %v1490 = vsel %vm1050, %v163, 0
  %1492 = vmatprep.subr.mxu0 0.0
  %1493 = vmatpush1.msra.mxu0 %v164
  %1494 = vmatprep.subr.mxu0 0.0
  %1495 = vmatpush1.msra.mxu0 %v165
  %1496 = vmatprep.subr.mxu0 0.0
  %1497 = vmatpush1.msra.mxu0 %v166
  %1498 = vmatprep.subr.mxu0 0.0
  %1499 = vmatpush1.msra.mxu0 %v167
  %1500 = vmatprep.subr.mxu0 0.0
  %1501 = vmatpush1.msra.mxu0 0.0
  %1502 = vmatprep.subr.mxu0 0.0
  %1503 = vmatpush1.msra.mxu0 0.0
  %1504 = vmatprep.subr.mxu0 0.0
  %1505 = vmatpush1.msra.mxu0 0.0
  %1506 = vmatprep.subr.mxu0 0.0
  %1507 = vmatpush1.msra.mxu0 0.0
  %1508 = vmatprep.subr.mxu0 0.0
  %1509 = vmatpush1.msra.mxu0 0.0
  %1510 = vmatprep.subr.mxu0 0.0
  %1511 = vmatpush1.msra.mxu0 0.0
  %1512 = vmatprep.subr.mxu0 0.0
  %1513 = vmatpush1.msra.mxu0 0.0
  %1514 = vmatprep.subr.mxu0 0.0
  %1515 = vmatpush1.msra.mxu0 0.0
  %1516 = vmatprep.subr.mxu0 0.0
  %1517 = vmatpush1.msra.mxu0 0.0
  %1518 = vmatprep.subr.mxu0 0.0
  %1519 = vmatpush1.msra.mxu0 0.0
  %1520 = vmatprep.subr.mxu0 0.0
  %1521 = vmatpush1.msra.mxu0 0.0
  %1522 = vmatprep.subr.mxu0 0.0
  %1523 = vmatpush1.msra.mxu0 0.0
  %1524 = vmatprep.subr.mxu0 0.0
  %1525 = vmatpush1.msra.mxu0 0.0
  %1526 = vmatprep.subr.mxu0 0.0
  %1527 = vmatpush1.msra.mxu0 0.0
  %1528 = vmatprep.subr.mxu0 0.0
  %1529 = vmatpush1.msra.mxu0 0.0
  %1530 = vmatprep.subr.mxu0 0.0
  %1531 = vmatpush1.msra.mxu0 0.0
  %1532 = vmatprep.subr.mxu0 0.0
  %1533 = vmatpush1.msra.mxu0 0.0
  %1534 = vmatprep.subr.mxu0 0.0
  %1535 = vmatpush1.msra.mxu0 0.0
  %1536 = vmatprep.subr.mxu0 0.0
  %1537 = vmatpush1.msra.mxu0 0.0
  %1538 = vmatprep.subr.mxu0 0.0
  %1539 = vmatpush1.msra.mxu0 0.0
  %1540 = vmatprep.subr.mxu0 0.0
  %1541 = vmatpush1.msra.mxu0 0.0
  %1542 = vmatprep.subr.mxu0 0.0
  %1543 = vmatpush1.msra.mxu0 0.0
  %1544 = vmatprep.subr.mxu0 0.0
  %1545 = vmatpush1.msra.mxu0 0.0
  %1546 = vmatprep.subr.mxu0 0.0
  %1547 = vmatpush1.msra.mxu0 0.0
  %1548 = vmatprep.subr.mxu0 0.0
  %1549 = vmatpush1.msra.mxu0 0.0
  %1550 = vmatprep.subr.mxu0 0.0
  %1551 = vmatpush1.msra.mxu0 0.0
  %1552 = vmatprep.subr.mxu0 0.0
  %1553 = vmatpush1.msra.mxu0 0.0
  %1554 = vmatprep.subr.mxu0 0.0
  %1555 = vmatpush1.msra.mxu0 0.0
  %1556 = vmatprep.mubr.f32.mxu0 0.0
  %1557 = vmatmul.mubr.f32.gmra.mrb[0].mxu0 %v1052
  %v1558 = vpop.f32.mrb[0].mxu0
  %v1559 = vadd.f32 %v318, %v1558
  %v1560 = vpop.f32.mrb[0].mxu0
  %1561 = vmatprep.mubr.f32.mxu0 0.0
  %1562 = vmatmul.mubr.f32.gmra.mrb[0].mxu0 %v1055
  %v1563 = vpop.f32.mrb[0].mxu0
  %v1564 = vadd.f32 %v323, %v1563
  %v1565 = vpop.f32.mrb[0].mxu0
  %1566 = vmatprep.mubr.f32.mxu0 0.0
  %1567 = vmatmul.mubr.f32.gmra.mrb[0].mxu0 %v1058
  %v1568 = vpop.f32.mrb[0].mxu0
  %v1569 = vadd.f32 %v328, %v1568
  %v1570 = vpop.f32.mrb[0].mxu0
  %1571 = vmatprep.mubr.f32.mxu0 0.0
  %1572 = vmatmul.mubr.f32.gmra.mrb[0].mxu0 %v1061
  %v1573 = vpop.f32.mrb[0].mxu0
  %v1574 = vadd.f32 %v333, %v1573
  %v1575 = vpop.f32.mrb[0].mxu0
  %1576 = vmatprep.mubr.f32.mxu0 0.0
  %1577 = vmatmul.mubr.f32.gmra.mrb[0].mxu0 %v1064
  %v1578 = vpop.f32.mrb[0].mxu0
  %v1579 = vadd.f32 %v338, %v1578
  %v1580 = vpop.f32.mrb[0].mxu0
  %1581 = vmatprep.mubr.f32.mxu0 0.0
  %1582 = vmatmul.mubr.f32.gmra.mrb[0].mxu0 %v1067
  %v1583 = vpop.f32.mrb[0].mxu0
  %v1584 = vadd.f32 %v343, %v1583
  %v1585 = vpop.f32.mrb[0].mxu0
  %1586 = vmatprep.mubr.f32.mxu0 0.0
  %1587 = vmatmul.mubr.f32.gmra.mrb[0].mxu0 %v1070
  %v1588 = vpop.f32.mrb[0].mxu0
  %v1589 = vadd.f32 %v348, %v1588
  %v1590 = vpop.f32.mrb[0].mxu0
  %1591 = vmatprep.mubr.f32.mxu0 0.0
  %1592 = vmatmul.mubr.f32.gmra.mrb[0].mxu0 %v1073
  %v1593 = vpop.f32.mrb[0].mxu0
  %v1594 = vadd.f32 %v353, %v1593
  %v1595 = vpop.f32.mrb[0].mxu0
  %1596 = vmatprep.mubr.f32.mxu0 0.0
  %1597 = vmatmul.mubr.f32.gmra.mrb[0].mxu0 %v1076
  %v1598 = vpop.f32.mrb[0].mxu0
  %v1599 = vadd.f32 %v358, %v1598
  %v1600 = vpop.f32.mrb[0].mxu0
  %1601 = vmatprep.mubr.f32.mxu0 0.0
  %1602 = vmatmul.mubr.f32.gmra.mrb[0].mxu0 %v1079
  %v1603 = vpop.f32.mrb[0].mxu0
  %v1604 = vadd.f32 %v363, %v1603
  %v1605 = vpop.f32.mrb[0].mxu0
  %1606 = vmatprep.mubr.f32.mxu0 0.0
  %1607 = vmatmul.mubr.f32.gmra.mrb[0].mxu0 %v1082
  %v1608 = vpop.f32.mrb[0].mxu0
  %v1609 = vadd.f32 %v368, %v1608
  %v1610 = vpop.f32.mrb[0].mxu0
  %1611 = vmatprep.mubr.f32.mxu0 0.0
  %1612 = vmatmul.mubr.f32.gmra.mrb[0].mxu0 %v1085
  %v1613 = vpop.f32.mrb[0].mxu0
  %v1614 = vadd.f32 %v373, %v1613
  %v1615 = vpop.f32.mrb[0].mxu0
  %1616 = vmatprep.mubr.f32.mxu0 0.0
  %1617 = vmatmul.mubr.f32.gmra.mrb[0].mxu0 %v1088
  %v1618 = vpop.f32.mrb[0].mxu0
  %v1619 = vadd.f32 %v378, %v1618
  %v1620 = vpop.f32.mrb[0].mxu0
  %1621 = vmatprep.mubr.f32.mxu0 0.0
  %1622 = vmatmul.mubr.f32.gmra.mrb[0].mxu0 %v1091
  %v1623 = vpop.f32.mrb[0].mxu0
  %v1624 = vadd.f32 %v383, %v1623
  %v1625 = vpop.f32.mrb[0].mxu0
  %1626 = vmatprep.mubr.f32.mxu0 0.0
  %1627 = vmatmul.mubr.f32.gmra.mrb[0].mxu0 %v1094
  %v1628 = vpop.f32.mrb[0].mxu0
  %v1629 = vadd.f32 %v388, %v1628
  %v1630 = vpop.f32.mrb[0].mxu0
  %1631 = vmatprep.mubr.f32.mxu0 0.0
  %1632 = vmatmul.mubr.f32.gmra.mrb[0].mxu0 %v1097
  %v1633 = vpop.f32.mrb[0].mxu0
  %v1634 = vadd.f32 %v393, %v1633
  %v1635 = vpop.f32.mrb[0].mxu0
  %1636 = vmatprep.mubr.f32.mxu0 0.0
  %1637 = vmatmul.mubr.f32.gmra.mrb[0].mxu0 %v1100
  %v1638 = vpop.f32.mrb[0].mxu0
  %v1639 = vadd.f32 %v398, %v1638
  %v1640 = vpop.f32.mrb[0].mxu0
  %1641 = vmatprep.mubr.f32.mxu0 0.0
  %1642 = vmatmul.mubr.f32.gmra.mrb[0].mxu0 %v1103
  %v1643 = vpop.f32.mrb[0].mxu0
  %v1644 = vadd.f32 %v403, %v1643
  %v1645 = vpop.f32.mrb[0].mxu0
  %1646 = vmatprep.mubr.f32.mxu0 0.0
  %1647 = vmatmul.mubr.f32.gmra.mrb[0].mxu0 %v1106
  %v1648 = vpop.f32.mrb[0].mxu0
  %v1649 = vadd.f32 %v408, %v1648
  %v1650 = vpop.f32.mrb[0].mxu0
  %1651 = vmatprep.mubr.f32.mxu0 0.0
  %1652 = vmatmul.mubr.f32.gmra.mrb[0].mxu0 %v1109
  %v1653 = vpop.f32.mrb[0].mxu0
  %v1654 = vadd.f32 %v413, %v1653
  %v1655 = vpop.f32.mrb[0].mxu0
  %1656 = vmatprep.mubr.f32.mxu0 0.0
  %1657 = vmatmul.mubr.f32.gmra.mrb[0].mxu0 %v1112
  %v1658 = vpop.f32.mrb[0].mxu0
  %v1659 = vadd.f32 %v418, %v1658
  %v1660 = vpop.f32.mrb[0].mxu0
  %1661 = vmatprep.mubr.f32.mxu0 0.0
  %1662 = vmatmul.mubr.f32.gmra.mrb[0].mxu0 %v1115
  %v1663 = vpop.f32.mrb[0].mxu0
  %v1664 = vadd.f32 %v423, %v1663
  %v1665 = vpop.f32.mrb[0].mxu0
  %1666 = vmatprep.mubr.f32.mxu0 0.0
  %1667 = vmatmul.mubr.f32.gmra.mrb[0].mxu0 %v1118
  %v1668 = vpop.f32.mrb[0].mxu0
  %v1669 = vadd.f32 %v428, %v1668
  %v1670 = vpop.f32.mrb[0].mxu0
  %1671 = vmatprep.mubr.f32.mxu0 0.0
  %1672 = vmatmul.mubr.f32.gmra.mrb[0].mxu0 %v1121
  %v1673 = vpop.f32.mrb[0].mxu0
  %v1674 = vadd.f32 %v433, %v1673
  %v1675 = vpop.f32.mrb[0].mxu0
  %1676 = vmatprep.mubr.f32.mxu0 0.0
  %1677 = vmatmul.mubr.f32.gmra.mrb[0].mxu0 %v1124
  %v1678 = vpop.f32.mrb[0].mxu0
  %v1679 = vadd.f32 %v438, %v1678
  %v1680 = vpop.f32.mrb[0].mxu0
  %1681 = vmatprep.mubr.f32.mxu0 0.0
  %1682 = vmatmul.mubr.f32.gmra.mrb[0].mxu0 %v1127
  %v1683 = vpop.f32.mrb[0].mxu0
  %v1684 = vadd.f32 %v443, %v1683
  %v1685 = vpop.f32.mrb[0].mxu0
  %1686 = vmatprep.mubr.f32.mxu0 0.0
  %1687 = vmatmul.mubr.f32.gmra.mrb[0].mxu0 %v1130
  %v1688 = vpop.f32.mrb[0].mxu0
  %v1689 = vadd.f32 %v448, %v1688
  %v1690 = vpop.f32.mrb[0].mxu0
  %1691 = vmatprep.mubr.f32.mxu0 0.0
  %1692 = vmatmul.mubr.f32.gmra.mrb[0].mxu0 %v1133
  %v1693 = vpop.f32.mrb[0].mxu0
  %v1694 = vadd.f32 %v453, %v1693
  %v1695 = vpop.f32.mrb[0].mxu0
  %1696 = vmatprep.mubr.f32.mxu0 0.0
  %1697 = vmatmul.mubr.f32.gmra.mrb[0].mxu0 %v1136
  %v1698 = vpop.f32.mrb[0].mxu0
  %v1699 = vadd.f32 %v458, %v1698
  %v1700 = vpop.f32.mrb[0].mxu0
  %1701 = vmatprep.mubr.f32.mxu0 0.0
  %1702 = vmatmul.mubr.f32.gmra.mrb[0].mxu0 %v1139
  %v1703 = vpop.f32.mrb[0].mxu0
  %v1704 = vadd.f32 %v463, %v1703
  %v1705 = vpop.f32.mrb[0].mxu0
  %1706 = vmatprep.mubr.f32.mxu0 0.0
  %1707 = vmatmul.mubr.f32.gmra.mrb[0].mxu0 %v1142
  %v1708 = vpop.f32.mrb[0].mxu0
  %v1709 = vadd.f32 %v468, %v1708
  %v1710 = vpop.f32.mrb[0].mxu0
  %1711 = vmatprep.mubr.f32.mxu0 0.0
  %1712 = vmatmul.mubr.f32.gmra.mrb[0].mxu0 %v1145
  %v1713 = vpop.f32.mrb[0].mxu0
  %v1714 = vadd.f32 %v473, %v1713
  %v1715 = vpop.f32.mrb[0].mxu0
  %1716 = vmatprep.mubr.f32.mxu0 0.0
  %1717 = vmatmul.mubr.f32.gmra.mrb[0].mxu0 %v1148
  %v1718 = vpop.f32.mrb[0].mxu0
  %v1719 = vadd.f32 %v478, %v1718
  %v1720 = vpop.f32.mrb[0].mxu0
  %1721 = vmatprep.mubr.f32.mxu0 0.0
  %1722 = vmatmul.mubr.f32.gmra.mrb[0].mxu0 %v1151
  %v1723 = vpop.f32.mrb[0].mxu0
  %v1724 = vadd.f32 %v483, %v1723
  %v1725 = vpop.f32.mrb[0].mxu0
  %1726 = vmatprep.mubr.f32.mxu0 0.0
  %1727 = vmatmul.mubr.f32.gmra.mrb[0].mxu0 %v1154
  %v1728 = vpop.f32.mrb[0].mxu0
  %v1729 = vadd.f32 %v488, %v1728
  %v1730 = vpop.f32.mrb[0].mxu0
  %1731 = vmatprep.mubr.f32.mxu0 0.0
  %1732 = vmatmul.mubr.f32.gmra.mrb[0].mxu0 %v1157
  %v1733 = vpop.f32.mrb[0].mxu0
  %v1734 = vadd.f32 %v493, %v1733
  %v1735 = vpop.f32.mrb[0].mxu0
  %1736 = vmatprep.mubr.f32.mxu0 0.0
  %1737 = vmatmul.mubr.f32.gmra.mrb[0].mxu0 %v1160
  %v1738 = vpop.f32.mrb[0].mxu0
  %v1739 = vadd.f32 %v498, %v1738
  %v1740 = vpop.f32.mrb[0].mxu0
  %1741 = vmatprep.mubr.f32.mxu0 0.0
  %1742 = vmatmul.mubr.f32.gmra.mrb[0].mxu0 %v1163
  %v1743 = vpop.f32.mrb[0].mxu0
  %v1744 = vadd.f32 %v503, %v1743
  %v1745 = vpop.f32.mrb[0].mxu0
  %1746 = vmatprep.mubr.f32.mxu0 0.0
  %1747 = vmatmul.mubr.f32.gmra.mrb[0].mxu0 %v1166
  %v1748 = vpop.f32.mrb[0].mxu0
  %v1749 = vadd.f32 %v508, %v1748
  %v1750 = vpop.f32.mrb[0].mxu0
  %1751 = vmatprep.mubr.f32.mxu0 0.0
  %1752 = vmatmul.mubr.f32.gmra.mrb[0].mxu0 %v1169
  %v1753 = vpop.f32.mrb[0].mxu0
  %v1754 = vadd.f32 %v513, %v1753
  %v1755 = vpop.f32.mrb[0].mxu0
  %1756 = vmatprep.mubr.f32.mxu0 0.0
  %1757 = vmatmul.mubr.f32.gmra.mrb[0].mxu0 %v1172
  %v1758 = vpop.f32.mrb[0].mxu0
  %v1759 = vadd.f32 %v518, %v1758
  %v1760 = vpop.f32.mrb[0].mxu0
  %1761 = vmatprep.mubr.f32.mxu0 0.0
  %1762 = vmatmul.mubr.f32.gmra.mrb[0].mxu0 %v1175
  %v1763 = vpop.f32.mrb[0].mxu0
  %v1764 = vadd.f32 %v523, %v1763
  %v1765 = vpop.f32.mrb[0].mxu0
  %1766 = vmatprep.mubr.f32.mxu0 0.0
  %1767 = vmatmul.mubr.f32.gmra.mrb[0].mxu0 %v1178
  %v1768 = vpop.f32.mrb[0].mxu0
  %v1769 = vadd.f32 %v528, %v1768
  %v1770 = vpop.f32.mrb[0].mxu0
  %1771 = vmatprep.mubr.f32.mxu0 0.0
  %1772 = vmatmul.mubr.f32.gmra.mrb[0].mxu0 %v1181
  %v1773 = vpop.f32.mrb[0].mxu0
  %v1774 = vadd.f32 %v533, %v1773
  %v1775 = vpop.f32.mrb[0].mxu0
  %1776 = vmatprep.mubr.f32.mxu0 0.0
  %1777 = vmatmul.mubr.f32.gmra.mrb[0].mxu0 %v1184
  %v1778 = vpop.f32.mrb[0].mxu0
  %v1779 = vadd.f32 %v538, %v1778
  %v1780 = vpop.f32.mrb[0].mxu0
  %1781 = vmatprep.mubr.f32.mxu0 0.0
  %1782 = vmatmul.mubr.f32.gmra.mrb[0].mxu0 %v1187
  %v1783 = vpop.f32.mrb[0].mxu0
  %v1784 = vadd.f32 %v543, %v1783
  %v1785 = vpop.f32.mrb[0].mxu0
  %1786 = vmatprep.mubr.f32.mxu0 0.0
  %1787 = vmatmul.mubr.f32.gmra.mrb[0].mxu0 %v1190
  %v1788 = vpop.f32.mrb[0].mxu0
  %v1789 = vadd.f32 %v548, %v1788
  %v1790 = vpop.f32.mrb[0].mxu0
  %1791 = vmatprep.mubr.f32.mxu0 0.0
  %1792 = vmatmul.mubr.f32.gmra.mrb[0].mxu0 %v1193
  %v1793 = vpop.f32.mrb[0].mxu0
  %v1794 = vadd.f32 %v553, %v1793
  %v1795 = vpop.f32.mrb[0].mxu0
  %1796 = vmatprep.mubr.f32.mxu0 0.0
  %1797 = vmatmul.mubr.f32.gmra.mrb[0].mxu0 %v1196
  %v1798 = vpop.f32.mrb[0].mxu0
  %v1799 = vadd.f32 %v558, %v1798
  %v1800 = vpop.f32.mrb[0].mxu0
  %1801 = vmatprep.mubr.f32.mxu0 0.0
  %1802 = vmatmul.mubr.f32.gmra.mrb[0].mxu0 %v1199
  %v1803 = vpop.f32.mrb[0].mxu0
  %v1804 = vadd.f32 %v563, %v1803
  %v1805 = vpop.f32.mrb[0].mxu0
  %1806 = vmatprep.mubr.f32.mxu0 0.0
  %1807 = vmatmul.mubr.f32.gmra.mrb[0].mxu0 %v1202
  %v1808 = vpop.f32.mrb[0].mxu0
  %v1809 = vadd.f32 %v568, %v1808
  %v1810 = vpop.f32.mrb[0].mxu0
  %1811 = vmatprep.mubr.f32.mxu0 0.0
  %1812 = vmatmul.mubr.f32.gmra.mrb[0].mxu0 %v1205
  %v1813 = vpop.f32.mrb[0].mxu0
  %v1814 = vadd.f32 %v573, %v1813
  %v1815 = vpop.f32.mrb[0].mxu0
  %1816 = vmatprep.mubr.f32.mxu0 0.0
  %1817 = vmatmul.mubr.f32.gmra.mrb[0].mxu0 %v1208
  %v1818 = vpop.f32.mrb[0].mxu0
  %v1819 = vadd.f32 %v578, %v1818
  %v1820 = vpop.f32.mrb[0].mxu0
  %1821 = vmatprep.mubr.f32.mxu0 0.0
  %1822 = vmatmul.mubr.f32.gmra.mrb[0].mxu0 %v1211
  %v1823 = vpop.f32.mrb[0].mxu0
  %v1824 = vadd.f32 %v583, %v1823
  %v1825 = vpop.f32.mrb[0].mxu0
  %1826 = vmatprep.mubr.f32.mxu0 0.0
  %1827 = vmatmul.mubr.f32.gmra.mrb[0].mxu0 %v1214
  %v1828 = vpop.f32.mrb[0].mxu0
  %v1829 = vadd.f32 %v588, %v1828
  %v1830 = vpop.f32.mrb[0].mxu0
  %1831 = vmatprep.mubr.f32.mxu0 0.0
  %1832 = vmatmul.mubr.f32.gmra.mrb[0].mxu0 %v1217
  %v1833 = vpop.f32.mrb[0].mxu0
  %v1834 = vadd.f32 %v593, %v1833
  %v1835 = vpop.f32.mrb[0].mxu0
  %1836 = vmatprep.mubr.f32.mxu0 0.0
  %1837 = vmatmul.mubr.f32.gmra.mrb[0].mxu0 %v1220
  %v1838 = vpop.f32.mrb[0].mxu0
  %v1839 = vadd.f32 %v598, %v1838
  %v1840 = vpop.f32.mrb[0].mxu0
  %1841 = vmatprep.mubr.f32.mxu0 0.0
  %1842 = vmatmul.mubr.f32.gmra.mrb[0].mxu0 %v1223
  %v1843 = vpop.f32.mrb[0].mxu0
  %v1844 = vadd.f32 %v603, %v1843
  %v1845 = vpop.f32.mrb[0].mxu0
  %1846 = vmatprep.mubr.f32.mxu0 0.0
  %1847 = vmatmul.mubr.f32.gmra.mrb[0].mxu0 %v1226
  %v1848 = vpop.f32.mrb[0].mxu0
  %v1849 = vadd.f32 %v608, %v1848
  %v1850 = vpop.f32.mrb[0].mxu0
  %1851 = vmatprep.mubr.f32.mxu0 0.0
  %1852 = vmatmul.mubr.f32.gmra.mrb[0].mxu0 %v1229
  %v1853 = vpop.f32.mrb[0].mxu0
  %v1854 = vadd.f32 %v613, %v1853
  %v1855 = vpop.f32.mrb[0].mxu0
  %1856 = vmatprep.mubr.f32.mxu0 0.0
  %1857 = vmatmul.mubr.f32.gmra.mrb[0].mxu0 %v1232
  %v1858 = vpop.f32.mrb[0].mxu0
  %v1859 = vadd.f32 %v618, %v1858
  %v1860 = vpop.f32.mrb[0].mxu0
  %1861 = vmatprep.mubr.f32.mxu0 0.0
  %1862 = vmatmul.mubr.f32.gmra.mrb[0].mxu0 %v1235
  %v1863 = vpop.f32.mrb[0].mxu0
  %v1864 = vadd.f32 %v623, %v1863
  %v1865 = vpop.f32.mrb[0].mxu0
  %1866 = vmatprep.mubr.f32.mxu0 0.0
  %1867 = vmatmul.mubr.f32.gmra.mrb[0].mxu0 %v1238
  %v1868 = vpop.f32.mrb[0].mxu0
  %v1869 = vadd.f32 %v628, %v1868
  %v1870 = vpop.f32.mrb[0].mxu0
  %1871 = vmatprep.mubr.f32.mxu0 0.0
  %1872 = vmatmul.mubr.f32.gmra.mrb[0].mxu0 %v1241
  %v1873 = vpop.f32.mrb[0].mxu0
  %v1874 = vadd.f32 %v633, %v1873
  %v1875 = vpop.f32.mrb[0].mxu0
  %1876 = vmatprep.mubr.f32.mxu0 0.0
  %1877 = vmatmul.mubr.f32.gmra.mrb[0].mxu0 %v1244
  %v1878 = vpop.f32.mrb[0].mxu0
  %v1879 = vadd.f32 %v638, %v1878
  %v1880 = vpop.f32.mrb[0].mxu0
  %1881 = vmatprep.mubr.f32.mxu0 0.0
  %1882 = vmatmul.mubr.f32.gmra.mrb[0].mxu0 %v1247
  %v1883 = vpop.f32.mrb[0].mxu0
  %v1884 = vadd.f32 %v643, %v1883
  %v1885 = vpop.f32.mrb[0].mxu0
  %1886 = vmatprep.mubr.f32.mxu0 0.0
  %1887 = vmatmul.mubr.f32.gmra.mrb[0].mxu0 %v1250
  %v1888 = vpop.f32.mrb[0].mxu0
  %v1889 = vadd.f32 %v648, %v1888
  %v1890 = vpop.f32.mrb[0].mxu0
  %1891 = vmatprep.mubr.f32.mxu0 0.0
  %1892 = vmatmul.mubr.f32.gmra.mrb[0].mxu0 %v1253
  %v1893 = vpop.f32.mrb[0].mxu0
  %v1894 = vadd.f32 %v653, %v1893
  %v1895 = vpop.f32.mrb[0].mxu0
  %1896 = vmatprep.mubr.f32.mxu0 0.0
  %1897 = vmatmul.mubr.f32.gmra.mrb[0].mxu0 %v1256
  %v1898 = vpop.f32.mrb[0].mxu0
  %v1899 = vadd.f32 %v658, %v1898
  %v1900 = vpop.f32.mrb[0].mxu0
  %1901 = vmatprep.mubr.f32.mxu0 0.0
  %1902 = vmatmul.mubr.f32.gmra.mrb[0].mxu0 %v1259
  %v1903 = vpop.f32.mrb[0].mxu0
  %v1904 = vadd.f32 %v663, %v1903
  %v1905 = vpop.f32.mrb[0].mxu0
  %1906 = vmatprep.mubr.f32.mxu0 0.0
  %1907 = vmatmul.mubr.f32.gmra.mrb[0].mxu0 %v1262
  %v1908 = vpop.f32.mrb[0].mxu0
  %v1909 = vadd.f32 %v668, %v1908
  %v1910 = vpop.f32.mrb[0].mxu0
  %1911 = vmatprep.mubr.f32.mxu0 0.0
  %1912 = vmatmul.mubr.f32.gmra.mrb[0].mxu0 %v1265
  %v1913 = vpop.f32.mrb[0].mxu0
  %v1914 = vadd.f32 %v673, %v1913
  %v1915 = vpop.f32.mrb[0].mxu0
  %1916 = vmatprep.mubr.f32.mxu0 0.0
  %1917 = vmatmul.mubr.f32.gmra.mrb[0].mxu0 %v1268
  %v1918 = vpop.f32.mrb[0].mxu0
  %v1919 = vadd.f32 %v678, %v1918
  %v1920 = vpop.f32.mrb[0].mxu0
  %1921 = vmatprep.mubr.f32.mxu0 0.0
  %1922 = vmatmul.mubr.f32.gmra.mrb[0].mxu0 %v1271
  %v1923 = vpop.f32.mrb[0].mxu0
  %v1924 = vadd.f32 %v683, %v1923
  %v1925 = vpop.f32.mrb[0].mxu0
  %1926 = vmatprep.mubr.f32.mxu0 0.0
  %1927 = vmatmul.mubr.f32.gmra.mrb[0].mxu0 %v1274
  %v1928 = vpop.f32.mrb[0].mxu0
  %v1929 = vadd.f32 %v688, %v1928
  %v1930 = vpop.f32.mrb[0].mxu0
  %1931 = vmatprep.mubr.f32.mxu0 0.0
  %1932 = vmatmul.mubr.f32.gmra.mrb[0].mxu0 %v1277
  %v1933 = vpop.f32.mrb[0].mxu0
  %v1934 = vadd.f32 %v693, %v1933
  %v1935 = vpop.f32.mrb[0].mxu0
  %1936 = vmatprep.mubr.f32.mxu0 0.0
  %1937 = vmatmul.mubr.f32.gmra.mrb[0].mxu0 %v1280
  %v1938 = vpop.f32.mrb[0].mxu0
  %v1939 = vadd.f32 %v698, %v1938
  %v1940 = vpop.f32.mrb[0].mxu0
  %1941 = vmatprep.mubr.f32.mxu0 0.0
  %1942 = vmatmul.mubr.f32.gmra.mrb[0].mxu0 %v1283
  %v1943 = vpop.f32.mrb[0].mxu0
  %v1944 = vadd.f32 %v703, %v1943
  %v1945 = vpop.f32.mrb[0].mxu0
  %1946 = vmatprep.mubr.f32.mxu0 0.0
  %1947 = vmatmul.mubr.f32.gmra.mrb[0].mxu0 %v1286
  %v1948 = vpop.f32.mrb[0].mxu0
  %v1949 = vadd.f32 %v708, %v1948
  %v1950 = vpop.f32.mrb[0].mxu0
  %1951 = vmatprep.mubr.f32.mxu0 0.0
  %1952 = vmatmul.mubr.f32.gmra.mrb[0].mxu0 %v1289
  %v1953 = vpop.f32.mrb[0].mxu0
  %v1954 = vadd.f32 %v713, %v1953
  %v1955 = vpop.f32.mrb[0].mxu0
  %1956 = vmatprep.mubr.f32.mxu0 0.0
  %1957 = vmatmul.mubr.f32.gmra.mrb[0].mxu0 %v1292
  %v1958 = vpop.f32.mrb[0].mxu0
  %v1959 = vadd.f32 %v718, %v1958
  %v1960 = vpop.f32.mrb[0].mxu0
  %1961 = vmatprep.mubr.f32.mxu0 0.0
  %1962 = vmatmul.mubr.f32.gmra.mrb[0].mxu0 %v1295
  %v1963 = vpop.f32.mrb[0].mxu0
  %v1964 = vadd.f32 %v723, %v1963
  %v1965 = vpop.f32.mrb[0].mxu0
  %1966 = vmatprep.mubr.f32.mxu0 0.0
  %1967 = vmatmul.mubr.f32.gmra.mrb[0].mxu0 %v1298
  %v1968 = vpop.f32.mrb[0].mxu0
  %v1969 = vadd.f32 %v728, %v1968
  %v1970 = vpop.f32.mrb[0].mxu0
  %1971 = vmatprep.mubr.f32.mxu0 0.0
  %1972 = vmatmul.mubr.f32.gmra.mrb[0].mxu0 %v1301
  %v1973 = vpop.f32.mrb[0].mxu0
  %v1974 = vadd.f32 %v733, %v1973
  %v1975 = vpop.f32.mrb[0].mxu0
  %1976 = vmatprep.mubr.f32.mxu0 0.0
  %1977 = vmatmul.mubr.f32.gmra.mrb[0].mxu0 %v1304
  %v1978 = vpop.f32.mrb[0].mxu0
  %v1979 = vadd.f32 %v738, %v1978
  %v1980 = vpop.f32.mrb[0].mxu0
  %1981 = vmatprep.mubr.f32.mxu0 0.0
  %1982 = vmatmul.mubr.f32.gmra.mrb[0].mxu0 %v1307
  %v1983 = vpop.f32.mrb[0].mxu0
  %v1984 = vadd.f32 %v743, %v1983
  %v1985 = vpop.f32.mrb[0].mxu0
  %1986 = vmatprep.mubr.f32.mxu0 0.0
  %1987 = vmatmul.mubr.f32.gmra.mrb[0].mxu0 %v1310
  %v1988 = vpop.f32.mrb[0].mxu0
  %v1989 = vadd.f32 %v748, %v1988
  %v1990 = vpop.f32.mrb[0].mxu0
  %1991 = vmatprep.mubr.f32.mxu0 0.0
  %1992 = vmatmul.mubr.f32.gmra.mrb[0].mxu0 %v1313
  %v1993 = vpop.f32.mrb[0].mxu0
  %v1994 = vadd.f32 %v753, %v1993
  %v1995 = vpop.f32.mrb[0].mxu0
  %1996 = vmatprep.mubr.f32.mxu0 0.0
  %1997 = vmatmul.mubr.f32.gmra.mrb[0].mxu0 %v1316
  %v1998 = vpop.f32.mrb[0].mxu0
  %v1999 = vadd.f32 %v758, %v1998
  %v2000 = vpop.f32.mrb[0].mxu0
  %2001 = vmatprep.mubr.f32.mxu0 0.0
  %2002 = vmatmul.mubr.f32.gmra.mrb[0].mxu0 %v1319
  %v2003 = vpop.f32.mrb[0].mxu0
  %v2004 = vadd.f32 %v763, %v2003
  %v2005 = vpop.f32.mrb[0].mxu0
  %2006 = vmatprep.mubr.f32.mxu0 0.0
  %2007 = vmatmul.mubr.f32.gmra.mrb[0].mxu0 %v1322
  %v2008 = vpop.f32.mrb[0].mxu0
  %v2009 = vadd.f32 %v768, %v2008
  %v2010 = vpop.f32.mrb[0].mxu0
  %2011 = vmatprep.mubr.f32.mxu0 0.0
  %2012 = vmatmul.mubr.f32.gmra.mrb[0].mxu0 %v1325
  %v2013 = vpop.f32.mrb[0].mxu0
  %v2014 = vadd.f32 %v773, %v2013
  %v2015 = vpop.f32.mrb[0].mxu0
  %2016 = vmatprep.mubr.f32.mxu0 0.0
  %2017 = vmatmul.mubr.f32.gmra.mrb[0].mxu0 %v1328
  %v2018 = vpop.f32.mrb[0].mxu0
  %v2019 = vadd.f32 %v778, %v2018
  %v2020 = vpop.f32.mrb[0].mxu0
  %2021 = vmatprep.mubr.f32.mxu0 0.0
  %2022 = vmatmul.mubr.f32.gmra.mrb[0].mxu0 %v1331
  %v2023 = vpop.f32.mrb[0].mxu0
  %v2024 = vadd.f32 %v783, %v2023
  %v2025 = vpop.f32.mrb[0].mxu0
  %2026 = vmatprep.mubr.f32.mxu0 0.0
  %2027 = vmatmul.mubr.f32.gmra.mrb[0].mxu0 %v1334
  %v2028 = vpop.f32.mrb[0].mxu0
  %v2029 = vadd.f32 %v788, %v2028
  %v2030 = vpop.f32.mrb[0].mxu0
  %2031 = vmatprep.mubr.f32.mxu0 0.0
  %2032 = vmatmul.mubr.f32.gmra.mrb[0].mxu0 %v1337
  %v2033 = vpop.f32.mrb[0].mxu0
  %v2034 = vadd.f32 %v793, %v2033
  %v2035 = vpop.f32.mrb[0].mxu0
  %2036 = vmatprep.mubr.f32.mxu0 0.0
  %2037 = vmatmul.mubr.f32.gmra.mrb[0].mxu0 %v1340
  %v2038 = vpop.f32.mrb[0].mxu0
  %v2039 = vadd.f32 %v798, %v2038
  %v2040 = vpop.f32.mrb[0].mxu0
  %2041 = vmatprep.mubr.f32.mxu0 0.0
  %2042 = vmatmul.mubr.f32.gmra.mrb[0].mxu0 %v1343
  %v2043 = vpop.f32.mrb[0].mxu0
  %v2044 = vadd.f32 %v803, %v2043
  %v2045 = vpop.f32.mrb[0].mxu0
  %2046 = vmatprep.mubr.f32.mxu0 0.0
  %2047 = vmatmul.mubr.f32.gmra.mrb[0].mxu0 %v1346
  %v2048 = vpop.f32.mrb[0].mxu0
  %v2049 = vadd.f32 %v808, %v2048
  %v2050 = vpop.f32.mrb[0].mxu0
  %2051 = vmatprep.mubr.f32.mxu0 0.0
  %2052 = vmatmul.mubr.f32.gmra.mrb[0].mxu0 %v1349
  %v2053 = vpop.f32.mrb[0].mxu0
  %v2054 = vadd.f32 %v813, %v2053
  %v2055 = vpop.f32.mrb[0].mxu0
  %2056 = vmatprep.mubr.f32.mxu0 0.0
  %2057 = vmatmul.mubr.f32.gmra.mrb[0].mxu0 %v1352
  %v2058 = vpop.f32.mrb[0].mxu0
  %v2059 = vadd.f32 %v818, %v2058
  %v2060 = vpop.f32.mrb[0].mxu0
  %2061 = vmatprep.mubr.f32.mxu0 0.0
  %2062 = vmatmul.mubr.f32.gmra.mrb[0].mxu0 %v1355
  %v2063 = vpop.f32.mrb[0].mxu0
  %v2064 = vadd.f32 %v823, %v2063
  %v2065 = vpop.f32.mrb[0].mxu0
  %2066 = vmatprep.mubr.f32.mxu0 0.0
  %2067 = vmatmul.mubr.f32.gmra.mrb[0].mxu0 %v1358
  %v2068 = vpop.f32.mrb[0].mxu0
  %v2069 = vadd.f32 %v828, %v2068
  %v2070 = vpop.f32.mrb[0].mxu0
  %2071 = vmatprep.mubr.f32.mxu0 0.0
  %2072 = vmatmul.mubr.f32.gmra.mrb[0].mxu0 %v1361
  %v2073 = vpop.f32.mrb[0].mxu0
  %v2074 = vadd.f32 %v833, %v2073
  %v2075 = vpop.f32.mrb[0].mxu0
  %2076 = vmatprep.mubr.f32.mxu0 0.0
  %2077 = vmatmul.mubr.f32.gmra.mrb[0].mxu0 %v1364
  %v2078 = vpop.f32.mrb[0].mxu0
  %v2079 = vadd.f32 %v838, %v2078
  %v2080 = vpop.f32.mrb[0].mxu0
  %2081 = vmatprep.mubr.f32.mxu0 0.0
  %2082 = vmatmul.mubr.f32.gmra.mrb[0].mxu0 %v1367
  %v2083 = vpop.f32.mrb[0].mxu0
  %v2084 = vadd.f32 %v843, %v2083
  %v2085 = vpop.f32.mrb[0].mxu0
  %2086 = vmatprep.mubr.f32.mxu0 0.0
  %2087 = vmatmul.mubr.f32.gmra.mrb[0].mxu0 %v1370
  %v2088 = vpop.f32.mrb[0].mxu0
  %v2089 = vadd.f32 %v848, %v2088
  %v2090 = vpop.f32.mrb[0].mxu0
  %2091 = vmatprep.mubr.f32.mxu0 0.0
  %2092 = vmatmul.mubr.f32.gmra.mrb[0].mxu0 %v1373
  %v2093 = vpop.f32.mrb[0].mxu0
  %v2094 = vadd.f32 %v853, %v2093
  %v2095 = vpop.f32.mrb[0].mxu0
  %2096 = vmatprep.mubr.f32.mxu0 0.0
  %2097 = vmatmul.mubr.f32.gmra.mrb[0].mxu0 %v1376
  %v2098 = vpop.f32.mrb[0].mxu0
  %v2099 = vadd.f32 %v858, %v2098
  %v2100 = vpop.f32.mrb[0].mxu0
  %2101 = vmatprep.mubr.f32.mxu0 0.0
  %2102 = vmatmul.mubr.f32.gmra.mrb[0].mxu0 %v1379
  %v2103 = vpop.f32.mrb[0].mxu0
  %v2104 = vadd.f32 %v863, %v2103
  %v2105 = vpop.f32.mrb[0].mxu0
  %2106 = vmatprep.mubr.f32.mxu0 0.0
  %2107 = vmatmul.mubr.f32.gmra.mrb[0].mxu0 %v1382
  %v2108 = vpop.f32.mrb[0].mxu0
  %v2109 = vadd.f32 %v868, %v2108
  %v2110 = vpop.f32.mrb[0].mxu0
  %2111 = vmatprep.mubr.f32.mxu0 0.0
  %2112 = vmatmul.mubr.f32.gmra.mrb[0].mxu0 %v1385
  %v2113 = vpop.f32.mrb[0].mxu0
  %v2114 = vadd.f32 %v873, %v2113
  %v2115 = vpop.f32.mrb[0].mxu0
  %2116 = vmatprep.mubr.f32.mxu0 0.0
  %2117 = vmatmul.mubr.f32.gmra.mrb[0].mxu0 %v1388
  %v2118 = vpop.f32.mrb[0].mxu0
  %v2119 = vadd.f32 %v878, %v2118
  %v2120 = vpop.f32.mrb[0].mxu0
  %2121 = vmatprep.mubr.f32.mxu0 0.0
  %2122 = vmatmul.mubr.f32.gmra.mrb[0].mxu0 %v1391
  %v2123 = vpop.f32.mrb[0].mxu0
  %v2124 = vadd.f32 %v883, %v2123
  %v2125 = vpop.f32.mrb[0].mxu0
  %2126 = vmatprep.mubr.f32.mxu0 0.0
  %2127 = vmatmul.mubr.f32.gmra.mrb[0].mxu0 %v1394
  %v2128 = vpop.f32.mrb[0].mxu0
  %v2129 = vadd.f32 %v888, %v2128
  %v2130 = vpop.f32.mrb[0].mxu0
  %2131 = vmatprep.mubr.f32.mxu0 0.0
  %2132 = vmatmul.mubr.f32.gmra.mrb[0].mxu0 %v1397
  %v2133 = vpop.f32.mrb[0].mxu0
  %v2134 = vadd.f32 %v893, %v2133
  %v2135 = vpop.f32.mrb[0].mxu0
  %2136 = vmatprep.mubr.f32.mxu0 0.0
  %2137 = vmatmul.mubr.f32.gmra.mrb[0].mxu0 %v1400
  %v2138 = vpop.f32.mrb[0].mxu0
  %v2139 = vadd.f32 %v898, %v2138
  %v2140 = vpop.f32.mrb[0].mxu0
  %2141 = vmatprep.mubr.f32.mxu0 0.0
  %2142 = vmatmul.mubr.f32.gmra.mrb[0].mxu0 %v1403
  %v2143 = vpop.f32.mrb[0].mxu0
  %v2144 = vadd.f32 %v903, %v2143
  %v2145 = vpop.f32.mrb[0].mxu0
  %2146 = vmatprep.mubr.f32.mxu0 0.0
  %2147 = vmatmul.mubr.f32.gmra.mrb[0].mxu0 %v1406
  %v2148 = vpop.f32.mrb[0].mxu0
  %v2149 = vadd.f32 %v908, %v2148
  %v2150 = vpop.f32.mrb[0].mxu0
  %2151 = vmatprep.mubr.f32.mxu0 0.0
  %2152 = vmatmul.mubr.f32.gmra.mrb[0].mxu0 %v1409
  %v2153 = vpop.f32.mrb[0].mxu0
  %v2154 = vadd.f32 %v913, %v2153
  %v2155 = vpop.f32.mrb[0].mxu0
  %2156 = vmatprep.mubr.f32.mxu0 0.0
  %2157 = vmatmul.mubr.f32.gmra.mrb[0].mxu0 %v1412
  %v2158 = vpop.f32.mrb[0].mxu0
  %v2159 = vadd.f32 %v918, %v2158
  %v2160 = vpop.f32.mrb[0].mxu0
  %2161 = vmatprep.mubr.f32.mxu0 0.0
  %2162 = vmatmul.mubr.f32.gmra.mrb[0].mxu0 %v1415
  %v2163 = vpop.f32.mrb[0].mxu0
  %v2164 = vadd.f32 %v923, %v2163
  %v2165 = vpop.f32.mrb[0].mxu0
  %2166 = vmatprep.mubr.f32.mxu0 0.0
  %2167 = vmatmul.mubr.f32.gmra.mrb[0].mxu0 %v1418
  %v2168 = vpop.f32.mrb[0].mxu0
  %v2169 = vadd.f32 %v928, %v2168
  %v2170 = vpop.f32.mrb[0].mxu0
  %2171 = vmatprep.mubr.f32.mxu0 0.0
  %2172 = vmatmul.mubr.f32.gmra.mrb[0].mxu0 %v1421
  %v2173 = vpop.f32.mrb[0].mxu0
  %v2174 = vadd.f32 %v933, %v2173
  %v2175 = vpop.f32.mrb[0].mxu0
  %2176 = vmatprep.mubr.f32.mxu0 0.0
  %2177 = vmatmul.mubr.f32.gmra.mrb[0].mxu0 %v1424
  %v2178 = vpop.f32.mrb[0].mxu0
  %v2179 = vadd.f32 %v938, %v2178
  %v2180 = vpop.f32.mrb[0].mxu0
  %2181 = vmatprep.mubr.f32.mxu0 0.0
  %2182 = vmatmul.mubr.f32.gmra.mrb[0].mxu0 %v1427
  %v2183 = vpop.f32.mrb[0].mxu0
  %v2184 = vadd.f32 %v943, %v2183
  %v2185 = vpop.f32.mrb[0].mxu0
  %2186 = vmatprep.mubr.f32.mxu0 0.0
  %2187 = vmatmul.mubr.f32.gmra.mrb[0].mxu0 %v1430
  %v2188 = vpop.f32.mrb[0].mxu0
  %v2189 = vadd.f32 %v948, %v2188
  %v2190 = vpop.f32.mrb[0].mxu0
  %2191 = vmatprep.mubr.f32.mxu0 0.0
  %2192 = vmatmul.mubr.f32.gmra.mrb[0].mxu0 %v1433
  %v2193 = vpop.f32.mrb[0].mxu0
  %v2194 = vadd.f32 %v953, %v2193
  %v2195 = vpop.f32.mrb[0].mxu0
  %2196 = vmatprep.mubr.f32.mxu0 0.0
  %2197 = vmatmul.mubr.f32.gmra.mrb[0].mxu0 %v1436
  %v2198 = vpop.f32.mrb[0].mxu0
  %v2199 = vadd.f32 %v958, %v2198
  %v2200 = vpop.f32.mrb[0].mxu0
  %2201 = vmatprep.mubr.f32.mxu0 0.0
  %2202 = vmatmul.mubr.f32.gmra.mrb[0].mxu0 %v1439
  %v2203 = vpop.f32.mrb[0].mxu0
  %v2204 = vadd.f32 %v963, %v2203
  %v2205 = vpop.f32.mrb[0].mxu0
  %2206 = vmatprep.mubr.f32.mxu0 0.0
  %2207 = vmatmul.mubr.f32.gmra.mrb[0].mxu0 %v1442
  %v2208 = vpop.f32.mrb[0].mxu0
  %v2209 = vadd.f32 %v968, %v2208
  %v2210 = vpop.f32.mrb[0].mxu0
  %2211 = vmatprep.mubr.f32.mxu0 0.0
  %2212 = vmatmul.mubr.f32.gmra.mrb[0].mxu0 %v1445
  %v2213 = vpop.f32.mrb[0].mxu0
  %v2214 = vadd.f32 %v973, %v2213
  %v2215 = vpop.f32.mrb[0].mxu0
  %2216 = vmatprep.mubr.f32.mxu0 0.0
  %2217 = vmatmul.mubr.f32.gmra.mrb[0].mxu0 %v1448
  %v2218 = vpop.f32.mrb[0].mxu0
  %v2219 = vadd.f32 %v978, %v2218
  %v2220 = vpop.f32.mrb[0].mxu0
  %2221 = vmatprep.mubr.f32.mxu0 0.0
  %2222 = vmatmul.mubr.f32.gmra.mrb[0].mxu0 %v1451
  %v2223 = vpop.f32.mrb[0].mxu0
  %v2224 = vadd.f32 %v983, %v2223
  %v2225 = vpop.f32.mrb[0].mxu0
  %2226 = vmatprep.mubr.f32.mxu0 0.0
  %2227 = vmatmul.mubr.f32.gmra.mrb[0].mxu0 %v1454
  %v2228 = vpop.f32.mrb[0].mxu0
  %v2229 = vadd.f32 %v988, %v2228
  %v2230 = vpop.f32.mrb[0].mxu0
  %2231 = vmatprep.mubr.f32.mxu0 0.0
  %2232 = vmatmul.mubr.f32.gmra.mrb[0].mxu0 %v1457
  %v2233 = vpop.f32.mrb[0].mxu0
  %v2234 = vadd.f32 %v993, %v2233
  %v2235 = vpop.f32.mrb[0].mxu0
  %2236 = vmatprep.mubr.f32.mxu0 0.0
  %2237 = vmatmul.mubr.f32.gmra.mrb[0].mxu0 %v1460
  %v2238 = vpop.f32.mrb[0].mxu0
  %v2239 = vadd.f32 %v998, %v2238
  %v2240 = vpop.f32.mrb[0].mxu0
  %2241 = vmatprep.mubr.f32.mxu0 0.0
  %2242 = vmatmul.mubr.f32.gmra.mrb[0].mxu0 %v1463
  %v2243 = vpop.f32.mrb[0].mxu0
  %v2244 = vadd.f32 %v1003, %v2243
  %v2245 = vpop.f32.mrb[0].mxu0
  %2246 = vmatprep.mubr.f32.mxu0 0.0
  %2247 = vmatmul.mubr.f32.gmra.mrb[0].mxu0 %v1466
  %v2248 = vpop.f32.mrb[0].mxu0
  %v2249 = vadd.f32 %v1008, %v2248
  %v2250 = vpop.f32.mrb[0].mxu0
  %2251 = vmatprep.mubr.f32.mxu0 0.0
  %2252 = vmatmul.mubr.f32.gmra.mrb[0].mxu0 %v1469
  %v2253 = vpop.f32.mrb[0].mxu0
  %v2254 = vadd.f32 %v1013, %v2253
  %v2255 = vpop.f32.mrb[0].mxu0
  %2256 = vmatprep.mubr.f32.mxu0 0.0
  %2257 = vmatmul.mubr.f32.gmra.mrb[0].mxu0 %v1472
  %v2258 = vpop.f32.mrb[0].mxu0
  %v2259 = vadd.f32 %v1018, %v2258
  %v2260 = vpop.f32.mrb[0].mxu0
  %2261 = vmatprep.mubr.f32.mxu0 0.0
  %2262 = vmatmul.mubr.f32.gmra.mrb[0].mxu0 %v1475
  %v2263 = vpop.f32.mrb[0].mxu0
  %v2264 = vadd.f32 %v1023, %v2263
  %v2265 = vpop.f32.mrb[0].mxu0
  %2266 = vmatprep.mubr.f32.mxu0 0.0
  %2267 = vmatmul.mubr.f32.gmra.mrb[0].mxu0 %v1478
  %v2268 = vpop.f32.mrb[0].mxu0
  %v2269 = vadd.f32 %v1028, %v2268
  %v2270 = vpop.f32.mrb[0].mxu0
  %2271 = vmatprep.mubr.f32.mxu0 0.0
  %2272 = vmatmul.mubr.f32.gmra.mrb[0].mxu0 %v1481
  %v2273 = vpop.f32.mrb[0].mxu0
  %v2274 = vadd.f32 %v1033, %v2273
  %v2275 = vpop.f32.mrb[0].mxu0
  %2276 = vmatprep.mubr.f32.mxu0 0.0
  %2277 = vmatmul.mubr.f32.gmra.mrb[0].mxu0 %v1484
  %v2278 = vpop.f32.mrb[0].mxu0
  %v2279 = vadd.f32 %v1038, %v2278
  %v2280 = vpop.f32.mrb[0].mxu0
  %2281 = vmatprep.mubr.f32.mxu0 0.0
  %2282 = vmatmul.mubr.f32.gmra.mrb[0].mxu0 %v1487
  %v2283 = vpop.f32.mrb[0].mxu0
  %v2284 = vadd.f32 %v1043, %v2283
  %v2285 = vpop.f32.mrb[0].mxu0
  %2286 = vmatprep.mubr.f32.mxu0 0.0
  %2287 = vmatmul.mubr.f32.gmra.mrb[0].mxu0 %v1490
  %v2288 = vpop.f32.mrb[0].mxu0
  %v2289 = vadd.f32 %v1048, %v2288
  %v2290 = vpop.f32.mrb[0].mxu0
  %2291 = vdwg.mxu0
  %v2292 = vmax.f32 %v1559, 0.0
  %v2293 = vmax.f32 %v1564, 0.0
  %v2294 = vmax.f32 %v1569, 0.0
  %v2295 = vmax.f32 %v1574, 0.0
  %v2296 = vmax.f32 %v1579, 0.0
  %v2297 = vmax.f32 %v1584, 0.0
  %v2298 = vmax.f32 %v1589, 0.0
  %v2299 = vmax.f32 %v1594, 0.0
  %v2300 = vmax.f32 %v1599, 0.0
  %v2301 = vmax.f32 %v1604, 0.0
  %v2302 = vmax.f32 %v1609, 0.0
  %v2303 = vmax.f32 %v1614, 0.0
  %v2304 = vmax.f32 %v1619, 0.0
  %v2305 = vmax.f32 %v1624, 0.0
  %v2306 = vmax.f32 %v1629, 0.0
  %v2307 = vmax.f32 %v1634, 0.0
  %v2308 = vmax.f32 %v1639, 0.0
  %v2309 = vmax.f32 %v1644, 0.0
  %v2310 = vmax.f32 %v1649, 0.0
  %v2311 = vmax.f32 %v1654, 0.0
  %v2312 = vmax.f32 %v1659, 0.0
  %v2313 = vmax.f32 %v1664, 0.0
  %v2314 = vmax.f32 %v1669, 0.0
  %v2315 = vmax.f32 %v1674, 0.0
  %v2316 = vmax.f32 %v1679, 0.0
  %v2317 = vmax.f32 %v1684, 0.0
  %v2318 = vmax.f32 %v1689, 0.0
  %v2319 = vmax.f32 %v1694, 0.0
  %v2320 = vmax.f32 %v1699, 0.0
  %v2321 = vmax.f32 %v1704, 0.0
  %v2322 = vmax.f32 %v1709, 0.0
  %v2323 = vmax.f32 %v1714, 0.0
  %v2324 = vmax.f32 %v1719, 0.0
  %v2325 = vmax.f32 %v1724, 0.0
  %v2326 = vmax.f32 %v1729, 0.0
  %v2327 = vmax.f32 %v1734, 0.0
  %v2328 = vmax.f32 %v1739, 0.0
  %v2329 = vmax.f32 %v1744, 0.0
  %v2330 = vmax.f32 %v1749, 0.0
  %v2331 = vmax.f32 %v1754, 0.0
  %v2332 = vmax.f32 %v1759, 0.0
  %v2333 = vmax.f32 %v1764, 0.0
  %v2334 = vmax.f32 %v1769, 0.0
  %v2335 = vmax.f32 %v1774, 0.0
  %v2336 = vmax.f32 %v1779, 0.0
  %v2337 = vmax.f32 %v1784, 0.0
  %v2338 = vmax.f32 %v1789, 0.0
  %v2339 = vmax.f32 %v1794, 0.0
  %v2340 = vmax.f32 %v1799, 0.0
  %v2341 = vmax.f32 %v1804, 0.0
  %v2342 = vmax.f32 %v1809, 0.0
  %v2343 = vmax.f32 %v1814, 0.0
  %v2344 = vmax.f32 %v1819, 0.0
  %v2345 = vmax.f32 %v1824, 0.0
  %v2346 = vmax.f32 %v1829, 0.0
  %v2347 = vmax.f32 %v1834, 0.0
  %v2348 = vmax.f32 %v1839, 0.0
  %v2349 = vmax.f32 %v1844, 0.0
  %v2350 = vmax.f32 %v1849, 0.0
  %v2351 = vmax.f32 %v1854, 0.0
  %v2352 = vmax.f32 %v1859, 0.0
  %v2353 = vmax.f32 %v1864, 0.0
  %v2354 = vmax.f32 %v1869, 0.0
  %v2355 = vmax.f32 %v1874, 0.0
  %v2356 = vmax.f32 %v1879, 0.0
  %v2357 = vmax.f32 %v1884, 0.0
  %v2358 = vmax.f32 %v1889, 0.0
  %v2359 = vmax.f32 %v1894, 0.0
  %v2360 = vmax.f32 %v1899, 0.0
  %v2361 = vmax.f32 %v1904, 0.0
  %v2362 = vmax.f32 %v1909, 0.0
  %v2363 = vmax.f32 %v1914, 0.0
  %v2364 = vmax.f32 %v1919, 0.0
  %v2365 = vmax.f32 %v1924, 0.0
  %v2366 = vmax.f32 %v1929, 0.0
  %v2367 = vmax.f32 %v1934, 0.0
  %v2368 = vmax.f32 %v1939, 0.0
  %v2369 = vmax.f32 %v1944, 0.0
  %v2370 = vmax.f32 %v1949, 0.0
  %v2371 = vmax.f32 %v1954, 0.0
  %v2372 = vmax.f32 %v1959, 0.0
  %v2373 = vmax.f32 %v1964, 0.0
  %v2374 = vmax.f32 %v1969, 0.0
  %v2375 = vmax.f32 %v1974, 0.0
  %v2376 = vmax.f32 %v1979, 0.0
  %v2377 = vmax.f32 %v1984, 0.0
  %v2378 = vmax.f32 %v1989, 0.0
  %v2379 = vmax.f32 %v1994, 0.0
  %v2380 = vmax.f32 %v1999, 0.0
  %v2381 = vmax.f32 %v2004, 0.0
  %v2382 = vmax.f32 %v2009, 0.0
  %v2383 = vmax.f32 %v2014, 0.0
  %v2384 = vmax.f32 %v2019, 0.0
  %v2385 = vmax.f32 %v2024, 0.0
  %v2386 = vmax.f32 %v2029, 0.0
  %v2387 = vmax.f32 %v2034, 0.0
  %v2388 = vmax.f32 %v2039, 0.0
  %v2389 = vmax.f32 %v2044, 0.0
  %v2390 = vmax.f32 %v2049, 0.0
  %v2391 = vmax.f32 %v2054, 0.0
  %v2392 = vmax.f32 %v2059, 0.0
  %v2393 = vmax.f32 %v2064, 0.0
  %v2394 = vmax.f32 %v2069, 0.0
  %v2395 = vmax.f32 %v2074, 0.0
  %v2396 = vmax.f32 %v2079, 0.0
  %v2397 = vmax.f32 %v2084, 0.0
  %v2398 = vmax.f32 %v2089, 0.0
  %v2399 = vmax.f32 %v2094, 0.0
  %v2400 = vmax.f32 %v2099, 0.0
  %v2401 = vmax.f32 %v2104, 0.0
  %v2402 = vmax.f32 %v2109, 0.0
  %v2403 = vmax.f32 %v2114, 0.0
  %v2404 = vmax.f32 %v2119, 0.0
  %v2405 = vmax.f32 %v2124, 0.0
  %v2406 = vmax.f32 %v2129, 0.0
  %v2407 = vmax.f32 %v2134, 0.0
  %v2408 = vmax.f32 %v2139, 0.0
  %v2409 = vmax.f32 %v2144, 0.0
  %v2410 = vmax.f32 %v2149, 0.0
  %v2411 = vmax.f32 %v2154, 0.0
  %v2412 = vmax.f32 %v2159, 0.0
  %v2413 = vmax.f32 %v2164, 0.0
  %v2414 = vmax.f32 %v2169, 0.0
  %v2415 = vmax.f32 %v2174, 0.0
  %v2416 = vmax.f32 %v2179, 0.0
  %v2417 = vmax.f32 %v2184, 0.0
  %v2418 = vmax.f32 %v2189, 0.0
  %v2419 = vmax.f32 %v2194, 0.0
  %v2420 = vmax.f32 %v2199, 0.0
  %v2421 = vmax.f32 %v2204, 0.0
  %v2422 = vmax.f32 %v2209, 0.0
  %v2423 = vmax.f32 %v2214, 0.0
  %v2424 = vmax.f32 %v2219, 0.0
  %v2425 = vmax.f32 %v2224, 0.0
  %v2426 = vmax.f32 %v2229, 0.0
  %v2427 = vmax.f32 %v2234, 0.0
  %v2428 = vmax.f32 %v2239, 0.0
  %v2429 = vmax.f32 %v2244, 0.0
  %v2430 = vmax.f32 %v2249, 0.0
  %v2431 = vmax.f32 %v2254, 0.0
  %v2432 = vmax.f32 %v2259, 0.0
  %v2433 = vmax.f32 %v2264, 0.0
  %v2434 = vmax.f32 %v2269, 0.0
  %v2435 = vmax.f32 %v2274, 0.0
  %v2436 = vmax.f32 %v2279, 0.0
  %v2437 = vmax.f32 %v2284, 0.0
  %v2438 = vmax.f32 %v2289, 0.0
  %vm2439 = vcmask 15360
  %2440 = vst.msk [vmem:[%s3] sm:$0xff] %vm2439, %v2292
  %2441 = vst.msk [vmem:[%s3 + $0x8] sm:$0xff] %vm2439, %v2293
  %2442 = vst.msk [vmem:[%s3 + $0x10] sm:$0xff] %vm2439, %v2294
  %2443 = vst.msk [vmem:[%s3 + $0x18] sm:$0xff] %vm2439, %v2295
  %2444 = vst.msk [vmem:[%s3 + $0x20] sm:$0xff] %vm2439, %v2296
  %2445 = vst.msk [vmem:[%s3 + $0x28] sm:$0xff] %vm2439, %v2297
  %2446 = vst.msk [vmem:[%s3 + $0x30] sm:$0xff] %vm2439, %v2298
  %2447 = vst.msk [vmem:[%s3 + $0x38] sm:$0xff] %vm2439, %v2299
  %2448 = vst.msk [vmem:[%s3 + $0x40] sm:$0xff] %vm2439, %v2300
  %2449 = vst.msk [vmem:[%s3 + $0x48] sm:$0xff] %vm2439, %v2301
  %2450 = vst.msk [vmem:[%s3 + $0x50] sm:$0xff] %vm2439, %v2302
  %2451 = vst.msk [vmem:[%s3 + $0x58] sm:$0xff] %vm2439, %v2303
  %2452 = vst.msk [vmem:[%s3 + $0x60] sm:$0xff] %vm2439, %v2304
  %2453 = vst.msk [vmem:[%s3 + $0x68] sm:$0xff] %vm2439, %v2305
  %2454 = vst.msk [vmem:[%s3 + $0x70] sm:$0xff] %vm2439, %v2306
  %2455 = vst.msk [vmem:[%s3 + $0x78] sm:$0xff] %vm2439, %v2307
  %2456 = vst.msk [vmem:[%s3 + $0x80] sm:$0xff] %vm2439, %v2308
  %2457 = vst.msk [vmem:[%s3 + $0x88] sm:$0xff] %vm2439, %v2309
  %2458 = vst.msk [vmem:[%s3 + $0x90] sm:$0xff] %vm2439, %v2310
  %2459 = vst.msk [vmem:[%s3 + $0x98] sm:$0xff] %vm2439, %v2311
  %2460 = vst.msk [vmem:[%s3 + $0xa0] sm:$0xff] %vm2439, %v2312
  %2461 = vst.msk [vmem:[%s3 + $0xa8] sm:$0xff] %vm2439, %v2313
  %2462 = vst.msk [vmem:[%s3 + $0xb0] sm:$0xff] %vm2439, %v2314
  %2463 = vst.msk [vmem:[%s3 + $0xb8] sm:$0xff] %vm2439, %v2315
  %2464 = vst.msk [vmem:[%s3 + $0xc0] sm:$0xff] %vm2439, %v2316
  %2465 = vst.msk [vmem:[%s3 + $0xc8] sm:$0xff] %vm2439, %v2317
  %2466 = vst.msk [vmem:[%s3 + $0xd0] sm:$0xff] %vm2439, %v2318
  %2467 = vst.msk [vmem:[%s3 + $0xd8] sm:$0xff] %vm2439, %v2319
  %2468 = vst.msk [vmem:[%s3 + $0xe0] sm:$0xff] %vm2439, %v2320
  %2469 = vst.msk [vmem:[%s3 + $0xe8] sm:$0xff] %vm2439, %v2321
  %2470 = vst.msk [vmem:[%s3 + $0xf0] sm:$0xff] %vm2439, %v2322
  %2471 = vst.msk [vmem:[%s3 + $0xf8] sm:$0xff] %vm2439, %v2323
  %2472 = vst.msk [vmem:[%s3 + $0x100] sm:$0xff] %vm2439, %v2324
  %2473 = vst.msk [vmem:[%s3 + $0x108] sm:$0xff] %vm2439, %v2325
  %2474 = vst.msk [vmem:[%s3 + $0x110] sm:$0xff] %vm2439, %v2326
  %2475 = vst.msk [vmem:[%s3 + $0x118] sm:$0xff] %vm2439, %v2327
  %2476 = vst.msk [vmem:[%s3 + $0x120] sm:$0xff] %vm2439, %v2328
  %2477 = vst.msk [vmem:[%s3 + $0x128] sm:$0xff] %vm2439, %v2329
  %2478 = vst.msk [vmem:[%s3 + $0x130] sm:$0xff] %vm2439, %v2330
  %2479 = vst.msk [vmem:[%s3 + $0x138] sm:$0xff] %vm2439, %v2331
  %2480 = vst.msk [vmem:[%s3 + $0x140] sm:$0xff] %vm2439, %v2332
  %2481 = vst.msk [vmem:[%s3 + $0x148] sm:$0xff] %vm2439, %v2333
  %2482 = vst.msk [vmem:[%s3 + $0x150] sm:$0xff] %vm2439, %v2334
  %2483 = vst.msk [vmem:[%s3 + $0x158] sm:$0xff] %vm2439, %v2335
  %2484 = vst.msk [vmem:[%s3 + $0x160] sm:$0xff] %vm2439, %v2336
  %2485 = vst.msk [vmem:[%s3 + $0x168] sm:$0xff] %vm2439, %v2337
  %2486 = vst.msk [vmem:[%s3 + $0x170] sm:$0xff] %vm2439, %v2338
  %2487 = vst.msk [vmem:[%s3 + $0x178] sm:$0xff] %vm2439, %v2339
  %2488 = vst.msk [vmem:[%s3 + $0x180] sm:$0xff] %vm2439, %v2340
  %2489 = vst.msk [vmem:[%s3 + $0x188] sm:$0xff] %vm2439, %v2341
  %2490 = vst.msk [vmem:[%s3 + $0x190] sm:$0xff] %vm2439, %v2342
  %2491 = vst.msk [vmem:[%s3 + $0x198] sm:$0xff] %vm2439, %v2343
  %2492 = vst.msk [vmem:[%s3 + $0x1a0] sm:$0xff] %vm2439, %v2344
  %2493 = vst.msk [vmem:[%s3 + $0x1a8] sm:$0xff] %vm2439, %v2345
  %2494 = vst.msk [vmem:[%s3 + $0x1b0] sm:$0xff] %vm2439, %v2346
  %2495 = vst.msk [vmem:[%s3 + $0x1b8] sm:$0xff] %vm2439, %v2347
  %2496 = vst.msk [vmem:[%s3 + $0x1c0] sm:$0xff] %vm2439, %v2348
  %2497 = vst.msk [vmem:[%s3 + $0x1c8] sm:$0xff] %vm2439, %v2349
  %2498 = vst.msk [vmem:[%s3 + $0x1d0] sm:$0xff] %vm2439, %v2350
  %2499 = vst.msk [vmem:[%s3 + $0x1d8] sm:$0xff] %vm2439, %v2351
  %2500 = vst.msk [vmem:[%s3 + $0x1e0] sm:$0xff] %vm2439, %v2352
  %2501 = vst.msk [vmem:[%s3 + $0x1e8] sm:$0xff] %vm2439, %v2353
  %2502 = vst.msk [vmem:[%s3 + $0x1f0] sm:$0xff] %vm2439, %v2354
  %2503 = vst.msk [vmem:[%s3 + $0x1f8] sm:$0xff] %vm2439, %v2355
  %2504 = vst.msk [vmem:[%s3 + $0x200] sm:$0xff] %vm2439, %v2356
  %2505 = vst.msk [vmem:[%s3 + $0x208] sm:$0xff] %vm2439, %v2357
  %2506 = vst.msk [vmem:[%s3 + $0x210] sm:$0xff] %vm2439, %v2358
  %2507 = vst.msk [vmem:[%s3 + $0x218] sm:$0xff] %vm2439, %v2359
  %2508 = vst.msk [vmem:[%s3 + $0x220] sm:$0xff] %vm2439, %v2360
  %2509 = vst.msk [vmem:[%s3 + $0x228] sm:$0xff] %vm2439, %v2361
  %2510 = vst.msk [vmem:[%s3 + $0x230] sm:$0xff] %vm2439, %v2362
  %2511 = vst.msk [vmem:[%s3 + $0x238] sm:$0xff] %vm2439, %v2363
  %2512 = vst.msk [vmem:[%s3 + $0x240] sm:$0xff] %vm2439, %v2364
  %2513 = vst.msk [vmem:[%s3 + $0x248] sm:$0xff] %vm2439, %v2365
  %2514 = vst.msk [vmem:[%s3 + $0x250] sm:$0xff] %vm2439, %v2366
  %2515 = vst.msk [vmem:[%s3 + $0x258] sm:$0xff] %vm2439, %v2367
  %2516 = vst.msk [vmem:[%s3 + $0x260] sm:$0xff] %vm2439, %v2368
  %2517 = vst.msk [vmem:[%s3 + $0x268] sm:$0xff] %vm2439, %v2369
  %2518 = vst.msk [vmem:[%s3 + $0x270] sm:$0xff] %vm2439, %v2370
  %2519 = vst.msk [vmem:[%s3 + $0x278] sm:$0xff] %vm2439, %v2371
  %2520 = vst.msk [vmem:[%s3 + $0x280] sm:$0xff] %vm2439, %v2372
  %2521 = vst.msk [vmem:[%s3 + $0x288] sm:$0xff] %vm2439, %v2373
  %2522 = vst.msk [vmem:[%s3 + $0x290] sm:$0xff] %vm2439, %v2374
  %2523 = vst.msk [vmem:[%s3 + $0x298] sm:$0xff] %vm2439, %v2375
  %2524 = vst.msk [vmem:[%s3 + $0x2a0] sm:$0xff] %vm2439, %v2376
  %2525 = vst.msk [vmem:[%s3 + $0x2a8] sm:$0xff] %vm2439, %v2377
  %2526 = vst.msk [vmem:[%s3 + $0x2b0] sm:$0xff] %vm2439, %v2378
  %2527 = vst.msk [vmem:[%s3 + $0x2b8] sm:$0xff] %vm2439, %v2379
  %2528 = vst.msk [vmem:[%s3 + $0x2c0] sm:$0xff] %vm2439, %v2380
  %2529 = vst.msk [vmem:[%s3 + $0x2c8] sm:$0xff] %vm2439, %v2381
  %2530 = vst.msk [vmem:[%s3 + $0x2d0] sm:$0xff] %vm2439, %v2382
  %2531 = vst.msk [vmem:[%s3 + $0x2d8] sm:$0xff] %vm2439, %v2383
  %2532 = vst.msk [vmem:[%s3 + $0x2e0] sm:$0xff] %vm2439, %v2384
  %2533 = vst.msk [vmem:[%s3 + $0x2e8] sm:$0xff] %vm2439, %v2385
  %2534 = vst.msk [vmem:[%s3 + $0x2f0] sm:$0xff] %vm2439, %v2386
  %2535 = vst.msk [vmem:[%s3 + $0x2f8] sm:$0xff] %vm2439, %v2387
  %2536 = vst.msk [vmem:[%s3 + $0x300] sm:$0xff] %vm2439, %v2388
  %2537 = vst.msk [vmem:[%s3 + $0x308] sm:$0xff] %vm2439, %v2389
  %2538 = vst.msk [vmem:[%s3 + $0x310] sm:$0xff] %vm2439, %v2390
  %2539 = vst.msk [vmem:[%s3 + $0x318] sm:$0xff] %vm2439, %v2391
  %2540 = vst.msk [vmem:[%s3 + $0x320] sm:$0xff] %vm2439, %v2392
  %2541 = vst.msk [vmem:[%s3 + $0x328] sm:$0xff] %vm2439, %v2393
  %2542 = vst.msk [vmem:[%s3 + $0x330] sm:$0xff] %vm2439, %v2394
  %2543 = vst.msk [vmem:[%s3 + $0x338] sm:$0xff] %vm2439, %v2395
  %2544 = vst.msk [vmem:[%s3 + $0x340] sm:$0xff] %vm2439, %v2396
  %2545 = vst.msk [vmem:[%s3 + $0x348] sm:$0xff] %vm2439, %v2397
  %2546 = vst.msk [vmem:[%s3 + $0x350] sm:$0xff] %vm2439, %v2398
  %2547 = vst.msk [vmem:[%s3 + $0x358] sm:$0xff] %vm2439, %v2399
  %2548 = vst.msk [vmem:[%s3 + $0x360] sm:$0xff] %vm2439, %v2400
  %2549 = vst.msk [vmem:[%s3 + $0x368] sm:$0xff] %vm2439, %v2401
  %2550 = vst.msk [vmem:[%s3 + $0x370] sm:$0xff] %vm2439, %v2402
  %2551 = vst.msk [vmem:[%s3 + $0x378] sm:$0xff] %vm2439, %v2403
  %2552 = vst.msk [vmem:[%s3 + $0x380] sm:$0xff] %vm2439, %v2404
  %2553 = vst.msk [vmem:[%s3 + $0x388] sm:$0xff] %vm2439, %v2405
  %2554 = vst.msk [vmem:[%s3 + $0x390] sm:$0xff] %vm2439, %v2406
  %2555 = vst.msk [vmem:[%s3 + $0x398] sm:$0xff] %vm2439, %v2407
  %2556 = vst.msk [vmem:[%s3 + $0x3a0] sm:$0xff] %vm2439, %v2408
  %2557 = vst.msk [vmem:[%s3 + $0x3a8] sm:$0xff] %vm2439, %v2409
  %2558 = vst.msk [vmem:[%s3 + $0x3b0] sm:$0xff] %vm2439, %v2410
  %2559 = vst.msk [vmem:[%s3 + $0x3b8] sm:$0xff] %vm2439, %v2411
  %2560 = vst.msk [vmem:[%s3 + $0x3c0] sm:$0xff] %vm2439, %v2412
  %2561 = vst.msk [vmem:[%s3 + $0x3c8] sm:$0xff] %vm2439, %v2413
  %2562 = vst.msk [vmem:[%s3 + $0x3d0] sm:$0xff] %vm2439, %v2414
  %2563 = vst.msk [vmem:[%s3 + $0x3d8] sm:$0xff] %vm2439, %v2415
  %2564 = vst.msk [vmem:[%s3 + $0x3e0] sm:$0xff] %vm2439, %v2416
  %2565 = vst.msk [vmem:[%s3 + $0x3e8] sm:$0xff] %vm2439, %v2417
  %2566 = vst.msk [vmem:[%s3 + $0x3f0] sm:$0xff] %vm2439, %v2418
  %2567 = vst.msk [vmem:[%s3 + $0x3f8] sm:$0xff] %vm2439, %v2419
  %2568 = vst.msk [vmem:[%s3 + $0x400] sm:$0xff] %vm2439, %v2420
  %2569 = vst.msk [vmem:[%s3 + $0x408] sm:$0xff] %vm2439, %v2421
  %2570 = vst.msk [vmem:[%s3 + $0x410] sm:$0xff] %vm2439, %v2422
  %2571 = vst.msk [vmem:[%s3 + $0x418] sm:$0xff] %vm2439, %v2423
  %2572 = vst.msk [vmem:[%s3 + $0x420] sm:$0xff] %vm2439, %v2424
  %2573 = vst.msk [vmem:[%s3 + $0x428] sm:$0xff] %vm2439, %v2425
  %2574 = vst.msk [vmem:[%s3 + $0x430] sm:$0xff] %vm2439, %v2426
  %2575 = vst.msk [vmem:[%s3 + $0x438] sm:$0xff] %vm2439, %v2427
  %2576 = vst.msk [vmem:[%s3 + $0x440] sm:$0xff] %vm2439, %v2428
  %2577 = vst.msk [vmem:[%s3 + $0x448] sm:$0xff] %vm2439, %v2429
  %2578 = vst.msk [vmem:[%s3 + $0x450] sm:$0xff] %vm2439, %v2430
  %2579 = vst.msk [vmem:[%s3 + $0x458] sm:$0xff] %vm2439, %v2431
  %2580 = vst.msk [vmem:[%s3 + $0x460] sm:$0xff] %vm2439, %v2432
  %2581 = vst.msk [vmem:[%s3 + $0x468] sm:$0xff] %vm2439, %v2433
  %2582 = vst.msk [vmem:[%s3 + $0x470] sm:$0xff] %vm2439, %v2434
  %2583 = vst.msk [vmem:[%s3 + $0x478] sm:$0xff] %vm2439, %v2435
  %2584 = vst.msk [vmem:[%s3 + $0x480] sm:$0xff] %vm2439, %v2436
  %2585 = vst.msk [vmem:[%s3 + $0x488] sm:$0xff] %vm2439, %v2437
  %2586 = vst.msk [vmem:[%s3 + $0x490] sm:$0xff] %vm2439, %v2438
  %v2587 = vsel %vm2439, %v2292, 0.0
  %2588 = vadd.xlane.f32.xlu0 %v2587
  %v2589 = vpop.xlane.xlu0 %2588
  %v2590 = vsel %vm2439, %v2293, 0.0
  %2591 = vadd.xlane.f32.xlu0 %v2590
  %v2592 = vpop.xlane.xlu0 %2591
  %v2593 = vsel %vm2439, %v2294, 0.0
  %2594 = vadd.xlane.f32.xlu0 %v2593
  %v2595 = vpop.xlane.xlu0 %2594
  %v2596 = vsel %vm2439, %v2295, 0.0
  %2597 = vadd.xlane.f32.xlu0 %v2596
  %v2598 = vpop.xlane.xlu0 %2597
  %v2599 = vsel %vm2439, %v2296, 0.0
  %2600 = vadd.xlane.f32.xlu0 %v2599
  %v2601 = vpop.xlane.xlu0 %2600
  %v2602 = vsel %vm2439, %v2297, 0.0
  %2603 = vadd.xlane.f32.xlu0 %v2602
  %v2604 = vpop.xlane.xlu0 %2603
  %v2605 = vsel %vm2439, %v2298, 0.0
  %2606 = vadd.xlane.f32.xlu0 %v2605
  %v2607 = vpop.xlane.xlu0 %2606
  %v2608 = vsel %vm2439, %v2299, 0.0
  %2609 = vadd.xlane.f32.xlu0 %v2608
  %v2610 = vpop.xlane.xlu0 %2609
  %v2611 = vsel %vm2439, %v2300, 0.0
  %2612 = vadd.xlane.f32.xlu0 %v2611
  %v2613 = vpop.xlane.xlu0 %2612
  %v2614 = vsel %vm2439, %v2301, 0.0
  %2615 = vadd.xlane.f32.xlu0 %v2614
  %v2616 = vpop.xlane.xlu0 %2615
  %v2617 = vsel %vm2439, %v2302, 0.0
  %2618 = vadd.xlane.f32.xlu0 %v2617
  %v2619 = vpop.xlane.xlu0 %2618
  %v2620 = vsel %vm2439, %v2303, 0.0
  %2621 = vadd.xlane.f32.xlu0 %v2620
  %v2622 = vpop.xlane.xlu0 %2621
  %v2623 = vsel %vm2439, %v2304, 0.0
  %2624 = vadd.xlane.f32.xlu0 %v2623
  %v2625 = vpop.xlane.xlu0 %2624
  %v2626 = vsel %vm2439, %v2305, 0.0
  %2627 = vadd.xlane.f32.xlu0 %v2626
  %v2628 = vpop.xlane.xlu0 %2627
  %v2629 = vsel %vm2439, %v2306, 0.0
  %2630 = vadd.xlane.f32.xlu0 %v2629
  %v2631 = vpop.xlane.xlu0 %2630
  %v2632 = vsel %vm2439, %v2307, 0.0
  %2633 = vadd.xlane.f32.xlu0 %v2632
  %v2634 = vpop.xlane.xlu0 %2633
  %v2635 = vsel %vm2439, %v2308, 0.0
  %2636 = vadd.xlane.f32.xlu0 %v2635
  %v2637 = vpop.xlane.xlu0 %2636
  %v2638 = vsel %vm2439, %v2309, 0.0
  %2639 = vadd.xlane.f32.xlu0 %v2638
  %v2640 = vpop.xlane.xlu0 %2639
  %v2641 = vsel %vm2439, %v2310, 0.0
  %2642 = vadd.xlane.f32.xlu0 %v2641
  %v2643 = vpop.xlane.xlu0 %2642
  %v2644 = vsel %vm2439, %v2311, 0.0
  %2645 = vadd.xlane.f32.xlu0 %v2644
  %v2646 = vpop.xlane.xlu0 %2645
  %v2647 = vsel %vm2439, %v2312, 0.0
  %2648 = vadd.xlane.f32.xlu0 %v2647
  %v2649 = vpop.xlane.xlu0 %2648
  %v2650 = vsel %vm2439, %v2313, 0.0
  %2651 = vadd.xlane.f32.xlu0 %v2650
  %v2652 = vpop.xlane.xlu0 %2651
  %v2653 = vsel %vm2439, %v2314, 0.0
  %2654 = vadd.xlane.f32.xlu0 %v2653
  %v2655 = vpop.xlane.xlu0 %2654
  %v2656 = vsel %vm2439, %v2315, 0.0
  %2657 = vadd.xlane.f32.xlu0 %v2656
  %v2658 = vpop.xlane.xlu0 %2657
  %v2659 = vsel %vm2439, %v2316, 0.0
  %2660 = vadd.xlane.f32.xlu0 %v2659
  %v2661 = vpop.xlane.xlu0 %2660
  %v2662 = vsel %vm2439, %v2317, 0.0
  %2663 = vadd.xlane.f32.xlu0 %v2662
  %v2664 = vpop.xlane.xlu0 %2663
  %v2665 = vsel %vm2439, %v2318, 0.0
  %2666 = vadd.xlane.f32.xlu0 %v2665
  %v2667 = vpop.xlane.xlu0 %2666
  %v2668 = vsel %vm2439, %v2319, 0.0
  %2669 = vadd.xlane.f32.xlu0 %v2668
  %v2670 = vpop.xlane.xlu0 %2669
  %v2671 = vsel %vm2439, %v2320, 0.0
  %2672 = vadd.xlane.f32.xlu0 %v2671
  %v2673 = vpop.xlane.xlu0 %2672
  %v2674 = vsel %vm2439, %v2321, 0.0
  %2675 = vadd.xlane.f32.xlu0 %v2674
  %v2676 = vpop.xlane.xlu0 %2675
  %v2677 = vsel %vm2439, %v2322, 0.0
  %2678 = vadd.xlane.f32.xlu0 %v2677
  %v2679 = vpop.xlane.xlu0 %2678
  %v2680 = vsel %vm2439, %v2323, 0.0
  %2681 = vadd.xlane.f32.xlu0 %v2680
  %v2682 = vpop.xlane.xlu0 %2681
  %v2683 = vsel %vm2439, %v2324, 0.0
  %2684 = vadd.xlane.f32.xlu0 %v2683
  %v2685 = vpop.xlane.xlu0 %2684
  %v2686 = vsel %vm2439, %v2325, 0.0
  %2687 = vadd.xlane.f32.xlu0 %v2686
  %v2688 = vpop.xlane.xlu0 %2687
  %v2689 = vsel %vm2439, %v2326, 0.0
  %2690 = vadd.xlane.f32.xlu0 %v2689
  %v2691 = vpop.xlane.xlu0 %2690
  %v2692 = vsel %vm2439, %v2327, 0.0
  %2693 = vadd.xlane.f32.xlu0 %v2692
  %v2694 = vpop.xlane.xlu0 %2693
  %v2695 = vsel %vm2439, %v2328, 0.0
  %2696 = vadd.xlane.f32.xlu0 %v2695
  %v2697 = vpop.xlane.xlu0 %2696
  %v2698 = vsel %vm2439, %v2329, 0.0
  %2699 = vadd.xlane.f32.xlu0 %v2698
  %v2700 = vpop.xlane.xlu0 %2699
  %v2701 = vsel %vm2439, %v2330, 0.0
  %2702 = vadd.xlane.f32.xlu0 %v2701
  %v2703 = vpop.xlane.xlu0 %2702
  %v2704 = vsel %vm2439, %v2331, 0.0
  %2705 = vadd.xlane.f32.xlu0 %v2704
  %v2706 = vpop.xlane.xlu0 %2705
  %v2707 = vsel %vm2439, %v2332, 0.0
  %2708 = vadd.xlane.f32.xlu0 %v2707
  %v2709 = vpop.xlane.xlu0 %2708
  %v2710 = vsel %vm2439, %v2333, 0.0
  %2711 = vadd.xlane.f32.xlu0 %v2710
  %v2712 = vpop.xlane.xlu0 %2711
  %v2713 = vsel %vm2439, %v2334, 0.0
  %2714 = vadd.xlane.f32.xlu0 %v2713
  %v2715 = vpop.xlane.xlu0 %2714
  %v2716 = vsel %vm2439, %v2335, 0.0
  %2717 = vadd.xlane.f32.xlu0 %v2716
  %v2718 = vpop.xlane.xlu0 %2717
  %v2719 = vsel %vm2439, %v2336, 0.0
  %2720 = vadd.xlane.f32.xlu0 %v2719
  %v2721 = vpop.xlane.xlu0 %2720
  %v2722 = vsel %vm2439, %v2337, 0.0
  %2723 = vadd.xlane.f32.xlu0 %v2722
  %v2724 = vpop.xlane.xlu0 %2723
  %v2725 = vsel %vm2439, %v2338, 0.0
  %2726 = vadd.xlane.f32.xlu0 %v2725
  %v2727 = vpop.xlane.xlu0 %2726
  %v2728 = vsel %vm2439, %v2339, 0.0
  %2729 = vadd.xlane.f32.xlu0 %v2728
  %v2730 = vpop.xlane.xlu0 %2729
  %v2731 = vsel %vm2439, %v2340, 0.0
  %2732 = vadd.xlane.f32.xlu0 %v2731
  %v2733 = vpop.xlane.xlu0 %2732
  %v2734 = vsel %vm2439, %v2341, 0.0
  %2735 = vadd.xlane.f32.xlu0 %v2734
  %v2736 = vpop.xlane.xlu0 %2735
  %v2737 = vsel %vm2439, %v2342, 0.0
  %2738 = vadd.xlane.f32.xlu0 %v2737
  %v2739 = vpop.xlane.xlu0 %2738
  %v2740 = vsel %vm2439, %v2343, 0.0
  %2741 = vadd.xlane.f32.xlu0 %v2740
  %v2742 = vpop.xlane.xlu0 %2741
  %v2743 = vsel %vm2439, %v2344, 0.0
  %2744 = vadd.xlane.f32.xlu0 %v2743
  %v2745 = vpop.xlane.xlu0 %2744
  %v2746 = vsel %vm2439, %v2345, 0.0
  %2747 = vadd.xlane.f32.xlu0 %v2746
  %v2748 = vpop.xlane.xlu0 %2747
  %v2749 = vsel %vm2439, %v2346, 0.0
  %2750 = vadd.xlane.f32.xlu0 %v2749
  %v2751 = vpop.xlane.xlu0 %2750
  %v2752 = vsel %vm2439, %v2347, 0.0
  %2753 = vadd.xlane.f32.xlu0 %v2752
  %v2754 = vpop.xlane.xlu0 %2753
  %v2755 = vsel %vm2439, %v2348, 0.0
  %2756 = vadd.xlane.f32.xlu0 %v2755
  %v2757 = vpop.xlane.xlu0 %2756
  %v2758 = vsel %vm2439, %v2349, 0.0
  %2759 = vadd.xlane.f32.xlu0 %v2758
  %v2760 = vpop.xlane.xlu0 %2759
  %v2761 = vsel %vm2439, %v2350, 0.0
  %2762 = vadd.xlane.f32.xlu0 %v2761
  %v2763 = vpop.xlane.xlu0 %2762
  %v2764 = vsel %vm2439, %v2351, 0.0
  %2765 = vadd.xlane.f32.xlu0 %v2764
  %v2766 = vpop.xlane.xlu0 %2765
  %v2767 = vsel %vm2439, %v2352, 0.0
  %2768 = vadd.xlane.f32.xlu0 %v2767
  %v2769 = vpop.xlane.xlu0 %2768
  %v2770 = vsel %vm2439, %v2353, 0.0
  %2771 = vadd.xlane.f32.xlu0 %v2770
  %v2772 = vpop.xlane.xlu0 %2771
  %v2773 = vsel %vm2439, %v2354, 0.0
  %2774 = vadd.xlane.f32.xlu0 %v2773
  %v2775 = vpop.xlane.xlu0 %2774
  %v2776 = vsel %vm2439, %v2355, 0.0
  %2777 = vadd.xlane.f32.xlu0 %v2776
  %v2778 = vpop.xlane.xlu0 %2777
  %v2779 = vsel %vm2439, %v2356, 0.0
  %2780 = vadd.xlane.f32.xlu0 %v2779
  %v2781 = vpop.xlane.xlu0 %2780
  %v2782 = vsel %vm2439, %v2357, 0.0
  %2783 = vadd.xlane.f32.xlu0 %v2782
  %v2784 = vpop.xlane.xlu0 %2783
  %v2785 = vsel %vm2439, %v2358, 0.0
  %2786 = vadd.xlane.f32.xlu0 %v2785
  %v2787 = vpop.xlane.xlu0 %2786
  %v2788 = vsel %vm2439, %v2359, 0.0
  %2789 = vadd.xlane.f32.xlu0 %v2788
  %v2790 = vpop.xlane.xlu0 %2789
  %v2791 = vsel %vm2439, %v2360, 0.0
  %2792 = vadd.xlane.f32.xlu0 %v2791
  %v2793 = vpop.xlane.xlu0 %2792
  %v2794 = vsel %vm2439, %v2361, 0.0
  %2795 = vadd.xlane.f32.xlu0 %v2794
  %v2796 = vpop.xlane.xlu0 %2795
  %v2797 = vsel %vm2439, %v2362, 0.0
  %2798 = vadd.xlane.f32.xlu0 %v2797
  %v2799 = vpop.xlane.xlu0 %2798
  %v2800 = vsel %vm2439, %v2363, 0.0
  %2801 = vadd.xlane.f32.xlu0 %v2800
  %v2802 = vpop.xlane.xlu0 %2801
  %v2803 = vsel %vm2439, %v2364, 0.0
  %2804 = vadd.xlane.f32.xlu0 %v2803
  %v2805 = vpop.xlane.xlu0 %2804
  %v2806 = vsel %vm2439, %v2365, 0.0
  %2807 = vadd.xlane.f32.xlu0 %v2806
  %v2808 = vpop.xlane.xlu0 %2807
  %v2809 = vsel %vm2439, %v2366, 0.0
  %2810 = vadd.xlane.f32.xlu0 %v2809
  %v2811 = vpop.xlane.xlu0 %2810
  %v2812 = vsel %vm2439, %v2367, 0.0
  %2813 = vadd.xlane.f32.xlu0 %v2812
  %v2814 = vpop.xlane.xlu0 %2813
  %v2815 = vsel %vm2439, %v2368, 0.0
  %2816 = vadd.xlane.f32.xlu0 %v2815
  %v2817 = vpop.xlane.xlu0 %2816
  %v2818 = vsel %vm2439, %v2369, 0.0
  %2819 = vadd.xlane.f32.xlu0 %v2818
  %v2820 = vpop.xlane.xlu0 %2819
  %v2821 = vsel %vm2439, %v2370, 0.0
  %2822 = vadd.xlane.f32.xlu0 %v2821
  %v2823 = vpop.xlane.xlu0 %2822
  %v2824 = vsel %vm2439, %v2371, 0.0
  %2825 = vadd.xlane.f32.xlu0 %v2824
  %v2826 = vpop.xlane.xlu0 %2825
  %v2827 = vsel %vm2439, %v2372, 0.0
  %2828 = vadd.xlane.f32.xlu0 %v2827
  %v2829 = vpop.xlane.xlu0 %2828
  %v2830 = vsel %vm2439, %v2373, 0.0
  %2831 = vadd.xlane.f32.xlu0 %v2830
  %v2832 = vpop.xlane.xlu0 %2831
  %v2833 = vsel %vm2439, %v2374, 0.0
  %2834 = vadd.xlane.f32.xlu0 %v2833
  %v2835 = vpop.xlane.xlu0 %2834
  %v2836 = vsel %vm2439, %v2375, 0.0
  %2837 = vadd.xlane.f32.xlu0 %v2836
  %v2838 = vpop.xlane.xlu0 %2837
  %v2839 = vsel %vm2439, %v2376, 0.0
  %2840 = vadd.xlane.f32.xlu0 %v2839
  %v2841 = vpop.xlane.xlu0 %2840
  %v2842 = vsel %vm2439, %v2377, 0.0
  %2843 = vadd.xlane.f32.xlu0 %v2842
  %v2844 = vpop.xlane.xlu0 %2843
  %v2845 = vsel %vm2439, %v2378, 0.0
  %2846 = vadd.xlane.f32.xlu0 %v2845
  %v2847 = vpop.xlane.xlu0 %2846
  %v2848 = vsel %vm2439, %v2379, 0.0
  %2849 = vadd.xlane.f32.xlu0 %v2848
  %v2850 = vpop.xlane.xlu0 %2849
  %v2851 = vsel %vm2439, %v2380, 0.0
  %2852 = vadd.xlane.f32.xlu0 %v2851
  %v2853 = vpop.xlane.xlu0 %2852
  %v2854 = vsel %vm2439, %v2381, 0.0
  %2855 = vadd.xlane.f32.xlu0 %v2854
  %v2856 = vpop.xlane.xlu0 %2855
  %v2857 = vsel %vm2439, %v2382, 0.0
  %2858 = vadd.xlane.f32.xlu0 %v2857
  %v2859 = vpop.xlane.xlu0 %2858
  %v2860 = vsel %vm2439, %v2383, 0.0
  %2861 = vadd.xlane.f32.xlu0 %v2860
  %v2862 = vpop.xlane.xlu0 %2861
  %v2863 = vsel %vm2439, %v2384, 0.0
  %2864 = vadd.xlane.f32.xlu0 %v2863
  %v2865 = vpop.xlane.xlu0 %2864
  %v2866 = vsel %vm2439, %v2385, 0.0
  %2867 = vadd.xlane.f32.xlu0 %v2866
  %v2868 = vpop.xlane.xlu0 %2867
  %v2869 = vsel %vm2439, %v2386, 0.0
  %2870 = vadd.xlane.f32.xlu0 %v2869
  %v2871 = vpop.xlane.xlu0 %2870
  %v2872 = vsel %vm2439, %v2387, 0.0
  %2873 = vadd.xlane.f32.xlu0 %v2872
  %v2874 = vpop.xlane.xlu0 %2873
  %v2875 = vsel %vm2439, %v2388, 0.0
  %2876 = vadd.xlane.f32.xlu0 %v2875
  %v2877 = vpop.xlane.xlu0 %2876
  %v2878 = vsel %vm2439, %v2389, 0.0
  %2879 = vadd.xlane.f32.xlu0 %v2878
  %v2880 = vpop.xlane.xlu0 %2879
  %v2881 = vsel %vm2439, %v2390, 0.0
  %2882 = vadd.xlane.f32.xlu0 %v2881
  %v2883 = vpop.xlane.xlu0 %2882
  %v2884 = vsel %vm2439, %v2391, 0.0
  %2885 = vadd.xlane.f32.xlu0 %v2884
  %v2886 = vpop.xlane.xlu0 %2885
  %v2887 = vsel %vm2439, %v2392, 0.0
  %2888 = vadd.xlane.f32.xlu0 %v2887
  %v2889 = vpop.xlane.xlu0 %2888
  %v2890 = vsel %vm2439, %v2393, 0.0
  %2891 = vadd.xlane.f32.xlu0 %v2890
  %v2892 = vpop.xlane.xlu0 %2891
  %v2893 = vsel %vm2439, %v2394, 0.0
  %2894 = vadd.xlane.f32.xlu0 %v2893
  %v2895 = vpop.xlane.xlu0 %2894
  %v2896 = vsel %vm2439, %v2395, 0.0
  %2897 = vadd.xlane.f32.xlu0 %v2896
  %v2898 = vpop.xlane.xlu0 %2897
  %v2899 = vsel %vm2439, %v2396, 0.0
  %2900 = vadd.xlane.f32.xlu0 %v2899
  %v2901 = vpop.xlane.xlu0 %2900
  %v2902 = vsel %vm2439, %v2397, 0.0
  %2903 = vadd.xlane.f32.xlu0 %v2902
  %v2904 = vpop.xlane.xlu0 %2903
  %v2905 = vsel %vm2439, %v2398, 0.0
  %2906 = vadd.xlane.f32.xlu0 %v2905
  %v2907 = vpop.xlane.xlu0 %2906
  %v2908 = vsel %vm2439, %v2399, 0.0
  %2909 = vadd.xlane.f32.xlu0 %v2908
  %v2910 = vpop.xlane.xlu0 %2909
  %v2911 = vsel %vm2439, %v2400, 0.0
  %2912 = vadd.xlane.f32.xlu0 %v2911
  %v2913 = vpop.xlane.xlu0 %2912
  %v2914 = vsel %vm2439, %v2401, 0.0
  %2915 = vadd.xlane.f32.xlu0 %v2914
  %v2916 = vpop.xlane.xlu0 %2915
  %v2917 = vsel %vm2439, %v2402, 0.0
  %2918 = vadd.xlane.f32.xlu0 %v2917
  %v2919 = vpop.xlane.xlu0 %2918
  %v2920 = vsel %vm2439, %v2403, 0.0
  %2921 = vadd.xlane.f32.xlu0 %v2920
  %v2922 = vpop.xlane.xlu0 %2921
  %v2923 = vsel %vm2439, %v2404, 0.0
  %2924 = vadd.xlane.f32.xlu0 %v2923
  %v2925 = vpop.xlane.xlu0 %2924
  %v2926 = vsel %vm2439, %v2405, 0.0
  %2927 = vadd.xlane.f32.xlu0 %v2926
  %v2928 = vpop.xlane.xlu0 %2927
  %v2929 = vsel %vm2439, %v2406, 0.0
  %2930 = vadd.xlane.f32.xlu0 %v2929
  %v2931 = vpop.xlane.xlu0 %2930
  %v2932 = vsel %vm2439, %v2407, 0.0
  %2933 = vadd.xlane.f32.xlu0 %v2932
  %v2934 = vpop.xlane.xlu0 %2933
  %v2935 = vsel %vm2439, %v2408, 0.0
  %2936 = vadd.xlane.f32.xlu0 %v2935
  %v2937 = vpop.xlane.xlu0 %2936
  %v2938 = vsel %vm2439, %v2409, 0.0
  %2939 = vadd.xlane.f32.xlu0 %v2938
  %v2940 = vpop.xlane.xlu0 %2939
  %v2941 = vsel %vm2439, %v2410, 0.0
  %2942 = vadd.xlane.f32.xlu0 %v2941
  %v2943 = vpop.xlane.xlu0 %2942
  %v2944 = vsel %vm2439, %v2411, 0.0
  %2945 = vadd.xlane.f32.xlu0 %v2944
  %v2946 = vpop.xlane.xlu0 %2945
  %v2947 = vsel %vm2439, %v2412, 0.0
  %2948 = vadd.xlane.f32.xlu0 %v2947
  %v2949 = vpop.xlane.xlu0 %2948
  %v2950 = vsel %vm2439, %v2413, 0.0
  %2951 = vadd.xlane.f32.xlu0 %v2950
  %v2952 = vpop.xlane.xlu0 %2951
  %v2953 = vsel %vm2439, %v2414, 0.0
  %2954 = vadd.xlane.f32.xlu0 %v2953
  %v2955 = vpop.xlane.xlu0 %2954
  %v2956 = vsel %vm2439, %v2415, 0.0
  %2957 = vadd.xlane.f32.xlu0 %v2956
  %v2958 = vpop.xlane.xlu0 %2957
  %v2959 = vsel %vm2439, %v2416, 0.0
  %2960 = vadd.xlane.f32.xlu0 %v2959
  %v2961 = vpop.xlane.xlu0 %2960
  %v2962 = vsel %vm2439, %v2417, 0.0
  %2963 = vadd.xlane.f32.xlu0 %v2962
  %v2964 = vpop.xlane.xlu0 %2963
  %v2965 = vsel %vm2439, %v2418, 0.0
  %2966 = vadd.xlane.f32.xlu0 %v2965
  %v2967 = vpop.xlane.xlu0 %2966
  %v2968 = vsel %vm2439, %v2419, 0.0
  %2969 = vadd.xlane.f32.xlu0 %v2968
  %v2970 = vpop.xlane.xlu0 %2969
  %v2971 = vsel %vm2439, %v2420, 0.0
  %2972 = vadd.xlane.f32.xlu0 %v2971
  %v2973 = vpop.xlane.xlu0 %2972
  %v2974 = vsel %vm2439, %v2421, 0.0
  %2975 = vadd.xlane.f32.xlu0 %v2974
  %v2976 = vpop.xlane.xlu0 %2975
  %v2977 = vsel %vm2439, %v2422, 0.0
  %2978 = vadd.xlane.f32.xlu0 %v2977
  %v2979 = vpop.xlane.xlu0 %2978
  %v2980 = vsel %vm2439, %v2423, 0.0
  %2981 = vadd.xlane.f32.xlu0 %v2980
  %v2982 = vpop.xlane.xlu0 %2981
  %v2983 = vsel %vm2439, %v2424, 0.0
  %2984 = vadd.xlane.f32.xlu0 %v2983
  %v2985 = vpop.xlane.xlu0 %2984
  %v2986 = vsel %vm2439, %v2425, 0.0
  %2987 = vadd.xlane.f32.xlu0 %v2986
  %v2988 = vpop.xlane.xlu0 %2987
  %v2989 = vsel %vm2439, %v2426, 0.0
  %2990 = vadd.xlane.f32.xlu0 %v2989
  %v2991 = vpop.xlane.xlu0 %2990
  %v2992 = vsel %vm2439, %v2427, 0.0
  %2993 = vadd.xlane.f32.xlu0 %v2992
  %v2994 = vpop.xlane.xlu0 %2993
  %v2995 = vsel %vm2439, %v2428, 0.0
  %2996 = vadd.xlane.f32.xlu0 %v2995
  %v2997 = vpop.xlane.xlu0 %2996
  %v2998 = vsel %vm2439, %v2429, 0.0
  %2999 = vadd.xlane.f32.xlu0 %v2998
  %v3000 = vpop.xlane.xlu0 %2999
  %v3001 = vsel %vm2439, %v2430, 0.0
  %3002 = vadd.xlane.f32.xlu0 %v3001
  %v3003 = vpop.xlane.xlu0 %3002
  %v3004 = vsel %vm2439, %v2431, 0.0
  %3005 = vadd.xlane.f32.xlu0 %v3004
  %v3006 = vpop.xlane.xlu0 %3005
  %v3007 = vsel %vm2439, %v2432, 0.0
  %3008 = vadd.xlane.f32.xlu0 %v3007
  %v3009 = vpop.xlane.xlu0 %3008
  %v3010 = vsel %vm2439, %v2433, 0.0
  %3011 = vadd.xlane.f32.xlu0 %v3010
  %v3012 = vpop.xlane.xlu0 %3011
  %v3013 = vsel %vm2439, %v2434, 0.0
  %3014 = vadd.xlane.f32.xlu0 %v3013
  %v3015 = vpop.xlane.xlu0 %3014
  %v3016 = vsel %vm2439, %v2435, 0.0
  %3017 = vadd.xlane.f32.xlu0 %v3016
  %v3018 = vpop.xlane.xlu0 %3017
  %v3019 = vsel %vm2439, %v2436, 0.0
  %3020 = vadd.xlane.f32.xlu0 %v3019
  %v3021 = vpop.xlane.xlu0 %3020
  %v3022 = vsel %vm2439, %v2437, 0.0
  %3023 = vadd.xlane.f32.xlu0 %v3022
  %v3024 = vpop.xlane.xlu0 %3023
  %v3025 = vsel %vm2439, %v2438, 0.0
  %3026 = vadd.xlane.f32.xlu0 %v3025
  %v3027 = vpop.xlane.xlu0 %3026
  %vm3028 = vcmask 7168
  %3029 = vst.msk [vmem:[%s4] sm:$0xff] %vm3028, %v2589
  %3030 = vst.msk [vmem:[%s4 + $0x8] sm:$0xff] %vm3028, %v2592
  %3031 = vst.msk [vmem:[%s4 + $0x10] sm:$0xff] %vm3028, %v2595
  %3032 = vst.msk [vmem:[%s4 + $0x18] sm:$0xff] %vm3028, %v2598
  %3033 = vst.msk [vmem:[%s4 + $0x20] sm:$0xff] %vm3028, %v2601
  %3034 = vst.msk [vmem:[%s4 + $0x28] sm:$0xff] %vm3028, %v2604
  %3035 = vst.msk [vmem:[%s4 + $0x30] sm:$0xff] %vm3028, %v2607
  %3036 = vst.msk [vmem:[%s4 + $0x38] sm:$0xff] %vm3028, %v2610
  %3037 = vst.msk [vmem:[%s4 + $0x40] sm:$0xff] %vm3028, %v2613
  %3038 = vst.msk [vmem:[%s4 + $0x48] sm:$0xff] %vm3028, %v2616
  %3039 = vst.msk [vmem:[%s4 + $0x50] sm:$0xff] %vm3028, %v2619
  %3040 = vst.msk [vmem:[%s4 + $0x58] sm:$0xff] %vm3028, %v2622
  %3041 = vst.msk [vmem:[%s4 + $0x60] sm:$0xff] %vm3028, %v2625
  %3042 = vst.msk [vmem:[%s4 + $0x68] sm:$0xff] %vm3028, %v2628
  %3043 = vst.msk [vmem:[%s4 + $0x70] sm:$0xff] %vm3028, %v2631
  %3044 = vst.msk [vmem:[%s4 + $0x78] sm:$0xff] %vm3028, %v2634
  %3045 = vst.msk [vmem:[%s4 + $0x80] sm:$0xff] %vm3028, %v2637
  %3046 = vst.msk [vmem:[%s4 + $0x88] sm:$0xff] %vm3028, %v2640
  %3047 = vst.msk [vmem:[%s4 + $0x90] sm:$0xff] %vm3028, %v2643
  %3048 = vst.msk [vmem:[%s4 + $0x98] sm:$0xff] %vm3028, %v2646
  %3049 = vst.msk [vmem:[%s4 + $0xa0] sm:$0xff] %vm3028, %v2649
  %3050 = vst.msk [vmem:[%s4 + $0xa8] sm:$0xff] %vm3028, %v2652
  %3051 = vst.msk [vmem:[%s4 + $0xb0] sm:$0xff] %vm3028, %v2655
  %3052 = vst.msk [vmem:[%s4 + $0xb8] sm:$0xff] %vm3028, %v2658
  %3053 = vst.msk [vmem:[%s4 + $0xc0] sm:$0xff] %vm3028, %v2661
  %3054 = vst.msk [vmem:[%s4 + $0xc8] sm:$0xff] %vm3028, %v2664
  %3055 = vst.msk [vmem:[%s4 + $0xd0] sm:$0xff] %vm3028, %v2667
  %3056 = vst.msk [vmem:[%s4 + $0xd8] sm:$0xff] %vm3028, %v2670
  %3057 = vst.msk [vmem:[%s4 + $0xe0] sm:$0xff] %vm3028, %v2673
  %3058 = vst.msk [vmem:[%s4 + $0xe8] sm:$0xff] %vm3028, %v2676
  %3059 = vst.msk [vmem:[%s4 + $0xf0] sm:$0xff] %vm3028, %v2679
  %3060 = vst.msk [vmem:[%s4 + $0xf8] sm:$0xff] %vm3028, %v2682
  %3061 = vst.msk [vmem:[%s4 + $0x100] sm:$0xff] %vm3028, %v2685
  %3062 = vst.msk [vmem:[%s4 + $0x108] sm:$0xff] %vm3028, %v2688
  %3063 = vst.msk [vmem:[%s4 + $0x110] sm:$0xff] %vm3028, %v2691
  %3064 = vst.msk [vmem:[%s4 + $0x118] sm:$0xff] %vm3028, %v2694
  %3065 = vst.msk [vmem:[%s4 + $0x120] sm:$0xff] %vm3028, %v2697
  %3066 = vst.msk [vmem:[%s4 + $0x128] sm:$0xff] %vm3028, %v2700
  %3067 = vst.msk [vmem:[%s4 + $0x130] sm:$0xff] %vm3028, %v2703
  %3068 = vst.msk [vmem:[%s4 + $0x138] sm:$0xff] %vm3028, %v2706
  %3069 = vst.msk [vmem:[%s4 + $0x140] sm:$0xff] %vm3028, %v2709
  %3070 = vst.msk [vmem:[%s4 + $0x148] sm:$0xff] %vm3028, %v2712
  %3071 = vst.msk [vmem:[%s4 + $0x150] sm:$0xff] %vm3028, %v2715
  %3072 = vst.msk [vmem:[%s4 + $0x158] sm:$0xff] %vm3028, %v2718
  %3073 = vst.msk [vmem:[%s4 + $0x160] sm:$0xff] %vm3028, %v2721
  %3074 = vst.msk [vmem:[%s4 + $0x168] sm:$0xff] %vm3028, %v2724
  %3075 = vst.msk [vmem:[%s4 + $0x170] sm:$0xff] %vm3028, %v2727
  %3076 = vst.msk [vmem:[%s4 + $0x178] sm:$0xff] %vm3028, %v2730
  %3077 = vst.msk [vmem:[%s4 + $0x180] sm:$0xff] %vm3028, %v2733
  %3078 = vst.msk [vmem:[%s4 + $0x188] sm:$0xff] %vm3028, %v2736
  %3079 = vst.msk [vmem:[%s4 + $0x190] sm:$0xff] %vm3028, %v2739
  %3080 = vst.msk [vmem:[%s4 + $0x198] sm:$0xff] %vm3028, %v2742
  %3081 = vst.msk [vmem:[%s4 + $0x1a0] sm:$0xff] %vm3028, %v2745
  %3082 = vst.msk [vmem:[%s4 + $0x1a8] sm:$0xff] %vm3028, %v2748
  %3083 = vst.msk [vmem:[%s4 + $0x1b0] sm:$0xff] %vm3028, %v2751
  %3084 = vst.msk [vmem:[%s4 + $0x1b8] sm:$0xff] %vm3028, %v2754
  %3085 = vst.msk [vmem:[%s4 + $0x1c0] sm:$0xff] %vm3028, %v2757
  %3086 = vst.msk [vmem:[%s4 + $0x1c8] sm:$0xff] %vm3028, %v2760
  %3087 = vst.msk [vmem:[%s4 + $0x1d0] sm:$0xff] %vm3028, %v2763
  %3088 = vst.msk [vmem:[%s4 + $0x1d8] sm:$0xff] %vm3028, %v2766
  %3089 = vst.msk [vmem:[%s4 + $0x1e0] sm:$0xff] %vm3028, %v2769
  %3090 = vst.msk [vmem:[%s4 + $0x1e8] sm:$0xff] %vm3028, %v2772
  %3091 = vst.msk [vmem:[%s4 + $0x1f0] sm:$0xff] %vm3028, %v2775
  %3092 = vst.msk [vmem:[%s4 + $0x1f8] sm:$0xff] %vm3028, %v2778
  %3093 = vst.msk [vmem:[%s4 + $0x200] sm:$0xff] %vm3028, %v2781
  %3094 = vst.msk [vmem:[%s4 + $0x208] sm:$0xff] %vm3028, %v2784
  %3095 = vst.msk [vmem:[%s4 + $0x210] sm:$0xff] %vm3028, %v2787
  %3096 = vst.msk [vmem:[%s4 + $0x218] sm:$0xff] %vm3028, %v2790
  %3097 = vst.msk [vmem:[%s4 + $0x220] sm:$0xff] %vm3028, %v2793
  %3098 = vst.msk [vmem:[%s4 + $0x228] sm:$0xff] %vm3028, %v2796
  %3099 = vst.msk [vmem:[%s4 + $0x230] sm:$0xff] %vm3028, %v2799
  %3100 = vst.msk [vmem:[%s4 + $0x238] sm:$0xff] %vm3028, %v2802
  %3101 = vst.msk [vmem:[%s4 + $0x240] sm:$0xff] %vm3028, %v2805
  %3102 = vst.msk [vmem:[%s4 + $0x248] sm:$0xff] %vm3028, %v2808
  %3103 = vst.msk [vmem:[%s4 + $0x250] sm:$0xff] %vm3028, %v2811
  %3104 = vst.msk [vmem:[%s4 + $0x258] sm:$0xff] %vm3028, %v2814
  %3105 = vst.msk [vmem:[%s4 + $0x260] sm:$0xff] %vm3028, %v2817
  %3106 = vst.msk [vmem:[%s4 + $0x268] sm:$0xff] %vm3028, %v2820
  %3107 = vst.msk [vmem:[%s4 + $0x270] sm:$0xff] %vm3028, %v2823
  %3108 = vst.msk [vmem:[%s4 + $0x278] sm:$0xff] %vm3028, %v2826
  %3109 = vst.msk [vmem:[%s4 + $0x280] sm:$0xff] %vm3028, %v2829
  %3110 = vst.msk [vmem:[%s4 + $0x288] sm:$0xff] %vm3028, %v2832
  %3111 = vst.msk [vmem:[%s4 + $0x290] sm:$0xff] %vm3028, %v2835
  %3112 = vst.msk [vmem:[%s4 + $0x298] sm:$0xff] %vm3028, %v2838
  %3113 = vst.msk [vmem:[%s4 + $0x2a0] sm:$0xff] %vm3028, %v2841
  %3114 = vst.msk [vmem:[%s4 + $0x2a8] sm:$0xff] %vm3028, %v2844
  %3115 = vst.msk [vmem:[%s4 + $0x2b0] sm:$0xff] %vm3028, %v2847
  %3116 = vst.msk [vmem:[%s4 + $0x2b8] sm:$0xff] %vm3028, %v2850
  %3117 = vst.msk [vmem:[%s4 + $0x2c0] sm:$0xff] %vm3028, %v2853
  %3118 = vst.msk [vmem:[%s4 + $0x2c8] sm:$0xff] %vm3028, %v2856
  %3119 = vst.msk [vmem:[%s4 + $0x2d0] sm:$0xff] %vm3028, %v2859
  %3120 = vst.msk [vmem:[%s4 + $0x2d8] sm:$0xff] %vm3028, %v2862
  %3121 = vst.msk [vmem:[%s4 + $0x2e0] sm:$0xff] %vm3028, %v2865
  %3122 = vst.msk [vmem:[%s4 + $0x2e8] sm:$0xff] %vm3028, %v2868
  %3123 = vst.msk [vmem:[%s4 + $0x2f0] sm:$0xff] %vm3028, %v2871
  %3124 = vst.msk [vmem:[%s4 + $0x2f8] sm:$0xff] %vm3028, %v2874
  %3125 = vst.msk [vmem:[%s4 + $0x300] sm:$0xff] %vm3028, %v2877
  %3126 = vst.msk [vmem:[%s4 + $0x308] sm:$0xff] %vm3028, %v2880
  %3127 = vst.msk [vmem:[%s4 + $0x310] sm:$0xff] %vm3028, %v2883
  %3128 = vst.msk [vmem:[%s4 + $0x318] sm:$0xff] %vm3028, %v2886
  %3129 = vst.msk [vmem:[%s4 + $0x320] sm:$0xff] %vm3028, %v2889
  %3130 = vst.msk [vmem:[%s4 + $0x328] sm:$0xff] %vm3028, %v2892
  %3131 = vst.msk [vmem:[%s4 + $0x330] sm:$0xff] %vm3028, %v2895
  %3132 = vst.msk [vmem:[%s4 + $0x338] sm:$0xff] %vm3028, %v2898
  %3133 = vst.msk [vmem:[%s4 + $0x340] sm:$0xff] %vm3028, %v2901
  %3134 = vst.msk [vmem:[%s4 + $0x348] sm:$0xff] %vm3028, %v2904
  %3135 = vst.msk [vmem:[%s4 + $0x350] sm:$0xff] %vm3028, %v2907
  %3136 = vst.msk [vmem:[%s4 + $0x358] sm:$0xff] %vm3028, %v2910
  %3137 = vst.msk [vmem:[%s4 + $0x360] sm:$0xff] %vm3028, %v2913
  %3138 = vst.msk [vmem:[%s4 + $0x368] sm:$0xff] %vm3028, %v2916
  %3139 = vst.msk [vmem:[%s4 + $0x370] sm:$0xff] %vm3028, %v2919
  %3140 = vst.msk [vmem:[%s4 + $0x378] sm:$0xff] %vm3028, %v2922
  %3141 = vst.msk [vmem:[%s4 + $0x380] sm:$0xff] %vm3028, %v2925
  %3142 = vst.msk [vmem:[%s4 + $0x388] sm:$0xff] %vm3028, %v2928
  %3143 = vst.msk [vmem:[%s4 + $0x390] sm:$0xff] %vm3028, %v2931
  %3144 = vst.msk [vmem:[%s4 + $0x398] sm:$0xff] %vm3028, %v2934
  %3145 = vst.msk [vmem:[%s4 + $0x3a0] sm:$0xff] %vm3028, %v2937
  %3146 = vst.msk [vmem:[%s4 + $0x3a8] sm:$0xff] %vm3028, %v2940
  %3147 = vst.msk [vmem:[%s4 + $0x3b0] sm:$0xff] %vm3028, %v2943
  %3148 = vst.msk [vmem:[%s4 + $0x3b8] sm:$0xff] %vm3028, %v2946
  %3149 = vst.msk [vmem:[%s4 + $0x3c0] sm:$0xff] %vm3028, %v2949
  %3150 = vst.msk [vmem:[%s4 + $0x3c8] sm:$0xff] %vm3028, %v2952
  %3151 = vst.msk [vmem:[%s4 + $0x3d0] sm:$0xff] %vm3028, %v2955
  %3152 = vst.msk [vmem:[%s4 + $0x3d8] sm:$0xff] %vm3028, %v2958
  %3153 = vst.msk [vmem:[%s4 + $0x3e0] sm:$0xff] %vm3028, %v2961
  %3154 = vst.msk [vmem:[%s4 + $0x3e8] sm:$0xff] %vm3028, %v2964
  %3155 = vst.msk [vmem:[%s4 + $0x3f0] sm:$0xff] %vm3028, %v2967
  %3156 = vst.msk [vmem:[%s4 + $0x3f8] sm:$0xff] %vm3028, %v2970
  %3157 = vst.msk [vmem:[%s4 + $0x400] sm:$0xff] %vm3028, %v2973
  %3158 = vst.msk [vmem:[%s4 + $0x408] sm:$0xff] %vm3028, %v2976
  %3159 = vst.msk [vmem:[%s4 + $0x410] sm:$0xff] %vm3028, %v2979
  %3160 = vst.msk [vmem:[%s4 + $0x418] sm:$0xff] %vm3028, %v2982
  %3161 = vst.msk [vmem:[%s4 + $0x420] sm:$0xff] %vm3028, %v2985
  %3162 = vst.msk [vmem:[%s4 + $0x428] sm:$0xff] %vm3028, %v2988
  %3163 = vst.msk [vmem:[%s4 + $0x430] sm:$0xff] %vm3028, %v2991
  %3164 = vst.msk [vmem:[%s4 + $0x438] sm:$0xff] %vm3028, %v2994
  %3165 = vst.msk [vmem:[%s4 + $0x440] sm:$0xff] %vm3028, %v2997
  %3166 = vst.msk [vmem:[%s4 + $0x448] sm:$0xff] %vm3028, %v3000
  %3167 = vst.msk [vmem:[%s4 + $0x450] sm:$0xff] %vm3028, %v3003
  %3168 = vst.msk [vmem:[%s4 + $0x458] sm:$0xff] %vm3028, %v3006
  %3169 = vst.msk [vmem:[%s4 + $0x460] sm:$0xff] %vm3028, %v3009
  %3170 = vst.msk [vmem:[%s4 + $0x468] sm:$0xff] %vm3028, %v3012
  %3171 = vst.msk [vmem:[%s4 + $0x470] sm:$0xff] %vm3028, %v3015
  %3172 = vst.msk [vmem:[%s4 + $0x478] sm:$0xff] %vm3028, %v3018
  %3173 = vst.msk [vmem:[%s4 + $0x480] sm:$0xff] %vm3028, %v3021
  %3174 = vst.msk [vmem:[%s4 + $0x488] sm:$0xff] %vm3028, %v3024
  %3175 = vst.msk [vmem:[%s4 + $0x490] sm:$0xff] %vm3028, %v3027
  %v3176 = vmul.f32 %v2292, %v2292
  %v3177 = vmul.f32 %v2293, %v2293
  %v3178 = vmul.f32 %v2294, %v2294
  %v3179 = vmul.f32 %v2295, %v2295
  %v3180 = vmul.f32 %v2296, %v2296
  %v3181 = vmul.f32 %v2297, %v2297
  %v3182 = vmul.f32 %v2298, %v2298
  %v3183 = vmul.f32 %v2299, %v2299
  %v3184 = vmul.f32 %v2300, %v2300
  %v3185 = vmul.f32 %v2301, %v2301
  %v3186 = vmul.f32 %v2302, %v2302
  %v3187 = vmul.f32 %v2303, %v2303
  %v3188 = vmul.f32 %v2304, %v2304
  %v3189 = vmul.f32 %v2305, %v2305
  %v3190 = vmul.f32 %v2306, %v2306
  %v3191 = vmul.f32 %v2307, %v2307
  %v3192 = vmul.f32 %v2308, %v2308
  %v3193 = vmul.f32 %v2309, %v2309
  %v3194 = vmul.f32 %v2310, %v2310
  %v3195 = vmul.f32 %v2311, %v2311
  %v3196 = vmul.f32 %v2312, %v2312
  %v3197 = vmul.f32 %v2313, %v2313
  %v3198 = vmul.f32 %v2314, %v2314
  %v3199 = vmul.f32 %v2315, %v2315
  %v3200 = vmul.f32 %v2316, %v2316
  %v3201 = vmul.f32 %v2317, %v2317
  %v3202 = vmul.f32 %v2318, %v2318
  %v3203 = vmul.f32 %v2319, %v2319
  %v3204 = vmul.f32 %v2320, %v2320
  %v3205 = vmul.f32 %v2321, %v2321
  %v3206 = vmul.f32 %v2322, %v2322
  %v3207 = vmul.f32 %v2323, %v2323
  %v3208 = vmul.f32 %v2324, %v2324
  %v3209 = vmul.f32 %v2325, %v2325
  %v3210 = vmul.f32 %v2326, %v2326
  %v3211 = vmul.f32 %v2327, %v2327
  %v3212 = vmul.f32 %v2328, %v2328
  %v3213 = vmul.f32 %v2329, %v2329
  %v3214 = vmul.f32 %v2330, %v2330
  %v3215 = vmul.f32 %v2331, %v2331
  %v3216 = vmul.f32 %v2332, %v2332
  %v3217 = vmul.f32 %v2333, %v2333
  %v3218 = vmul.f32 %v2334, %v2334
  %v3219 = vmul.f32 %v2335, %v2335
  %v3220 = vmul.f32 %v2336, %v2336
  %v3221 = vmul.f32 %v2337, %v2337
  %v3222 = vmul.f32 %v2338, %v2338
  %v3223 = vmul.f32 %v2339, %v2339
  %v3224 = vmul.f32 %v2340, %v2340
  %v3225 = vmul.f32 %v2341, %v2341
  %v3226 = vmul.f32 %v2342, %v2342
  %v3227 = vmul.f32 %v2343, %v2343
  %v3228 = vmul.f32 %v2344, %v2344
  %v3229 = vmul.f32 %v2345, %v2345
  %v3230 = vmul.f32 %v2346, %v2346
  %v3231 = vmul.f32 %v2347, %v2347
  %v3232 = vmul.f32 %v2348, %v2348
  %v3233 = vmul.f32 %v2349, %v2349
  %v3234 = vmul.f32 %v2350, %v2350
  %v3235 = vmul.f32 %v2351, %v2351
  %v3236 = vmul.f32 %v2352, %v2352
  %v3237 = vmul.f32 %v2353, %v2353
  %v3238 = vmul.f32 %v2354, %v2354
  %v3239 = vmul.f32 %v2355, %v2355
  %v3240 = vmul.f32 %v2356, %v2356
  %v3241 = vmul.f32 %v2357, %v2357
  %v3242 = vmul.f32 %v2358, %v2358
  %v3243 = vmul.f32 %v2359, %v2359
  %v3244 = vmul.f32 %v2360, %v2360
  %v3245 = vmul.f32 %v2361, %v2361
  %v3246 = vmul.f32 %v2362, %v2362
  %v3247 = vmul.f32 %v2363, %v2363
  %v3248 = vmul.f32 %v2364, %v2364
  %v3249 = vmul.f32 %v2365, %v2365
  %v3250 = vmul.f32 %v2366, %v2366
  %v3251 = vmul.f32 %v2367, %v2367
  %v3252 = vmul.f32 %v2368, %v2368
  %v3253 = vmul.f32 %v2369, %v2369
  %v3254 = vmul.f32 %v2370, %v2370
  %v3255 = vmul.f32 %v2371, %v2371
  %v3256 = vmul.f32 %v2372, %v2372
  %v3257 = vmul.f32 %v2373, %v2373
  %v3258 = vmul.f32 %v2374, %v2374
  %v3259 = vmul.f32 %v2375, %v2375
  %v3260 = vmul.f32 %v2376, %v2376
  %v3261 = vmul.f32 %v2377, %v2377
  %v3262 = vmul.f32 %v2378, %v2378
  %v3263 = vmul.f32 %v2379, %v2379
  %v3264 = vmul.f32 %v2380, %v2380
  %v3265 = vmul.f32 %v2381, %v2381
  %v3266 = vmul.f32 %v2382, %v2382
  %v3267 = vmul.f32 %v2383, %v2383
  %v3268 = vmul.f32 %v2384, %v2384
  %v3269 = vmul.f32 %v2385, %v2385
  %v3270 = vmul.f32 %v2386, %v2386
  %v3271 = vmul.f32 %v2387, %v2387
  %v3272 = vmul.f32 %v2388, %v2388
  %v3273 = vmul.f32 %v2389, %v2389
  %v3274 = vmul.f32 %v2390, %v2390
  %v3275 = vmul.f32 %v2391, %v2391
  %v3276 = vmul.f32 %v2392, %v2392
  %v3277 = vmul.f32 %v2393, %v2393
  %v3278 = vmul.f32 %v2394, %v2394
  %v3279 = vmul.f32 %v2395, %v2395
  %v3280 = vmul.f32 %v2396, %v2396
  %v3281 = vmul.f32 %v2397, %v2397
  %v3282 = vmul.f32 %v2398, %v2398
  %v3283 = vmul.f32 %v2399, %v2399
  %v3284 = vmul.f32 %v2400, %v2400
  %v3285 = vmul.f32 %v2401, %v2401
  %v3286 = vmul.f32 %v2402, %v2402
  %v3287 = vmul.f32 %v2403, %v2403
  %v3288 = vmul.f32 %v2404, %v2404
  %v3289 = vmul.f32 %v2405, %v2405
  %v3290 = vmul.f32 %v2406, %v2406
  %v3291 = vmul.f32 %v2407, %v2407
  %v3292 = vmul.f32 %v2408, %v2408
  %v3293 = vmul.f32 %v2409, %v2409
  %v3294 = vmul.f32 %v2410, %v2410
  %v3295 = vmul.f32 %v2411, %v2411
  %v3296 = vmul.f32 %v2412, %v2412
  %v3297 = vmul.f32 %v2413, %v2413
  %v3298 = vmul.f32 %v2414, %v2414
  %v3299 = vmul.f32 %v2415, %v2415
  %v3300 = vmul.f32 %v2416, %v2416
  %v3301 = vmul.f32 %v2417, %v2417
  %v3302 = vmul.f32 %v2418, %v2418
  %v3303 = vmul.f32 %v2419, %v2419
  %v3304 = vmul.f32 %v2420, %v2420
  %v3305 = vmul.f32 %v2421, %v2421
  %v3306 = vmul.f32 %v2422, %v2422
  %v3307 = vmul.f32 %v2423, %v2423
  %v3308 = vmul.f32 %v2424, %v2424
  %v3309 = vmul.f32 %v2425, %v2425
  %v3310 = vmul.f32 %v2426, %v2426
  %v3311 = vmul.f32 %v2427, %v2427
  %v3312 = vmul.f32 %v2428, %v2428
  %v3313 = vmul.f32 %v2429, %v2429
  %v3314 = vmul.f32 %v2430, %v2430
  %v3315 = vmul.f32 %v2431, %v2431
  %v3316 = vmul.f32 %v2432, %v2432
  %v3317 = vmul.f32 %v2433, %v2433
  %v3318 = vmul.f32 %v2434, %v2434
  %v3319 = vmul.f32 %v2435, %v2435
  %v3320 = vmul.f32 %v2436, %v2436
  %v3321 = vmul.f32 %v2437, %v2437
  %v3322 = vmul.f32 %v2438, %v2438
  %v3323 = vsel %vm2439, %v3176, 0.0
  %3324 = vadd.xlane.f32.xlu0 %v3323
  %v3325 = vpop.xlane.xlu0 %3324
  %v3326 = vsel %vm2439, %v3177, 0.0
  %3327 = vadd.xlane.f32.xlu0 %v3326
  %v3328 = vpop.xlane.xlu0 %3327
  %v3329 = vsel %vm2439, %v3178, 0.0
  %3330 = vadd.xlane.f32.xlu0 %v3329
  %v3331 = vpop.xlane.xlu0 %3330
  %v3332 = vsel %vm2439, %v3179, 0.0
  %3333 = vadd.xlane.f32.xlu0 %v3332
  %v3334 = vpop.xlane.xlu0 %3333
  %v3335 = vsel %vm2439, %v3180, 0.0
  %3336 = vadd.xlane.f32.xlu0 %v3335
  %v3337 = vpop.xlane.xlu0 %3336
  %v3338 = vsel %vm2439, %v3181, 0.0
  %3339 = vadd.xlane.f32.xlu0 %v3338
  %v3340 = vpop.xlane.xlu0 %3339
  %v3341 = vsel %vm2439, %v3182, 0.0
  %3342 = vadd.xlane.f32.xlu0 %v3341
  %v3343 = vpop.xlane.xlu0 %3342
  %v3344 = vsel %vm2439, %v3183, 0.0
  %3345 = vadd.xlane.f32.xlu0 %v3344
  %v3346 = vpop.xlane.xlu0 %3345
  %v3347 = vsel %vm2439, %v3184, 0.0
  %3348 = vadd.xlane.f32.xlu0 %v3347
  %v3349 = vpop.xlane.xlu0 %3348
  %v3350 = vsel %vm2439, %v3185, 0.0
  %3351 = vadd.xlane.f32.xlu0 %v3350
  %v3352 = vpop.xlane.xlu0 %3351
  %v3353 = vsel %vm2439, %v3186, 0.0
  %3354 = vadd.xlane.f32.xlu0 %v3353
  %v3355 = vpop.xlane.xlu0 %3354
  %v3356 = vsel %vm2439, %v3187, 0.0
  %3357 = vadd.xlane.f32.xlu0 %v3356
  %v3358 = vpop.xlane.xlu0 %3357
  %v3359 = vsel %vm2439, %v3188, 0.0
  %3360 = vadd.xlane.f32.xlu0 %v3359
  %v3361 = vpop.xlane.xlu0 %3360
  %v3362 = vsel %vm2439, %v3189, 0.0
  %3363 = vadd.xlane.f32.xlu0 %v3362
  %v3364 = vpop.xlane.xlu0 %3363
  %v3365 = vsel %vm2439, %v3190, 0.0
  %3366 = vadd.xlane.f32.xlu0 %v3365
  %v3367 = vpop.xlane.xlu0 %3366
  %v3368 = vsel %vm2439, %v3191, 0.0
  %3369 = vadd.xlane.f32.xlu0 %v3368
  %v3370 = vpop.xlane.xlu0 %3369
  %v3371 = vsel %vm2439, %v3192, 0.0
  %3372 = vadd.xlane.f32.xlu0 %v3371
  %v3373 = vpop.xlane.xlu0 %3372
  %v3374 = vsel %vm2439, %v3193, 0.0
  %3375 = vadd.xlane.f32.xlu0 %v3374
  %v3376 = vpop.xlane.xlu0 %3375
  %v3377 = vsel %vm2439, %v3194, 0.0
  %3378 = vadd.xlane.f32.xlu0 %v3377
  %v3379 = vpop.xlane.xlu0 %3378
  %v3380 = vsel %vm2439, %v3195, 0.0
  %3381 = vadd.xlane.f32.xlu0 %v3380
  %v3382 = vpop.xlane.xlu0 %3381
  %v3383 = vsel %vm2439, %v3196, 0.0
  %3384 = vadd.xlane.f32.xlu0 %v3383
  %v3385 = vpop.xlane.xlu0 %3384
  %v3386 = vsel %vm2439, %v3197, 0.0
  %3387 = vadd.xlane.f32.xlu0 %v3386
  %v3388 = vpop.xlane.xlu0 %3387
  %v3389 = vsel %vm2439, %v3198, 0.0
  %3390 = vadd.xlane.f32.xlu0 %v3389
  %v3391 = vpop.xlane.xlu0 %3390
  %v3392 = vsel %vm2439, %v3199, 0.0
  %3393 = vadd.xlane.f32.xlu0 %v3392
  %v3394 = vpop.xlane.xlu0 %3393
  %v3395 = vsel %vm2439, %v3200, 0.0
  %3396 = vadd.xlane.f32.xlu0 %v3395
  %v3397 = vpop.xlane.xlu0 %3396
  %v3398 = vsel %vm2439, %v3201, 0.0
  %3399 = vadd.xlane.f32.xlu0 %v3398
  %v3400 = vpop.xlane.xlu0 %3399
  %v3401 = vsel %vm2439, %v3202, 0.0
  %3402 = vadd.xlane.f32.xlu0 %v3401
  %v3403 = vpop.xlane.xlu0 %3402
  %v3404 = vsel %vm2439, %v3203, 0.0
  %3405 = vadd.xlane.f32.xlu0 %v3404
  %v3406 = vpop.xlane.xlu0 %3405
  %v3407 = vsel %vm2439, %v3204, 0.0
  %3408 = vadd.xlane.f32.xlu0 %v3407
  %v3409 = vpop.xlane.xlu0 %3408
  %v3410 = vsel %vm2439, %v3205, 0.0
  %3411 = vadd.xlane.f32.xlu0 %v3410
  %v3412 = vpop.xlane.xlu0 %3411
  %v3413 = vsel %vm2439, %v3206, 0.0
  %3414 = vadd.xlane.f32.xlu0 %v3413
  %v3415 = vpop.xlane.xlu0 %3414
  %v3416 = vsel %vm2439, %v3207, 0.0
  %3417 = vadd.xlane.f32.xlu0 %v3416
  %v3418 = vpop.xlane.xlu0 %3417
  %v3419 = vsel %vm2439, %v3208, 0.0
  %3420 = vadd.xlane.f32.xlu0 %v3419
  %v3421 = vpop.xlane.xlu0 %3420
  %v3422 = vsel %vm2439, %v3209, 0.0
  %3423 = vadd.xlane.f32.xlu0 %v3422
  %v3424 = vpop.xlane.xlu0 %3423
  %v3425 = vsel %vm2439, %v3210, 0.0
  %3426 = vadd.xlane.f32.xlu0 %v3425
  %v3427 = vpop.xlane.xlu0 %3426
  %v3428 = vsel %vm2439, %v3211, 0.0
  %3429 = vadd.xlane.f32.xlu0 %v3428
  %v3430 = vpop.xlane.xlu0 %3429
  %v3431 = vsel %vm2439, %v3212, 0.0
  %3432 = vadd.xlane.f32.xlu0 %v3431
  %v3433 = vpop.xlane.xlu0 %3432
  %v3434 = vsel %vm2439, %v3213, 0.0
  %3435 = vadd.xlane.f32.xlu0 %v3434
  %v3436 = vpop.xlane.xlu0 %3435
  %v3437 = vsel %vm2439, %v3214, 0.0
  %3438 = vadd.xlane.f32.xlu0 %v3437
  %v3439 = vpop.xlane.xlu0 %3438
  %v3440 = vsel %vm2439, %v3215, 0.0
  %3441 = vadd.xlane.f32.xlu0 %v3440
  %v3442 = vpop.xlane.xlu0 %3441
  %v3443 = vsel %vm2439, %v3216, 0.0
  %3444 = vadd.xlane.f32.xlu0 %v3443
  %v3445 = vpop.xlane.xlu0 %3444
  %v3446 = vsel %vm2439, %v3217, 0.0
  %3447 = vadd.xlane.f32.xlu0 %v3446
  %v3448 = vpop.xlane.xlu0 %3447
  %v3449 = vsel %vm2439, %v3218, 0.0
  %3450 = vadd.xlane.f32.xlu0 %v3449
  %v3451 = vpop.xlane.xlu0 %3450
  %v3452 = vsel %vm2439, %v3219, 0.0
  %3453 = vadd.xlane.f32.xlu0 %v3452
  %v3454 = vpop.xlane.xlu0 %3453
  %v3455 = vsel %vm2439, %v3220, 0.0
  %3456 = vadd.xlane.f32.xlu0 %v3455
  %v3457 = vpop.xlane.xlu0 %3456
  %v3458 = vsel %vm2439, %v3221, 0.0
  %3459 = vadd.xlane.f32.xlu0 %v3458
  %v3460 = vpop.xlane.xlu0 %3459
  %v3461 = vsel %vm2439, %v3222, 0.0
  %3462 = vadd.xlane.f32.xlu0 %v3461
  %v3463 = vpop.xlane.xlu0 %3462
  %v3464 = vsel %vm2439, %v3223, 0.0
  %3465 = vadd.xlane.f32.xlu0 %v3464
  %v3466 = vpop.xlane.xlu0 %3465
  %v3467 = vsel %vm2439, %v3224, 0.0
  %3468 = vadd.xlane.f32.xlu0 %v3467
  %v3469 = vpop.xlane.xlu0 %3468
  %v3470 = vsel %vm2439, %v3225, 0.0
  %3471 = vadd.xlane.f32.xlu0 %v3470
  %v3472 = vpop.xlane.xlu0 %3471
  %v3473 = vsel %vm2439, %v3226, 0.0
  %3474 = vadd.xlane.f32.xlu0 %v3473
  %v3475 = vpop.xlane.xlu0 %3474
  %v3476 = vsel %vm2439, %v3227, 0.0
  %3477 = vadd.xlane.f32.xlu0 %v3476
  %v3478 = vpop.xlane.xlu0 %3477
  %v3479 = vsel %vm2439, %v3228, 0.0
  %3480 = vadd.xlane.f32.xlu0 %v3479
  %v3481 = vpop.xlane.xlu0 %3480
  %v3482 = vsel %vm2439, %v3229, 0.0
  %3483 = vadd.xlane.f32.xlu0 %v3482
  %v3484 = vpop.xlane.xlu0 %3483
  %v3485 = vsel %vm2439, %v3230, 0.0
  %3486 = vadd.xlane.f32.xlu0 %v3485
  %v3487 = vpop.xlane.xlu0 %3486
  %v3488 = vsel %vm2439, %v3231, 0.0
  %3489 = vadd.xlane.f32.xlu0 %v3488
  %v3490 = vpop.xlane.xlu0 %3489
  %v3491 = vsel %vm2439, %v3232, 0.0
  %3492 = vadd.xlane.f32.xlu0 %v3491
  %v3493 = vpop.xlane.xlu0 %3492
  %v3494 = vsel %vm2439, %v3233, 0.0
  %3495 = vadd.xlane.f32.xlu0 %v3494
  %v3496 = vpop.xlane.xlu0 %3495
  %v3497 = vsel %vm2439, %v3234, 0.0
  %3498 = vadd.xlane.f32.xlu0 %v3497
  %v3499 = vpop.xlane.xlu0 %3498
  %v3500 = vsel %vm2439, %v3235, 0.0
  %3501 = vadd.xlane.f32.xlu0 %v3500
  %v3502 = vpop.xlane.xlu0 %3501
  %v3503 = vsel %vm2439, %v3236, 0.0
  %3504 = vadd.xlane.f32.xlu0 %v3503
  %v3505 = vpop.xlane.xlu0 %3504
  %v3506 = vsel %vm2439, %v3237, 0.0
  %3507 = vadd.xlane.f32.xlu0 %v3506
  %v3508 = vpop.xlane.xlu0 %3507
  %v3509 = vsel %vm2439, %v3238, 0.0
  %3510 = vadd.xlane.f32.xlu0 %v3509
  %v3511 = vpop.xlane.xlu0 %3510
  %v3512 = vsel %vm2439, %v3239, 0.0
  %3513 = vadd.xlane.f32.xlu0 %v3512
  %v3514 = vpop.xlane.xlu0 %3513
  %v3515 = vsel %vm2439, %v3240, 0.0
  %3516 = vadd.xlane.f32.xlu0 %v3515
  %v3517 = vpop.xlane.xlu0 %3516
  %v3518 = vsel %vm2439, %v3241, 0.0
  %3519 = vadd.xlane.f32.xlu0 %v3518
  %v3520 = vpop.xlane.xlu0 %3519
  %v3521 = vsel %vm2439, %v3242, 0.0
  %3522 = vadd.xlane.f32.xlu0 %v3521
  %v3523 = vpop.xlane.xlu0 %3522
  %v3524 = vsel %vm2439, %v3243, 0.0
  %3525 = vadd.xlane.f32.xlu0 %v3524
  %v3526 = vpop.xlane.xlu0 %3525
  %v3527 = vsel %vm2439, %v3244, 0.0
  %3528 = vadd.xlane.f32.xlu0 %v3527
  %v3529 = vpop.xlane.xlu0 %3528
  %v3530 = vsel %vm2439, %v3245, 0.0
  %3531 = vadd.xlane.f32.xlu0 %v3530
  %v3532 = vpop.xlane.xlu0 %3531
  %v3533 = vsel %vm2439, %v3246, 0.0
  %3534 = vadd.xlane.f32.xlu0 %v3533
  %v3535 = vpop.xlane.xlu0 %3534
  %v3536 = vsel %vm2439, %v3247, 0.0
  %3537 = vadd.xlane.f32.xlu0 %v3536
  %v3538 = vpop.xlane.xlu0 %3537
  %v3539 = vsel %vm2439, %v3248, 0.0
  %3540 = vadd.xlane.f32.xlu0 %v3539
  %v3541 = vpop.xlane.xlu0 %3540
  %v3542 = vsel %vm2439, %v3249, 0.0
  %3543 = vadd.xlane.f32.xlu0 %v3542
  %v3544 = vpop.xlane.xlu0 %3543
  %v3545 = vsel %vm2439, %v3250, 0.0
  %3546 = vadd.xlane.f32.xlu0 %v3545
  %v3547 = vpop.xlane.xlu0 %3546
  %v3548 = vsel %vm2439, %v3251, 0.0
  %3549 = vadd.xlane.f32.xlu0 %v3548
  %v3550 = vpop.xlane.xlu0 %3549
  %v3551 = vsel %vm2439, %v3252, 0.0
  %3552 = vadd.xlane.f32.xlu0 %v3551
  %v3553 = vpop.xlane.xlu0 %3552
  %v3554 = vsel %vm2439, %v3253, 0.0
  %3555 = vadd.xlane.f32.xlu0 %v3554
  %v3556 = vpop.xlane.xlu0 %3555
  %v3557 = vsel %vm2439, %v3254, 0.0
  %3558 = vadd.xlane.f32.xlu0 %v3557
  %v3559 = vpop.xlane.xlu0 %3558
  %v3560 = vsel %vm2439, %v3255, 0.0
  %3561 = vadd.xlane.f32.xlu0 %v3560
  %v3562 = vpop.xlane.xlu0 %3561
  %v3563 = vsel %vm2439, %v3256, 0.0
  %3564 = vadd.xlane.f32.xlu0 %v3563
  %v3565 = vpop.xlane.xlu0 %3564
  %v3566 = vsel %vm2439, %v3257, 0.0
  %3567 = vadd.xlane.f32.xlu0 %v3566
  %v3568 = vpop.xlane.xlu0 %3567
  %v3569 = vsel %vm2439, %v3258, 0.0
  %3570 = vadd.xlane.f32.xlu0 %v3569
  %v3571 = vpop.xlane.xlu0 %3570
  %v3572 = vsel %vm2439, %v3259, 0.0
  %3573 = vadd.xlane.f32.xlu0 %v3572
  %v3574 = vpop.xlane.xlu0 %3573
  %v3575 = vsel %vm2439, %v3260, 0.0
  %3576 = vadd.xlane.f32.xlu0 %v3575
  %v3577 = vpop.xlane.xlu0 %3576
  %v3578 = vsel %vm2439, %v3261, 0.0
  %3579 = vadd.xlane.f32.xlu0 %v3578
  %v3580 = vpop.xlane.xlu0 %3579
  %v3581 = vsel %vm2439, %v3262, 0.0
  %3582 = vadd.xlane.f32.xlu0 %v3581
  %v3583 = vpop.xlane.xlu0 %3582
  %v3584 = vsel %vm2439, %v3263, 0.0
  %3585 = vadd.xlane.f32.xlu0 %v3584
  %v3586 = vpop.xlane.xlu0 %3585
  %v3587 = vsel %vm2439, %v3264, 0.0
  %3588 = vadd.xlane.f32.xlu0 %v3587
  %v3589 = vpop.xlane.xlu0 %3588
  %v3590 = vsel %vm2439, %v3265, 0.0
  %3591 = vadd.xlane.f32.xlu0 %v3590
  %v3592 = vpop.xlane.xlu0 %3591
  %v3593 = vsel %vm2439, %v3266, 0.0
  %3594 = vadd.xlane.f32.xlu0 %v3593
  %v3595 = vpop.xlane.xlu0 %3594
  %v3596 = vsel %vm2439, %v3267, 0.0
  %3597 = vadd.xlane.f32.xlu0 %v3596
  %v3598 = vpop.xlane.xlu0 %3597
  %v3599 = vsel %vm2439, %v3268, 0.0
  %3600 = vadd.xlane.f32.xlu0 %v3599
  %v3601 = vpop.xlane.xlu0 %3600
  %v3602 = vsel %vm2439, %v3269, 0.0
  %3603 = vadd.xlane.f32.xlu0 %v3602
  %v3604 = vpop.xlane.xlu0 %3603
  %v3605 = vsel %vm2439, %v3270, 0.0
  %3606 = vadd.xlane.f32.xlu0 %v3605
  %v3607 = vpop.xlane.xlu0 %3606
  %v3608 = vsel %vm2439, %v3271, 0.0
  %3609 = vadd.xlane.f32.xlu0 %v3608
  %v3610 = vpop.xlane.xlu0 %3609
  %v3611 = vsel %vm2439, %v3272, 0.0
  %3612 = vadd.xlane.f32.xlu0 %v3611
  %v3613 = vpop.xlane.xlu0 %3612
  %v3614 = vsel %vm2439, %v3273, 0.0
  %3615 = vadd.xlane.f32.xlu0 %v3614
  %v3616 = vpop.xlane.xlu0 %3615
  %v3617 = vsel %vm2439, %v3274, 0.0
  %3618 = vadd.xlane.f32.xlu0 %v3617
  %v3619 = vpop.xlane.xlu0 %3618
  %v3620 = vsel %vm2439, %v3275, 0.0
  %3621 = vadd.xlane.f32.xlu0 %v3620
  %v3622 = vpop.xlane.xlu0 %3621
  %v3623 = vsel %vm2439, %v3276, 0.0
  %3624 = vadd.xlane.f32.xlu0 %v3623
  %v3625 = vpop.xlane.xlu0 %3624
  %v3626 = vsel %vm2439, %v3277, 0.0
  %3627 = vadd.xlane.f32.xlu0 %v3626
  %v3628 = vpop.xlane.xlu0 %3627
  %v3629 = vsel %vm2439, %v3278, 0.0
  %3630 = vadd.xlane.f32.xlu0 %v3629
  %v3631 = vpop.xlane.xlu0 %3630
  %v3632 = vsel %vm2439, %v3279, 0.0
  %3633 = vadd.xlane.f32.xlu0 %v3632
  %v3634 = vpop.xlane.xlu0 %3633
  %v3635 = vsel %vm2439, %v3280, 0.0
  %3636 = vadd.xlane.f32.xlu0 %v3635
  %v3637 = vpop.xlane.xlu0 %3636
  %v3638 = vsel %vm2439, %v3281, 0.0
  %3639 = vadd.xlane.f32.xlu0 %v3638
  %v3640 = vpop.xlane.xlu0 %3639
  %v3641 = vsel %vm2439, %v3282, 0.0
  %3642 = vadd.xlane.f32.xlu0 %v3641
  %v3643 = vpop.xlane.xlu0 %3642
  %v3644 = vsel %vm2439, %v3283, 0.0
  %3645 = vadd.xlane.f32.xlu0 %v3644
  %v3646 = vpop.xlane.xlu0 %3645
  %v3647 = vsel %vm2439, %v3284, 0.0
  %3648 = vadd.xlane.f32.xlu0 %v3647
  %v3649 = vpop.xlane.xlu0 %3648
  %v3650 = vsel %vm2439, %v3285, 0.0
  %3651 = vadd.xlane.f32.xlu0 %v3650
  %v3652 = vpop.xlane.xlu0 %3651
  %v3653 = vsel %vm2439, %v3286, 0.0
  %3654 = vadd.xlane.f32.xlu0 %v3653
  %v3655 = vpop.xlane.xlu0 %3654
  %v3656 = vsel %vm2439, %v3287, 0.0
  %3657 = vadd.xlane.f32.xlu0 %v3656
  %v3658 = vpop.xlane.xlu0 %3657
  %v3659 = vsel %vm2439, %v3288, 0.0
  %3660 = vadd.xlane.f32.xlu0 %v3659
  %v3661 = vpop.xlane.xlu0 %3660
  %v3662 = vsel %vm2439, %v3289, 0.0
  %3663 = vadd.xlane.f32.xlu0 %v3662
  %v3664 = vpop.xlane.xlu0 %3663
  %v3665 = vsel %vm2439, %v3290, 0.0
  %3666 = vadd.xlane.f32.xlu0 %v3665
  %v3667 = vpop.xlane.xlu0 %3666
  %v3668 = vsel %vm2439, %v3291, 0.0
  %3669 = vadd.xlane.f32.xlu0 %v3668
  %v3670 = vpop.xlane.xlu0 %3669
  %v3671 = vsel %vm2439, %v3292, 0.0
  %3672 = vadd.xlane.f32.xlu0 %v3671
  %v3673 = vpop.xlane.xlu0 %3672
  %v3674 = vsel %vm2439, %v3293, 0.0
  %3675 = vadd.xlane.f32.xlu0 %v3674
  %v3676 = vpop.xlane.xlu0 %3675
  %v3677 = vsel %vm2439, %v3294, 0.0
  %3678 = vadd.xlane.f32.xlu0 %v3677
  %v3679 = vpop.xlane.xlu0 %3678
  %v3680 = vsel %vm2439, %v3295, 0.0
  %3681 = vadd.xlane.f32.xlu0 %v3680
  %v3682 = vpop.xlane.xlu0 %3681
  %v3683 = vsel %vm2439, %v3296, 0.0
  %3684 = vadd.xlane.f32.xlu0 %v3683
  %v3685 = vpop.xlane.xlu0 %3684
  %v3686 = vsel %vm2439, %v3297, 0.0
  %3687 = vadd.xlane.f32.xlu0 %v3686
  %v3688 = vpop.xlane.xlu0 %3687
  %v3689 = vsel %vm2439, %v3298, 0.0
  %3690 = vadd.xlane.f32.xlu0 %v3689
  %v3691 = vpop.xlane.xlu0 %3690
  %v3692 = vsel %vm2439, %v3299, 0.0
  %3693 = vadd.xlane.f32.xlu0 %v3692
  %v3694 = vpop.xlane.xlu0 %3693
  %v3695 = vsel %vm2439, %v3300, 0.0
  %3696 = vadd.xlane.f32.xlu0 %v3695
  %v3697 = vpop.xlane.xlu0 %3696
  %v3698 = vsel %vm2439, %v3301, 0.0
  %3699 = vadd.xlane.f32.xlu0 %v3698
  %v3700 = vpop.xlane.xlu0 %3699
  %v3701 = vsel %vm2439, %v3302, 0.0
  %3702 = vadd.xlane.f32.xlu0 %v3701
  %v3703 = vpop.xlane.xlu0 %3702
  %v3704 = vsel %vm2439, %v3303, 0.0
  %3705 = vadd.xlane.f32.xlu0 %v3704
  %v3706 = vpop.xlane.xlu0 %3705
  %v3707 = vsel %vm2439, %v3304, 0.0
  %3708 = vadd.xlane.f32.xlu0 %v3707
  %v3709 = vpop.xlane.xlu0 %3708
  %v3710 = vsel %vm2439, %v3305, 0.0
  %3711 = vadd.xlane.f32.xlu0 %v3710
  %v3712 = vpop.xlane.xlu0 %3711
  %v3713 = vsel %vm2439, %v3306, 0.0
  %3714 = vadd.xlane.f32.xlu0 %v3713
  %v3715 = vpop.xlane.xlu0 %3714
  %v3716 = vsel %vm2439, %v3307, 0.0
  %3717 = vadd.xlane.f32.xlu0 %v3716
  %v3718 = vpop.xlane.xlu0 %3717
  %v3719 = vsel %vm2439, %v3308, 0.0
  %3720 = vadd.xlane.f32.xlu0 %v3719
  %v3721 = vpop.xlane.xlu0 %3720
  %v3722 = vsel %vm2439, %v3309, 0.0
  %3723 = vadd.xlane.f32.xlu0 %v3722
  %v3724 = vpop.xlane.xlu0 %3723
  %v3725 = vsel %vm2439, %v3310, 0.0
  %3726 = vadd.xlane.f32.xlu0 %v3725
  %v3727 = vpop.xlane.xlu0 %3726
  %v3728 = vsel %vm2439, %v3311, 0.0
  %3729 = vadd.xlane.f32.xlu0 %v3728
  %v3730 = vpop.xlane.xlu0 %3729
  %v3731 = vsel %vm2439, %v3312, 0.0
  %3732 = vadd.xlane.f32.xlu0 %v3731
  %v3733 = vpop.xlane.xlu0 %3732
  %v3734 = vsel %vm2439, %v3313, 0.0
  %3735 = vadd.xlane.f32.xlu0 %v3734
  %v3736 = vpop.xlane.xlu0 %3735
  %v3737 = vsel %vm2439, %v3314, 0.0
  %3738 = vadd.xlane.f32.xlu0 %v3737
  %v3739 = vpop.xlane.xlu0 %3738
  %v3740 = vsel %vm2439, %v3315, 0.0
  %3741 = vadd.xlane.f32.xlu0 %v3740
  %v3742 = vpop.xlane.xlu0 %3741
  %v3743 = vsel %vm2439, %v3316, 0.0
  %3744 = vadd.xlane.f32.xlu0 %v3743
  %v3745 = vpop.xlane.xlu0 %3744
  %v3746 = vsel %vm2439, %v3317, 0.0
  %3747 = vadd.xlane.f32.xlu0 %v3746
  %v3748 = vpop.xlane.xlu0 %3747
  %v3749 = vsel %vm2439, %v3318, 0.0
  %3750 = vadd.xlane.f32.xlu0 %v3749
  %v3751 = vpop.xlane.xlu0 %3750
  %v3752 = vsel %vm2439, %v3319, 0.0
  %3753 = vadd.xlane.f32.xlu0 %v3752
  %v3754 = vpop.xlane.xlu0 %3753
  %v3755 = vsel %vm2439, %v3320, 0.0
  %3756 = vadd.xlane.f32.xlu0 %v3755
  %v3757 = vpop.xlane.xlu0 %3756
  %v3758 = vsel %vm2439, %v3321, 0.0
  %3759 = vadd.xlane.f32.xlu0 %v3758
  %v3760 = vpop.xlane.xlu0 %3759
  %v3761 = vsel %vm2439, %v3322, 0.0
  %3762 = vadd.xlane.f32.xlu0 %v3761
  %v3763 = vpop.xlane.xlu0 %3762
  %3764 = vst.msk [vmem:[%s5] sm:$0xff] %vm3028, %v3325
  %3765 = vst.msk [vmem:[%s5 + $0x8] sm:$0xff] %vm3028, %v3328
  %3766 = vst.msk [vmem:[%s5 + $0x10] sm:$0xff] %vm3028, %v3331
  %3767 = vst.msk [vmem:[%s5 + $0x18] sm:$0xff] %vm3028, %v3334
  %3768 = vst.msk [vmem:[%s5 + $0x20] sm:$0xff] %vm3028, %v3337
  %3769 = vst.msk [vmem:[%s5 + $0x28] sm:$0xff] %vm3028, %v3340
  %3770 = vst.msk [vmem:[%s5 + $0x30] sm:$0xff] %vm3028, %v3343
  %3771 = vst.msk [vmem:[%s5 + $0x38] sm:$0xff] %vm3028, %v3346
  %3772 = vst.msk [vmem:[%s5 + $0x40] sm:$0xff] %vm3028, %v3349
  %3773 = vst.msk [vmem:[%s5 + $0x48] sm:$0xff] %vm3028, %v3352
  %3774 = vst.msk [vmem:[%s5 + $0x50] sm:$0xff] %vm3028, %v3355
  %3775 = vst.msk [vmem:[%s5 + $0x58] sm:$0xff] %vm3028, %v3358
  %3776 = vst.msk [vmem:[%s5 + $0x60] sm:$0xff] %vm3028, %v3361
  %3777 = vst.msk [vmem:[%s5 + $0x68] sm:$0xff] %vm3028, %v3364
  %3778 = vst.msk [vmem:[%s5 + $0x70] sm:$0xff] %vm3028, %v3367
  %3779 = vst.msk [vmem:[%s5 + $0x78] sm:$0xff] %vm3028, %v3370
  %3780 = vst.msk [vmem:[%s5 + $0x80] sm:$0xff] %vm3028, %v3373
  %3781 = vst.msk [vmem:[%s5 + $0x88] sm:$0xff] %vm3028, %v3376
  %3782 = vst.msk [vmem:[%s5 + $0x90] sm:$0xff] %vm3028, %v3379
  %3783 = vst.msk [vmem:[%s5 + $0x98] sm:$0xff] %vm3028, %v3382
  %3784 = vst.msk [vmem:[%s5 + $0xa0] sm:$0xff] %vm3028, %v3385
  %3785 = vst.msk [vmem:[%s5 + $0xa8] sm:$0xff] %vm3028, %v3388
  %3786 = vst.msk [vmem:[%s5 + $0xb0] sm:$0xff] %vm3028, %v3391
  %3787 = vst.msk [vmem:[%s5 + $0xb8] sm:$0xff] %vm3028, %v3394
  %3788 = vst.msk [vmem:[%s5 + $0xc0] sm:$0xff] %vm3028, %v3397
  %3789 = vst.msk [vmem:[%s5 + $0xc8] sm:$0xff] %vm3028, %v3400
  %3790 = vst.msk [vmem:[%s5 + $0xd0] sm:$0xff] %vm3028, %v3403
  %3791 = vst.msk [vmem:[%s5 + $0xd8] sm:$0xff] %vm3028, %v3406
  %3792 = vst.msk [vmem:[%s5 + $0xe0] sm:$0xff] %vm3028, %v3409
  %3793 = vst.msk [vmem:[%s5 + $0xe8] sm:$0xff] %vm3028, %v3412
  %3794 = vst.msk [vmem:[%s5 + $0xf0] sm:$0xff] %vm3028, %v3415
  %3795 = vst.msk [vmem:[%s5 + $0xf8] sm:$0xff] %vm3028, %v3418
  %3796 = vst.msk [vmem:[%s5 + $0x100] sm:$0xff] %vm3028, %v3421
  %3797 = vst.msk [vmem:[%s5 + $0x108] sm:$0xff] %vm3028, %v3424
  %3798 = vst.msk [vmem:[%s5 + $0x110] sm:$0xff] %vm3028, %v3427
  %3799 = vst.msk [vmem:[%s5 + $0x118] sm:$0xff] %vm3028, %v3430
  %3800 = vst.msk [vmem:[%s5 + $0x120] sm:$0xff] %vm3028, %v3433
  %3801 = vst.msk [vmem:[%s5 + $0x128] sm:$0xff] %vm3028, %v3436
  %3802 = vst.msk [vmem:[%s5 + $0x130] sm:$0xff] %vm3028, %v3439
  %3803 = vst.msk [vmem:[%s5 + $0x138] sm:$0xff] %vm3028, %v3442
  %3804 = vst.msk [vmem:[%s5 + $0x140] sm:$0xff] %vm3028, %v3445
  %3805 = vst.msk [vmem:[%s5 + $0x148] sm:$0xff] %vm3028, %v3448
  %3806 = vst.msk [vmem:[%s5 + $0x150] sm:$0xff] %vm3028, %v3451
  %3807 = vst.msk [vmem:[%s5 + $0x158] sm:$0xff] %vm3028, %v3454
  %3808 = vst.msk [vmem:[%s5 + $0x160] sm:$0xff] %vm3028, %v3457
  %3809 = vst.msk [vmem:[%s5 + $0x168] sm:$0xff] %vm3028, %v3460
  %3810 = vst.msk [vmem:[%s5 + $0x170] sm:$0xff] %vm3028, %v3463
  %3811 = vst.msk [vmem:[%s5 + $0x178] sm:$0xff] %vm3028, %v3466
  %3812 = vst.msk [vmem:[%s5 + $0x180] sm:$0xff] %vm3028, %v3469
  %3813 = vst.msk [vmem:[%s5 + $0x188] sm:$0xff] %vm3028, %v3472
  %3814 = vst.msk [vmem:[%s5 + $0x190] sm:$0xff] %vm3028, %v3475
  %3815 = vst.msk [vmem:[%s5 + $0x198] sm:$0xff] %vm3028, %v3478
  %3816 = vst.msk [vmem:[%s5 + $0x1a0] sm:$0xff] %vm3028, %v3481
  %3817 = vst.msk [vmem:[%s5 + $0x1a8] sm:$0xff] %vm3028, %v3484
  %3818 = vst.msk [vmem:[%s5 + $0x1b0] sm:$0xff] %vm3028, %v3487
  %3819 = vst.msk [vmem:[%s5 + $0x1b8] sm:$0xff] %vm3028, %v3490
  %3820 = vst.msk [vmem:[%s5 + $0x1c0] sm:$0xff] %vm3028, %v3493
  %3821 = vst.msk [vmem:[%s5 + $0x1c8] sm:$0xff] %vm3028, %v3496
  %3822 = vst.msk [vmem:[%s5 + $0x1d0] sm:$0xff] %vm3028, %v3499
  %3823 = vst.msk [vmem:[%s5 + $0x1d8] sm:$0xff] %vm3028, %v3502
  %3824 = vst.msk [vmem:[%s5 + $0x1e0] sm:$0xff] %vm3028, %v3505
  %3825 = vst.msk [vmem:[%s5 + $0x1e8] sm:$0xff] %vm3028, %v3508
  %3826 = vst.msk [vmem:[%s5 + $0x1f0] sm:$0xff] %vm3028, %v3511
  %3827 = vst.msk [vmem:[%s5 + $0x1f8] sm:$0xff] %vm3028, %v3514
  %3828 = vst.msk [vmem:[%s5 + $0x200] sm:$0xff] %vm3028, %v3517
  %3829 = vst.msk [vmem:[%s5 + $0x208] sm:$0xff] %vm3028, %v3520
  %3830 = vst.msk [vmem:[%s5 + $0x210] sm:$0xff] %vm3028, %v3523
  %3831 = vst.msk [vmem:[%s5 + $0x218] sm:$0xff] %vm3028, %v3526
  %3832 = vst.msk [vmem:[%s5 + $0x220] sm:$0xff] %vm3028, %v3529
  %3833 = vst.msk [vmem:[%s5 + $0x228] sm:$0xff] %vm3028, %v3532
  %3834 = vst.msk [vmem:[%s5 + $0x230] sm:$0xff] %vm3028, %v3535
  %3835 = vst.msk [vmem:[%s5 + $0x238] sm:$0xff] %vm3028, %v3538
  %3836 = vst.msk [vmem:[%s5 + $0x240] sm:$0xff] %vm3028, %v3541
  %3837 = vst.msk [vmem:[%s5 + $0x248] sm:$0xff] %vm3028, %v3544
  %3838 = vst.msk [vmem:[%s5 + $0x250] sm:$0xff] %vm3028, %v3547
  %3839 = vst.msk [vmem:[%s5 + $0x258] sm:$0xff] %vm3028, %v3550
  %3840 = vst.msk [vmem:[%s5 + $0x260] sm:$0xff] %vm3028, %v3553
  %3841 = vst.msk [vmem:[%s5 + $0x268] sm:$0xff] %vm3028, %v3556
  %3842 = vst.msk [vmem:[%s5 + $0x270] sm:$0xff] %vm3028, %v3559
  %3843 = vst.msk [vmem:[%s5 + $0x278] sm:$0xff] %vm3028, %v3562
  %3844 = vst.msk [vmem:[%s5 + $0x280] sm:$0xff] %vm3028, %v3565
  %3845 = vst.msk [vmem:[%s5 + $0x288] sm:$0xff] %vm3028, %v3568
  %3846 = vst.msk [vmem:[%s5 + $0x290] sm:$0xff] %vm3028, %v3571
  %3847 = vst.msk [vmem:[%s5 + $0x298] sm:$0xff] %vm3028, %v3574
  %3848 = vst.msk [vmem:[%s5 + $0x2a0] sm:$0xff] %vm3028, %v3577
  %3849 = vst.msk [vmem:[%s5 + $0x2a8] sm:$0xff] %vm3028, %v3580
  %3850 = vst.msk [vmem:[%s5 + $0x2b0] sm:$0xff] %vm3028, %v3583
  %3851 = vst.msk [vmem:[%s5 + $0x2b8] sm:$0xff] %vm3028, %v3586
  %3852 = vst.msk [vmem:[%s5 + $0x2c0] sm:$0xff] %vm3028, %v3589
  %3853 = vst.msk [vmem:[%s5 + $0x2c8] sm:$0xff] %vm3028, %v3592
  %3854 = vst.msk [vmem:[%s5 + $0x2d0] sm:$0xff] %vm3028, %v3595
  %3855 = vst.msk [vmem:[%s5 + $0x2d8] sm:$0xff] %vm3028, %v3598
  %3856 = vst.msk [vmem:[%s5 + $0x2e0] sm:$0xff] %vm3028, %v3601
  %3857 = vst.msk [vmem:[%s5 + $0x2e8] sm:$0xff] %vm3028, %v3604
  %3858 = vst.msk [vmem:[%s5 + $0x2f0] sm:$0xff] %vm3028, %v3607
  %3859 = vst.msk [vmem:[%s5 + $0x2f8] sm:$0xff] %vm3028, %v3610
  %3860 = vst.msk [vmem:[%s5 + $0x300] sm:$0xff] %vm3028, %v3613
  %3861 = vst.msk [vmem:[%s5 + $0x308] sm:$0xff] %vm3028, %v3616
  %3862 = vst.msk [vmem:[%s5 + $0x310] sm:$0xff] %vm3028, %v3619
  %3863 = vst.msk [vmem:[%s5 + $0x318] sm:$0xff] %vm3028, %v3622
  %3864 = vst.msk [vmem:[%s5 + $0x320] sm:$0xff] %vm3028, %v3625
  %3865 = vst.msk [vmem:[%s5 + $0x328] sm:$0xff] %vm3028, %v3628
  %3866 = vst.msk [vmem:[%s5 + $0x330] sm:$0xff] %vm3028, %v3631
  %3867 = vst.msk [vmem:[%s5 + $0x338] sm:$0xff] %vm3028, %v3634
  %3868 = vst.msk [vmem:[%s5 + $0x340] sm:$0xff] %vm3028, %v3637
  %3869 = vst.msk [vmem:[%s5 + $0x348] sm:$0xff] %vm3028, %v3640
  %3870 = vst.msk [vmem:[%s5 + $0x350] sm:$0xff] %vm3028, %v3643
  %3871 = vst.msk [vmem:[%s5 + $0x358] sm:$0xff] %vm3028, %v3646
  %3872 = vst.msk [vmem:[%s5 + $0x360] sm:$0xff] %vm3028, %v3649
  %3873 = vst.msk [vmem:[%s5 + $0x368] sm:$0xff] %vm3028, %v3652
  %3874 = vst.msk [vmem:[%s5 + $0x370] sm:$0xff] %vm3028, %v3655
  %3875 = vst.msk [vmem:[%s5 + $0x378] sm:$0xff] %vm3028, %v3658
  %3876 = vst.msk [vmem:[%s5 + $0x380] sm:$0xff] %vm3028, %v3661
  %3877 = vst.msk [vmem:[%s5 + $0x388] sm:$0xff] %vm3028, %v3664
  %3878 = vst.msk [vmem:[%s5 + $0x390] sm:$0xff] %vm3028, %v3667
  %3879 = vst.msk [vmem:[%s5 + $0x398] sm:$0xff] %vm3028, %v3670
  %3880 = vst.msk [vmem:[%s5 + $0x3a0] sm:$0xff] %vm3028, %v3673
  %3881 = vst.msk [vmem:[%s5 + $0x3a8] sm:$0xff] %vm3028, %v3676
  %3882 = vst.msk [vmem:[%s5 + $0x3b0] sm:$0xff] %vm3028, %v3679
  %3883 = vst.msk [vmem:[%s5 + $0x3b8] sm:$0xff] %vm3028, %v3682
  %3884 = vst.msk [vmem:[%s5 + $0x3c0] sm:$0xff] %vm3028, %v3685
  %3885 = vst.msk [vmem:[%s5 + $0x3c8] sm:$0xff] %vm3028, %v3688
  %3886 = vst.msk [vmem:[%s5 + $0x3d0] sm:$0xff] %vm3028, %v3691
  %3887 = vst.msk [vmem:[%s5 + $0x3d8] sm:$0xff] %vm3028, %v3694
  %3888 = vst.msk [vmem:[%s5 + $0x3e0] sm:$0xff] %vm3028, %v3697
  %3889 = vst.msk [vmem:[%s5 + $0x3e8] sm:$0xff] %vm3028, %v3700
  %3890 = vst.msk [vmem:[%s5 + $0x3f0] sm:$0xff] %vm3028, %v3703
  %3891 = vst.msk [vmem:[%s5 + $0x3f8] sm:$0xff] %vm3028, %v3706
  %3892 = vst.msk [vmem:[%s5 + $0x400] sm:$0xff] %vm3028, %v3709
  %3893 = vst.msk [vmem:[%s5 + $0x408] sm:$0xff] %vm3028, %v3712
  %3894 = vst.msk [vmem:[%s5 + $0x410] sm:$0xff] %vm3028, %v3715
  %3895 = vst.msk [vmem:[%s5 + $0x418] sm:$0xff] %vm3028, %v3718
  %3896 = vst.msk [vmem:[%s5 + $0x420] sm:$0xff] %vm3028, %v3721
  %3897 = vst.msk [vmem:[%s5 + $0x428] sm:$0xff] %vm3028, %v3724
  %3898 = vst.msk [vmem:[%s5 + $0x430] sm:$0xff] %vm3028, %v3727
  %3899 = vst.msk [vmem:[%s5 + $0x438] sm:$0xff] %vm3028, %v3730
  %3900 = vst.msk [vmem:[%s5 + $0x440] sm:$0xff] %vm3028, %v3733
  %3901 = vst.msk [vmem:[%s5 + $0x448] sm:$0xff] %vm3028, %v3736
  %3902 = vst.msk [vmem:[%s5 + $0x450] sm:$0xff] %vm3028, %v3739
  %3903 = vst.msk [vmem:[%s5 + $0x458] sm:$0xff] %vm3028, %v3742
  %3904 = vst.msk [vmem:[%s5 + $0x460] sm:$0xff] %vm3028, %v3745
  %3905 = vst.msk [vmem:[%s5 + $0x468] sm:$0xff] %vm3028, %v3748
  %3906 = vst.msk [vmem:[%s5 + $0x470] sm:$0xff] %vm3028, %v3751
  %3907 = vst.msk [vmem:[%s5 + $0x478] sm:$0xff] %vm3028, %v3754
  %3908 = vst.msk [vmem:[%s5 + $0x480] sm:$0xff] %vm3028, %v3757
  %3909 = vst.msk [vmem:[%s5 + $0x488] sm:$0xff] %vm3028, %v3760
  %3910 = vst.msk [vmem:[%s5 + $0x490] sm:$0xff] %vm3028, %v3763
  // Predicated region
  $region14: #{decoder_forward.6} parent=0 // pred_check
    _
  $region15: #{decoder_forward.6} parent=0 // pred_check_branch
    %3912 = sbr.rel (0) target = $region17
  $region16: #{decoder_forward.6} parent=0 // pred_region
    _
  $region17: #{decoder_forward.6} parent=0 // pred_fallthru
    _
  // Predicated region
  $region18: #{decoder_forward.6} parent=0 // pred_check
    _
  $region19: #{decoder_forward.6} parent=0 // pred_check_branch
    %3914 = sbr.rel (0) target = $region21
  $region20: #{decoder_forward.6} parent=0 // pred_region
    _
  $region21: #{decoder_forward.6} parent=0 // pred_fallthru
    _
  // Predicated region
  $region22: #{decoder_forward.6} parent=0 // pred_check
    _
  $region23: #{decoder_forward.6} parent=0 // pred_check_branch
    %3916 = sbr.rel (0) target = $region25
  $region24: #{decoder_forward.6} parent=0 // pred_region
    _
  $region25: #{decoder_forward.6} parent=0 // pred_fallthru
    _
  // Predicated region
  $region26: #{decoder_forward.6} parent=0 // pred_check
    _
  $region27: #{decoder_forward.6} parent=0 // pred_check_branch
    %3918 = sbr.rel (0) target = $region29
  $region28: #{decoder_forward.6} parent=0 // pred_region
    _
  $region29: #{decoder_forward.6} parent=0 // pred_fallthru
    _
  // Predicated region
  $region30: #{decoder_forward.6} parent=0 // pred_check
    _
  $region31: #{decoder_forward.6} parent=0 // pred_check_branch
    %3920 = sbr.rel (0) target = $region33
  $region32: #{decoder_forward.6} parent=0 // pred_region
    _
  $region33: #{decoder_forward.6} parent=0 // pred_fallthru
    _
  // Predicated region
  $region34: #{decoder_forward.6} parent=0 // pred_check
    _
  $region35: #{decoder_forward.6} parent=0 // pred_check_branch
    %3922 = sbr.rel (0) target = $region37
  $region36: #{decoder_forward.6} parent=0 // pred_region
    _
  $region37: #{decoder_forward.6} parent=0 // pred_fallthru
    _

// kernel: decoder_forward.11
$region0: #{decoder_forward.11}
  #allocation0 [shape = 'u32[]', space=smem, size = 0x4, offset = 0x4, fixed_abs, tag = 'smem constant byte address 0x4 - core index']
  #allocation1 [shape = 'u32[144,128]{1,0:T(1,128)}', space=vmem, size = 0x12000, scoped, tag = 'internal scratch']
  %s0 = inlined_call_operand.vmem [shape: f32[3,25088], index: 0, kind: input, shape index: {}]
  %s1 = inlined_call_operand.vmem [shape: f32[12,3], index: 1, kind: input, shape index: {}]
  %s2 = inlined_call_operand.vmem [shape: f32[12,1], index: 2, kind: input, shape index: {}]
  %s3 = inlined_call_operand.vmem [shape: f32[12,25088], index: 3, kind: output, shape index: {}]
  %s4 = sld [smem:[#allocation0]]
  $region64: #{decoder_forward.11} parent=0
    _
  %s6 = ssub.s32 1, %s4
  %s7 = scalar_select 0, %s6, %s4
  $region1: #{decoder_forward.11} parent=0
    #allocation2 [shape = 'u8[802816]{0}', space=vmem, size = 0xc4000, scoped, tag = 'output window, operand 0']
    loop: start=0, step=1, limit=6
    $region2: #{decoder_forward.11} parent=1 // loop_pre_header
      _
    $region3: #{decoder_forward.11} parent=1 // loop_header
      %s9 = sphi 0, %s13
      %p10 = scmp.ge.s32.totalorder %s9, 6
      %s19 = sphi 0, %s21
      %s22 = sphi 0, %s19
      %s23 = sphi 0, %s22
      %s39 = sphi 0, %s23
      %s43 = sphi 0, %s43
      %s45 = sphi 0, %s43
      %s46 = sphi 0, %s45
      %s60 = sphi 0, %s46
      %s64 = sphi 0, %s64
      %s66 = sphi 0, %s64
      %s67 = sphi 0, %s66
      %s81 = sphi 0, %s67
      %s87 = sphi 0, %s89
      %s90 = sphi 0, %s87
      %s91 = sphi 0, %s90
      %s107 = sphi 0, %s91
    $region4: #{decoder_forward.11} parent=1 // loop_header_branch
      %12 = sbr.rel (%p10) target = $region8
    $region5: #{decoder_forward.11} parent=1 // loop_body
      %s14 = ssub.s32 %s9, 1
      %s15 = ssub.s32 %s9, 2
      %s16 = sadd.s32 %s9, 1
      %s17 = ssub.s32 %s9, %s16
      %p18 = scmp.eq.s32.totalorder %s17, 0
      %s20 = sadd.s32 %s19, 1
      %s21 = scalar_select %p18, %s19, %s20
      %p24 = pneg %p18
      %p25 = scmp.eq.s32.totalorder %s9, 3
      %p26 = por %p24, %p25
      %p27 = scmp.ne.s32.totalorder %s19, %s22
      %p28 = scmp.eq.s32.totalorder %s9, 0
      %p29 = por %p27, %p28
      %p30 = scmp.ne.s32.totalorder %s19, %s22
      %p31 = scmp.eq.s32.totalorder %s14, 3
      %p32 = por %p30, %p31
      %p33 = scmp.ne.s32.totalorder %s22, %s23
      %p34 = scmp.eq.s32.totalorder %s14, 0
      %p35 = por %p33, %p34
      %p36 = scmp.ne.s32.totalorder %s22, %s23
      %p37 = scmp.eq.s32.totalorder %s15, 3
      %p38 = por %p36, %p37
      %p40 = scmp.ne.s32.totalorder %s23, %s39
      %p41 = scmp.eq.s32.totalorder %s15, 0
      %p42 = por %p40, %p41
      %s44 = sadd.s32 %s43, 1
      %p47 = scmp.eq.s32.totalorder %s9, 3
      %p48 = scmp.ne.s32.totalorder %s43, %s45
      %p49 = scmp.eq.s32.totalorder %s9, 0
      %p50 = por %p48, %p49
      %p51 = scmp.ne.s32.totalorder %s43, %s45
      %p52 = scmp.eq.s32.totalorder %s14, 3
      %p53 = por %p51, %p52
      %p54 = scmp.ne.s32.totalorder %s45, %s46
      %p55 = scmp.eq.s32.totalorder %s14, 0
      %p56 = por %p54, %p55
      %p57 = scmp.ne.s32.totalorder %s45, %s46
      %p58 = scmp.eq.s32.totalorder %s15, 3
      %p59 = por %p57, %p58
      %p61 = scmp.ne.s32.totalorder %s46, %s60
      %p62 = scmp.eq.s32.totalorder %s15, 0
      %p63 = por %p61, %p62
      %s65 = sadd.s32 %s64, 1
      %p68 = scmp.eq.s32.totalorder %s9, 3
      %p69 = scmp.ne.s32.totalorder %s64, %s66
      %p70 = scmp.eq.s32.totalorder %s9, 0
      %p71 = por %p69, %p70
      %p72 = scmp.ne.s32.totalorder %s64, %s66
      %p73 = scmp.eq.s32.totalorder %s14, 3
      %p74 = por %p72, %p73
      %p75 = scmp.ne.s32.totalorder %s66, %s67
      %p76 = scmp.eq.s32.totalorder %s14, 0
      %p77 = por %p75, %p76
      %p78 = scmp.ne.s32.totalorder %s66, %s67
      %p79 = scmp.eq.s32.totalorder %s15, 3
      %p80 = por %p78, %p79
      %p82 = scmp.ne.s32.totalorder %s67, %s81
      %p83 = scmp.eq.s32.totalorder %s15, 0
      %p84 = por %p82, %p83
      %s85 = ssub.s32 %s9, %s16
      %p86 = scmp.eq.s32.totalorder %s85, 0
      %s88 = sadd.s32 %s87, 1
      %s89 = scalar_select %p86, %s87, %s88
      %p92 = pneg %p86
      %p93 = scmp.eq.s32.totalorder %s9, 3
      %p94 = por %p92, %p93
      %p95 = scmp.ne.s32.totalorder %s87, %s90
      %p96 = scmp.eq.s32.totalorder %s9, 0
      %p97 = por %p95, %p96
      %p98 = scmp.ne.s32.totalorder %s87, %s90
      %p99 = scmp.eq.s32.totalorder %s14, 3
      %p100 = por %p98, %p99
      %p101 = scmp.ne.s32.totalorder %s90, %s91
      %p102 = scmp.eq.s32.totalorder %s14, 0
      %p103 = por %p101, %p102
      %p104 = scmp.ne.s32.totalorder %s90, %s91
      %p105 = scmp.eq.s32.totalorder %s15, 3
      %p106 = por %p104, %p105
      %p108 = scmp.ne.s32.totalorder %s91, %s107
      %p109 = scmp.eq.s32.totalorder %s15, 0
      %p110 = por %p108, %p109
      %p111 = scmp.le.s32.totalorder 1, %s9
      %p112 = scmp.lt.s32.totalorder %s9, 5
      %p113 = pnand %p111, %p112
      %p114 = pneg %p113
      // Predicated region
      $region9: #{decoder_forward.11} parent=5 // pred_check
        _
      $region10: #{decoder_forward.11} parent=5 // pred_check_branch
        %116 = sbr.rel (%p113) target = $region12
      $region11: #{decoder_forward.11} parent=5 // pred_region
        %s117 = ssub.s32 %s9, 1
        // Predicated region
        $region13: #{decoder_forward.11} parent=11 // pred_check
          %p118 = pneg %p56
        $region14: #{decoder_forward.11} parent=11 // pred_check_branch
          %120 = sbr.rel (%p118) target = $region16
        $region15: #{decoder_forward.11} parent=11 // pred_region
          _
        $region16: #{decoder_forward.11} parent=11 // pred_fallthru
          _
        // Predicated region
        $region17: #{decoder_forward.11} parent=11 // pred_check
          %p121 = pneg %p77
        $region18: #{decoder_forward.11} parent=11 // pred_check_branch
          %123 = sbr.rel (%p121) target = $region20
        $region19: #{decoder_forward.11} parent=11 // pred_region
          _
        $region20: #{decoder_forward.11} parent=11 // pred_fallthru
          _
      $region12: #{decoder_forward.11} parent=5 // pred_fallthru
        _
      %p124 = scmp.lt.s32.totalorder %s9, 4
      // Predicated region
      $region21: #{decoder_forward.11} parent=5 // pred_check
        %p125 = pneg %p124
      $region22: #{decoder_forward.11} parent=5 // pred_check_branch
        %127 = sbr.rel (%p125) target = $region24
      $region23: #{decoder_forward.11} parent=5 // pred_region
        // Predicated region
        $region25: #{decoder_forward.11} parent=23 // pred_check
          %p128 = pneg %p29
        $region26: #{decoder_forward.11} parent=23 // pred_check_branch
          %130 = sbr.rel (%p128) target = $region28
        $region27: #{decoder_forward.11} parent=23 // pred_region
          %s131 = smul.u32 49, %s9
          %p132 = scmp.lt.s32.totalorder %s131, 195
          %s133 = scalar_select %p132, %s131, 195
          %s134 = smul.addr %s133, 4
          %s135 = scalar_lea.vmem %s0, %s134
          %s136 = smul.u32 49, %s9
        $region28: #{decoder_forward.11} parent=23 // pred_fallthru
          _
      $region24: #{decoder_forward.11} parent=5 // pred_fallthru
        _
      %p137 = scmp.le.s32.totalorder 1, %s9
      %p138 = scmp.lt.s32.totalorder %s9, 5
      %p139 = pnand %p137, %p138
      %p140 = pneg %p139
      // Predicated region
      $region29: #{decoder_forward.11} parent=5 // pred_check
        _
      $region30: #{decoder_forward.11} parent=5 // pred_check_branch
        %142 = sbr.rel (%p139) target = $region32
      $region31: #{decoder_forward.11} parent=5 // pred_region
        %s143 = ssub.s32 %s9, 1
        %s144 = smul.u32 49, %s14
        %p145 = scmp.lt.s32.totalorder %s144, 195
        %s146 = scalar_select %p145, %s144, 195
        %s147 = smul.addr %s146, 4
        %s148 = scalar_lea.vmem %s0, %s147
        %p149 = pneg %p35
        %p150 = pneg %p32
        %p151 = pneg %p56
        %p152 = pneg %p53
        %p153 = pneg %p77
        %p154 = pneg %p74
        %p155 = pneg %p103
        %p156 = pneg %p100
        %s157 = sand.u32 %s90, 1
        %s158 = sand.u32 %s90, 1
        %s159 = smul.addr %s158, 784
        %s160 = scalar_lea.vmem [#allocation2], %s159
        %s161 = smul.u32 49, %s14
        %p162 = scmp.lt.s32.totalorder %s161, 195
        %s163 = scalar_select %p162, %s161, 195
        %s164 = smul.addr %s163, 4
        %s165 = scalar_lea.vmem %s0, %s164
        %s166 = smul.u32 49, %s14
        %s167 = smul.u32 49, %s14
        %v168 = vld [vmem:[%s1] sm:$0xff]
        %v169 = vld [vmem:[%s1 + $0x8] sm:$0xf]
        %v170 = vld [vmem:[%s165] sm:$0x77]
        %v171 = vld [vmem:[%s165 + $0x8] sm:$0x77]
        %v172 = vld [vmem:[%s165 + $0x10] sm:$0x77]
        %v173 = vld [vmem:[%s165 + $0x18] sm:$0x77]
        %v174 = vld [vmem:[%s165 + $0x20] sm:$0x77]
        %v175 = vld [vmem:[%s165 + $0x28] sm:$0x77]
        %v176 = vld [vmem:[%s165 + $0x30] sm:$0x77]
        %v177 = vld [vmem:[%s165 + $0x38] sm:$0x77]
        %v178 = vld [vmem:[%s165 + $0x40] sm:$0x77]
        %v179 = vld [vmem:[%s165 + $0x48] sm:$0x77]
        %v180 = vld [vmem:[%s165 + $0x50] sm:$0x77]
        %v181 = vld [vmem:[%s165 + $0x58] sm:$0x77]
        %v182 = vld [vmem:[%s165 + $0x60] sm:$0x77]
        %v183 = vld [vmem:[%s165 + $0x68] sm:$0x77]
        %v184 = vld [vmem:[%s165 + $0x70] sm:$0x77]
        %v185 = vld [vmem:[%s165 + $0x78] sm:$0x77]
        %v186 = vld [vmem:[%s165 + $0x80] sm:$0x77]
        %v187 = vld [vmem:[%s165 + $0x88] sm:$0x77]
        %v188 = vld [vmem:[%s165 + $0x90] sm:$0x77]
        %v189 = vld [vmem:[%s165 + $0x98] sm:$0x77]
        %v190 = vld [vmem:[%s165 + $0xa0] sm:$0x77]
        %v191 = vld [vmem:[%s165 + $0xa8] sm:$0x77]
        %v192 = vld [vmem:[%s165 + $0xb0] sm:$0x77]
        %v193 = vld [vmem:[%s165 + $0xb8] sm:$0x77]
        %v194 = vld [vmem:[%s165 + $0xc0] sm:$0x7]
        %v195 = vld [vmem:[%s2] sm:$0xff]
        %v196 = vld [vmem:[%s2 + $0x8] sm:$0xf]
        %198 = vset.pattern.permute.xlu0 0
        %199 = vperm.xlu0 %198, %v195
        %v200 = vpop.permute.xlu0 %199
        %203 = vset.pattern.permute.xlu0 0
        %204 = vperm.xlu0 %203, %v196
        %v205 = vpop.permute.xlu0 %204
        %v232 = vcombine.high %v170, %v170
        %v233 = vcombine.high %v171, %v171
        %v234 = vcombine.high %v172, %v172
        %v235 = vcombine.high %v173, %v173
        %v236 = vcombine.high %v174, %v174
        %v237 = vcombine.high %v175, %v175
        %v238 = vcombine.high %v176, %v176
        %v239 = vcombine.high %v177, %v177
        %v240 = vcombine.high %v178, %v178
        %v241 = vcombine.high %v179, %v179
        %v242 = vcombine.high %v180, %v180
        %v243 = vcombine.high %v181, %v181
        %v244 = vcombine.high %v182, %v182
        %v245 = vcombine.high %v183, %v183
        %v246 = vcombine.high %v184, %v184
        %v247 = vcombine.high %v185, %v185
        %v248 = vcombine.high %v186, %v186
        %v249 = vcombine.high %v187, %v187
        %v250 = vcombine.high %v188, %v188
        %v251 = vcombine.high %v189, %v189
        %v252 = vcombine.high %v190, %v190
        %v253 = vcombine.high %v191, %v191
        %v254 = vcombine.high %v192, %v192
        %v255 = vcombine.high %v193, %v193
        %vm256 = vcmask 23552
        %v258 = vsel %vm256, %v168, 0
        %v261 = vsel %vm256, %v169, 0
        %vm263 = vcmask 1042432
        %v264 = vsel %vm263, %v170, 0
        %v266 = vsel %vm263, %v232, 0
        %v268 = vsel %vm263, %v171, 0
        %v270 = vsel %vm263, %v233, 0
        %v272 = vsel %vm263, %v172, 0
        %v274 = vsel %vm263, %v234, 0
        %v276 = vsel %vm263, %v173, 0
        %v278 = vsel %vm263, %v235, 0
        %v280 = vsel %vm263, %v174, 0
        %v282 = vsel %vm263, %v236, 0
        %v284 = vsel %vm263, %v175, 0
        %v286 = vsel %vm263, %v237, 0
        %v288 = vsel %vm263, %v176, 0
        %v290 = vsel %vm263, %v238, 0
        %v292 = vsel %vm263, %v177, 0
        %v294 = vsel %vm263, %v239, 0
        %v296 = vsel %vm263, %v178, 0
        %v298 = vsel %vm263, %v240, 0
        %v300 = vsel %vm263, %v179, 0
        %v302 = vsel %vm263, %v241, 0
        %v304 = vsel %vm263, %v180, 0
        %v306 = vsel %vm263, %v242, 0
        %v308 = vsel %vm263, %v181, 0
        %v310 = vsel %vm263, %v243, 0
        %v312 = vsel %vm263, %v182, 0
        %v314 = vsel %vm263, %v244, 0
        %v316 = vsel %vm263, %v183, 0
        %v318 = vsel %vm263, %v245, 0
        %v320 = vsel %vm263, %v184, 0
        %v322 = vsel %vm263, %v246, 0
        %v324 = vsel %vm263, %v185, 0
        %v326 = vsel %vm263, %v247, 0
        %v328 = vsel %vm263, %v186, 0
        %v330 = vsel %vm263, %v248, 0
        %v332 = vsel %vm263, %v187, 0
        %v334 = vsel %vm263, %v249, 0
        %v336 = vsel %vm263, %v188, 0
        %v338 = vsel %vm263, %v250, 0
        %v340 = vsel %vm263, %v189, 0
        %v342 = vsel %vm263, %v251, 0
        %v344 = vsel %vm263, %v190, 0
        %v346 = vsel %vm263, %v252, 0
        %v348 = vsel %vm263, %v191, 0
        %v350 = vsel %vm263, %v253, 0
        %v352 = vsel %vm263, %v192, 0
        %v354 = vsel %vm263, %v254, 0
        %v356 = vsel %vm263, %v193, 0
        %v358 = vsel %vm263, %v255, 0
        %v360 = vsel %vm263, %v194, 0
        %362 = vmatprep.subr.mxu0 %v266
        %363 = vmatpush1.msra.mxu0 %v264
        %364 = vmatprep.subr.mxu0 0.0
        %365 = vmatpush1.msra.mxu0 0.0
        %366 = vmatprep.subr.mxu0 0.0
        %367 = vmatpush1.msra.mxu0 0.0
        %368 = vmatprep.subr.mxu0 0.0
        %369 = vmatpush1.msra.mxu0 0.0
        %370 = vmatprep.subr.mxu0 0.0
        %371 = vmatpush1.msra.mxu0 0.0
        %372 = vmatprep.subr.mxu0 0.0
        %373 = vmatpush1.msra.mxu0 0.0
        %374 = vmatprep.subr.mxu0 0.0
        %375 = vmatpush1.msra.mxu0 0.0
        %376 = vmatprep.subr.mxu0 0.0
        %377 = vmatpush1.msra.mxu0 0.0
        %378 = vmatprep.subr.mxu0 0.0
        %379 = vmatpush1.msra.mxu0 0.0
        %380 = vmatprep.subr.mxu0 0.0
        %381 = vmatpush1.msra.mxu0 0.0
        %382 = vmatprep.subr.mxu0 0.0
        %383 = vmatpush1.msra.mxu0 0.0
        %384 = vmatprep.subr.mxu0 0.0
        %385 = vmatpush1.msra.mxu0 0.0
        %386 = vmatprep.subr.mxu0 0.0
        %387 = vmatpush1.msra.mxu0 0.0
        %388 = vmatprep.subr.mxu0 0.0
        %389 = vmatpush1.msra.mxu0 0.0
        %390 = vmatprep.subr.mxu0 0.0
        %391 = vmatpush1.msra.mxu0 0.0
        %392 = vmatprep.subr.mxu0 0.0
        %393 = vmatpush1.msra.mxu0 0.0
        %394 = vmatprep.subr.mxu0 0.0
        %395 = vmatpush1.msra.mxu0 0.0
        %396 = vmatprep.subr.mxu0 0.0
        %397 = vmatpush1.msra.mxu0 0.0
        %398 = vmatprep.subr.mxu0 0.0
        %399 = vmatpush1.msra.mxu0 0.0
        %400 = vmatprep.subr.mxu0 0.0
        %401 = vmatpush1.msra.mxu0 0.0
        %402 = vmatprep.subr.mxu0 0.0
        %403 = vmatpush1.msra.mxu0 0.0
        %404 = vmatprep.subr.mxu0 0.0
        %405 = vmatpush1.msra.mxu0 0.0
        %406 = vmatprep.subr.mxu0 0.0
        %407 = vmatpush1.msra.mxu0 0.0
        %408 = vmatprep.subr.mxu0 0.0
        %409 = vmatpush1.msra.mxu0 0.0
        %410 = vmatprep.subr.mxu0 0.0
        %411 = vmatpush1.msra.mxu0 0.0
        %412 = vmatprep.subr.mxu0 0.0
        %413 = vmatpush1.msra.mxu0 0.0
        %414 = vmatprep.subr.mxu0 0.0
        %415 = vmatpush1.msra.mxu0 0.0
        %416 = vmatprep.subr.mxu0 0.0
        %417 = vmatpush1.msra.mxu0 0.0
        %418 = vmatprep.subr.mxu0 0.0
        %419 = vmatpush1.msra.mxu0 0.0
        %420 = vmatprep.subr.mxu0 0.0
        %421 = vmatpush1.msra.mxu0 0.0
        %422 = vmatprep.subr.mxu0 0.0
        %423 = vmatpush1.msra.mxu0 0.0
        %424 = vmatprep.subr.mxu0 0.0
        %425 = vmatpush1.msra.mxu0 0.0
        %426 = vmatprep.mubr.f32.mxu0 0.0
        %427 = vmatmul.mubr.f32.gmra.mrb[0].mxu0 %v258
        %v428 = vpop.f32.mrb[0].mxu0
        %v429 = vadd.f32 %v200, %v428
        %v430 = vpop.f32.mrb[0].mxu0
        %v431 = vadd.f32 %v200, %v430
        %432 = vmatprep.mubr.f32.mxu0 0.0
        %433 = vmatmul.mubr.f32.gmra.mrb[0].mxu0 %v261
        %v434 = vpop.f32.mrb[0].mxu0
        %v435 = vadd.f32 %v205, %v434
        %v436 = vpop.f32.mrb[0].mxu0
        %v437 = vadd.f32 %v205, %v436
        %438 = vdwg.mxu0
        %439 = vmatprep.subr.mxu0 %v270
        %440 = vmatpush1.msra.mxu0 %v268
        %441 = vmatprep.subr.mxu0 0.0
        %442 = vmatpush1.msra.mxu0 0.0
        %443 = vmatprep.subr.mxu0 0.0
        %444 = vmatpush1.msra.mxu0 0.0
        %445 = vmatprep.subr.mxu0 0.0
        %446 = vmatpush1.msra.mxu0 0.0
        %447 = vmatprep.subr.mxu0 0.0
        %448 = vmatpush1.msra.mxu0 0.0
        %449 = vmatprep.subr.mxu0 0.0
        %450 = vmatpush1.msra.mxu0 0.0
        %451 = vmatprep.subr.mxu0 0.0
        %452 = vmatpush1.msra.mxu0 0.0
        %453 = vmatprep.subr.mxu0 0.0
        %454 = vmatpush1.msra.mxu0 0.0
        %455 = vmatprep.subr.mxu0 0.0
        %456 = vmatpush1.msra.mxu0 0.0
        %457 = vmatprep.subr.mxu0 0.0
        %458 = vmatpush1.msra.mxu0 0.0
        %459 = vmatprep.subr.mxu0 0.0
        %460 = vmatpush1.msra.mxu0 0.0
        %461 = vmatprep.subr.mxu0 0.0
        %462 = vmatpush1.msra.mxu0 0.0
        %463 = vmatprep.subr.mxu0 0.0
        %464 = vmatpush1.msra.mxu0 0.0
        %465 = vmatprep.subr.mxu0 0.0
        %466 = vmatpush1.msra.mxu0 0.0
        %467 = vmatprep.subr.mxu0 0.0
        %468 = vmatpush1.msra.mxu0 0.0
        %469 = vmatprep.subr.mxu0 0.0
        %470 = vmatpush1.msra.mxu0 0.0
        %471 = vmatprep.subr.mxu0 0.0
        %472 = vmatpush1.msra.mxu0 0.0
        %473 = vmatprep.subr.mxu0 0.0
        %474 = vmatpush1.msra.mxu0 0.0
        %475 = vmatprep.subr.mxu0 0.0
        %476 = vmatpush1.msra.mxu0 0.0
        %477 = vmatprep.subr.mxu0 0.0
        %478 = vmatpush1.msra.mxu0 0.0
        %479 = vmatprep.subr.mxu0 0.0
        %480 = vmatpush1.msra.mxu0 0.0
        %481 = vmatprep.subr.mxu0 0.0
        %482 = vmatpush1.msra.mxu0 0.0
        %483 = vmatprep.subr.mxu0 0.0
        %484 = vmatpush1.msra.mxu0 0.0
        %485 = vmatprep.subr.mxu0 0.0
        %486 = vmatpush1.msra.mxu0 0.0
        %487 = vmatprep.subr.mxu0 0.0
        %488 = vmatpush1.msra.mxu0 0.0
        %489 = vmatprep.subr.mxu0 0.0
        %490 = vmatpush1.msra.mxu0 0.0
        %491 = vmatprep.subr.mxu0 0.0
        %492 = vmatpush1.msra.mxu0 0.0
        %493 = vmatprep.subr.mxu0 0.0
        %494 = vmatpush1.msra.mxu0 0.0
        %495 = vmatprep.subr.mxu0 0.0
        %496 = vmatpush1.msra.mxu0 0.0
        %497 = vmatprep.subr.mxu0 0.0
        %498 = vmatpush1.msra.mxu0 0.0
        %499 = vmatprep.subr.mxu0 0.0
        %500 = vmatpush1.msra.mxu0 0.0
        %501 = vmatprep.subr.mxu0 0.0
        %502 = vmatpush1.msra.mxu0 0.0
        %503 = vmatprep.mubr.f32.mxu0 0.0
        %504 = vmatmul.mubr.f32.gmra.mrb[0].mxu0 %v258
        %v505 = vpop.f32.mrb[0].mxu0
        %v506 = vadd.f32 %v200, %v505
        %v507 = vpop.f32.mrb[0].mxu0
        %v508 = vadd.f32 %v200, %v507
        %509 = vmatprep.mubr.f32.mxu0 0.0
        %510 = vmatmul.mubr.f32.gmra.mrb[0].mxu0 %v261
        %v511 = vpop.f32.mrb[0].mxu0
        %v512 = vadd.f32 %v205, %v511
        %v513 = vpop.f32.mrb[0].mxu0
        %v514 = vadd.f32 %v205, %v513
        %515 = vdwg.mxu0
        %516 = vmatprep.subr.mxu0 %v274
        %517 = vmatpush1.msra.mxu0 %v272
        %518 = vmatprep.subr.mxu0 0.0
        %519 = vmatpush1.msra.mxu0 0.0
        %520 = vmatprep.subr.mxu0 0.0
        %521 = vmatpush1.msra.mxu0 0.0
        %522 = vmatprep.subr.mxu0 0.0
        %523 = vmatpush1.msra.mxu0 0.0
        %524 = vmatprep.subr.mxu0 0.0
        %525 = vmatpush1.msra.mxu0 0.0
        %526 = vmatprep.subr.mxu0 0.0
        %527 = vmatpush1.msra.mxu0 0.0
        %528 = vmatprep.subr.mxu0 0.0
        %529 = vmatpush1.msra.mxu0 0.0
        %530 = vmatprep.subr.mxu0 0.0
        %531 = vmatpush1.msra.mxu0 0.0
        %532 = vmatprep.subr.mxu0 0.0
        %533 = vmatpush1.msra.mxu0 0.0
        %534 = vmatprep.subr.mxu0 0.0
        %535 = vmatpush1.msra.mxu0 0.0
        %536 = vmatprep.subr.mxu0 0.0
        %537 = vmatpush1.msra.mxu0 0.0
        %538 = vmatprep.subr.mxu0 0.0
        %539 = vmatpush1.msra.mxu0 0.0
        %540 = vmatprep.subr.mxu0 0.0
        %541 = vmatpush1.msra.mxu0 0.0
        %542 = vmatprep.subr.mxu0 0.0
        %543 = vmatpush1.msra.mxu0 0.0
        %544 = vmatprep.subr.mxu0 0.0
        %545 = vmatpush1.msra.mxu0 0.0
        %546 = vmatprep.subr.mxu0 0.0
        %547 = vmatpush1.msra.mxu0 0.0
        %548 = vmatprep.subr.mxu0 0.0
        %549 = vmatpush1.msra.mxu0 0.0
        %550 = vmatprep.subr.mxu0 0.0
        %551 = vmatpush1.msra.mxu0 0.0
        %552 = vmatprep.subr.mxu0 0.0
        %553 = vmatpush1.msra.mxu0 0.0
        %554 = vmatprep.subr.mxu0 0.0
        %555 = vmatpush1.msra.mxu0 0.0
        %556 = vmatprep.subr.mxu0 0.0
        %557 = vmatpush1.msra.mxu0 0.0
        %558 = vmatprep.subr.mxu0 0.0
        %559 = vmatpush1.msra.mxu0 0.0
        %560 = vmatprep.subr.mxu0 0.0
        %561 = vmatpush1.msra.mxu0 0.0
        %562 = vmatprep.subr.mxu0 0.0
        %563 = vmatpush1.msra.mxu0 0.0
        %564 = vmatprep.subr.mxu0 0.0
        %565 = vmatpush1.msra.mxu0 0.0
        %566 = vmatprep.subr.mxu0 0.0
        %567 = vmatpush1.msra.mxu0 0.0
        %568 = vmatprep.subr.mxu0 0.0
        %569 = vmatpush1.msra.mxu0 0.0
        %570 = vmatprep.subr.mxu0 0.0
        %571 = vmatpush1.msra.mxu0 0.0
        %572 = vmatprep.subr.mxu0 0.0
        %573 = vmatpush1.msra.mxu0 0.0
        %574 = vmatprep.subr.mxu0 0.0
        %575 = vmatpush1.msra.mxu0 0.0
        %576 = vmatprep.subr.mxu0 0.0
        %577 = vmatpush1.msra.mxu0 0.0
        %578 = vmatprep.subr.mxu0 0.0
        %579 = vmatpush1.msra.mxu0 0.0
        %580 = vmatprep.mubr.f32.mxu0 0.0
        %581 = vmatmul.mubr.f32.gmra.mrb[0].mxu0 %v258
        %v582 = vpop.f32.mrb[0].mxu0
        %v583 = vadd.f32 %v200, %v582
        %v584 = vpop.f32.mrb[0].mxu0
        %v585 = vadd.f32 %v200, %v584
        %586 = vmatprep.mubr.f32.mxu0 0.0
        %587 = vmatmul.mubr.f32.gmra.mrb[0].mxu0 %v261
        %v588 = vpop.f32.mrb[0].mxu0
        %v589 = vadd.f32 %v205, %v588
        %v590 = vpop.f32.mrb[0].mxu0
        %v591 = vadd.f32 %v205, %v590
        %592 = vdwg.mxu0
        %593 = vmatprep.subr.mxu0 %v278
        %594 = vmatpush1.msra.mxu0 %v276
        %595 = vmatprep.subr.mxu0 0.0
        %596 = vmatpush1.msra.mxu0 0.0
        %597 = vmatprep.subr.mxu0 0.0
        %598 = vmatpush1.msra.mxu0 0.0
        %599 = vmatprep.subr.mxu0 0.0
        %600 = vmatpush1.msra.mxu0 0.0
        %601 = vmatprep.subr.mxu0 0.0
        %602 = vmatpush1.msra.mxu0 0.0
        %603 = vmatprep.subr.mxu0 0.0
        %604 = vmatpush1.msra.mxu0 0.0
        %605 = vmatprep.subr.mxu0 0.0
        %606 = vmatpush1.msra.mxu0 0.0
        %607 = vmatprep.subr.mxu0 0.0
        %608 = vmatpush1.msra.mxu0 0.0
        %609 = vmatprep.subr.mxu0 0.0
        %610 = vmatpush1.msra.mxu0 0.0
        %611 = vmatprep.subr.mxu0 0.0
        %612 = vmatpush1.msra.mxu0 0.0
        %613 = vmatprep.subr.mxu0 0.0
        %614 = vmatpush1.msra.mxu0 0.0
        %615 = vmatprep.subr.mxu0 0.0
        %616 = vmatpush1.msra.mxu0 0.0
        %617 = vmatprep.subr.mxu0 0.0
        %618 = vmatpush1.msra.mxu0 0.0
        %619 = vmatprep.subr.mxu0 0.0
        %620 = vmatpush1.msra.mxu0 0.0
        %621 = vmatprep.subr.mxu0 0.0
        %622 = vmatpush1.msra.mxu0 0.0
        %623 = vmatprep.subr.mxu0 0.0
        %624 = vmatpush1.msra.mxu0 0.0
        %625 = vmatprep.subr.mxu0 0.0
        %626 = vmatpush1.msra.mxu0 0.0
        %627 = vmatprep.subr.mxu0 0.0
        %628 = vmatpush1.msra.mxu0 0.0
        %629 = vmatprep.subr.mxu0 0.0
        %630 = vmatpush1.msra.mxu0 0.0
        %631 = vmatprep.subr.mxu0 0.0
        %632 = vmatpush1.msra.mxu0 0.0
        %633 = vmatprep.subr.mxu0 0.0
        %634 = vmatpush1.msra.mxu0 0.0
        %635 = vmatprep.subr.mxu0 0.0
        %636 = vmatpush1.msra.mxu0 0.0
        %637 = vmatprep.subr.mxu0 0.0
        %638 = vmatpush1.msra.mxu0 0.0
        %639 = vmatprep.subr.mxu0 0.0
        %640 = vmatpush1.msra.mxu0 0.0
        %641 = vmatprep.subr.mxu0 0.0
        %642 = vmatpush1.msra.mxu0 0.0
        %643 = vmatprep.subr.mxu0 0.0
        %644 = vmatpush1.msra.mxu0 0.0
        %645 = vmatprep.subr.mxu0 0.0
        %646 = vmatpush1.msra.mxu0 0.0
        %647 = vmatprep.subr.mxu0 0.0
        %648 = vmatpush1.msra.mxu0 0.0
        %649 = vmatprep.subr.mxu0 0.0
        %650 = vmatpush1.msra.mxu0 0.0
        %651 = vmatprep.subr.mxu0 0.0
        %652 = vmatpush1.msra.mxu0 0.0
        %653 = vmatprep.subr.mxu0 0.0
        %654 = vmatpush1.msra.mxu0 0.0
        %655 = vmatprep.subr.mxu0 0.0
        %656 = vmatpush1.msra.mxu0 0.0
        %657 = vmatprep.mubr.f32.mxu0 0.0
        %658 = vmatmul.mubr.f32.gmra.mrb[0].mxu0 %v258
        %v659 = vpop.f32.mrb[0].mxu0
        %v660 = vadd.f32 %v200, %v659
        %v661 = vpop.f32.mrb[0].mxu0
        %v662 = vadd.f32 %v200, %v661
        %663 = vmatprep.mubr.f32.mxu0 0.0
        %664 = vmatmul.mubr.f32.gmra.mrb[0].mxu0 %v261
        %v665 = vpop.f32.mrb[0].mxu0
        %v666 = vadd.f32 %v205, %v665
        %v667 = vpop.f32.mrb[0].mxu0
        %v668 = vadd.f32 %v205, %v667
        %669 = vdwg.mxu0
        %670 = vmatprep.subr.mxu0 %v282
        %671 = vmatpush1.msra.mxu0 %v280
        %672 = vmatprep.subr.mxu0 0.0
        %673 = vmatpush1.msra.mxu0 0.0
        %674 = vmatprep.subr.mxu0 0.0
        %675 = vmatpush1.msra.mxu0 0.0
        %676 = vmatprep.subr.mxu0 0.0
        %677 = vmatpush1.msra.mxu0 0.0
        %678 = vmatprep.subr.mxu0 0.0
        %679 = vmatpush1.msra.mxu0 0.0
        %680 = vmatprep.subr.mxu0 0.0
        %681 = vmatpush1.msra.mxu0 0.0
        %682 = vmatprep.subr.mxu0 0.0
        %683 = vmatpush1.msra.mxu0 0.0
        %684 = vmatprep.subr.mxu0 0.0
        %685 = vmatpush1.msra.mxu0 0.0
        %686 = vmatprep.subr.mxu0 0.0
        %687 = vmatpush1.msra.mxu0 0.0
        %688 = vmatprep.subr.mxu0 0.0
        %689 = vmatpush1.msra.mxu0 0.0
        %690 = vmatprep.subr.mxu0 0.0
        %691 = vmatpush1.msra.mxu0 0.0
        %692 = vmatprep.subr.mxu0 0.0
        %693 = vmatpush1.msra.mxu0 0.0
        %694 = vmatprep.subr.mxu0 0.0
        %695 = vmatpush1.msra.mxu0 0.0
        %696 = vmatprep.subr.mxu0 0.0
        %697 = vmatpush1.msra.mxu0 0.0
        %698 = vmatprep.subr.mxu0 0.0
        %699 = vmatpush1.msra.mxu0 0.0
        %700 = vmatprep.subr.mxu0 0.0
        %701 = vmatpush1.msra.mxu0 0.0
        %702 = vmatprep.subr.mxu0 0.0
        %703 = vmatpush1.msra.mxu0 0.0
        %704 = vmatprep.subr.mxu0 0.0
        %705 = vmatpush1.msra.mxu0 0.0
        %706 = vmatprep.subr.mxu0 0.0
        %707 = vmatpush1.msra.mxu0 0.0
        %708 = vmatprep.subr.mxu0 0.0
        %709 = vmatpush1.msra.mxu0 0.0
        %710 = vmatprep.subr.mxu0 0.0
        %711 = vmatpush1.msra.mxu0 0.0
        %712 = vmatprep.subr.mxu0 0.0
        %713 = vmatpush1.msra.mxu0 0.0
        %714 = vmatprep.subr.mxu0 0.0
        %715 = vmatpush1.msra.mxu0 0.0
        %716 = vmatprep.subr.mxu0 0.0
        %717 = vmatpush1.msra.mxu0 0.0
        %718 = vmatprep.subr.mxu0 0.0
        %719 = vmatpush1.msra.mxu0 0.0
        %720 = vmatprep.subr.mxu0 0.0
        %721 = vmatpush1.msra.mxu0 0.0
        %722 = vmatprep.subr.mxu0 0.0
        %723 = vmatpush1.msra.mxu0 0.0
        %724 = vmatprep.subr.mxu0 0.0
        %725 = vmatpush1.msra.mxu0 0.0
        %726 = vmatprep.subr.mxu0 0.0
        %727 = vmatpush1.msra.mxu0 0.0
        %728 = vmatprep.subr.mxu0 0.0
        %729 = vmatpush1.msra.mxu0 0.0
        %730 = vmatprep.subr.mxu0 0.0
        %731 = vmatpush1.msra.mxu0 0.0
        %732 = vmatprep.subr.mxu0 0.0
        %733 = vmatpush1.msra.mxu0 0.0
        %734 = vmatprep.mubr.f32.mxu0 0.0
        %735 = vmatmul.mubr.f32.gmra.mrb[0].mxu0 %v258
        %v736 = vpop.f32.mrb[0].mxu0
        %v737 = vadd.f32 %v200, %v736
        %v738 = vpop.f32.mrb[0].mxu0
        %v739 = vadd.f32 %v200, %v738
        %740 = vmatprep.mubr.f32.mxu0 0.0
        %741 = vmatmul.mubr.f32.gmra.mrb[0].mxu0 %v261
        %v742 = vpop.f32.mrb[0].mxu0
        %v743 = vadd.f32 %v205, %v742
        %v744 = vpop.f32.mrb[0].mxu0
        %v745 = vadd.f32 %v205, %v744
        %746 = vdwg.mxu0
        %747 = vmatprep.subr.mxu0 %v286
        %748 = vmatpush1.msra.mxu0 %v284
        %749 = vmatprep.subr.mxu0 0.0
        %750 = vmatpush1.msra.mxu0 0.0
        %751 = vmatprep.subr.mxu0 0.0
        %752 = vmatpush1.msra.mxu0 0.0
        %753 = vmatprep.subr.mxu0 0.0
        %754 = vmatpush1.msra.mxu0 0.0
        %755 = vmatprep.subr.mxu0 0.0
        %756 = vmatpush1.msra.mxu0 0.0
        %757 = vmatprep.subr.mxu0 0.0
        %758 = vmatpush1.msra.mxu0 0.0
        %759 = vmatprep.subr.mxu0 0.0
        %760 = vmatpush1.msra.mxu0 0.0
        %761 = vmatprep.subr.mxu0 0.0
        %762 = vmatpush1.msra.mxu0 0.0
        %763 = vmatprep.subr.mxu0 0.0
        %764 = vmatpush1.msra.mxu0 0.0
        %765 = vmatprep.subr.mxu0 0.0
        %766 = vmatpush1.msra.mxu0 0.0
        %767 = vmatprep.subr.mxu0 0.0
        %768 = vmatpush1.msra.mxu0 0.0
        %769 = vmatprep.subr.mxu0 0.0
        %770 = vmatpush1.msra.mxu0 0.0
        %771 = vmatprep.subr.mxu0 0.0
        %772 = vmatpush1.msra.mxu0 0.0
        %773 = vmatprep.subr.mxu0 0.0
        %774 = vmatpush1.msra.mxu0 0.0
        %775 = vmatprep.subr.mxu0 0.0
        %776 = vmatpush1.msra.mxu0 0.0
        %777 = vmatprep.subr.mxu0 0.0
        %778 = vmatpush1.msra.mxu0 0.0
        %779 = vmatprep.subr.mxu0 0.0
        %780 = vmatpush1.msra.mxu0 0.0
        %781 = vmatprep.subr.mxu0 0.0
        %782 = vmatpush1.msra.mxu0 0.0
        %783 = vmatprep.subr.mxu0 0.0
        %784 = vmatpush1.msra.mxu0 0.0
        %785 = vmatprep.subr.mxu0 0.0
        %786 = vmatpush1.msra.mxu0 0.0
        %787 = vmatprep.subr.mxu0 0.0
        %788 = vmatpush1.msra.mxu0 0.0
        %789 = vmatprep.subr.mxu0 0.0
        %790 = vmatpush1.msra.mxu0 0.0
        %791 = vmatprep.subr.mxu0 0.0
        %792 = vmatpush1.msra.mxu0 0.0
        %793 = vmatprep.subr.mxu0 0.0
        %794 = vmatpush1.msra.mxu0 0.0
        %795 = vmatprep.subr.mxu0 0.0
        %796 = vmatpush1.msra.mxu0 0.0
        %797 = vmatprep.subr.mxu0 0.0
        %798 = vmatpush1.msra.mxu0 0.0
        %799 = vmatprep.subr.mxu0 0.0
        %800 = vmatpush1.msra.mxu0 0.0
        %801 = vmatprep.subr.mxu0 0.0
        %802 = vmatpush1.msra.mxu0 0.0
        %803 = vmatprep.subr.mxu0 0.0
        %804 = vmatpush1.msra.mxu0 0.0
        %805 = vmatprep.subr.mxu0 0.0
        %806 = vmatpush1.msra.mxu0 0.0
        %807 = vmatprep.subr.mxu0 0.0
        %808 = vmatpush1.msra.mxu0 0.0
        %809 = vmatprep.subr.mxu0 0.0
        %810 = vmatpush1.msra.mxu0 0.0
        %811 = vmatprep.mubr.f32.mxu0 0.0
        %812 = vmatmul.mubr.f32.gmra.mrb[0].mxu0 %v258
        %v813 = vpop.f32.mrb[0].mxu0
        %v814 = vadd.f32 %v200, %v813
        %v815 = vpop.f32.mrb[0].mxu0
        %v816 = vadd.f32 %v200, %v815
        %817 = vmatprep.mubr.f32.mxu0 0.0
        %818 = vmatmul.mubr.f32.gmra.mrb[0].mxu0 %v261
        %v819 = vpop.f32.mrb[0].mxu0
        %v820 = vadd.f32 %v205, %v819
        %v821 = vpop.f32.mrb[0].mxu0
        %v822 = vadd.f32 %v205, %v821
        %823 = vdwg.mxu0
        %824 = vmatprep.subr.mxu0 %v290
        %825 = vmatpush1.msra.mxu0 %v288
        %826 = vmatprep.subr.mxu0 0.0
        %827 = vmatpush1.msra.mxu0 0.0
        %828 = vmatprep.subr.mxu0 0.0
        %829 = vmatpush1.msra.mxu0 0.0
        %830 = vmatprep.subr.mxu0 0.0
        %831 = vmatpush1.msra.mxu0 0.0
        %832 = vmatprep.subr.mxu0 0.0
        %833 = vmatpush1.msra.mxu0 0.0
        %834 = vmatprep.subr.mxu0 0.0
        %835 = vmatpush1.msra.mxu0 0.0
        %836 = vmatprep.subr.mxu0 0.0
        %837 = vmatpush1.msra.mxu0 0.0
        %838 = vmatprep.subr.mxu0 0.0
        %839 = vmatpush1.msra.mxu0 0.0
        %840 = vmatprep.subr.mxu0 0.0
        %841 = vmatpush1.msra.mxu0 0.0
        %842 = vmatprep.subr.mxu0 0.0
        %843 = vmatpush1.msra.mxu0 0.0
        %844 = vmatprep.subr.mxu0 0.0
        %845 = vmatpush1.msra.mxu0 0.0
        %846 = vmatprep.subr.mxu0 0.0
        %847 = vmatpush1.msra.mxu0 0.0
        %848 = vmatprep.subr.mxu0 0.0
        %849 = vmatpush1.msra.mxu0 0.0
        %850 = vmatprep.subr.mxu0 0.0
        %851 = vmatpush1.msra.mxu0 0.0
        %852 = vmatprep.subr.mxu0 0.0
        %853 = vmatpush1.msra.mxu0 0.0
        %854 = vmatprep.subr.mxu0 0.0
        %855 = vmatpush1.msra.mxu0 0.0
        %856 = vmatprep.subr.mxu0 0.0
        %857 = vmatpush1.msra.mxu0 0.0
        %858 = vmatprep.subr.mxu0 0.0
        %859 = vmatpush1.msra.mxu0 0.0
        %860 = vmatprep.subr.mxu0 0.0
        %861 = vmatpush1.msra.mxu0 0.0
        %862 = vmatprep.subr.mxu0 0.0
        %863 = vmatpush1.msra.mxu0 0.0
        %864 = vmatprep.subr.mxu0 0.0
        %865 = vmatpush1.msra.mxu0 0.0
        %866 = vmatprep.subr.mxu0 0.0
        %867 = vmatpush1.msra.mxu0 0.0
        %868 = vmatprep.subr.mxu0 0.0
        %869 = vmatpush1.msra.mxu0 0.0
        %870 = vmatprep.subr.mxu0 0.0
        %871 = vmatpush1.msra.mxu0 0.0
        %872 = vmatprep.subr.mxu0 0.0
        %873 = vmatpush1.msra.mxu0 0.0
        %874 = vmatprep.subr.mxu0 0.0
        %875 = vmatpush1.msra.mxu0 0.0
        %876 = vmatprep.subr.mxu0 0.0
        %877 = vmatpush1.msra.mxu0 0.0
        %878 = vmatprep.subr.mxu0 0.0
        %879 = vmatpush1.msra.mxu0 0.0
        %880 = vmatprep.subr.mxu0 0.0
        %881 = vmatpush1.msra.mxu0 0.0
        %882 = vmatprep.subr.mxu0 0.0
        %883 = vmatpush1.msra.mxu0 0.0
        %884 = vmatprep.subr.mxu0 0.0
        %885 = vmatpush1.msra.mxu0 0.0
        %886 = vmatprep.subr.mxu0 0.0
        %887 = vmatpush1.msra.mxu0 0.0
        %888 = vmatprep.mubr.f32.mxu0 0.0
        %889 = vmatmul.mubr.f32.gmra.mrb[0].mxu0 %v258
        %v890 = vpop.f32.mrb[0].mxu0
        %v891 = vadd.f32 %v200, %v890
        %v892 = vpop.f32.mrb[0].mxu0
        %v893 = vadd.f32 %v200, %v892
        %894 = vmatprep.mubr.f32.mxu0 0.0
        %895 = vmatmul.mubr.f32.gmra.mrb[0].mxu0 %v261
        %v896 = vpop.f32.mrb[0].mxu0
        %v897 = vadd.f32 %v205, %v896
        %v898 = vpop.f32.mrb[0].mxu0
        %v899 = vadd.f32 %v205, %v898
        %900 = vdwg.mxu0
        %901 = vmatprep.subr.mxu0 %v294
        %902 = vmatpush1.msra.mxu0 %v292
        %903 = vmatprep.subr.mxu0 0.0
        %904 = vmatpush1.msra.mxu0 0.0
        %905 = vmatprep.subr.mxu0 0.0
        %906 = vmatpush1.msra.mxu0 0.0
        %907 = vmatprep.subr.mxu0 0.0
        %908 = vmatpush1.msra.mxu0 0.0
        %909 = vmatprep.subr.mxu0 0.0
        %910 = vmatpush1.msra.mxu0 0.0
        %911 = vmatprep.subr.mxu0 0.0
        %912 = vmatpush1.msra.mxu0 0.0
        %913 = vmatprep.subr.mxu0 0.0
        %914 = vmatpush1.msra.mxu0 0.0
        %915 = vmatprep.subr.mxu0 0.0
        %916 = vmatpush1.msra.mxu0 0.0
        %917 = vmatprep.subr.mxu0 0.0
        %918 = vmatpush1.msra.mxu0 0.0
        %919 = vmatprep.subr.mxu0 0.0
        %920 = vmatpush1.msra.mxu0 0.0
        %921 = vmatprep.subr.mxu0 0.0
        %922 = vmatpush1.msra.mxu0 0.0
        %923 = vmatprep.subr.mxu0 0.0
        %924 = vmatpush1.msra.mxu0 0.0
        %925 = vmatprep.subr.mxu0 0.0
        %926 = vmatpush1.msra.mxu0 0.0
        %927 = vmatprep.subr.mxu0 0.0
        %928 = vmatpush1.msra.mxu0 0.0
        %929 = vmatprep.subr.mxu0 0.0
        %930 = vmatpush1.msra.mxu0 0.0
        %931 = vmatprep.subr.mxu0 0.0
        %932 = vmatpush1.msra.mxu0 0.0
        %933 = vmatprep.subr.mxu0 0.0
        %934 = vmatpush1.msra.mxu0 0.0
        %935 = vmatprep.subr.mxu0 0.0
        %936 = vmatpush1.msra.mxu0 0.0
        %937 = vmatprep.subr.mxu0 0.0
        %938 = vmatpush1.msra.mxu0 0.0
        %939 = vmatprep.subr.mxu0 0.0
        %940 = vmatpush1.msra.mxu0 0.0
        %941 = vmatprep.subr.mxu0 0.0
        %942 = vmatpush1.msra.mxu0 0.0
        %943 = vmatprep.subr.mxu0 0.0
        %944 = vmatpush1.msra.mxu0 0.0
        %945 = vmatprep.subr.mxu0 0.0
        %946 = vmatpush1.msra.mxu0 0.0
        %947 = vmatprep.subr.mxu0 0.0
        %948 = vmatpush1.msra.mxu0 0.0
        %949 = vmatprep.subr.mxu0 0.0
        %950 = vmatpush1.msra.mxu0 0.0
        %951 = vmatprep.subr.mxu0 0.0
        %952 = vmatpush1.msra.mxu0 0.0
        %953 = vmatprep.subr.mxu0 0.0
        %954 = vmatpush1.msra.mxu0 0.0
        %955 = vmatprep.subr.mxu0 0.0
        %956 = vmatpush1.msra.mxu0 0.0
        %957 = vmatprep.subr.mxu0 0.0
        %958 = vmatpush1.msra.mxu0 0.0
        %959 = vmatprep.subr.mxu0 0.0
        %960 = vmatpush1.msra.mxu0 0.0
        %961 = vmatprep.subr.mxu0 0.0
        %962 = vmatpush1.msra.mxu0 0.0
        %963 = vmatprep.subr.mxu0 0.0
        %964 = vmatpush1.msra.mxu0 0.0
        %965 = vmatprep.mubr.f32.mxu0 0.0
        %966 = vmatmul.mubr.f32.gmra.mrb[0].mxu0 %v258
        %v967 = vpop.f32.mrb[0].mxu0
        %v968 = vadd.f32 %v200, %v967
        %v969 = vpop.f32.mrb[0].mxu0
        %v970 = vadd.f32 %v200, %v969
        %971 = vmatprep.mubr.f32.mxu0 0.0
        %972 = vmatmul.mubr.f32.gmra.mrb[0].mxu0 %v261
        %v973 = vpop.f32.mrb[0].mxu0
        %v974 = vadd.f32 %v205, %v973
        %v975 = vpop.f32.mrb[0].mxu0
        %v976 = vadd.f32 %v205, %v975
        %977 = vdwg.mxu0
        %978 = vmatprep.subr.mxu0 %v298
        %979 = vmatpush1.msra.mxu0 %v296
        %980 = vmatprep.subr.mxu0 0.0
        %981 = vmatpush1.msra.mxu0 0.0
        %982 = vmatprep.subr.mxu0 0.0
        %983 = vmatpush1.msra.mxu0 0.0
        %984 = vmatprep.subr.mxu0 0.0
        %985 = vmatpush1.msra.mxu0 0.0
        %986 = vmatprep.subr.mxu0 0.0
        %987 = vmatpush1.msra.mxu0 0.0
        %988 = vmatprep.subr.mxu0 0.0
        %989 = vmatpush1.msra.mxu0 0.0
        %990 = vmatprep.subr.mxu0 0.0
        %991 = vmatpush1.msra.mxu0 0.0
        %992 = vmatprep.subr.mxu0 0.0
        %993 = vmatpush1.msra.mxu0 0.0
        %994 = vmatprep.subr.mxu0 0.0
        %995 = vmatpush1.msra.mxu0 0.0
        %996 = vmatprep.subr.mxu0 0.0
        %997 = vmatpush1.msra.mxu0 0.0
        %998 = vmatprep.subr.mxu0 0.0
        %999 = vmatpush1.msra.mxu0 0.0
        %1000 = vmatprep.subr.mxu0 0.0
        %1001 = vmatpush1.msra.mxu0 0.0
        %1002 = vmatprep.subr.mxu0 0.0
        %1003 = vmatpush1.msra.mxu0 0.0
        %1004 = vmatprep.subr.mxu0 0.0
        %1005 = vmatpush1.msra.mxu0 0.0
        %1006 = vmatprep.subr.mxu0 0.0
        %1007 = vmatpush1.msra.mxu0 0.0
        %1008 = vmatprep.subr.mxu0 0.0
        %1009 = vmatpush1.msra.mxu0 0.0
        %1010 = vmatprep.subr.mxu0 0.0
        %1011 = vmatpush1.msra.mxu0 0.0
        %1012 = vmatprep.subr.mxu0 0.0
        %1013 = vmatpush1.msra.mxu0 0.0
        %1014 = vmatprep.subr.mxu0 0.0
        %1015 = vmatpush1.msra.mxu0 0.0
        %1016 = vmatprep.subr.mxu0 0.0
        %1017 = vmatpush1.msra.mxu0 0.0
        %1018 = vmatprep.subr.mxu0 0.0
        %1019 = vmatpush1.msra.mxu0 0.0
        %1020 = vmatprep.subr.mxu0 0.0
        %1021 = vmatpush1.msra.mxu0 0.0
        %1022 = vmatprep.subr.mxu0 0.0
        %1023 = vmatpush1.msra.mxu0 0.0
        %1024 = vmatprep.subr.mxu0 0.0
        %1025 = vmatpush1.msra.mxu0 0.0
        %1026 = vmatprep.subr.mxu0 0.0
        %1027 = vmatpush1.msra.mxu0 0.0
        %1028 = vmatprep.subr.mxu0 0.0
        %1029 = vmatpush1.msra.mxu0 0.0
        %1030 = vmatprep.subr.mxu0 0.0
        %1031 = vmatpush1.msra.mxu0 0.0
        %1032 = vmatprep.subr.mxu0 0.0
        %1033 = vmatpush1.msra.mxu0 0.0
        %1034 = vmatprep.subr.mxu0 0.0
        %1035 = vmatpush1.msra.mxu0 0.0
        %1036 = vmatprep.subr.mxu0 0.0
        %1037 = vmatpush1.msra.mxu0 0.0
        %1038 = vmatprep.subr.mxu0 0.0
        %1039 = vmatpush1.msra.mxu0 0.0
        %1040 = vmatprep.subr.mxu0 0.0
        %1041 = vmatpush1.msra.mxu0 0.0
        %1042 = vmatprep.mubr.f32.mxu0 0.0
        %1043 = vmatmul.mubr.f32.gmra.mrb[0].mxu0 %v258
        %v1044 = vpop.f32.mrb[0].mxu0
        %v1045 = vadd.f32 %v200, %v1044
        %v1046 = vpop.f32.mrb[0].mxu0
        %v1047 = vadd.f32 %v200, %v1046
        %1048 = vmatprep.mubr.f32.mxu0 0.0
        %1049 = vmatmul.mubr.f32.gmra.mrb[0].mxu0 %v261
        %v1050 = vpop.f32.mrb[0].mxu0
        %v1051 = vadd.f32 %v205, %v1050
        %v1052 = vpop.f32.mrb[0].mxu0
        %v1053 = vadd.f32 %v205, %v1052
        %1054 = vdwg.mxu0
        %1055 = vmatprep.subr.mxu0 %v302
        %1056 = vmatpush1.msra.mxu0 %v300
        %1057 = vmatprep.subr.mxu0 0.0
        %1058 = vmatpush1.msra.mxu0 0.0
        %1059 = vmatprep.subr.mxu0 0.0
        %1060 = vmatpush1.msra.mxu0 0.0
        %1061 = vmatprep.subr.mxu0 0.0
        %1062 = vmatpush1.msra.mxu0 0.0
        %1063 = vmatprep.subr.mxu0 0.0
        %1064 = vmatpush1.msra.mxu0 0.0
        %1065 = vmatprep.subr.mxu0 0.0
        %1066 = vmatpush1.msra.mxu0 0.0
        %1067 = vmatprep.subr.mxu0 0.0
        %1068 = vmatpush1.msra.mxu0 0.0
        %1069 = vmatprep.subr.mxu0 0.0
        %1070 = vmatpush1.msra.mxu0 0.0
        %1071 = vmatprep.subr.mxu0 0.0
        %1072 = vmatpush1.msra.mxu0 0.0
        %1073 = vmatprep.subr.mxu0 0.0
        %1074 = vmatpush1.msra.mxu0 0.0
        %1075 = vmatprep.subr.mxu0 0.0
        %1076 = vmatpush1.msra.mxu0 0.0
        %1077 = vmatprep.subr.mxu0 0.0
        %1078 = vmatpush1.msra.mxu0 0.0
        %1079 = vmatprep.subr.mxu0 0.0
        %1080 = vmatpush1.msra.mxu0 0.0
        %1081 = vmatprep.subr.mxu0 0.0
        %1082 = vmatpush1.msra.mxu0 0.0
        %1083 = vmatprep.subr.mxu0 0.0
        %1084 = vmatpush1.msra.mxu0 0.0
        %1085 = vmatprep.subr.mxu0 0.0
        %1086 = vmatpush1.msra.mxu0 0.0
        %1087 = vmatprep.subr.mxu0 0.0
        %1088 = vmatpush1.msra.mxu0 0.0
        %1089 = vmatprep.subr.mxu0 0.0
        %1090 = vmatpush1.msra.mxu0 0.0
        %1091 = vmatprep.subr.mxu0 0.0
        %1092 = vmatpush1.msra.mxu0 0.0
        %1093 = vmatprep.subr.mxu0 0.0
        %1094 = vmatpush1.msra.mxu0 0.0
        %1095 = vmatprep.subr.mxu0 0.0
        %1096 = vmatpush1.msra.mxu0 0.0
        %1097 = vmatprep.subr.mxu0 0.0
        %1098 = vmatpush1.msra.mxu0 0.0
        %1099 = vmatprep.subr.mxu0 0.0
        %1100 = vmatpush1.msra.mxu0 0.0
        %1101 = vmatprep.subr.mxu0 0.0
        %1102 = vmatpush1.msra.mxu0 0.0
        %1103 = vmatprep.subr.mxu0 0.0
        %1104 = vmatpush1.msra.mxu0 0.0
        %1105 = vmatprep.subr.mxu0 0.0
        %1106 = vmatpush1.msra.mxu0 0.0
        %1107 = vmatprep.subr.mxu0 0.0
        %1108 = vmatpush1.msra.mxu0 0.0
        %1109 = vmatprep.subr.mxu0 0.0
        %1110 = vmatpush1.msra.mxu0 0.0
        %1111 = vmatprep.subr.mxu0 0.0
        %1112 = vmatpush1.msra.mxu0 0.0
        %1113 = vmatprep.subr.mxu0 0.0
        %1114 = vmatpush1.msra.mxu0 0.0
        %1115 = vmatprep.subr.mxu0 0.0
        %1116 = vmatpush1.msra.mxu0 0.0
        %1117 = vmatprep.subr.mxu0 0.0
        %1118 = vmatpush1.msra.mxu0 0.0
        %1119 = vmatprep.mubr.f32.mxu0 0.0
        %1120 = vmatmul.mubr.f32.gmra.mrb[0].mxu0 %v258
        %v1121 = vpop.f32.mrb[0].mxu0
        %v1122 = vadd.f32 %v200, %v1121
        %v1123 = vpop.f32.mrb[0].mxu0
        %v1124 = vadd.f32 %v200, %v1123
        %1125 = vmatprep.mubr.f32.mxu0 0.0
        %1126 = vmatmul.mubr.f32.gmra.mrb[0].mxu0 %v261
        %v1127 = vpop.f32.mrb[0].mxu0
        %v1128 = vadd.f32 %v205, %v1127
        %v1129 = vpop.f32.mrb[0].mxu0
        %v1130 = vadd.f32 %v205, %v1129
        %1131 = vdwg.mxu0
        %1132 = vmatprep.subr.mxu0 %v306
        %1133 = vmatpush1.msra.mxu0 %v304
        %1134 = vmatprep.subr.mxu0 0.0
        %1135 = vmatpush1.msra.mxu0 0.0
        %1136 = vmatprep.subr.mxu0 0.0
        %1137 = vmatpush1.msra.mxu0 0.0
        %1138 = vmatprep.subr.mxu0 0.0
        %1139 = vmatpush1.msra.mxu0 0.0
        %1140 = vmatprep.subr.mxu0 0.0
        %1141 = vmatpush1.msra.mxu0 0.0
        %1142 = vmatprep.subr.mxu0 0.0
        %1143 = vmatpush1.msra.mxu0 0.0
        %1144 = vmatprep.subr.mxu0 0.0
        %1145 = vmatpush1.msra.mxu0 0.0
        %1146 = vmatprep.subr.mxu0 0.0
        %1147 = vmatpush1.msra.mxu0 0.0
        %1148 = vmatprep.subr.mxu0 0.0
        %1149 = vmatpush1.msra.mxu0 0.0
        %1150 = vmatprep.subr.mxu0 0.0
        %1151 = vmatpush1.msra.mxu0 0.0
        %1152 = vmatprep.subr.mxu0 0.0
        %1153 = vmatpush1.msra.mxu0 0.0
        %1154 = vmatprep.subr.mxu0 0.0
        %1155 = vmatpush1.msra.mxu0 0.0
        %1156 = vmatprep.subr.mxu0 0.0
        %1157 = vmatpush1.msra.mxu0 0.0
        %1158 = vmatprep.subr.mxu0 0.0
        %1159 = vmatpush1.msra.mxu0 0.0
        %1160 = vmatprep.subr.mxu0 0.0
        %1161 = vmatpush1.msra.mxu0 0.0
        %1162 = vmatprep.subr.mxu0 0.0
        %1163 = vmatpush1.msra.mxu0 0.0
        %1164 = vmatprep.subr.mxu0 0.0
        %1165 = vmatpush1.msra.mxu0 0.0
        %1166 = vmatprep.subr.mxu0 0.0
        %1167 = vmatpush1.msra.mxu0 0.0
        %1168 = vmatprep.subr.mxu0 0.0
        %1169 = vmatpush1.msra.mxu0 0.0
        %1170 = vmatprep.subr.mxu0 0.0
        %1171 = vmatpush1.msra.mxu0 0.0
        %1172 = vmatprep.subr.mxu0 0.0
        %1173 = vmatpush1.msra.mxu0 0.0
        %1174 = vmatprep.subr.mxu0 0.0
        %1175 = vmatpush1.msra.mxu0 0.0
        %1176 = vmatprep.subr.mxu0 0.0
        %1177 = vmatpush1.msra.mxu0 0.0
        %1178 = vmatprep.subr.mxu0 0.0
        %1179 = vmatpush1.msra.mxu0 0.0
        %1180 = vmatprep.subr.mxu0 0.0
        %1181 = vmatpush1.msra.mxu0 0.0
        %1182 = vmatprep.subr.mxu0 0.0
        %1183 = vmatpush1.msra.mxu0 0.0
        %1184 = vmatprep.subr.mxu0 0.0
        %1185 = vmatpush1.msra.mxu0 0.0
        %1186 = vmatprep.subr.mxu0 0.0
        %1187 = vmatpush1.msra.mxu0 0.0
        %1188 = vmatprep.subr.mxu0 0.0
        %1189 = vmatpush1.msra.mxu0 0.0
        %1190 = vmatprep.subr.mxu0 0.0
        %1191 = vmatpush1.msra.mxu0 0.0
        %1192 = vmatprep.subr.mxu0 0.0
        %1193 = vmatpush1.msra.mxu0 0.0
        %1194 = vmatprep.subr.mxu0 0.0
        %1195 = vmatpush1.msra.mxu0 0.0
        %1196 = vmatprep.mubr.f32.mxu0 0.0
        %1197 = vmatmul.mubr.f32.gmra.mrb[0].mxu0 %v258
        %v1198 = vpop.f32.mrb[0].mxu0
        %v1199 = vadd.f32 %v200, %v1198
        %v1200 = vpop.f32.mrb[0].mxu0
        %v1201 = vadd.f32 %v200, %v1200
        %1202 = vmatprep.mubr.f32.mxu0 0.0
        %1203 = vmatmul.mubr.f32.gmra.mrb[0].mxu0 %v261
        %v1204 = vpop.f32.mrb[0].mxu0
        %v1205 = vadd.f32 %v205, %v1204
        %v1206 = vpop.f32.mrb[0].mxu0
        %v1207 = vadd.f32 %v205, %v1206
        %1208 = vdwg.mxu0
        %1209 = vmatprep.subr.mxu0 %v310
        %1210 = vmatpush1.msra.mxu0 %v308
        %1211 = vmatprep.subr.mxu0 0.0
        %1212 = vmatpush1.msra.mxu0 0.0
        %1213 = vmatprep.subr.mxu0 0.0
        %1214 = vmatpush1.msra.mxu0 0.0
        %1215 = vmatprep.subr.mxu0 0.0
        %1216 = vmatpush1.msra.mxu0 0.0
        %1217 = vmatprep.subr.mxu0 0.0
        %1218 = vmatpush1.msra.mxu0 0.0
        %1219 = vmatprep.subr.mxu0 0.0
        %1220 = vmatpush1.msra.mxu0 0.0
        %1221 = vmatprep.subr.mxu0 0.0
        %1222 = vmatpush1.msra.mxu0 0.0
        %1223 = vmatprep.subr.mxu0 0.0
        %1224 = vmatpush1.msra.mxu0 0.0
        %1225 = vmatprep.subr.mxu0 0.0
        %1226 = vmatpush1.msra.mxu0 0.0
        %1227 = vmatprep.subr.mxu0 0.0
        %1228 = vmatpush1.msra.mxu0 0.0
        %1229 = vmatprep.subr.mxu0 0.0
        %1230 = vmatpush1.msra.mxu0 0.0
        %1231 = vmatprep.subr.mxu0 0.0
        %1232 = vmatpush1.msra.mxu0 0.0
        %1233 = vmatprep.subr.mxu0 0.0
        %1234 = vmatpush1.msra.mxu0 0.0
        %1235 = vmatprep.subr.mxu0 0.0
        %1236 = vmatpush1.msra.mxu0 0.0
        %1237 = vmatprep.subr.mxu0 0.0
        %1238 = vmatpush1.msra.mxu0 0.0
        %1239 = vmatprep.subr.mxu0 0.0
        %1240 = vmatpush1.msra.mxu0 0.0
        %1241 = vmatprep.subr.mxu0 0.0
        %1242 = vmatpush1.msra.mxu0 0.0
        %1243 = vmatprep.subr.mxu0 0.0
        %1244 = vmatpush1.msra.mxu0 0.0
        %1245 = vmatprep.subr.mxu0 0.0
        %1246 = vmatpush1.msra.mxu0 0.0
        %1247 = vmatprep.subr.mxu0 0.0
        %1248 = vmatpush1.msra.mxu0 0.0
        %1249 = vmatprep.subr.mxu0 0.0
        %1250 = vmatpush1.msra.mxu0 0.0
        %1251 = vmatprep.subr.mxu0 0.0
        %1252 = vmatpush1.msra.mxu0 0.0
        %1253 = vmatprep.subr.mxu0 0.0
        %1254 = vmatpush1.msra.mxu0 0.0
        %1255 = vmatprep.subr.mxu0 0.0
        %1256 = vmatpush1.msra.mxu0 0.0
        %1257 = vmatprep.subr.mxu0 0.0
        %1258 = vmatpush1.msra.mxu0 0.0
        %1259 = vmatprep.subr.mxu0 0.0
        %1260 = vmatpush1.msra.mxu0 0.0
        %1261 = vmatprep.subr.mxu0 0.0
        %1262 = vmatpush1.msra.mxu0 0.0
        %1263 = vmatprep.subr.mxu0 0.0
        %1264 = vmatpush1.msra.mxu0 0.0
        %1265 = vmatprep.subr.mxu0 0.0
        %1266 = vmatpush1.msra.mxu0 0.0
        %1267 = vmatprep.subr.mxu0 0.0
        %1268 = vmatpush1.msra.mxu0 0.0
        %1269 = vmatprep.subr.mxu0 0.0
        %1270 = vmatpush1.msra.mxu0 0.0
        %1271 = vmatprep.subr.mxu0 0.0
        %1272 = vmatpush1.msra.mxu0 0.0
        %1273 = vmatprep.mubr.f32.mxu0 0.0
        %1274 = vmatmul.mubr.f32.gmra.mrb[0].mxu0 %v258
        %v1275 = vpop.f32.mrb[0].mxu0
        %v1276 = vadd.f32 %v200, %v1275
        %v1277 = vpop.f32.mrb[0].mxu0
        %v1278 = vadd.f32 %v200, %v1277
        %1279 = vmatprep.mubr.f32.mxu0 0.0
        %1280 = vmatmul.mubr.f32.gmra.mrb[0].mxu0 %v261
        %v1281 = vpop.f32.mrb[0].mxu0
        %v1282 = vadd.f32 %v205, %v1281
        %v1283 = vpop.f32.mrb[0].mxu0
        %v1284 = vadd.f32 %v205, %v1283
        %1285 = vdwg.mxu0
        %1286 = vmatprep.subr.mxu0 %v314
        %1287 = vmatpush1.msra.mxu0 %v312
        %1288 = vmatprep.subr.mxu0 0.0
        %1289 = vmatpush1.msra.mxu0 0.0
        %1290 = vmatprep.subr.mxu0 0.0
        %1291 = vmatpush1.msra.mxu0 0.0
        %1292 = vmatprep.subr.mxu0 0.0
        %1293 = vmatpush1.msra.mxu0 0.0
        %1294 = vmatprep.subr.mxu0 0.0
        %1295 = vmatpush1.msra.mxu0 0.0
        %1296 = vmatprep.subr.mxu0 0.0
        %1297 = vmatpush1.msra.mxu0 0.0
        %1298 = vmatprep.subr.mxu0 0.0
        %1299 = vmatpush1.msra.mxu0 0.0
        %1300 = vmatprep.subr.mxu0 0.0
        %1301 = vmatpush1.msra.mxu0 0.0
        %1302 = vmatprep.subr.mxu0 0.0
        %1303 = vmatpush1.msra.mxu0 0.0
        %1304 = vmatprep.subr.mxu0 0.0
        %1305 = vmatpush1.msra.mxu0 0.0
        %1306 = vmatprep.subr.mxu0 0.0
        %1307 = vmatpush1.msra.mxu0 0.0
        %1308 = vmatprep.subr.mxu0 0.0
        %1309 = vmatpush1.msra.mxu0 0.0
        %1310 = vmatprep.subr.mxu0 0.0
        %1311 = vmatpush1.msra.mxu0 0.0
        %1312 = vmatprep.subr.mxu0 0.0
        %1313 = vmatpush1.msra.mxu0 0.0
        %1314 = vmatprep.subr.mxu0 0.0
        %1315 = vmatpush1.msra.mxu0 0.0
        %1316 = vmatprep.subr.mxu0 0.0
        %1317 = vmatpush1.msra.mxu0 0.0
        %1318 = vmatprep.subr.mxu0 0.0
        %1319 = vmatpush1.msra.mxu0 0.0
        %1320 = vmatprep.subr.mxu0 0.0
        %1321 = vmatpush1.msra.mxu0 0.0
        %1322 = vmatprep.subr.mxu0 0.0
        %1323 = vmatpush1.msra.mxu0 0.0
        %1324 = vmatprep.subr.mxu0 0.0
        %1325 = vmatpush1.msra.mxu0 0.0
        %1326 = vmatprep.subr.mxu0 0.0
        %1327 = vmatpush1.msra.mxu0 0.0
        %1328 = vmatprep.subr.mxu0 0.0
        %1329 = vmatpush1.msra.mxu0 0.0
        %1330 = vmatprep.subr.mxu0 0.0
        %1331 = vmatpush1.msra.mxu0 0.0
        %1332 = vmatprep.subr.mxu0 0.0
        %1333 = vmatpush1.msra.mxu0 0.0
        %1334 = vmatprep.subr.mxu0 0.0
        %1335 = vmatpush1.msra.mxu0 0.0
        %1336 = vmatprep.subr.mxu0 0.0
        %1337 = vmatpush1.msra.mxu0 0.0
        %1338 = vmatprep.subr.mxu0 0.0
        %1339 = vmatpush1.msra.mxu0 0.0
        %1340 = vmatprep.subr.mxu0 0.0
        %1341 = vmatpush1.msra.mxu0 0.0
        %1342 = vmatprep.subr.mxu0 0.0
        %1343 = vmatpush1.msra.mxu0 0.0
        %1344 = vmatprep.subr.mxu0 0.0
        %1345 = vmatpush1.msra.mxu0 0.0
        %1346 = vmatprep.subr.mxu0 0.0
        %1347 = vmatpush1.msra.mxu0 0.0
        %1348 = vmatprep.subr.mxu0 0.0
        %1349 = vmatpush1.msra.mxu0 0.0
        %1350 = vmatprep.mubr.f32.mxu0 0.0
        %1351 = vmatmul.mubr.f32.gmra.mrb[0].mxu0 %v258
        %v1352 = vpop.f32.mrb[0].mxu0
        %v1353 = vadd.f32 %v200, %v1352
        %v1354 = vpop.f32.mrb[0].mxu0
        %v1355 = vadd.f32 %v200, %v1354
        %1356 = vmatprep.mubr.f32.mxu0 0.0
        %1357 = vmatmul.mubr.f32.gmra.mrb[0].mxu0 %v261
        %v1358 = vpop.f32.mrb[0].mxu0
        %v1359 = vadd.f32 %v205, %v1358
        %v1360 = vpop.f32.mrb[0].mxu0
        %v1361 = vadd.f32 %v205, %v1360
        %1362 = vdwg.mxu0
        %1363 = vmatprep.subr.mxu0 %v318
        %1364 = vmatpush1.msra.mxu0 %v316
        %1365 = vmatprep.subr.mxu0 0.0
        %1366 = vmatpush1.msra.mxu0 0.0
        %1367 = vmatprep.subr.mxu0 0.0
        %1368 = vmatpush1.msra.mxu0 0.0
        %1369 = vmatprep.subr.mxu0 0.0
        %1370 = vmatpush1.msra.mxu0 0.0
        %1371 = vmatprep.subr.mxu0 0.0
        %1372 = vmatpush1.msra.mxu0 0.0
        %1373 = vmatprep.subr.mxu0 0.0
        %1374 = vmatpush1.msra.mxu0 0.0
        %1375 = vmatprep.subr.mxu0 0.0
        %1376 = vmatpush1.msra.mxu0 0.0
        %1377 = vmatprep.subr.mxu0 0.0
        %1378 = vmatpush1.msra.mxu0 0.0
        %1379 = vmatprep.subr.mxu0 0.0
        %1380 = vmatpush1.msra.mxu0 0.0
        %1381 = vmatprep.subr.mxu0 0.0
        %1382 = vmatpush1.msra.mxu0 0.0
        %1383 = vmatprep.subr.mxu0 0.0
        %1384 = vmatpush1.msra.mxu0 0.0
        %1385 = vmatprep.subr.mxu0 0.0
        %1386 = vmatpush1.msra.mxu0 0.0
        %1387 = vmatprep.subr.mxu0 0.0
        %1388 = vmatpush1.msra.mxu0 0.0
        %1389 = vmatprep.subr.mxu0 0.0
        %1390 = vmatpush1.msra.mxu0 0.0
        %1391 = vmatprep.subr.mxu0 0.0
        %1392 = vmatpush1.msra.mxu0 0.0
        %1393 = vmatprep.subr.mxu0 0.0
        %1394 = vmatpush1.msra.mxu0 0.0
        %1395 = vmatprep.subr.mxu0 0.0
        %1396 = vmatpush1.msra.mxu0 0.0
        %1397 = vmatprep.subr.mxu0 0.0
        %1398 = vmatpush1.msra.mxu0 0.0
        %1399 = vmatprep.subr.mxu0 0.0
        %1400 = vmatpush1.msra.mxu0 0.0
        %1401 = vmatprep.subr.mxu0 0.0
        %1402 = vmatpush1.msra.mxu0 0.0
        %1403 = vmatprep.subr.mxu0 0.0
        %1404 = vmatpush1.msra.mxu0 0.0
        %1405 = vmatprep.subr.mxu0 0.0
        %1406 = vmatpush1.msra.mxu0 0.0
        %1407 = vmatprep.subr.mxu0 0.0
        %1408 = vmatpush1.msra.mxu0 0.0
        %1409 = vmatprep.subr.mxu0 0.0
        %1410 = vmatpush1.msra.mxu0 0.0
        %1411 = vmatprep.subr.mxu0 0.0
        %1412 = vmatpush1.msra.mxu0 0.0
        %1413 = vmatprep.subr.mxu0 0.0
        %1414 = vmatpush1.msra.mxu0 0.0
        %1415 = vmatprep.subr.mxu0 0.0
        %1416 = vmatpush1.msra.mxu0 0.0
        %1417 = vmatprep.subr.mxu0 0.0
        %1418 = vmatpush1.msra.mxu0 0.0
        %1419 = vmatprep.subr.mxu0 0.0
        %1420 = vmatpush1.msra.mxu0 0.0
        %1421 = vmatprep.subr.mxu0 0.0
        %1422 = vmatpush1.msra.mxu0 0.0
        %1423 = vmatprep.subr.mxu0 0.0
        %1424 = vmatpush1.msra.mxu0 0.0
        %1425 = vmatprep.subr.mxu0 0.0
        %1426 = vmatpush1.msra.mxu0 0.0
        %1427 = vmatprep.mubr.f32.mxu0 0.0
        %1428 = vmatmul.mubr.f32.gmra.mrb[0].mxu0 %v258
        %v1429 = vpop.f32.mrb[0].mxu0
        %v1430 = vadd.f32 %v200, %v1429
        %v1431 = vpop.f32.mrb[0].mxu0
        %v1432 = vadd.f32 %v200, %v1431
        %1433 = vmatprep.mubr.f32.mxu0 0.0
        %1434 = vmatmul.mubr.f32.gmra.mrb[0].mxu0 %v261
        %v1435 = vpop.f32.mrb[0].mxu0
        %v1436 = vadd.f32 %v205, %v1435
        %v1437 = vpop.f32.mrb[0].mxu0
        %v1438 = vadd.f32 %v205, %v1437
        %1439 = vdwg.mxu0
        %1440 = vmatprep.subr.mxu0 %v322
        %1441 = vmatpush1.msra.mxu0 %v320
        %1442 = vmatprep.subr.mxu0 0.0
        %1443 = vmatpush1.msra.mxu0 0.0
        %1444 = vmatprep.subr.mxu0 0.0
        %1445 = vmatpush1.msra.mxu0 0.0
        %1446 = vmatprep.subr.mxu0 0.0
        %1447 = vmatpush1.msra.mxu0 0.0
        %1448 = vmatprep.subr.mxu0 0.0
        %1449 = vmatpush1.msra.mxu0 0.0
        %1450 = vmatprep.subr.mxu0 0.0
        %1451 = vmatpush1.msra.mxu0 0.0
        %1452 = vmatprep.subr.mxu0 0.0
        %1453 = vmatpush1.msra.mxu0 0.0
        %1454 = vmatprep.subr.mxu0 0.0
        %1455 = vmatpush1.msra.mxu0 0.0
        %1456 = vmatprep.subr.mxu0 0.0
        %1457 = vmatpush1.msra.mxu0 0.0
        %1458 = vmatprep.subr.mxu0 0.0
        %1459 = vmatpush1.msra.mxu0 0.0
        %1460 = vmatprep.subr.mxu0 0.0
        %1461 = vmatpush1.msra.mxu0 0.0
        %1462 = vmatprep.subr.mxu0 0.0
        %1463 = vmatpush1.msra.mxu0 0.0
        %1464 = vmatprep.subr.mxu0 0.0
        %1465 = vmatpush1.msra.mxu0 0.0
        %1466 = vmatprep.subr.mxu0 0.0
        %1467 = vmatpush1.msra.mxu0 0.0
        %1468 = vmatprep.subr.mxu0 0.0
        %1469 = vmatpush1.msra.mxu0 0.0
        %1470 = vmatprep.subr.mxu0 0.0
        %1471 = vmatpush1.msra.mxu0 0.0
        %1472 = vmatprep.subr.mxu0 0.0
        %1473 = vmatpush1.msra.mxu0 0.0
        %1474 = vmatprep.subr.mxu0 0.0
        %1475 = vmatpush1.msra.mxu0 0.0
        %1476 = vmatprep.subr.mxu0 0.0
        %1477 = vmatpush1.msra.mxu0 0.0
        %1478 = vmatprep.subr.mxu0 0.0
        %1479 = vmatpush1.msra.mxu0 0.0
        %1480 = vmatprep.subr.mxu0 0.0
        %1481 = vmatpush1.msra.mxu0 0.0
        %1482 = vmatprep.subr.mxu0 0.0
        %1483 = vmatpush1.msra.mxu0 0.0
        %1484 = vmatprep.subr.mxu0 0.0
        %1485 = vmatpush1.msra.mxu0 0.0
        %1486 = vmatprep.subr.mxu0 0.0
        %1487 = vmatpush1.msra.mxu0 0.0
        %1488 = vmatprep.subr.mxu0 0.0
        %1489 = vmatpush1.msra.mxu0 0.0
        %1490 = vmatprep.subr.mxu0 0.0
        %1491 = vmatpush1.msra.mxu0 0.0
        %1492 = vmatprep.subr.mxu0 0.0
        %1493 = vmatpush1.msra.mxu0 0.0
        %1494 = vmatprep.subr.mxu0 0.0
        %1495 = vmatpush1.msra.mxu0 0.0
        %1496 = vmatprep.subr.mxu0 0.0
        %1497 = vmatpush1.msra.mxu0 0.0
        %1498 = vmatprep.subr.mxu0 0.0
        %1499 = vmatpush1.msra.mxu0 0.0
        %1500 = vmatprep.subr.mxu0 0.0
        %1501 = vmatpush1.msra.mxu0 0.0
        %1502 = vmatprep.subr.mxu0 0.0
        %1503 = vmatpush1.msra.mxu0 0.0
        %1504 = vmatprep.mubr.f32.mxu0 0.0
        %1505 = vmatmul.mubr.f32.gmra.mrb[0].mxu0 %v258
        %v1506 = vpop.f32.mrb[0].mxu0
        %v1507 = vadd.f32 %v200, %v1506
        %v1508 = vpop.f32.mrb[0].mxu0
        %v1509 = vadd.f32 %v200, %v1508
        %1510 = vmatprep.mubr.f32.mxu0 0.0
        %1511 = vmatmul.mubr.f32.gmra.mrb[0].mxu0 %v261
        %v1512 = vpop.f32.mrb[0].mxu0
        %v1513 = vadd.f32 %v205, %v1512
        %v1514 = vpop.f32.mrb[0].mxu0
        %v1515 = vadd.f32 %v205, %v1514
        %1516 = vdwg.mxu0
        %1517 = vmatprep.subr.mxu0 %v326
        %1518 = vmatpush1.msra.mxu0 %v324
        %1519 = vmatprep.subr.mxu0 0.0
        %1520 = vmatpush1.msra.mxu0 0.0
        %1521 = vmatprep.subr.mxu0 0.0
        %1522 = vmatpush1.msra.mxu0 0.0
        %1523 = vmatprep.subr.mxu0 0.0
        %1524 = vmatpush1.msra.mxu0 0.0
        %1525 = vmatprep.subr.mxu0 0.0
        %1526 = vmatpush1.msra.mxu0 0.0
        %1527 = vmatprep.subr.mxu0 0.0
        %1528 = vmatpush1.msra.mxu0 0.0
        %1529 = vmatprep.subr.mxu0 0.0
        %1530 = vmatpush1.msra.mxu0 0.0
        %1531 = vmatprep.subr.mxu0 0.0
        %1532 = vmatpush1.msra.mxu0 0.0
        %1533 = vmatprep.subr.mxu0 0.0
        %1534 = vmatpush1.msra.mxu0 0.0
        %1535 = vmatprep.subr.mxu0 0.0
        %1536 = vmatpush1.msra.mxu0 0.0
        %1537 = vmatprep.subr.mxu0 0.0
        %1538 = vmatpush1.msra.mxu0 0.0
        %1539 = vmatprep.subr.mxu0 0.0
        %1540 = vmatpush1.msra.mxu0 0.0
        %1541 = vmatprep.subr.mxu0 0.0
        %1542 = vmatpush1.msra.mxu0 0.0
        %1543 = vmatprep.subr.mxu0 0.0
        %1544 = vmatpush1.msra.mxu0 0.0
        %1545 = vmatprep.subr.mxu0 0.0
        %1546 = vmatpush1.msra.mxu0 0.0
        %1547 = vmatprep.subr.mxu0 0.0
        %1548 = vmatpush1.msra.mxu0 0.0
        %1549 = vmatprep.subr.mxu0 0.0
        %1550 = vmatpush1.msra.mxu0 0.0
        %1551 = vmatprep.subr.mxu0 0.0
        %1552 = vmatpush1.msra.mxu0 0.0
        %1553 = vmatprep.subr.mxu0 0.0
        %1554 = vmatpush1.msra.mxu0 0.0
        %1555 = vmatprep.subr.mxu0 0.0
        %1556 = vmatpush1.msra.mxu0 0.0
        %1557 = vmatprep.subr.mxu0 0.0
        %1558 = vmatpush1.msra.mxu0 0.0
        %1559 = vmatprep.subr.mxu0 0.0
        %1560 = vmatpush1.msra.mxu0 0.0
        %1561 = vmatprep.subr.mxu0 0.0
        %1562 = vmatpush1.msra.mxu0 0.0
        %1563 = vmatprep.subr.mxu0 0.0
        %1564 = vmatpush1.msra.mxu0 0.0
        %1565 = vmatprep.subr.mxu0 0.0
        %1566 = vmatpush1.msra.mxu0 0.0
        %1567 = vmatprep.subr.mxu0 0.0
        %1568 = vmatpush1.msra.mxu0 0.0
        %1569 = vmatprep.subr.mxu0 0.0
        %1570 = vmatpush1.msra.mxu0 0.0
        %1571 = vmatprep.subr.mxu0 0.0
        %1572 = vmatpush1.msra.mxu0 0.0
        %1573 = vmatprep.subr.mxu0 0.0
        %1574 = vmatpush1.msra.mxu0 0.0
        %1575 = vmatprep.subr.mxu0 0.0
        %1576 = vmatpush1.msra.mxu0 0.0
        %1577 = vmatprep.subr.mxu0 0.0
        %1578 = vmatpush1.msra.mxu0 0.0
        %1579 = vmatprep.subr.mxu0 0.0
        %1580 = vmatpush1.msra.mxu0 0.0
        %1581 = vmatprep.mubr.f32.mxu0 0.0
        %1582 = vmatmul.mubr.f32.gmra.mrb[0].mxu0 %v258
        %v1583 = vpop.f32.mrb[0].mxu0
        %v1584 = vadd.f32 %v200, %v1583
        %v1585 = vpop.f32.mrb[0].mxu0
        %v1586 = vadd.f32 %v200, %v1585
        %1587 = vmatprep.mubr.f32.mxu0 0.0
        %1588 = vmatmul.mubr.f32.gmra.mrb[0].mxu0 %v261
        %v1589 = vpop.f32.mrb[0].mxu0
        %v1590 = vadd.f32 %v205, %v1589
        %v1591 = vpop.f32.mrb[0].mxu0
        %v1592 = vadd.f32 %v205, %v1591
        %1593 = vdwg.mxu0
        %1594 = vmatprep.subr.mxu0 %v330
        %1595 = vmatpush1.msra.mxu0 %v328
        %1596 = vmatprep.subr.mxu0 0.0
        %1597 = vmatpush1.msra.mxu0 0.0
        %1598 = vmatprep.subr.mxu0 0.0
        %1599 = vmatpush1.msra.mxu0 0.0
        %1600 = vmatprep.subr.mxu0 0.0
        %1601 = vmatpush1.msra.mxu0 0.0
        %1602 = vmatprep.subr.mxu0 0.0
        %1603 = vmatpush1.msra.mxu0 0.0
        %1604 = vmatprep.subr.mxu0 0.0
        %1605 = vmatpush1.msra.mxu0 0.0
        %1606 = vmatprep.subr.mxu0 0.0
        %1607 = vmatpush1.msra.mxu0 0.0
        %1608 = vmatprep.subr.mxu0 0.0
        %1609 = vmatpush1.msra.mxu0 0.0
        %1610 = vmatprep.subr.mxu0 0.0
        %1611 = vmatpush1.msra.mxu0 0.0
        %1612 = vmatprep.subr.mxu0 0.0
        %1613 = vmatpush1.msra.mxu0 0.0
        %1614 = vmatprep.subr.mxu0 0.0
        %1615 = vmatpush1.msra.mxu0 0.0
        %1616 = vmatprep.subr.mxu0 0.0
        %1617 = vmatpush1.msra.mxu0 0.0
        %1618 = vmatprep.subr.mxu0 0.0
        %1619 = vmatpush1.msra.mxu0 0.0
        %1620 = vmatprep.subr.mxu0 0.0
        %1621 = vmatpush1.msra.mxu0 0.0
        %1622 = vmatprep.subr.mxu0 0.0
        %1623 = vmatpush1.msra.mxu0 0.0
        %1624 = vmatprep.subr.mxu0 0.0
        %1625 = vmatpush1.msra.mxu0 0.0
        %1626 = vmatprep.subr.mxu0 0.0
        %1627 = vmatpush1.msra.mxu0 0.0
        %1628 = vmatprep.subr.mxu0 0.0
        %1629 = vmatpush1.msra.mxu0 0.0
        %1630 = vmatprep.subr.mxu0 0.0
        %1631 = vmatpush1.msra.mxu0 0.0
        %1632 = vmatprep.subr.mxu0 0.0
        %1633 = vmatpush1.msra.mxu0 0.0
        %1634 = vmatprep.subr.mxu0 0.0
        %1635 = vmatpush1.msra.mxu0 0.0
        %1636 = vmatprep.subr.mxu0 0.0
        %1637 = vmatpush1.msra.mxu0 0.0
        %1638 = vmatprep.subr.mxu0 0.0
        %1639 = vmatpush1.msra.mxu0 0.0
        %1640 = vmatprep.subr.mxu0 0.0
        %1641 = vmatpush1.msra.mxu0 0.0
        %1642 = vmatprep.subr.mxu0 0.0
        %1643 = vmatpush1.msra.mxu0 0.0
        %1644 = vmatprep.subr.mxu0 0.0
        %1645 = vmatpush1.msra.mxu0 0.0
        %1646 = vmatprep.subr.mxu0 0.0
        %1647 = vmatpush1.msra.mxu0 0.0
        %1648 = vmatprep.subr.mxu0 0.0
        %1649 = vmatpush1.msra.mxu0 0.0
        %1650 = vmatprep.subr.mxu0 0.0
        %1651 = vmatpush1.msra.mxu0 0.0
        %1652 = vmatprep.subr.mxu0 0.0
        %1653 = vmatpush1.msra.mxu0 0.0
        %1654 = vmatprep.subr.mxu0 0.0
        %1655 = vmatpush1.msra.mxu0 0.0
        %1656 = vmatprep.subr.mxu0 0.0
        %1657 = vmatpush1.msra.mxu0 0.0
        %1658 = vmatprep.mubr.f32.mxu0 0.0
        %1659 = vmatmul.mubr.f32.gmra.mrb[0].mxu0 %v258
        %v1660 = vpop.f32.mrb[0].mxu0
        %v1661 = vadd.f32 %v200, %v1660
        %v1662 = vpop.f32.mrb[0].mxu0
        %v1663 = vadd.f32 %v200, %v1662
        %1664 = vmatprep.mubr.f32.mxu0 0.0
        %1665 = vmatmul.mubr.f32.gmra.mrb[0].mxu0 %v261
        %v1666 = vpop.f32.mrb[0].mxu0
        %v1667 = vadd.f32 %v205, %v1666
        %v1668 = vpop.f32.mrb[0].mxu0
        %v1669 = vadd.f32 %v205, %v1668
        %1670 = vdwg.mxu0
        %1671 = vmatprep.subr.mxu0 %v334
        %1672 = vmatpush1.msra.mxu0 %v332
        %1673 = vmatprep.subr.mxu0 0.0
        %1674 = vmatpush1.msra.mxu0 0.0
        %1675 = vmatprep.subr.mxu0 0.0
        %1676 = vmatpush1.msra.mxu0 0.0
        %1677 = vmatprep.subr.mxu0 0.0
        %1678 = vmatpush1.msra.mxu0 0.0
        %1679 = vmatprep.subr.mxu0 0.0
        %1680 = vmatpush1.msra.mxu0 0.0
        %1681 = vmatprep.subr.mxu0 0.0
        %1682 = vmatpush1.msra.mxu0 0.0
        %1683 = vmatprep.subr.mxu0 0.0
        %1684 = vmatpush1.msra.mxu0 0.0
        %1685 = vmatprep.subr.mxu0 0.0
        %1686 = vmatpush1.msra.mxu0 0.0
        %1687 = vmatprep.subr.mxu0 0.0
        %1688 = vmatpush1.msra.mxu0 0.0
        %1689 = vmatprep.subr.mxu0 0.0
        %1690 = vmatpush1.msra.mxu0 0.0
        %1691 = vmatprep.subr.mxu0 0.0
        %1692 = vmatpush1.msra.mxu0 0.0
        %1693 = vmatprep.subr.mxu0 0.0
        %1694 = vmatpush1.msra.mxu0 0.0
        %1695 = vmatprep.subr.mxu0 0.0
        %1696 = vmatpush1.msra.mxu0 0.0
        %1697 = vmatprep.subr.mxu0 0.0
        %1698 = vmatpush1.msra.mxu0 0.0
        %1699 = vmatprep.subr.mxu0 0.0
        %1700 = vmatpush1.msra.mxu0 0.0
        %1701 = vmatprep.subr.mxu0 0.0
        %1702 = vmatpush1.msra.mxu0 0.0
        %1703 = vmatprep.subr.mxu0 0.0
        %1704 = vmatpush1.msra.mxu0 0.0
        %1705 = vmatprep.subr.mxu0 0.0
        %1706 = vmatpush1.msra.mxu0 0.0
        %1707 = vmatprep.subr.mxu0 0.0
        %1708 = vmatpush1.msra.mxu0 0.0
        %1709 = vmatprep.subr.mxu0 0.0
        %1710 = vmatpush1.msra.mxu0 0.0
        %1711 = vmatprep.subr.mxu0 0.0
        %1712 = vmatpush1.msra.mxu0 0.0
        %1713 = vmatprep.subr.mxu0 0.0
        %1714 = vmatpush1.msra.mxu0 0.0
        %1715 = vmatprep.subr.mxu0 0.0
        %1716 = vmatpush1.msra.mxu0 0.0
        %1717 = vmatprep.subr.mxu0 0.0
        %1718 = vmatpush1.msra.mxu0 0.0
        %1719 = vmatprep.subr.mxu0 0.0
        %1720 = vmatpush1.msra.mxu0 0.0
        %1721 = vmatprep.subr.mxu0 0.0
        %1722 = vmatpush1.msra.mxu0 0.0
        %1723 = vmatprep.subr.mxu0 0.0
        %1724 = vmatpush1.msra.mxu0 0.0
        %1725 = vmatprep.subr.mxu0 0.0
        %1726 = vmatpush1.msra.mxu0 0.0
        %1727 = vmatprep.subr.mxu0 0.0
        %1728 = vmatpush1.msra.mxu0 0.0
        %1729 = vmatprep.subr.mxu0 0.0
        %1730 = vmatpush1.msra.mxu0 0.0
        %1731 = vmatprep.subr.mxu0 0.0
        %1732 = vmatpush1.msra.mxu0 0.0
        %1733 = vmatprep.subr.mxu0 0.0
        %1734 = vmatpush1.msra.mxu0 0.0
        %1735 = vmatprep.mubr.f32.mxu0 0.0
        %1736 = vmatmul.mubr.f32.gmra.mrb[0].mxu0 %v258
        %v1737 = vpop.f32.mrb[0].mxu0
        %v1738 = vadd.f32 %v200, %v1737
        %v1739 = vpop.f32.mrb[0].mxu0
        %v1740 = vadd.f32 %v200, %v1739
        %1741 = vmatprep.mubr.f32.mxu0 0.0
        %1742 = vmatmul.mubr.f32.gmra.mrb[0].mxu0 %v261
        %v1743 = vpop.f32.mrb[0].mxu0
        %v1744 = vadd.f32 %v205, %v1743
        %v1745 = vpop.f32.mrb[0].mxu0
        %v1746 = vadd.f32 %v205, %v1745
        %1747 = vdwg.mxu0
        %1748 = vmatprep.subr.mxu0 %v338
        %1749 = vmatpush1.msra.mxu0 %v336
        %1750 = vmatprep.subr.mxu0 0.0
        %1751 = vmatpush1.msra.mxu0 0.0
        %1752 = vmatprep.subr.mxu0 0.0
        %1753 = vmatpush1.msra.mxu0 0.0
        %1754 = vmatprep.subr.mxu0 0.0
        %1755 = vmatpush1.msra.mxu0 0.0
        %1756 = vmatprep.subr.mxu0 0.0
        %1757 = vmatpush1.msra.mxu0 0.0
        %1758 = vmatprep.subr.mxu0 0.0
        %1759 = vmatpush1.msra.mxu0 0.0
        %1760 = vmatprep.subr.mxu0 0.0
        %1761 = vmatpush1.msra.mxu0 0.0
        %1762 = vmatprep.subr.mxu0 0.0
        %1763 = vmatpush1.msra.mxu0 0.0
        %1764 = vmatprep.subr.mxu0 0.0
        %1765 = vmatpush1.msra.mxu0 0.0
        %1766 = vmatprep.subr.mxu0 0.0
        %1767 = vmatpush1.msra.mxu0 0.0
        %1768 = vmatprep.subr.mxu0 0.0
        %1769 = vmatpush1.msra.mxu0 0.0
        %1770 = vmatprep.subr.mxu0 0.0
        %1771 = vmatpush1.msra.mxu0 0.0
        %1772 = vmatprep.subr.mxu0 0.0
        %1773 = vmatpush1.msra.mxu0 0.0
        %1774 = vmatprep.subr.mxu0 0.0
        %1775 = vmatpush1.msra.mxu0 0.0
        %1776 = vmatprep.subr.mxu0 0.0
        %1777 = vmatpush1.msra.mxu0 0.0
        %1778 = vmatprep.subr.mxu0 0.0
        %1779 = vmatpush1.msra.mxu0 0.0
        %1780 = vmatprep.subr.mxu0 0.0
        %1781 = vmatpush1.msra.mxu0 0.0
        %1782 = vmatprep.subr.mxu0 0.0
        %1783 = vmatpush1.msra.mxu0 0.0
        %1784 = vmatprep.subr.mxu0 0.0
        %1785 = vmatpush1.msra.mxu0 0.0
        %1786 = vmatprep.subr.mxu0 0.0
        %1787 = vmatpush1.msra.mxu0 0.0
        %1788 = vmatprep.subr.mxu0 0.0
        %1789 = vmatpush1.msra.mxu0 0.0
        %1790 = vmatprep.subr.mxu0 0.0
        %1791 = vmatpush1.msra.mxu0 0.0
        %1792 = vmatprep.subr.mxu0 0.0
        %1793 = vmatpush1.msra.mxu0 0.0
        %1794 = vmatprep.subr.mxu0 0.0
        %1795 = vmatpush1.msra.mxu0 0.0
        %1796 = vmatprep.subr.mxu0 0.0
        %1797 = vmatpush1.msra.mxu0 0.0
        %1798 = vmatprep.subr.mxu0 0.0
        %1799 = vmatpush1.msra.mxu0 0.0
        %1800 = vmatprep.subr.mxu0 0.0
        %1801 = vmatpush1.msra.mxu0 0.0
        %1802 = vmatprep.subr.mxu0 0.0
        %1803 = vmatpush1.msra.mxu0 0.0
        %1804 = vmatprep.subr.mxu0 0.0
        %1805 = vmatpush1.msra.mxu0 0.0
        %1806 = vmatprep.subr.mxu0 0.0
        %1807 = vmatpush1.msra.mxu0 0.0
        %1808 = vmatprep.subr.mxu0 0.0
        %1809 = vmatpush1.msra.mxu0 0.0
        %1810 = vmatprep.subr.mxu0 0.0
        %1811 = vmatpush1.msra.mxu0 0.0
        %1812 = vmatprep.mubr.f32.mxu0 0.0
        %1813 = vmatmul.mubr.f32.gmra.mrb[0].mxu0 %v258
        %v1814 = vpop.f32.mrb[0].mxu0
        %v1815 = vadd.f32 %v200, %v1814
        %v1816 = vpop.f32.mrb[0].mxu0
        %v1817 = vadd.f32 %v200, %v1816
        %1818 = vmatprep.mubr.f32.mxu0 0.0
        %1819 = vmatmul.mubr.f32.gmra.mrb[0].mxu0 %v261
        %v1820 = vpop.f32.mrb[0].mxu0
        %v1821 = vadd.f32 %v205, %v1820
        %v1822 = vpop.f32.mrb[0].mxu0
        %v1823 = vadd.f32 %v205, %v1822
        %1824 = vdwg.mxu0
        %1825 = vmatprep.subr.mxu0 %v342
        %1826 = vmatpush1.msra.mxu0 %v340
        %1827 = vmatprep.subr.mxu0 0.0
        %1828 = vmatpush1.msra.mxu0 0.0
        %1829 = vmatprep.subr.mxu0 0.0
        %1830 = vmatpush1.msra.mxu0 0.0
        %1831 = vmatprep.subr.mxu0 0.0
        %1832 = vmatpush1.msra.mxu0 0.0
        %1833 = vmatprep.subr.mxu0 0.0
        %1834 = vmatpush1.msra.mxu0 0.0
        %1835 = vmatprep.subr.mxu0 0.0
        %1836 = vmatpush1.msra.mxu0 0.0
        %1837 = vmatprep.subr.mxu0 0.0
        %1838 = vmatpush1.msra.mxu0 0.0
        %1839 = vmatprep.subr.mxu0 0.0
        %1840 = vmatpush1.msra.mxu0 0.0
        %1841 = vmatprep.subr.mxu0 0.0
        %1842 = vmatpush1.msra.mxu0 0.0
        %1843 = vmatprep.subr.mxu0 0.0
        %1844 = vmatpush1.msra.mxu0 0.0
        %1845 = vmatprep.subr.mxu0 0.0
        %1846 = vmatpush1.msra.mxu0 0.0
        %1847 = vmatprep.subr.mxu0 0.0
        %1848 = vmatpush1.msra.mxu0 0.0
        %1849 = vmatprep.subr.mxu0 0.0
        %1850 = vmatpush1.msra.mxu0 0.0
        %1851 = vmatprep.subr.mxu0 0.0
        %1852 = vmatpush1.msra.mxu0 0.0
        %1853 = vmatprep.subr.mxu0 0.0
        %1854 = vmatpush1.msra.mxu0 0.0
        %1855 = vmatprep.subr.mxu0 0.0
        %1856 = vmatpush1.msra.mxu0 0.0
        %1857 = vmatprep.subr.mxu0 0.0
        %1858 = vmatpush1.msra.mxu0 0.0
        %1859 = vmatprep.subr.mxu0 0.0
        %1860 = vmatpush1.msra.mxu0 0.0
        %1861 = vmatprep.subr.mxu0 0.0
        %1862 = vmatpush1.msra.mxu0 0.0
        %1863 = vmatprep.subr.mxu0 0.0
        %1864 = vmatpush1.msra.mxu0 0.0
        %1865 = vmatprep.subr.mxu0 0.0
        %1866 = vmatpush1.msra.mxu0 0.0
        %1867 = vmatprep.subr.mxu0 0.0
        %1868 = vmatpush1.msra.mxu0 0.0
        %1869 = vmatprep.subr.mxu0 0.0
        %1870 = vmatpush1.msra.mxu0 0.0
        %1871 = vmatprep.subr.mxu0 0.0
        %1872 = vmatpush1.msra.mxu0 0.0
        %1873 = vmatprep.subr.mxu0 0.0
        %1874 = vmatpush1.msra.mxu0 0.0
        %1875 = vmatprep.subr.mxu0 0.0
        %1876 = vmatpush1.msra.mxu0 0.0
        %1877 = vmatprep.subr.mxu0 0.0
        %1878 = vmatpush1.msra.mxu0 0.0
        %1879 = vmatprep.subr.mxu0 0.0
        %1880 = vmatpush1.msra.mxu0 0.0
        %1881 = vmatprep.subr.mxu0 0.0
        %1882 = vmatpush1.msra.mxu0 0.0
        %1883 = vmatprep.subr.mxu0 0.0
        %1884 = vmatpush1.msra.mxu0 0.0
        %1885 = vmatprep.subr.mxu0 0.0
        %1886 = vmatpush1.msra.mxu0 0.0
        %1887 = vmatprep.subr.mxu0 0.0
        %1888 = vmatpush1.msra.mxu0 0.0
        %1889 = vmatprep.mubr.f32.mxu0 0.0
        %1890 = vmatmul.mubr.f32.gmra.mrb[0].mxu0 %v258
        %v1891 = vpop.f32.mrb[0].mxu0
        %v1892 = vadd.f32 %v200, %v1891
        %v1893 = vpop.f32.mrb[0].mxu0
        %v1894 = vadd.f32 %v200, %v1893
        %1895 = vmatprep.mubr.f32.mxu0 0.0
        %1896 = vmatmul.mubr.f32.gmra.mrb[0].mxu0 %v261
        %v1897 = vpop.f32.mrb[0].mxu0
        %v1898 = vadd.f32 %v205, %v1897
        %v1899 = vpop.f32.mrb[0].mxu0
        %v1900 = vadd.f32 %v205, %v1899
        %1901 = vdwg.mxu0
        %1902 = vmatprep.subr.mxu0 %v346
        %1903 = vmatpush1.msra.mxu0 %v344
        %1904 = vmatprep.subr.mxu0 0.0
        %1905 = vmatpush1.msra.mxu0 0.0
        %1906 = vmatprep.subr.mxu0 0.0
        %1907 = vmatpush1.msra.mxu0 0.0
        %1908 = vmatprep.subr.mxu0 0.0
        %1909 = vmatpush1.msra.mxu0 0.0
        %1910 = vmatprep.subr.mxu0 0.0
        %1911 = vmatpush1.msra.mxu0 0.0
        %1912 = vmatprep.subr.mxu0 0.0
        %1913 = vmatpush1.msra.mxu0 0.0
        %1914 = vmatprep.subr.mxu0 0.0
        %1915 = vmatpush1.msra.mxu0 0.0
        %1916 = vmatprep.subr.mxu0 0.0
        %1917 = vmatpush1.msra.mxu0 0.0
        %1918 = vmatprep.subr.mxu0 0.0
        %1919 = vmatpush1.msra.mxu0 0.0
        %1920 = vmatprep.subr.mxu0 0.0
        %1921 = vmatpush1.msra.mxu0 0.0
        %1922 = vmatprep.subr.mxu0 0.0
        %1923 = vmatpush1.msra.mxu0 0.0
        %1924 = vmatprep.subr.mxu0 0.0
        %1925 = vmatpush1.msra.mxu0 0.0
        %1926 = vmatprep.subr.mxu0 0.0
        %1927 = vmatpush1.msra.mxu0 0.0
        %1928 = vmatprep.subr.mxu0 0.0
        %1929 = vmatpush1.msra.mxu0 0.0
        %1930 = vmatprep.subr.mxu0 0.0
        %1931 = vmatpush1.msra.mxu0 0.0
        %1932 = vmatprep.subr.mxu0 0.0
        %1933 = vmatpush1.msra.mxu0 0.0
        %1934 = vmatprep.subr.mxu0 0.0
        %1935 = vmatpush1.msra.mxu0 0.0
        %1936 = vmatprep.subr.mxu0 0.0
        %1937 = vmatpush1.msra.mxu0 0.0
        %1938 = vmatprep.subr.mxu0 0.0
        %1939 = vmatpush1.msra.mxu0 0.0
        %1940 = vmatprep.subr.mxu0 0.0
        %1941 = vmatpush1.msra.mxu0 0.0
        %1942 = vmatprep.subr.mxu0 0.0
        %1943 = vmatpush1.msra.mxu0 0.0
        %1944 = vmatprep.subr.mxu0 0.0
        %1945 = vmatpush1.msra.mxu0 0.0
        %1946 = vmatprep.subr.mxu0 0.0
        %1947 = vmatpush1.msra.mxu0 0.0
        %1948 = vmatprep.subr.mxu0 0.0
        %1949 = vmatpush1.msra.mxu0 0.0
        %1950 = vmatprep.subr.mxu0 0.0
        %1951 = vmatpush1.msra.mxu0 0.0
        %1952 = vmatprep.subr.mxu0 0.0
        %1953 = vmatpush1.msra.mxu0 0.0
        %1954 = vmatprep.subr.mxu0 0.0
        %1955 = vmatpush1.msra.mxu0 0.0
        %1956 = vmatprep.subr.mxu0 0.0
        %1957 = vmatpush1.msra.mxu0 0.0
        %1958 = vmatprep.subr.mxu0 0.0
        %1959 = vmatpush1.msra.mxu0 0.0
        %1960 = vmatprep.subr.mxu0 0.0
        %1961 = vmatpush1.msra.mxu0 0.0
        %1962 = vmatprep.subr.mxu0 0.0
        %1963 = vmatpush1.msra.mxu0 0.0
        %1964 = vmatprep.subr.mxu0 0.0
        %1965 = vmatpush1.msra.mxu0 0.0
        %1966 = vmatprep.mubr.f32.mxu0 0.0
        %1967 = vmatmul.mubr.f32.gmra.mrb[0].mxu0 %v258
        %v1968 = vpop.f32.mrb[0].mxu0
        %v1969 = vadd.f32 %v200, %v1968
        %v1970 = vpop.f32.mrb[0].mxu0
        %v1971 = vadd.f32 %v200, %v1970
        %1972 = vmatprep.mubr.f32.mxu0 0.0
        %1973 = vmatmul.mubr.f32.gmra.mrb[0].mxu0 %v261
        %v1974 = vpop.f32.mrb[0].mxu0
        %v1975 = vadd.f32 %v205, %v1974
        %v1976 = vpop.f32.mrb[0].mxu0
        %v1977 = vadd.f32 %v205, %v1976
        %1978 = vdwg.mxu0
        %1979 = vmatprep.subr.mxu0 %v350
        %1980 = vmatpush1.msra.mxu0 %v348
        %1981 = vmatprep.subr.mxu0 0.0
        %1982 = vmatpush1.msra.mxu0 0.0
        %1983 = vmatprep.subr.mxu0 0.0
        %1984 = vmatpush1.msra.mxu0 0.0
        %1985 = vmatprep.subr.mxu0 0.0
        %1986 = vmatpush1.msra.mxu0 0.0
        %1987 = vmatprep.subr.mxu0 0.0
        %1988 = vmatpush1.msra.mxu0 0.0
        %1989 = vmatprep.subr.mxu0 0.0
        %1990 = vmatpush1.msra.mxu0 0.0
        %1991 = vmatprep.subr.mxu0 0.0
        %1992 = vmatpush1.msra.mxu0 0.0
        %1993 = vmatprep.subr.mxu0 0.0
        %1994 = vmatpush1.msra.mxu0 0.0
        %1995 = vmatprep.subr.mxu0 0.0
        %1996 = vmatpush1.msra.mxu0 0.0
        %1997 = vmatprep.subr.mxu0 0.0
        %1998 = vmatpush1.msra.mxu0 0.0
        %1999 = vmatprep.subr.mxu0 0.0
        %2000 = vmatpush1.msra.mxu0 0.0
        %2001 = vmatprep.subr.mxu0 0.0
        %2002 = vmatpush1.msra.mxu0 0.0
        %2003 = vmatprep.subr.mxu0 0.0
        %2004 = vmatpush1.msra.mxu0 0.0
        %2005 = vmatprep.subr.mxu0 0.0
        %2006 = vmatpush1.msra.mxu0 0.0
        %2007 = vmatprep.subr.mxu0 0.0
        %2008 = vmatpush1.msra.mxu0 0.0
        %2009 = vmatprep.subr.mxu0 0.0
        %2010 = vmatpush1.msra.mxu0 0.0
        %2011 = vmatprep.subr.mxu0 0.0
        %2012 = vmatpush1.msra.mxu0 0.0
        %2013 = vmatprep.subr.mxu0 0.0
        %2014 = vmatpush1.msra.mxu0 0.0
        %2015 = vmatprep.subr.mxu0 0.0
        %2016 = vmatpush1.msra.mxu0 0.0
        %2017 = vmatprep.subr.mxu0 0.0
        %2018 = vmatpush1.msra.mxu0 0.0
        %2019 = vmatprep.subr.mxu0 0.0
        %2020 = vmatpush1.msra.mxu0 0.0
        %2021 = vmatprep.subr.mxu0 0.0
        %2022 = vmatpush1.msra.mxu0 0.0
        %2023 = vmatprep.subr.mxu0 0.0
        %2024 = vmatpush1.msra.mxu0 0.0
        %2025 = vmatprep.subr.mxu0 0.0
        %2026 = vmatpush1.msra.mxu0 0.0
        %2027 = vmatprep.subr.mxu0 0.0
        %2028 = vmatpush1.msra.mxu0 0.0
        %2029 = vmatprep.subr.mxu0 0.0
        %2030 = vmatpush1.msra.mxu0 0.0
        %2031 = vmatprep.subr.mxu0 0.0
        %2032 = vmatpush1.msra.mxu0 0.0
        %2033 = vmatprep.subr.mxu0 0.0
        %2034 = vmatpush1.msra.mxu0 0.0
        %2035 = vmatprep.subr.mxu0 0.0
        %2036 = vmatpush1.msra.mxu0 0.0
        %2037 = vmatprep.subr.mxu0 0.0
        %2038 = vmatpush1.msra.mxu0 0.0
        %2039 = vmatprep.subr.mxu0 0.0
        %2040 = vmatpush1.msra.mxu0 0.0
        %2041 = vmatprep.subr.mxu0 0.0
        %2042 = vmatpush1.msra.mxu0 0.0
        %2043 = vmatprep.mubr.f32.mxu0 0.0
        %2044 = vmatmul.mubr.f32.gmra.mrb[0].mxu0 %v258
        %v2045 = vpop.f32.mrb[0].mxu0
        %v2046 = vadd.f32 %v200, %v2045
        %v2047 = vpop.f32.mrb[0].mxu0
        %v2048 = vadd.f32 %v200, %v2047
        %2049 = vmatprep.mubr.f32.mxu0 0.0
        %2050 = vmatmul.mubr.f32.gmra.mrb[0].mxu0 %v261
        %v2051 = vpop.f32.mrb[0].mxu0
        %v2052 = vadd.f32 %v205, %v2051
        %v2053 = vpop.f32.mrb[0].mxu0
        %v2054 = vadd.f32 %v205, %v2053
        %2055 = vdwg.mxu0
        %2056 = vmatprep.subr.mxu0 %v354
        %2057 = vmatpush1.msra.mxu0 %v352
        %2058 = vmatprep.subr.mxu0 0.0
        %2059 = vmatpush1.msra.mxu0 0.0
        %2060 = vmatprep.subr.mxu0 0.0
        %2061 = vmatpush1.msra.mxu0 0.0
        %2062 = vmatprep.subr.mxu0 0.0
        %2063 = vmatpush1.msra.mxu0 0.0
        %2064 = vmatprep.subr.mxu0 0.0
        %2065 = vmatpush1.msra.mxu0 0.0
        %2066 = vmatprep.subr.mxu0 0.0
        %2067 = vmatpush1.msra.mxu0 0.0
        %2068 = vmatprep.subr.mxu0 0.0
        %2069 = vmatpush1.msra.mxu0 0.0
        %2070 = vmatprep.subr.mxu0 0.0
        %2071 = vmatpush1.msra.mxu0 0.0
        %2072 = vmatprep.subr.mxu0 0.0
        %2073 = vmatpush1.msra.mxu0 0.0
        %2074 = vmatprep.subr.mxu0 0.0
        %2075 = vmatpush1.msra.mxu0 0.0
        %2076 = vmatprep.subr.mxu0 0.0
        %2077 = vmatpush1.msra.mxu0 0.0
        %2078 = vmatprep.subr.mxu0 0.0
        %2079 = vmatpush1.msra.mxu0 0.0
        %2080 = vmatprep.subr.mxu0 0.0
        %2081 = vmatpush1.msra.mxu0 0.0
        %2082 = vmatprep.subr.mxu0 0.0
        %2083 = vmatpush1.msra.mxu0 0.0
        %2084 = vmatprep.subr.mxu0 0.0
        %2085 = vmatpush1.msra.mxu0 0.0
        %2086 = vmatprep.subr.mxu0 0.0
        %2087 = vmatpush1.msra.mxu0 0.0
        %2088 = vmatprep.subr.mxu0 0.0
        %2089 = vmatpush1.msra.mxu0 0.0
        %2090 = vmatprep.subr.mxu0 0.0
        %2091 = vmatpush1.msra.mxu0 0.0
        %2092 = vmatprep.subr.mxu0 0.0
        %2093 = vmatpush1.msra.mxu0 0.0
        %2094 = vmatprep.subr.mxu0 0.0
        %2095 = vmatpush1.msra.mxu0 0.0
        %2096 = vmatprep.subr.mxu0 0.0
        %2097 = vmatpush1.msra.mxu0 0.0
        %2098 = vmatprep.subr.mxu0 0.0
        %2099 = vmatpush1.msra.mxu0 0.0
        %2100 = vmatprep.subr.mxu0 0.0
        %2101 = vmatpush1.msra.mxu0 0.0
        %2102 = vmatprep.subr.mxu0 0.0
        %2103 = vmatpush1.msra.mxu0 0.0
        %2104 = vmatprep.subr.mxu0 0.0
        %2105 = vmatpush1.msra.mxu0 0.0
        %2106 = vmatprep.subr.mxu0 0.0
        %2107 = vmatpush1.msra.mxu0 0.0
        %2108 = vmatprep.subr.mxu0 0.0
        %2109 = vmatpush1.msra.mxu0 0.0
        %2110 = vmatprep.subr.mxu0 0.0
        %2111 = vmatpush1.msra.mxu0 0.0
        %2112 = vmatprep.subr.mxu0 0.0
        %2113 = vmatpush1.msra.mxu0 0.0
        %2114 = vmatprep.subr.mxu0 0.0
        %2115 = vmatpush1.msra.mxu0 0.0
        %2116 = vmatprep.subr.mxu0 0.0
        %2117 = vmatpush1.msra.mxu0 0.0
        %2118 = vmatprep.subr.mxu0 0.0
        %2119 = vmatpush1.msra.mxu0 0.0
        %2120 = vmatprep.mubr.f32.mxu0 0.0
        %2121 = vmatmul.mubr.f32.gmra.mrb[0].mxu0 %v258
        %v2122 = vpop.f32.mrb[0].mxu0
        %v2123 = vadd.f32 %v200, %v2122
        %v2124 = vpop.f32.mrb[0].mxu0
        %v2125 = vadd.f32 %v200, %v2124
        %2126 = vmatprep.mubr.f32.mxu0 0.0
        %2127 = vmatmul.mubr.f32.gmra.mrb[0].mxu0 %v261
        %v2128 = vpop.f32.mrb[0].mxu0
        %v2129 = vadd.f32 %v205, %v2128
        %v2130 = vpop.f32.mrb[0].mxu0
        %v2131 = vadd.f32 %v205, %v2130
        %2132 = vdwg.mxu0
        %2133 = vmatprep.subr.mxu0 %v358
        %2134 = vmatpush1.msra.mxu0 %v356
        %2135 = vmatprep.subr.mxu0 0.0
        %2136 = vmatpush1.msra.mxu0 0.0
        %2137 = vmatprep.subr.mxu0 0.0
        %2138 = vmatpush1.msra.mxu0 0.0
        %2139 = vmatprep.subr.mxu0 0.0
        %2140 = vmatpush1.msra.mxu0 0.0
        %2141 = vmatprep.subr.mxu0 0.0
        %2142 = vmatpush1.msra.mxu0 0.0
        %2143 = vmatprep.subr.mxu0 0.0
        %2144 = vmatpush1.msra.mxu0 0.0
        %2145 = vmatprep.subr.mxu0 0.0
        %2146 = vmatpush1.msra.mxu0 0.0
        %2147 = vmatprep.subr.mxu0 0.0
        %2148 = vmatpush1.msra.mxu0 0.0
        %2149 = vmatprep.subr.mxu0 0.0
        %2150 = vmatpush1.msra.mxu0 0.0
        %2151 = vmatprep.subr.mxu0 0.0
        %2152 = vmatpush1.msra.mxu0 0.0
        %2153 = vmatprep.subr.mxu0 0.0
        %2154 = vmatpush1.msra.mxu0 0.0
        %2155 = vmatprep.subr.mxu0 0.0
        %2156 = vmatpush1.msra.mxu0 0.0
        %2157 = vmatprep.subr.mxu0 0.0
        %2158 = vmatpush1.msra.mxu0 0.0
        %2159 = vmatprep.subr.mxu0 0.0
        %2160 = vmatpush1.msra.mxu0 0.0
        %2161 = vmatprep.subr.mxu0 0.0
        %2162 = vmatpush1.msra.mxu0 0.0
        %2163 = vmatprep.subr.mxu0 0.0
        %2164 = vmatpush1.msra.mxu0 0.0
        %2165 = vmatprep.subr.mxu0 0.0
        %2166 = vmatpush1.msra.mxu0 0.0
        %2167 = vmatprep.subr.mxu0 0.0
        %2168 = vmatpush1.msra.mxu0 0.0
        %2169 = vmatprep.subr.mxu0 0.0
        %2170 = vmatpush1.msra.mxu0 0.0
        %2171 = vmatprep.subr.mxu0 0.0
        %2172 = vmatpush1.msra.mxu0 0.0
        %2173 = vmatprep.subr.mxu0 0.0
        %2174 = vmatpush1.msra.mxu0 0.0
        %2175 = vmatprep.subr.mxu0 0.0
        %2176 = vmatpush1.msra.mxu0 0.0
        %2177 = vmatprep.subr.mxu0 0.0
        %2178 = vmatpush1.msra.mxu0 0.0
        %2179 = vmatprep.subr.mxu0 0.0
        %2180 = vmatpush1.msra.mxu0 0.0
        %2181 = vmatprep.subr.mxu0 0.0
        %2182 = vmatpush1.msra.mxu0 0.0
        %2183 = vmatprep.subr.mxu0 0.0
        %2184 = vmatpush1.msra.mxu0 0.0
        %2185 = vmatprep.subr.mxu0 0.0
        %2186 = vmatpush1.msra.mxu0 0.0
        %2187 = vmatprep.subr.mxu0 0.0
        %2188 = vmatpush1.msra.mxu0 0.0
        %2189 = vmatprep.subr.mxu0 0.0
        %2190 = vmatpush1.msra.mxu0 0.0
        %2191 = vmatprep.subr.mxu0 0.0
        %2192 = vmatpush1.msra.mxu0 0.0
        %2193 = vmatprep.subr.mxu0 0.0
        %2194 = vmatpush1.msra.mxu0 0.0
        %2195 = vmatprep.subr.mxu0 0.0
        %2196 = vmatpush1.msra.mxu0 0.0
        %2197 = vmatprep.mubr.f32.mxu0 0.0
        %2198 = vmatmul.mubr.f32.gmra.mrb[0].mxu0 %v258
        %v2199 = vpop.f32.mrb[0].mxu0
        %v2200 = vadd.f32 %v200, %v2199
        %v2201 = vpop.f32.mrb[0].mxu0
        %v2202 = vadd.f32 %v200, %v2201
        %2203 = vmatprep.mubr.f32.mxu0 0.0
        %2204 = vmatmul.mubr.f32.gmra.mrb[0].mxu0 %v261
        %v2205 = vpop.f32.mrb[0].mxu0
        %v2206 = vadd.f32 %v205, %v2205
        %v2207 = vpop.f32.mrb[0].mxu0
        %v2208 = vadd.f32 %v205, %v2207
        %2209 = vdwg.mxu0
        %2210 = vmatprep.subr.mxu0 0.0
        %2211 = vmatpush1.msra.mxu0 %v360
        %2212 = vmatprep.subr.mxu0 0.0
        %2213 = vmatpush1.msra.mxu0 0.0
        %2214 = vmatprep.subr.mxu0 0.0
        %2215 = vmatpush1.msra.mxu0 0.0
        %2216 = vmatprep.subr.mxu0 0.0
        %2217 = vmatpush1.msra.mxu0 0.0
        %2218 = vmatprep.subr.mxu0 0.0
        %2219 = vmatpush1.msra.mxu0 0.0
        %2220 = vmatprep.subr.mxu0 0.0
        %2221 = vmatpush1.msra.mxu0 0.0
        %2222 = vmatprep.subr.mxu0 0.0
        %2223 = vmatpush1.msra.mxu0 0.0
        %2224 = vmatprep.subr.mxu0 0.0
        %2225 = vmatpush1.msra.mxu0 0.0
        %2226 = vmatprep.subr.mxu0 0.0
        %2227 = vmatpush1.msra.mxu0 0.0
        %2228 = vmatprep.subr.mxu0 0.0
        %2229 = vmatpush1.msra.mxu0 0.0
        %2230 = vmatprep.subr.mxu0 0.0
        %2231 = vmatpush1.msra.mxu0 0.0
        %2232 = vmatprep.subr.mxu0 0.0
        %2233 = vmatpush1.msra.mxu0 0.0
        %2234 = vmatprep.subr.mxu0 0.0
        %2235 = vmatpush1.msra.mxu0 0.0
        %2236 = vmatprep.subr.mxu0 0.0
        %2237 = vmatpush1.msra.mxu0 0.0
        %2238 = vmatprep.subr.mxu0 0.0
        %2239 = vmatpush1.msra.mxu0 0.0
        %2240 = vmatprep.subr.mxu0 0.0
        %2241 = vmatpush1.msra.mxu0 0.0
        %2242 = vmatprep.subr.mxu0 0.0
        %2243 = vmatpush1.msra.mxu0 0.0
        %2244 = vmatprep.subr.mxu0 0.0
        %2245 = vmatpush1.msra.mxu0 0.0
        %2246 = vmatprep.subr.mxu0 0.0
        %2247 = vmatpush1.msra.mxu0 0.0
        %2248 = vmatprep.subr.mxu0 0.0
        %2249 = vmatpush1.msra.mxu0 0.0
        %2250 = vmatprep.subr.mxu0 0.0
        %2251 = vmatpush1.msra.mxu0 0.0
        %2252 = vmatprep.subr.mxu0 0.0
        %2253 = vmatpush1.msra.mxu0 0.0
        %2254 = vmatprep.subr.mxu0 0.0
        %2255 = vmatpush1.msra.mxu0 0.0
        %2256 = vmatprep.subr.mxu0 0.0
        %2257 = vmatpush1.msra.mxu0 0.0
        %2258 = vmatprep.subr.mxu0 0.0
        %2259 = vmatpush1.msra.mxu0 0.0
        %2260 = vmatprep.subr.mxu0 0.0
        %2261 = vmatpush1.msra.mxu0 0.0
        %2262 = vmatprep.subr.mxu0 0.0
        %2263 = vmatpush1.msra.mxu0 0.0
        %2264 = vmatprep.subr.mxu0 0.0
        %2265 = vmatpush1.msra.mxu0 0.0
        %2266 = vmatprep.subr.mxu0 0.0
        %2267 = vmatpush1.msra.mxu0 0.0
        %2268 = vmatprep.subr.mxu0 0.0
        %2269 = vmatpush1.msra.mxu0 0.0
        %2270 = vmatprep.subr.mxu0 0.0
        %2271 = vmatpush1.msra.mxu0 0.0
        %2272 = vmatprep.subr.mxu0 0.0
        %2273 = vmatpush1.msra.mxu0 0.0
        %2274 = vmatprep.mubr.f32.mxu0 0.0
        %2275 = vmatmul.mubr.f32.gmra.mrb[0].mxu0 %v258
        %v2276 = vpop.f32.mrb[0].mxu0
        %v2277 = vadd.f32 %v200, %v2276
        %v2278 = vpop.f32.mrb[0].mxu0
        %2279 = vmatprep.mubr.f32.mxu0 0.0
        %2280 = vmatmul.mubr.f32.gmra.mrb[0].mxu0 %v261
        %v2281 = vpop.f32.mrb[0].mxu0
        %v2282 = vadd.f32 %v205, %v2281
        %v2283 = vpop.f32.mrb[0].mxu0
        %2284 = vdwg.mxu0
        %v2285 = vmax.f32 %v429, 0.0
        %v2286 = vmax.f32 %v431, 0.0
        %v2287 = vmax.f32 %v506, 0.0
        %v2288 = vmax.f32 %v508, 0.0
        %v2289 = vmax.f32 %v583, 0.0
        %v2290 = vmax.f32 %v585, 0.0
        %v2291 = vmax.f32 %v660, 0.0
        %v2292 = vmax.f32 %v662, 0.0
        %v2293 = vmax.f32 %v737, 0.0
        %v2294 = vmax.f32 %v739, 0.0
        %v2295 = vmax.f32 %v814, 0.0
        %v2296 = vmax.f32 %v816, 0.0
        %v2297 = vmax.f32 %v891, 0.0
        %v2298 = vmax.f32 %v893, 0.0
        %v2299 = vmax.f32 %v968, 0.0
        %v2300 = vmax.f32 %v970, 0.0
        %v2301 = vmax.f32 %v1045, 0.0
        %v2302 = vmax.f32 %v1047, 0.0
        %v2303 = vmax.f32 %v1122, 0.0
        %v2304 = vmax.f32 %v1124, 0.0
        %v2305 = vmax.f32 %v1199, 0.0
        %v2306 = vmax.f32 %v1201, 0.0
        %v2307 = vmax.f32 %v1276, 0.0
        %v2308 = vmax.f32 %v1278, 0.0
        %v2309 = vmax.f32 %v1353, 0.0
        %v2310 = vmax.f32 %v1355, 0.0
        %v2311 = vmax.f32 %v1430, 0.0
        %v2312 = vmax.f32 %v1432, 0.0
        %v2313 = vmax.f32 %v1507, 0.0
        %v2314 = vmax.f32 %v1509, 0.0
        %v2315 = vmax.f32 %v1584, 0.0
        %v2316 = vmax.f32 %v1586, 0.0
        %v2317 = vmax.f32 %v1661, 0.0
        %v2318 = vmax.f32 %v1663, 0.0
        %v2319 = vmax.f32 %v1738, 0.0
        %v2320 = vmax.f32 %v1740, 0.0
        %v2321 = vmax.f32 %v1815, 0.0
        %v2322 = vmax.f32 %v1817, 0.0
        %v2323 = vmax.f32 %v1892, 0.0
        %v2324 = vmax.f32 %v1894, 0.0
        %v2325 = vmax.f32 %v1969, 0.0
        %v2326 = vmax.f32 %v1971, 0.0
        %v2327 = vmax.f32 %v2046, 0.0
        %v2328 = vmax.f32 %v2048, 0.0
        %v2329 = vmax.f32 %v2123, 0.0
        %v2330 = vmax.f32 %v2125, 0.0
        %v2331 = vmax.f32 %v2200, 0.0
        %v2332 = vmax.f32 %v2202, 0.0
        %v2333 = vmax.f32 %v2277, 0.0
        %v2334 = vmax.f32 %v435, 0.0
        %v2335 = vmax.f32 %v437, 0.0
        %v2336 = vmax.f32 %v512, 0.0
        %v2337 = vmax.f32 %v514, 0.0
        %v2338 = vmax.f32 %v589, 0.0
        %v2339 = vmax.f32 %v591, 0.0
        %v2340 = vmax.f32 %v666, 0.0
        %v2341 = vmax.f32 %v668, 0.0
        %v2342 = vmax.f32 %v743, 0.0
        %v2343 = vmax.f32 %v745, 0.0
        %v2344 = vmax.f32 %v820, 0.0
        %v2345 = vmax.f32 %v822, 0.0
        %v2346 = vmax.f32 %v897, 0.0
        %v2347 = vmax.f32 %v899, 0.0
        %v2348 = vmax.f32 %v974, 0.0
        %v2349 = vmax.f32 %v976, 0.0
        %v2350 = vmax.f32 %v1051, 0.0
        %v2351 = vmax.f32 %v1053, 0.0
        %v2352 = vmax.f32 %v1128, 0.0
        %v2353 = vmax.f32 %v1130, 0.0
        %v2354 = vmax.f32 %v1205, 0.0
        %v2355 = vmax.f32 %v1207, 0.0
        %v2356 = vmax.f32 %v1282, 0.0
        %v2357 = vmax.f32 %v1284, 0.0
        %v2358 = vmax.f32 %v1359, 0.0
        %v2359 = vmax.f32 %v1361, 0.0
        %v2360 = vmax.f32 %v1436, 0.0
        %v2361 = vmax.f32 %v1438, 0.0
        %v2362 = vmax.f32 %v1513, 0.0
        %v2363 = vmax.f32 %v1515, 0.0
        %v2364 = vmax.f32 %v1590, 0.0
        %v2365 = vmax.f32 %v1592, 0.0
        %v2366 = vmax.f32 %v1667, 0.0
        %v2367 = vmax.f32 %v1669, 0.0
        %v2368 = vmax.f32 %v1744, 0.0
        %v2369 = vmax.f32 %v1746, 0.0
        %v2370 = vmax.f32 %v1821, 0.0
        %v2371 = vmax.f32 %v1823, 0.0
        %v2372 = vmax.f32 %v1898, 0.0
        %v2373 = vmax.f32 %v1900, 0.0
        %v2374 = vmax.f32 %v1975, 0.0
        %v2375 = vmax.f32 %v1977, 0.0
        %v2376 = vmax.f32 %v2052, 0.0
        %v2377 = vmax.f32 %v2054, 0.0
        %v2378 = vmax.f32 %v2129, 0.0
        %v2379 = vmax.f32 %v2131, 0.0
        %v2380 = vmax.f32 %v2206, 0.0
        %v2381 = vmax.f32 %v2208, 0.0
        %v2382 = vmax.f32 %v2282, 0.0
        %2383 = vst [vmem:[%s160] sm:$0xff] %v2285
        %2384 = vst [vmem:[%s160 + $0x8] sm:$0xff] %v2286
        %2385 = vst [vmem:[%s160 + $0x10] sm:$0xff] %v2287
        %2386 = vst [vmem:[%s160 + $0x18] sm:$0xff] %v2288
        %2387 = vst [vmem:[%s160 + $0x20] sm:$0xff] %v2289
        %2388 = vst [vmem:[%s160 + $0x28] sm:$0xff] %v2290
        %2389 = vst [vmem:[%s160 + $0x30] sm:$0xff] %v2291
        %2390 = vst [vmem:[%s160 + $0x38] sm:$0xff] %v2292
        %2391 = vst [vmem:[%s160 + $0x40] sm:$0xff] %v2293
        %2392 = vst [vmem:[%s160 + $0x48] sm:$0xff] %v2294
        %2393 = vst [vmem:[%s160 + $0x50] sm:$0xff] %v2295
        %2394 = vst [vmem:[%s160 + $0x58] sm:$0xff] %v2296
        %2395 = vst [vmem:[%s160 + $0x60] sm:$0xff] %v2297
        %2396 = vst [vmem:[%s160 + $0x68] sm:$0xff] %v2298
        %2397 = vst [vmem:[%s160 + $0x70] sm:$0xff] %v2299
        %2398 = vst [vmem:[%s160 + $0x78] sm:$0xff] %v2300
        %2399 = vst [vmem:[%s160 + $0x80] sm:$0xff] %v2301
        %2400 = vst [vmem:[%s160 + $0x88] sm:$0xff] %v2302
        %2401 = vst [vmem:[%s160 + $0x90] sm:$0xff] %v2303
        %2402 = vst [vmem:[%s160 + $0x98] sm:$0xff] %v2304
        %2403 = vst [vmem:[%s160 + $0xa0] sm:$0xff] %v2305
        %2404 = vst [vmem:[%s160 + $0xa8] sm:$0xff] %v2306
        %2405 = vst [vmem:[%s160 + $0xb0] sm:$0xff] %v2307
        %2406 = vst [vmem:[%s160 + $0xb8] sm:$0xff] %v2308
        %2407 = vst [vmem:[%s160 + $0xc0] sm:$0xff] %v2309
        %2408 = vst [vmem:[%s160 + $0xc8] sm:$0xff] %v2310
        %2409 = vst [vmem:[%s160 + $0xd0] sm:$0xff] %v2311
        %2410 = vst [vmem:[%s160 + $0xd8] sm:$0xff] %v2312
        %2411 = vst [vmem:[%s160 + $0xe0] sm:$0xff] %v2313
        %2412 = vst [vmem:[%s160 + $0xe8] sm:$0xff] %v2314
        %2413 = vst [vmem:[%s160 + $0xf0] sm:$0xff] %v2315
        %2414 = vst [vmem:[%s160 + $0xf8] sm:$0xff] %v2316
        %2415 = vst [vmem:[%s160 + $0x100] sm:$0xff] %v2317
        %2416 = vst [vmem:[%s160 + $0x108] sm:$0xff] %v2318
        %2417 = vst [vmem:[%s160 + $0x110] sm:$0xff] %v2319
        %2418 = vst [vmem:[%s160 + $0x118] sm:$0xff] %v2320
        %2419 = vst [vmem:[%s160 + $0x120] sm:$0xff] %v2321
        %2420 = vst [vmem:[%s160 + $0x128] sm:$0xff] %v2322
        %2421 = vst [vmem:[%s160 + $0x130] sm:$0xff] %v2323
        %2422 = vst [vmem:[%s160 + $0x138] sm:$0xff] %v2324
        %2423 = vst [vmem:[%s160 + $0x140] sm:$0xff] %v2325
        %2424 = vst [vmem:[%s160 + $0x148] sm:$0xff] %v2326
        %2425 = vst [vmem:[%s160 + $0x150] sm:$0xff] %v2327
        %2426 = vst [vmem:[%s160 + $0x158] sm:$0xff] %v2328
        %2427 = vst [vmem:[%s160 + $0x160] sm:$0xff] %v2329
        %2428 = vst [vmem:[%s160 + $0x168] sm:$0xff] %v2330
        %2429 = vst [vmem:[%s160 + $0x170] sm:$0xff] %v2331
        %2430 = vst [vmem:[%s160 + $0x178] sm:$0xff] %v2332
        %2431 = vst [vmem:[%s160 + $0x180] sm:$0xff] %v2333
        %2432 = vst [vmem:[%s160 + $0x188] sm:$0xf] %v2334
        %2433 = vst [vmem:[%s160 + $0x190] sm:$0xf] %v2335
        %2434 = vst [vmem:[%s160 + $0x198] sm:$0xf] %v2336
        %2435 = vst [vmem:[%s160 + $0x1a0] sm:$0xf] %v2337
        %2436 = vst [vmem:[%s160 + $0x1a8] sm:$0xf] %v2338
        %2437 = vst [vmem:[%s160 + $0x1b0] sm:$0xf] %v2339
        %2438 = vst [vmem:[%s160 + $0x1b8] sm:$0xf] %v2340
        %2439 = vst [vmem:[%s160 + $0x1c0] sm:$0xf] %v2341
        %2440 = vst [vmem:[%s160 + $0x1c8] sm:$0xf] %v2342
        %2441 = vst [vmem:[%s160 + $0x1d0] sm:$0xf] %v2343
        %2442 = vst [vmem:[%s160 + $0x1d8] sm:$0xf] %v2344
        %2443 = vst [vmem:[%s160 + $0x1e0] sm:$0xf] %v2345
        %2444 = vst [vmem:[%s160 + $0x1e8] sm:$0xf] %v2346
        %2445 = vst [vmem:[%s160 + $0x1f0] sm:$0xf] %v2347
        %2446 = vst [vmem:[%s160 + $0x1f8] sm:$0xf] %v2348
        %2447 = vst [vmem:[%s160 + $0x200] sm:$0xf] %v2349
        %2448 = vst [vmem:[%s160 + $0x208] sm:$0xf] %v2350
        %2449 = vst [vmem:[%s160 + $0x210] sm:$0xf] %v2351
        %2450 = vst [vmem:[%s160 + $0x218] sm:$0xf] %v2352
        %2451 = vst [vmem:[%s160 + $0x220] sm:$0xf] %v2353
        %2452 = vst [vmem:[%s160 + $0x228] sm:$0xf] %v2354
        %2453 = vst [vmem:[%s160 + $0x230] sm:$0xf] %v2355
        %2454 = vst [vmem:[%s160 + $0x238] sm:$0xf] %v2356
        %2455 = vst [vmem:[%s160 + $0x240] sm:$0xf] %v2357
        %2456 = vst [vmem:[%s160 + $0x248] sm:$0xf] %v2358
        %2457 = vst [vmem:[%s160 + $0x250] sm:$0xf] %v2359
        %2458 = vst [vmem:[%s160 + $0x258] sm:$0xf] %v2360
        %2459 = vst [vmem:[%s160 + $0x260] sm:$0xf] %v2361
        %2460 = vst [vmem:[%s160 + $0x268] sm:$0xf] %v2362
        %2461 = vst [vmem:[%s160 + $0x270] sm:$0xf] %v2363
        %2462 = vst [vmem:[%s160 + $0x278] sm:$0xf] %v2364
        %2463 = vst [vmem:[%s160 + $0x280] sm:$0xf] %v2365
        %2464 = vst [vmem:[%s160 + $0x288] sm:$0xf] %v2366
        %2465 = vst [vmem:[%s160 + $0x290] sm:$0xf] %v2367
        %2466 = vst [vmem:[%s160 + $0x298] sm:$0xf] %v2368
        %2467 = vst [vmem:[%s160 + $0x2a0] sm:$0xf] %v2369
        %2468 = vst [vmem:[%s160 + $0x2a8] sm:$0xf] %v2370
        %2469 = vst [vmem:[%s160 + $0x2b0] sm:$0xf] %v2371
        %2470 = vst [vmem:[%s160 + $0x2b8] sm:$0xf] %v2372
        %2471 = vst [vmem:[%s160 + $0x2c0] sm:$0xf] %v2373
        %2472 = vst [vmem:[%s160 + $0x2c8] sm:$0xf] %v2374
        %2473 = vst [vmem:[%s160 + $0x2d0] sm:$0xf] %v2375
        %2474 = vst [vmem:[%s160 + $0x2d8] sm:$0xf] %v2376
        %2475 = vst [vmem:[%s160 + $0x2e0] sm:$0xf] %v2377
        %2476 = vst [vmem:[%s160 + $0x2e8] sm:$0xf] %v2378
        %2477 = vst [vmem:[%s160 + $0x2f0] sm:$0xf] %v2379
        %2478 = vst [vmem:[%s160 + $0x2f8] sm:$0xf] %v2380
        %2479 = vst [vmem:[%s160 + $0x300] sm:$0xf] %v2381
        %2480 = vst [vmem:[%s160 + $0x308] sm:$0xf] %v2382
        %s2481 = sand.u32 %s90, 1
        %s2482 = sand.u32 %s90, 1
        %s2483 = smul.addr %s2482, 784
        %s2484 = scalar_lea.vmem [#allocation2], %s2483
        // Predicated region
        $region33: #{decoder_forward.11} parent=31 // pred_check
          %p2485 = pneg %p100
        $region34: #{decoder_forward.11} parent=31 // pred_check_branch
          %2487 = sbr.rel (%p2485) target = $region36
        $region35: #{decoder_forward.11} parent=31 // pred_region
          %s2488 = smul.u32 49, %s14
          %s2489 = smul.addr %s2488, 8
          %s2490 = scalar_lea.vmem %s3, %s2489
          // Predicated region
          $region37: #{decoder_forward.11} parent=35 // pred_check
            _
          $region38: #{decoder_forward.11} parent=35 // pred_check_branch
            %2492 = sbr.rel (0) target = $region40
          $region39: #{decoder_forward.11} parent=35 // pred_region
            // Predicated region
            $region41: #{decoder_forward.11} parent=39 // pred_check
              _
            $region42: #{decoder_forward.11} parent=39 // pred_check_branch
              %2494 = sbr.rel (0) target = $region44
            $region43: #{decoder_forward.11} parent=39 // pred_region
              loop: start=0, step=1, limit=1
              $region45: #{decoder_forward.11} parent=43 // loop_pre_header
                _
              $region46: #{decoder_forward.11} parent=43 // loop_header
                %s2496 = sphi 0, %s2500
                %p2497 = scmp.ge.s32.totalorder %s2496, 1
                %s2501 = sphi %s2484, %s2484
                %s2502 = sphi %s2490, %s2490
              $region47: #{decoder_forward.11} parent=43 // loop_header_branch
                %2499 = sbr.rel (%p2497) target = $region51
              $region48: #{decoder_forward.11} parent=43 // loop_body
                %v2503 = vld [vmem:[%s2501] sm:$0xff]
                %2504 = vst [vmem:[%s2502] sm:$0xff] %v2503
                %v2505 = vld [vmem:[%s2501 + $0x8] sm:$0xff]
                %2506 = vst [vmem:[%s2502 + $0x8] sm:$0xff] %v2505
                %v2507 = vld [vmem:[%s2501 + $0x10] sm:$0xff]
                %2508 = vst [vmem:[%s2502 + $0x10] sm:$0xff] %v2507
                %v2509 = vld [vmem:[%s2501 + $0x18] sm:$0xff]
                %2510 = vst [vmem:[%s2502 + $0x18] sm:$0xff] %v2509
                %v2511 = vld [vmem:[%s2501 + $0x20] sm:$0xff]
                %2512 = vst [vmem:[%s2502 + $0x20] sm:$0xff] %v2511
                %v2513 = vld [vmem:[%s2501 + $0x28] sm:$0xff]
                %2514 = vst [vmem:[%s2502 + $0x28] sm:$0xff] %v2513
                %v2515 = vld [vmem:[%s2501 + $0x30] sm:$0xff]
                %2516 = vst [vmem:[%s2502 + $0x30] sm:$0xff] %v2515
                %v2517 = vld [vmem:[%s2501 + $0x38] sm:$0xff]
                %2518 = vst [vmem:[%s2502 + $0x38] sm:$0xff] %v2517
                %v2519 = vld [vmem:[%s2501 + $0x40] sm:$0xff]
                %2520 = vst [vmem:[%s2502 + $0x40] sm:$0xff] %v2519
                %v2521 = vld [vmem:[%s2501 + $0x48] sm:$0xff]
                %2522 = vst [vmem:[%s2502 + $0x48] sm:$0xff] %v2521
                %v2523 = vld [vmem:[%s2501 + $0x50] sm:$0xff]
                %2524 = vst [vmem:[%s2502 + $0x50] sm:$0xff] %v2523
                %v2525 = vld [vmem:[%s2501 + $0x58] sm:$0xff]
                %2526 = vst [vmem:[%s2502 + $0x58] sm:$0xff] %v2525
                %v2527 = vld [vmem:[%s2501 + $0x60] sm:$0xff]
                %2528 = vst [vmem:[%s2502 + $0x60] sm:$0xff] %v2527
                %v2529 = vld [vmem:[%s2501 + $0x68] sm:$0xff]
                %2530 = vst [vmem:[%s2502 + $0x68] sm:$0xff] %v2529
                %v2531 = vld [vmem:[%s2501 + $0x70] sm:$0xff]
                %2532 = vst [vmem:[%s2502 + $0x70] sm:$0xff] %v2531
                %v2533 = vld [vmem:[%s2501 + $0x78] sm:$0xff]
                %2534 = vst [vmem:[%s2502 + $0x78] sm:$0xff] %v2533
                %v2535 = vld [vmem:[%s2501 + $0x80] sm:$0xff]
                %2536 = vst [vmem:[%s2502 + $0x80] sm:$0xff] %v2535
                %v2537 = vld [vmem:[%s2501 + $0x88] sm:$0xff]
                %2538 = vst [vmem:[%s2502 + $0x88] sm:$0xff] %v2537
                %v2539 = vld [vmem:[%s2501 + $0x90] sm:$0xff]
                %2540 = vst [vmem:[%s2502 + $0x90] sm:$0xff] %v2539
                %v2541 = vld [vmem:[%s2501 + $0x98] sm:$0xff]
                %2542 = vst [vmem:[%s2502 + $0x98] sm:$0xff] %v2541
                %v2543 = vld [vmem:[%s2501 + $0xa0] sm:$0xff]
                %2544 = vst [vmem:[%s2502 + $0xa0] sm:$0xff] %v2543
                %v2545 = vld [vmem:[%s2501 + $0xa8] sm:$0xff]
                %2546 = vst [vmem:[%s2502 + $0xa8] sm:$0xff] %v2545
                %v2547 = vld [vmem:[%s2501 + $0xb0] sm:$0xff]
                %2548 = vst [vmem:[%s2502 + $0xb0] sm:$0xff] %v2547
                %v2549 = vld [vmem:[%s2501 + $0xb8] sm:$0xff]
                %2550 = vst [vmem:[%s2502 + $0xb8] sm:$0xff] %v2549
                %v2551 = vld [vmem:[%s2501 + $0xc0] sm:$0xff]
                %2552 = vst [vmem:[%s2502 + $0xc0] sm:$0xff] %v2551
                %v2553 = vld [vmem:[%s2501 + $0xc8] sm:$0xff]
                %2554 = vst [vmem:[%s2502 + $0xc8] sm:$0xff] %v2553
                %v2555 = vld [vmem:[%s2501 + $0xd0] sm:$0xff]
                %2556 = vst [vmem:[%s2502 + $0xd0] sm:$0xff] %v2555
                %v2557 = vld [vmem:[%s2501 + $0xd8] sm:$0xff]
                %2558 = vst [vmem:[%s2502 + $0xd8] sm:$0xff] %v2557
                %v2559 = vld [vmem:[%s2501 + $0xe0] sm:$0xff]
                %2560 = vst [vmem:[%s2502 + $0xe0] sm:$0xff] %v2559
                %v2561 = vld [vmem:[%s2501 + $0xe8] sm:$0xff]
                %2562 = vst [vmem:[%s2502 + $0xe8] sm:$0xff] %v2561
                %v2563 = vld [vmem:[%s2501 + $0xf0] sm:$0xff]
                %2564 = vst [vmem:[%s2502 + $0xf0] sm:$0xff] %v2563
                %v2565 = vld [vmem:[%s2501 + $0xf8] sm:$0xff]
                %2566 = vst [vmem:[%s2502 + $0xf8] sm:$0xff] %v2565
                %v2567 = vld [vmem:[%s2501 + $0x100] sm:$0xff]
                %2568 = vst [vmem:[%s2502 + $0x100] sm:$0xff] %v2567
                %v2569 = vld [vmem:[%s2501 + $0x108] sm:$0xff]
                %2570 = vst [vmem:[%s2502 + $0x108] sm:$0xff] %v2569
                %v2571 = vld [vmem:[%s2501 + $0x110] sm:$0xff]
                %2572 = vst [vmem:[%s2502 + $0x110] sm:$0xff] %v2571
                %v2573 = vld [vmem:[%s2501 + $0x118] sm:$0xff]
                %2574 = vst [vmem:[%s2502 + $0x118] sm:$0xff] %v2573
                %v2575 = vld [vmem:[%s2501 + $0x120] sm:$0xff]
                %2576 = vst [vmem:[%s2502 + $0x120] sm:$0xff] %v2575
                %v2577 = vld [vmem:[%s2501 + $0x128] sm:$0xff]
                %2578 = vst [vmem:[%s2502 + $0x128] sm:$0xff] %v2577
                %v2579 = vld [vmem:[%s2501 + $0x130] sm:$0xff]
                %2580 = vst [vmem:[%s2502 + $0x130] sm:$0xff] %v2579
                %v2581 = vld [vmem:[%s2501 + $0x138] sm:$0xff]
                %2582 = vst [vmem:[%s2502 + $0x138] sm:$0xff] %v2581
                %v2583 = vld [vmem:[%s2501 + $0x140] sm:$0xff]
                %2584 = vst [vmem:[%s2502 + $0x140] sm:$0xff] %v2583
                %v2585 = vld [vmem:[%s2501 + $0x148] sm:$0xff]
                %2586 = vst [vmem:[%s2502 + $0x148] sm:$0xff] %v2585
                %v2587 = vld [vmem:[%s2501 + $0x150] sm:$0xff]
                %2588 = vst [vmem:[%s2502 + $0x150] sm:$0xff] %v2587
                %v2589 = vld [vmem:[%s2501 + $0x158] sm:$0xff]
                %2590 = vst [vmem:[%s2502 + $0x158] sm:$0xff] %v2589
                %v2591 = vld [vmem:[%s2501 + $0x160] sm:$0xff]
                %2592 = vst [vmem:[%s2502 + $0x160] sm:$0xff] %v2591
                %v2593 = vld [vmem:[%s2501 + $0x168] sm:$0xff]
                %2594 = vst [vmem:[%s2502 + $0x168] sm:$0xff] %v2593
                %v2595 = vld [vmem:[%s2501 + $0x170] sm:$0xff]
                %2596 = vst [vmem:[%s2502 + $0x170] sm:$0xff] %v2595
                %v2597 = vld [vmem:[%s2501 + $0x178] sm:$0xff]
                %2598 = vst [vmem:[%s2502 + $0x178] sm:$0xff] %v2597
                %v2599 = vld [vmem:[%s2501 + $0x180] sm:$0xff]
                %2600 = vst [vmem:[%s2502 + $0x180] sm:$0xff] %v2599
                %v2601 = vld [vmem:[%s2501 + $0x188] sm:$0xff]
                %2602 = vst [vmem:[%s2502 + $0x620] sm:$0xff] %v2601
                %v2603 = vld [vmem:[%s2501 + $0x190] sm:$0xff]
                %2604 = vst [vmem:[%s2502 + $0x628] sm:$0xff] %v2603
                %v2605 = vld [vmem:[%s2501 + $0x198] sm:$0xff]
                %2606 = vst [vmem:[%s2502 + $0x630] sm:$0xff] %v2605
                %v2607 = vld [vmem:[%s2501 + $0x1a0] sm:$0xff]
                %2608 = vst [vmem:[%s2502 + $0x638] sm:$0xff] %v2607
                %v2609 = vld [vmem:[%s2501 + $0x1a8] sm:$0xff]
                %2610 = vst [vmem:[%s2502 + $0x640] sm:$0xff] %v2609
                %v2611 = vld [vmem:[%s2501 + $0x1b0] sm:$0xff]
                %2612 = vst [vmem:[%s2502 + $0x648] sm:$0xff] %v2611
                %v2613 = vld [vmem:[%s2501 + $0x1b8] sm:$0xff]
                %2614 = vst [vmem:[%s2502 + $0x650] sm:$0xff] %v2613
                %v2615 = vld [vmem:[%s2501 + $0x1c0] sm:$0xff]
                %2616 = vst [vmem:[%s2502 + $0x658] sm:$0xff] %v2615
                %v2617 = vld [vmem:[%s2501 + $0x1c8] sm:$0xff]
                %2618 = vst [vmem:[%s2502 + $0x660] sm:$0xff] %v2617
                %v2619 = vld [vmem:[%s2501 + $0x1d0] sm:$0xff]
                %2620 = vst [vmem:[%s2502 + $0x668] sm:$0xff] %v2619
                %v2621 = vld [vmem:[%s2501 + $0x1d8] sm:$0xff]
                %2622 = vst [vmem:[%s2502 + $0x670] sm:$0xff] %v2621
                %v2623 = vld [vmem:[%s2501 + $0x1e0] sm:$0xff]
                %2624 = vst [vmem:[%s2502 + $0x678] sm:$0xff] %v2623
                %v2625 = vld [vmem:[%s2501 + $0x1e8] sm:$0xff]
                %2626 = vst [vmem:[%s2502 + $0x680] sm:$0xff] %v2625
                %v2627 = vld [vmem:[%s2501 + $0x1f0] sm:$0xff]
                %2628 = vst [vmem:[%s2502 + $0x688] sm:$0xff] %v2627
                %v2629 = vld [vmem:[%s2501 + $0x1f8] sm:$0xff]
                %2630 = vst [vmem:[%s2502 + $0x690] sm:$0xff] %v2629
                %v2631 = vld [vmem:[%s2501 + $0x200] sm:$0xff]
                %2632 = vst [vmem:[%s2502 + $0x698] sm:$0xff] %v2631
                %v2633 = vld [vmem:[%s2501 + $0x208] sm:$0xff]
                %2634 = vst [vmem:[%s2502 + $0x6a0] sm:$0xff] %v2633
                %v2635 = vld [vmem:[%s2501 + $0x210] sm:$0xff]
                %2636 = vst [vmem:[%s2502 + $0x6a8] sm:$0xff] %v2635
                %v2637 = vld [vmem:[%s2501 + $0x218] sm:$0xff]
                %2638 = vst [vmem:[%s2502 + $0x6b0] sm:$0xff] %v2637
                %v2639 = vld [vmem:[%s2501 + $0x220] sm:$0xff]
                %2640 = vst [vmem:[%s2502 + $0x6b8] sm:$0xff] %v2639
                %v2641 = vld [vmem:[%s2501 + $0x228] sm:$0xff]
                %2642 = vst [vmem:[%s2502 + $0x6c0] sm:$0xff] %v2641
                %v2643 = vld [vmem:[%s2501 + $0x230] sm:$0xff]
                %2644 = vst [vmem:[%s2502 + $0x6c8] sm:$0xff] %v2643
                %v2645 = vld [vmem:[%s2501 + $0x238] sm:$0xff]
                %2646 = vst [vmem:[%s2502 + $0x6d0] sm:$0xff] %v2645
                %v2647 = vld [vmem:[%s2501 + $0x240] sm:$0xff]
                %2648 = vst [vmem:[%s2502 + $0x6d8] sm:$0xff] %v2647
                %v2649 = vld [vmem:[%s2501 + $0x248] sm:$0xff]
                %2650 = vst [vmem:[%s2502 + $0x6e0] sm:$0xff] %v2649
                %v2651 = vld [vmem:[%s2501 + $0x250] sm:$0xff]
                %2652 = vst [vmem:[%s2502 + $0x6e8] sm:$0xff] %v2651
                %v2653 = vld [vmem:[%s2501 + $0x258] sm:$0xff]
                %2654 = vst [vmem:[%s2502 + $0x6f0] sm:$0xff] %v2653
                %v2655 = vld [vmem:[%s2501 + $0x260] sm:$0xff]
                %2656 = vst [vmem:[%s2502 + $0x6f8] sm:$0xff] %v2655
                %v2657 = vld [vmem:[%s2501 + $0x268] sm:$0xff]
                %2658 = vst [vmem:[%s2502 + $0x700] sm:$0xff] %v2657
                %v2659 = vld [vmem:[%s2501 + $0x270] sm:$0xff]
                %2660 = vst [vmem:[%s2502 + $0x708] sm:$0xff] %v2659
                %v2661 = vld [vmem:[%s2501 + $0x278] sm:$0xff]
                %2662 = vst [vmem:[%s2502 + $0x710] sm:$0xff] %v2661
                %v2663 = vld [vmem:[%s2501 + $0x280] sm:$0xff]
                %2664 = vst [vmem:[%s2502 + $0x718] sm:$0xff] %v2663
                %v2665 = vld [vmem:[%s2501 + $0x288] sm:$0xff]
                %2666 = vst [vmem:[%s2502 + $0x720] sm:$0xff] %v2665
                %v2667 = vld [vmem:[%s2501 + $0x290] sm:$0xff]
                %2668 = vst [vmem:[%s2502 + $0x728] sm:$0xff] %v2667
                %v2669 = vld [vmem:[%s2501 + $0x298] sm:$0xff]
                %2670 = vst [vmem:[%s2502 + $0x730] sm:$0xff] %v2669
                %v2671 = vld [vmem:[%s2501 + $0x2a0] sm:$0xff]
                %2672 = vst [vmem:[%s2502 + $0x738] sm:$0xff] %v2671
                %v2673 = vld [vmem:[%s2501 + $0x2a8] sm:$0xff]
                %2674 = vst [vmem:[%s2502 + $0x740] sm:$0xff] %v2673
                %v2675 = vld [vmem:[%s2501 + $0x2b0] sm:$0xff]
                %2676 = vst [vmem:[%s2502 + $0x748] sm:$0xff] %v2675
                %v2677 = vld [vmem:[%s2501 + $0x2b8] sm:$0xff]
                %2678 = vst [vmem:[%s2502 + $0x750] sm:$0xff] %v2677
                %v2679 = vld [vmem:[%s2501 + $0x2c0] sm:$0xff]
                %2680 = vst [vmem:[%s2502 + $0x758] sm:$0xff] %v2679
                %v2681 = vld [vmem:[%s2501 + $0x2c8] sm:$0xff]
                %2682 = vst [vmem:[%s2502 + $0x760] sm:$0xff] %v2681
                %v2683 = vld [vmem:[%s2501 + $0x2d0] sm:$0xff]
                %2684 = vst [vmem:[%s2502 + $0x768] sm:$0xff] %v2683
                %v2685 = vld [vmem:[%s2501 + $0x2d8] sm:$0xff]
                %2686 = vst [vmem:[%s2502 + $0x770] sm:$0xff] %v2685
                %v2687 = vld [vmem:[%s2501 + $0x2e0] sm:$0xff]
                %2688 = vst [vmem:[%s2502 + $0x778] sm:$0xff] %v2687
                %v2689 = vld [vmem:[%s2501 + $0x2e8] sm:$0xff]
                %2690 = vst [vmem:[%s2502 + $0x780] sm:$0xff] %v2689
                %v2691 = vld [vmem:[%s2501 + $0x2f0] sm:$0xff]
                %2692 = vst [vmem:[%s2502 + $0x788] sm:$0xff] %v2691
                %v2693 = vld [vmem:[%s2501 + $0x2f8] sm:$0xff]
                %2694 = vst [vmem:[%s2502 + $0x790] sm:$0xff] %v2693
                %v2695 = vld [vmem:[%s2501 + $0x300] sm:$0xff]
                %2696 = vst [vmem:[%s2502 + $0x798] sm:$0xff] %v2695
                %v2697 = vld [vmem:[%s2501 + $0x308] sm:$0xff]
                %2698 = vst [vmem:[%s2502 + $0x7a0] sm:$0xff] %v2697
              $region49: #{decoder_forward.11} parent=43 // loop_footer
                %s2500 = sadd.s32 1, %s2496
              $region50: #{decoder_forward.11} parent=43 // loop_footer_branch
                %2495 = sbr.rel target = $region46
              $region51: #{decoder_forward.11} parent=43 // loop_exit
                _
            $region44: #{decoder_forward.11} parent=39 // pred_fallthru
              _
            // Predicated region
            $region52: #{decoder_forward.11} parent=39 // pred_check
              _
            $region53: #{decoder_forward.11} parent=39 // pred_check_branch
              %2700 = sbr.rel target = $region55
            $region54: #{decoder_forward.11} parent=39 // pred_region
              _
            $region55: #{decoder_forward.11} parent=39 // pred_fallthru
              _
          $region40: #{decoder_forward.11} parent=35 // pred_fallthru
            _
          %2701 = vnop
        $region36: #{decoder_forward.11} parent=31 // pred_fallthru
          _
      $region32: #{decoder_forward.11} parent=5 // pred_fallthru
        _
      %p2702 = scmp.le.s32.totalorder 2, %s9
      // Predicated region
      $region56: #{decoder_forward.11} parent=5 // pred_check
        %p2703 = pneg %p2702
      $region57: #{decoder_forward.11} parent=5 // pred_check_branch
        %2705 = sbr.rel (%p2703) target = $region59
      $region58: #{decoder_forward.11} parent=5 // pred_region
        %s2706 = ssub.s32 %s9, 2
        // Predicated region
        $region60: #{decoder_forward.11} parent=58 // pred_check
          %p2707 = pneg %p106
        $region61: #{decoder_forward.11} parent=58 // pred_check_branch
          %2709 = sbr.rel (%p2707) target = $region63
        $region62: #{decoder_forward.11} parent=58 // pred_region
          %s2710 = sand.u32 %s91, 1
          %s2711 = sand.u32 %s91, 1
          %s2712 = smul.addr %s2711, 784
          %s2713 = scalar_lea.vmem [#allocation2], %s2712
        $region63: #{decoder_forward.11} parent=58 // pred_fallthru
          _
      $region59: #{decoder_forward.11} parent=5 // pred_fallthru
        _
    $region6: #{decoder_forward.11} parent=1 // loop_footer
      %s13 = sadd.s32 1, %s9
    $region7: #{decoder_forward.11} parent=1 // loop_footer_branch
      %8 = sbr.rel target = $region3
    $region8: #{decoder_forward.11} parent=1 // loop_exit
      _

</llo_original>
